<compile_context>
chip_gen: v7x
topology: tpu7x:2x2x1
jax: 0.10.0
libtpu: 0.0.40
codegen_flags: <defaults>
</compile_context>

<pallas_src>
import jax
import jax.numpy as jnp
from jax.experimental import pallas as pl
from jax.experimental.pallas import tpu as pltpu


def cnn_server_kernel(patches_ref, wc_ref, bc_ref, v_ref, bfc_ref, out_ref):
    """One TILE_N-sample slab of the CNN_server forward pass.

    patches_ref: (4, 49, TN, 400) im2col patches (pool pos, spatial pos, batch, k)
    wc_ref:      (400, 32)        conv weight, im2col layout (ci*25+kh*5+kw, co)
    bc_ref:      (1, 32)          conv bias
    v_ref:       (49, 32, 10)     fc weight, v[s, c, o] = W_fc[o, c*49 + s]
    bfc_ref:     (1, 10)          fc bias
    out_ref:     (TN, 10)
    """
    p4, s49, tn, kdim = patches_ref.shape
    cout = wc_ref.shape[1]

    # --- Conv2d(16->32, k=5, pad=2) as ONE fused MXU matmul over all rows. ---
    # (4, 49, TN, 400) -> (4*49*TN, 400): leading-dim merge into an 8-aligned
    # sublane dim with the lane dim unchanged -> layout-preserving.
    lhs = patches_ref[...].reshape(p4 * s49 * tn, kdim)
    y = jnp.dot(lhs, wc_ref[...], preferred_element_type=jnp.float32)
    y = y.reshape(p4, s49 * tn, cout)                     # (4, 49*TN, 32)

    # --- MaxPool2d(2): max over the 4 pool-window positions (leading axis). ---
    pooled = jnp.max(y, axis=0)                           # (49*TN, 32)
    # Bias + ReLU once, after the max (both monotone => identical result).
    pooled = jnp.maximum(pooled + bc_ref[...], 0.0)

    # --- Linear(32*7*7 -> 10): single batched contraction over s then sum. ---
    pooled = pooled.reshape(s49, tn, cout)                # (49, TN, 32)
    t = jnp.einsum("snc,sco->sno", pooled, v_ref[...],
                   preferred_element_type=jnp.float32)    # (49, TN, 10)
    out_ref[...] = t.sum(axis=0) + bfc_ref[...]


def cnn_server_forward(x, w_conv, b_conv, w_fc, b_fc, *, tile_n=8):
    """x: (N, 16, 14, 14) NCHW float32. Returns (N, 10) float32."""
    n = x.shape[0]
    cin, cout, kk = 16, 32, 5
    h = w = 14
    kdim = cin * kk * kk                                  # 400

    n_pad = ((n + tile_n - 1) // tile_n) * tile_n         # sublane-aligned batch
    x = x.astype(jnp.float32)
    if n_pad != n:
        x = jnp.pad(x, ((0, n_pad - n), (0, 0), (0, 0), (0, 0)))
    xp = jnp.pad(x, ((0, 0), (0, 0), (2, 2), (2, 2)))     # (Np, 16, 18, 18)

    # im2col: patch[n, ci*25 + kh*5 + kw, h, w] = xp[n, ci, h+kh, w+kw]
    cols = []
    for kh in range(kk):
        for kw in range(kk):
            cols.append(xp[:, :, kh:kh + h, kw:kw + w])   # (Np, 16, 14, 14)
    patch = jnp.stack(cols, axis=2)                       # (Np, 16, 25, 14, 14)
    patch = patch.reshape(n_pad, kdim, h, w)              # (Np, 400, 14, 14)
    # split spatial into (pooled pos, window offset) and reorder batch-blockable
    patch = patch.reshape(n_pad, kdim, 7, 2, 7, 2)        # (n, k, ph, dh, pw, dw)
    patch = patch.transpose(3, 5, 2, 4, 0, 1)             # (dh, dw, ph, pw, n, k)
    patches = patch.reshape(4, 49, n_pad, kdim)           # (p, s, n, k)
    # TODO(synk): the 25x im2col inflation keeps this kernel HBM-bound; moving
    # im2col in-kernel (or casting patches to bf16) would cut the dominant HBM
    # traffic but is left out here to keep exact f32 numerics.

    # conv weight (Cout, Cin, 5, 5) -> (ci*25+kh*5+kw, co)
    w_im2col = w_conv.transpose(1, 2, 3, 0).reshape(kdim, cout).astype(jnp.float32)
    bc2 = b_conv.reshape(1, cout).astype(jnp.float32)

    # fc weight (10, 32*7*7) with PyTorch flatten order c*49 + s -> v[s, c, o]
    v = w_fc.reshape(10, cout, 49).transpose(2, 1, 0).astype(jnp.float32)
    bfc2 = b_fc.reshape(1, 10).astype(jnp.float32)

    grid = (n_pad // tile_n,)
    grid_spec = pltpu.PrefetchScalarGridSpec(
        num_scalar_prefetch=0,
        grid=grid,
        in_specs=[
            pl.BlockSpec((4, 49, tile_n, kdim), lambda b: (0, 0, b, 0)),
            pl.BlockSpec((kdim, cout), lambda b: (0, 0)),
            pl.BlockSpec((1, cout), lambda b: (0, 0)),
            pl.BlockSpec((49, cout, 10), lambda b: (0, 0, 0)),
            pl.BlockSpec((1, 10), lambda b: (0, 0)),
        ],
        out_specs=pl.BlockSpec((tile_n, 10), lambda b: (b, 0)),
    )

    out = pl.pallas_call(
        cnn_server_kernel,
        out_shape=jax.ShapeDtypeStruct((n_pad, 10), jnp.float32),
        grid_spec=grid_spec,
        compiler_params=pltpu.CompilerParams(
            dimension_semantics=("parallel",),      # v7x: shard batch across TCs
            vmem_limit_bytes=32 * 1024 * 1024,      # v5e default (16 MiB) is tight
        ),
    )(patches, w_im2col, bc2, v, bfc2)
    return out[:n]


def cnn_server_reference(x, w_conv, b_conv, w_fc, b_fc):
    """Pure-JAX reference mirroring the PyTorch forward exactly (NCHW)."""
    n = x.shape[0]
    y = jax.lax.conv_general_dilated(
        x, w_conv, window_strides=(1, 1), padding=((2, 2), (2, 2)),
        dimension_numbers=("NCHW", "OIHW", "NCHW"))
    y = jnp.maximum(y + b_conv[None, :, None, None], 0.0)
    y = y.reshape(n, 32, 7, 2, 7, 2).max(axis=(3, 5))      # MaxPool2d(2)
    flat = y.reshape(n, 32 * 7 * 7)                        # PyTorch .view order
    return flat @ w_fc.T + b_fc[None, :]


if __name__ == "__main__":
    key = jax.random.PRNGKey(0)
    kx, kw1, kb1, kw2, kb2, kx2 = jax.random.split(key, 6)

    # Deterministic synthetic parameters (shapes from the module __init__).
    w_conv = jax.random.normal(kw1, (32, 16, 5, 5), jnp.float32) * 0.05
    b_conv = jax.random.normal(kb1, (32,), jnp.float32) * 0.1
    w_fc = jax.random.normal(kw2, (10, 32 * 7 * 7), jnp.float32) * 0.02
    b_fc = jax.random.normal(kb2, (10,), jnp.float32) * 0.1

    # Input: batch=2, channels=16, spatial=14x14 (required by Linear(32*7*7, 10)).
    x = jax.random.normal(kx, (2, 16, 14, 14), jnp.float32)

    out = jax.block_until_ready(cnn_server_forward(x, w_conv, b_conv, w_fc, b_fc))
    ref = jax.block_until_ready(cnn_server_reference(x, w_conv, b_conv, w_fc, b_fc))
    assert out.shape == (2, 10)
    assert jnp.allclose(out, ref, rtol=1e-3, atol=1e-3), (out, ref)

    # Second check: batch spanning multiple grid steps (N=10 -> pad to 16, grid=(2,)).
    x2 = jax.random.normal(kx2, (10, 16, 14, 14), jnp.float32)
    out2 = jax.block_until_ready(cnn_server_forward(x2, w_conv, b_conv, w_fc, b_fc))
    ref2 = jax.block_until_ready(cnn_server_reference(x2, w_conv, b_conv, w_fc, b_fc))
    assert out2.shape == (10, 10)
    assert jnp.allclose(out2, ref2, rtol=1e-3, atol=1e-3), (out2, ref2)

    print("KERNEL_OK")
</pallas_src>

<mosaic_0001>
module attributes {stable_mosaic.version = 11 : i64} {
  func.func @cnn_server_kernel(%arg0: i32, %arg1: memref<4x49x8x400xf32, #tpu.memory_space<vmem>>, %arg2: memref<400x32xf32, #tpu.memory_space<vmem>>, %arg3: memref<1x32xf32, #tpu.memory_space<vmem>>, %arg4: memref<49x32x10xf32, #tpu.memory_space<vmem>>, %arg5: memref<1x10xf32, #tpu.memory_space<vmem>>, %arg6: memref<8x10xf32, #tpu.memory_space<vmem>>) attributes {dimension_semantics = [#tpu.dimension_semantics<parallel>], iteration_bounds = array<i64: 1>, scalar_prefetch = 0 : i64, scratch_operands = 0 : i64, tpu.core_type = #tpu.core_type<tc>, window_params = [{transform_indices = @transform_0, window_bounds = array<i64: 4, 49, 8, 400>}, {pipeline_mode = #tpu.pipeline_mode<synchronous>, transform_indices = @transform_1, window_bounds = array<i64: 400, 32>}, {pipeline_mode = #tpu.pipeline_mode<synchronous>, transform_indices = @transform_2, window_bounds = array<i64: 1, 32>}, {pipeline_mode = #tpu.pipeline_mode<synchronous>, transform_indices = @transform_3, window_bounds = array<i64: 49, 32, 10>}, {pipeline_mode = #tpu.pipeline_mode<synchronous>, transform_indices = @transform_4, window_bounds = array<i64: 1, 10>}, {transform_indices = @transform_5, window_bounds = array<i64: 8, 10>}]} {
    %c0 = arith.constant 0 : index
    %c0_0 = arith.constant 0 : index
    %c0_1 = arith.constant 0 : index
    %c0_2 = arith.constant 0 : index
    %0 = vector.load %arg1[%c0, %c0_0, %c0_1, %c0_2] : memref<4x49x8x400xf32, #tpu.memory_space<vmem>>, vector<4x49x8x400xf32>
    %1 = vector.shape_cast %0 : vector<4x49x8x400xf32> to vector<1568x400xf32>
    %c0_3 = arith.constant 0 : index
    %c0_4 = arith.constant 0 : index
    %2 = vector.load %arg2[%c0_3, %c0_4] : memref<400x32xf32, #tpu.memory_space<vmem>>, vector<400x32xf32>
    %cst = arith.constant dense<0.000000e+00> : vector<1568x32xf32>
    %3 = tpu.matmul %1, %2, %cst {dimension_numbers = #tpu.dot_dimension_numbers<[1], [0], [0], [1], [0, 0, 1, 1], [], []>} : vector<1568x400xf32>, vector<400x32xf32>, vector<1568x32xf32> -> vector<1568x32xf32>
    %4 = vector.shape_cast %3 : vector<1568x32xf32> to vector<4x392x32xf32>
    %cst_5 = arith.constant dense<0xFF800000> : vector<392x32xf32>
    %5 = vector.multi_reduction <maximumf>, %4, %cst_5 [0] : vector<4x392x32xf32> to vector<392x32xf32>
    %c0_6 = arith.constant 0 : index
    %c0_7 = arith.constant 0 : index
    %6 = vector.load %arg3[%c0_6, %c0_7] : memref<1x32xf32, #tpu.memory_space<vmem>>, vector<1x32xf32>
    %7 = vector.broadcast %6 : vector<1x32xf32> to vector<392x32xf32>
    %8 = arith.addf %5, %7 : vector<392x32xf32>
    %cst_8 = arith.constant 0.000000e+00 : f32
    %9 = vector.broadcast %cst_8 : f32 to vector<392x32xf32>
    %10 = arith.maximumf %8, %9 : vector<392x32xf32>
    %11 = vector.shape_cast %10 : vector<392x32xf32> to vector<49x8x32xf32>
    %c0_9 = arith.constant 0 : index
    %c0_10 = arith.constant 0 : index
    %c0_11 = arith.constant 0 : index
    %12 = vector.load %arg4[%c0_9, %c0_10, %c0_11] : memref<49x32x10xf32, #tpu.memory_space<vmem>>, vector<49x32x10xf32>
    "tpu.trace_start"() <{level = 10 : i32, message = "snc,sco->sno"}> : () -> ()
    %cst_12 = arith.constant dense<0.000000e+00> : vector<49x8x10xf32>
    %13 = tpu.matmul %11, %12, %cst_12 {dimension_numbers = #tpu.dot_dimension_numbers<[2], [1], [1], [2], [0, 0, 0, 1, 1, 2], [0], [0]>} : vector<49x8x32xf32>, vector<49x32x10xf32>, vector<49x8x10xf32> -> vector<49x8x10xf32>
    "tpu.trace_stop"() : () -> ()
    %cst_13 = arith.constant dense<0.000000e+00> : vector<8x10xf32>
    %14 = vector.multi_reduction <add>, %13, %cst_13 [0] : vector<49x8x10xf32> to vector<8x10xf32>
    %c0_14 = arith.constant 0 : index
    %c0_15 = arith.constant 0 : index
    %15 = vector.load %arg5[%c0_14, %c0_15] : memref<1x10xf32, #tpu.memory_space<vmem>>, vector<1x10xf32>
    %16 = vector.broadcast %15 : vector<1x10xf32> to vector<8x10xf32>
    %17 = arith.addf %14, %16 : vector<8x10xf32>
    %c0_16 = arith.constant 0 : index
    %c0_17 = arith.constant 0 : index
    %18 = vector.load %arg6[%c0_16, %c0_17] : memref<8x10xf32, #tpu.memory_space<vmem>>, vector<8x10xf32>
    tpu.vector_store %arg6[%c0_16, %c0_17], %17 {strides = array<i32>} : memref<8x10xf32, #tpu.memory_space<vmem>>, vector<8x10xf32>,
    return
  }
  func.func @transform_0(%arg0: i32) -> (i32, i32, i32, i32) {
    %c0_i32 = arith.constant 0 : i32
    %c0_i32_0 = arith.constant 0 : i32
    %c0_i32_1 = arith.constant 0 : i32
    %c0_i32_2 = arith.constant 0 : i32
    return %c0_i32, %c0_i32_0, %arg0, %c0_i32_1 : i32, i32, i32, i32
  }
  func.func @transform_1(%arg0: i32) -> (i32, i32) {
    %c0_i32 = arith.constant 0 : i32
    %c0_i32_0 = arith.constant 0 : i32
    %c0_i32_1 = arith.constant 0 : i32
    return %c0_i32, %c0_i32_0 : i32, i32
  }
  func.func @transform_2(%arg0: i32) -> (i32, i32) {
    %c0_i32 = arith.constant 0 : i32
    %c0_i32_0 = arith.constant 0 : i32
    %c0_i32_1 = arith.constant 0 : i32
    return %c0_i32, %c0_i32_0 : i32, i32
  }
  func.func @transform_3(%arg0: i32) -> (i32, i32, i32) {
    %c0_i32 = arith.constant 0 : i32
    %c0_i32_0 = arith.constant 0 : i32
    %c0_i32_1 = arith.constant 0 : i32
    %c0_i32_2 = arith.constant 0 : i32
    return %c0_i32, %c0_i32_0, %c0_i32_1 : i32, i32, i32
  }
  func.func @transform_4(%arg0: i32) -> (i32, i32) {
    %c0_i32 = arith.constant 0 : i32
    %c0_i32_0 = arith.constant 0 : i32
    %c0_i32_1 = arith.constant 0 : i32
    return %c0_i32, %c0_i32_0 : i32, i32
  }
  func.func @transform_5(%arg0: i32) -> (i32, i32) {
    %c0_i32 = arith.constant 0 : i32
    %c0_i32_0 = arith.constant 0 : i32
    return %arg0, %c0_i32 : i32, i32
  }
}

</mosaic_0001>

<llo_original>
// kernel: tpu_custom_call.1
$region0: #{tpu_custom_call.1}
  #allocation0 [shape = 'u32[]', space=smem, size = 0x4, offset = 0x4, fixed_abs, tag = 'smem constant byte address 0x4 - core index']
  #allocation1 [shape = 'u32[144,128]{1,0:T(1,128)}', space=vmem, size = 0x12000, scoped, tag = 'internal scratch']
  %s0 = inlined_call_operand.hbm [shape: f32[4,49,8,400], index: 0, kind: input, shape index: {}]
  %s1 = inlined_call_operand.vmem [shape: f32[400,32], index: 1, kind: input, shape index: {}]
  %s2 = inlined_call_operand.hbm [shape: f32[1,32], index: 2, kind: input, shape index: {}]
  %s3 = inlined_call_operand.vmem [shape: f32[49,32,10], index: 3, kind: input, shape index: {}]
  %s4 = inlined_call_operand.hbm [shape: f32[1,10], index: 4, kind: input, shape index: {}]
  %s5 = inlined_call_operand.hbm [shape: f32[8,10], index: 5, kind: output, shape index: {}]
  %s6 = sld [smem:[#allocation0]]
  $region42: #{tpu_custom_call.1} parent=0
    _
  %s8 = ssub.s32 1, %s6
  %s9 = scalar_select 0, %s8, %s6
  $region1: #{tpu_custom_call.1} parent=0
    #allocation2 [shape = 'u8[3211264]{0}', space=vmem, size = 0x310000, scoped, tag = 'input window, operand 0, single buffered']
    #allocation3 [shape = 's32[1]{0}', space=sflag, size = 0x4, scoped, tag = 'scoped memory for tpu_custom_call.1']
    #allocation4 [shape = 's32[1]{0}', space=sflag, size = 0x4, scoped, tag = 'scoped memory for tpu_custom_call.1']
    #allocation5 [shape = 'u8[512]{0}', space=vmem, size = 0x400, scoped, tag = 'input window, operand 2, single buffered']
    #allocation6 [shape = 's32[1]{0}', space=sflag, size = 0x4, scoped, tag = 'scoped memory for tpu_custom_call.1']
    #allocation7 [shape = 'u8[512]{0}', space=vmem, size = 0x400, scoped, tag = 'input window, operand 4, single buffered']
    #allocation8 [shape = 'u8[4096]{0}', space=vmem, size = 0x1000, scoped, tag = 'output window, operand 0, single buffered']
    %10 = vsyncpa [#allocation3], 0
    %11 = vsyncpa [#allocation6], 0
    %12 = vsyncpa [#allocation4], 0
    // Predicated region
    $region2: #{tpu_custom_call.1} parent=1 // pred_check
      _
    $region3: #{tpu_custom_call.1} parent=1 // pred_check_branch
      %14 = sbr.rel (0) target = $region5
    $region4: #{tpu_custom_call.1} parent=1 // pred_region
      %s16 = ssub.s32 100352, 100352
      %17 = vsyncadd [#allocation3], %s16
      %s18 = sshll.u32 [#allocation2], 4
      %s19 = int_to_ptr.vmem [resolvable:$true] %s18
      %24 = dma.hbm_to_vmem [thread:$0]  %s0, 100352, %s19, [#allocation3], 512, 512, 32
    $region5: #{tpu_custom_call.1} parent=1 // pred_fallthru
      _
    // Predicated region
    $region6: #{tpu_custom_call.1} parent=1 // pred_check
      _
    $region7: #{tpu_custom_call.1} parent=1 // pred_check_branch
      %26 = sbr.rel (0) target = $region9
    $region8: #{tpu_custom_call.1} parent=1 // pred_region
      _
    $region9: #{tpu_custom_call.1} parent=1 // pred_fallthru
      _
    // Predicated region
    $region10: #{tpu_custom_call.1} parent=1 // pred_check
      _
    $region11: #{tpu_custom_call.1} parent=1 // pred_check_branch
      %28 = sbr.rel (0) target = $region13
    $region12: #{tpu_custom_call.1} parent=1 // pred_region
      %s30 = ssub.s32 16, 16
      %31 = vsyncadd [#allocation6], %s30
      %s33 = sshll.u32 [#allocation5], 4
      %s34 = int_to_ptr.vmem [resolvable:$true] %s33
      %36 = dma.hbm_to_vmem [thread:$0]  %s2, 16, %s34, [#allocation6]
    $region13: #{tpu_custom_call.1} parent=1 // pred_fallthru
      _
    // Predicated region
    $region14: #{tpu_custom_call.1} parent=1 // pred_check
      _
    $region15: #{tpu_custom_call.1} parent=1 // pred_check_branch
      %38 = sbr.rel (0) target = $region17
    $region16: #{tpu_custom_call.1} parent=1 // pred_region
      _
    $region17: #{tpu_custom_call.1} parent=1 // pred_fallthru
      _
    // Predicated region
    $region18: #{tpu_custom_call.1} parent=1 // pred_check
      _
    $region19: #{tpu_custom_call.1} parent=1 // pred_check_branch
      %40 = sbr.rel (0) target = $region21
    $region20: #{tpu_custom_call.1} parent=1 // pred_region
      %s42 = ssub.s32 16, 16
      %43 = vsyncadd [#allocation6], %s42
      %s45 = sshll.u32 [#allocation7], 4
      %s46 = int_to_ptr.vmem [resolvable:$true] %s45
      %48 = dma.hbm_to_vmem [thread:$0]  %s4, 16, %s46, [#allocation6]
    $region21: #{tpu_custom_call.1} parent=1 // pred_fallthru
      _
    // Predicated region
    $region22: #{tpu_custom_call.1} parent=1 // pred_check
      _
    $region23: #{tpu_custom_call.1} parent=1 // pred_check_branch
      %50 = sbr.rel (0) target = $region25
    $region24: #{tpu_custom_call.1} parent=1 // pred_region
      %51 = dma.done [#allocation3], 100352
    $region25: #{tpu_custom_call.1} parent=1 // pred_fallthru
      _
    // Predicated region
    $region26: #{tpu_custom_call.1} parent=1 // pred_check
      _
    $region27: #{tpu_custom_call.1} parent=1 // pred_check_branch
      %53 = sbr.rel (0) target = $region29
    $region28: #{tpu_custom_call.1} parent=1 // pred_region
      %54 = dma.done [#allocation6], 16
    $region29: #{tpu_custom_call.1} parent=1 // pred_fallthru
      _
    // Predicated region
    $region30: #{tpu_custom_call.1} parent=1 // pred_check
      _
    $region31: #{tpu_custom_call.1} parent=1 // pred_check_branch
      %56 = sbr.rel (0) target = $region33
    $region32: #{tpu_custom_call.1} parent=1 // pred_region
      %57 = dma.done [#allocation6], 16
    $region33: #{tpu_custom_call.1} parent=1 // pred_fallthru
      _
    %v58 = vld [vmem:[#allocation2] sm:$0xff]
    %v59 = vld [vmem:[#allocation2 + $0x8] sm:$0xff]
    %v60 = vld [vmem:[#allocation2 + $0x10] sm:$0xff]
    %v61 = vld [vmem:[#allocation2 + $0x18] sm:$0xff]
    %v62 = vld [vmem:[#allocation2 + $0x20] sm:$0xff]
    %v63 = vld [vmem:[#allocation2 + $0x28] sm:$0xff]
    %v64 = vld [vmem:[#allocation2 + $0x30] sm:$0xff]
    %v65 = vld [vmem:[#allocation2 + $0x38] sm:$0xff]
    %v66 = vld [vmem:[#allocation2 + $0x40] sm:$0xff]
    %v67 = vld [vmem:[#allocation2 + $0x48] sm:$0xff]
    %v68 = vld [vmem:[#allocation2 + $0x50] sm:$0xff]
    %v69 = vld [vmem:[#allocation2 + $0x58] sm:$0xff]
    %v70 = vld [vmem:[#allocation2 + $0x60] sm:$0xff]
    %v71 = vld [vmem:[#allocation2 + $0x68] sm:$0xff]
    %v72 = vld [vmem:[#allocation2 + $0x70] sm:$0xff]
    %v73 = vld [vmem:[#allocation2 + $0x78] sm:$0xff]
    %v74 = vld [vmem:[#allocation2 + $0x80] sm:$0xff]
    %v75 = vld [vmem:[#allocation2 + $0x88] sm:$0xff]
    %v76 = vld [vmem:[#allocation2 + $0x90] sm:$0xff]
    %v77 = vld [vmem:[#allocation2 + $0x98] sm:$0xff]
    %v78 = vld [vmem:[#allocation2 + $0xa0] sm:$0xff]
    %v79 = vld [vmem:[#allocation2 + $0xa8] sm:$0xff]
    %v80 = vld [vmem:[#allocation2 + $0xb0] sm:$0xff]
    %v81 = vld [vmem:[#allocation2 + $0xb8] sm:$0xff]
    %v82 = vld [vmem:[#allocation2 + $0xc0] sm:$0xff]
    %v83 = vld [vmem:[#allocation2 + $0xc8] sm:$0xff]
    %v84 = vld [vmem:[#allocation2 + $0xd0] sm:$0xff]
    %v85 = vld [vmem:[#allocation2 + $0xd8] sm:$0xff]
    %v86 = vld [vmem:[#allocation2 + $0xe0] sm:$0xff]
    %v87 = vld [vmem:[#allocation2 + $0xe8] sm:$0xff]
    %v88 = vld [vmem:[#allocation2 + $0xf0] sm:$0xff]
    %v89 = vld [vmem:[#allocation2 + $0xf8] sm:$0xff]
    %v90 = vld [vmem:[#allocation2 + $0x100] sm:$0xff]
    %v91 = vld [vmem:[#allocation2 + $0x108] sm:$0xff]
    %v92 = vld [vmem:[#allocation2 + $0x110] sm:$0xff]
    %v93 = vld [vmem:[#allocation2 + $0x118] sm:$0xff]
    %v94 = vld [vmem:[#allocation2 + $0x120] sm:$0xff]
    %v95 = vld [vmem:[#allocation2 + $0x128] sm:$0xff]
    %v96 = vld [vmem:[#allocation2 + $0x130] sm:$0xff]
    %v97 = vld [vmem:[#allocation2 + $0x138] sm:$0xff]
    %v98 = vld [vmem:[#allocation2 + $0x140] sm:$0xff]
    %v99 = vld [vmem:[#allocation2 + $0x148] sm:$0xff]
    %v100 = vld [vmem:[#allocation2 + $0x150] sm:$0xff]
    %v101 = vld [vmem:[#allocation2 + $0x158] sm:$0xff]
    %v102 = vld [vmem:[#allocation2 + $0x160] sm:$0xff]
    %v103 = vld [vmem:[#allocation2 + $0x168] sm:$0xff]
    %v104 = vld [vmem:[#allocation2 + $0x170] sm:$0xff]
    %v105 = vld [vmem:[#allocation2 + $0x178] sm:$0xff]
    %v106 = vld [vmem:[#allocation2 + $0x180] sm:$0xff]
    %v107 = vld [vmem:[#allocation2 + $0x188] sm:$0xff]
    %v108 = vld [vmem:[#allocation2 + $0x190] sm:$0xff]
    %v109 = vld [vmem:[#allocation2 + $0x198] sm:$0xff]
    %v110 = vld [vmem:[#allocation2 + $0x1a0] sm:$0xff]
    %v111 = vld [vmem:[#allocation2 + $0x1a8] sm:$0xff]
    %v112 = vld [vmem:[#allocation2 + $0x1b0] sm:$0xff]
    %v113 = vld [vmem:[#allocation2 + $0x1b8] sm:$0xff]
    %v114 = vld [vmem:[#allocation2 + $0x1c0] sm:$0xff]
    %v115 = vld [vmem:[#allocation2 + $0x1c8] sm:$0xff]
    %v116 = vld [vmem:[#allocation2 + $0x1d0] sm:$0xff]
    %v117 = vld [vmem:[#allocation2 + $0x1d8] sm:$0xff]
    %v118 = vld [vmem:[#allocation2 + $0x1e0] sm:$0xff]
    %v119 = vld [vmem:[#allocation2 + $0x1e8] sm:$0xff]
    %v120 = vld [vmem:[#allocation2 + $0x1f0] sm:$0xff]
    %v121 = vld [vmem:[#allocation2 + $0x1f8] sm:$0xff]
    %v122 = vld [vmem:[#allocation2 + $0x200] sm:$0xff]
    %v123 = vld [vmem:[#allocation2 + $0x208] sm:$0xff]
    %v124 = vld [vmem:[#allocation2 + $0x210] sm:$0xff]
    %v125 = vld [vmem:[#allocation2 + $0x218] sm:$0xff]
    %v126 = vld [vmem:[#allocation2 + $0x220] sm:$0xff]
    %v127 = vld [vmem:[#allocation2 + $0x228] sm:$0xff]
    %v128 = vld [vmem:[#allocation2 + $0x230] sm:$0xff]
    %v129 = vld [vmem:[#allocation2 + $0x238] sm:$0xff]
    %v130 = vld [vmem:[#allocation2 + $0x240] sm:$0xff]
    %v131 = vld [vmem:[#allocation2 + $0x248] sm:$0xff]
    %v132 = vld [vmem:[#allocation2 + $0x250] sm:$0xff]
    %v133 = vld [vmem:[#allocation2 + $0x258] sm:$0xff]
    %v134 = vld [vmem:[#allocation2 + $0x260] sm:$0xff]
    %v135 = vld [vmem:[#allocation2 + $0x268] sm:$0xff]
    %v136 = vld [vmem:[#allocation2 + $0x270] sm:$0xff]
    %v137 = vld [vmem:[#allocation2 + $0x278] sm:$0xff]
    %v138 = vld [vmem:[#allocation2 + $0x280] sm:$0xff]
    %v139 = vld [vmem:[#allocation2 + $0x288] sm:$0xff]
    %v140 = vld [vmem:[#allocation2 + $0x290] sm:$0xff]
    %v141 = vld [vmem:[#allocation2 + $0x298] sm:$0xff]
    %v142 = vld [vmem:[#allocation2 + $0x2a0] sm:$0xff]
    %v143 = vld [vmem:[#allocation2 + $0x2a8] sm:$0xff]
    %v144 = vld [vmem:[#allocation2 + $0x2b0] sm:$0xff]
    %v145 = vld [vmem:[#allocation2 + $0x2b8] sm:$0xff]
    %v146 = vld [vmem:[#allocation2 + $0x2c0] sm:$0xff]
    %v147 = vld [vmem:[#allocation2 + $0x2c8] sm:$0xff]
    %v148 = vld [vmem:[#allocation2 + $0x2d0] sm:$0xff]
    %v149 = vld [vmem:[#allocation2 + $0x2d8] sm:$0xff]
    %v150 = vld [vmem:[#allocation2 + $0x2e0] sm:$0xff]
    %v151 = vld [vmem:[#allocation2 + $0x2e8] sm:$0xff]
    %v152 = vld [vmem:[#allocation2 + $0x2f0] sm:$0xff]
    %v153 = vld [vmem:[#allocation2 + $0x2f8] sm:$0xff]
    %v154 = vld [vmem:[#allocation2 + $0x300] sm:$0xff]
    %v155 = vld [vmem:[#allocation2 + $0x308] sm:$0xff]
    %v156 = vld [vmem:[#allocation2 + $0x310] sm:$0xff]
    %v157 = vld [vmem:[#allocation2 + $0x318] sm:$0xff]
    %v158 = vld [vmem:[#allocation2 + $0x320] sm:$0xff]
    %v159 = vld [vmem:[#allocation2 + $0x328] sm:$0xff]
    %v160 = vld [vmem:[#allocation2 + $0x330] sm:$0xff]
    %v161 = vld [vmem:[#allocation2 + $0x338] sm:$0xff]
    %v162 = vld [vmem:[#allocation2 + $0x340] sm:$0xff]
    %v163 = vld [vmem:[#allocation2 + $0x348] sm:$0xff]
    %v164 = vld [vmem:[#allocation2 + $0x350] sm:$0xff]
    %v165 = vld [vmem:[#allocation2 + $0x358] sm:$0xff]
    %v166 = vld [vmem:[#allocation2 + $0x360] sm:$0xff]
    %v167 = vld [vmem:[#allocation2 + $0x368] sm:$0xff]
    %v168 = vld [vmem:[#allocation2 + $0x370] sm:$0xff]
    %v169 = vld [vmem:[#allocation2 + $0x378] sm:$0xff]
    %v170 = vld [vmem:[#allocation2 + $0x380] sm:$0xff]
    %v171 = vld [vmem:[#allocation2 + $0x388] sm:$0xff]
    %v172 = vld [vmem:[#allocation2 + $0x390] sm:$0xff]
    %v173 = vld [vmem:[#allocation2 + $0x398] sm:$0xff]
    %v174 = vld [vmem:[#allocation2 + $0x3a0] sm:$0xff]
    %v175 = vld [vmem:[#allocation2 + $0x3a8] sm:$0xff]
    %v176 = vld [vmem:[#allocation2 + $0x3b0] sm:$0xff]
    %v177 = vld [vmem:[#allocation2 + $0x3b8] sm:$0xff]
    %v178 = vld [vmem:[#allocation2 + $0x3c0] sm:$0xff]
    %v179 = vld [vmem:[#allocation2 + $0x3c8] sm:$0xff]
    %v180 = vld [vmem:[#allocation2 + $0x3d0] sm:$0xff]
    %v181 = vld [vmem:[#allocation2 + $0x3d8] sm:$0xff]
    %v182 = vld [vmem:[#allocation2 + $0x3e0] sm:$0xff]
    %v183 = vld [vmem:[#allocation2 + $0x3e8] sm:$0xff]
    %v184 = vld [vmem:[#allocation2 + $0x3f0] sm:$0xff]
    %v185 = vld [vmem:[#allocation2 + $0x3f8] sm:$0xff]
    %v186 = vld [vmem:[#allocation2 + $0x400] sm:$0xff]
    %v187 = vld [vmem:[#allocation2 + $0x408] sm:$0xff]
    %v188 = vld [vmem:[#allocation2 + $0x410] sm:$0xff]
    %v189 = vld [vmem:[#allocation2 + $0x418] sm:$0xff]
    %v190 = vld [vmem:[#allocation2 + $0x420] sm:$0xff]
    %v191 = vld [vmem:[#allocation2 + $0x428] sm:$0xff]
    %v192 = vld [vmem:[#allocation2 + $0x430] sm:$0xff]
    %v193 = vld [vmem:[#allocation2 + $0x438] sm:$0xff]
    %v194 = vld [vmem:[#allocation2 + $0x440] sm:$0xff]
    %v195 = vld [vmem:[#allocation2 + $0x448] sm:$0xff]
    %v196 = vld [vmem:[#allocation2 + $0x450] sm:$0xff]
    %v197 = vld [vmem:[#allocation2 + $0x458] sm:$0xff]
    %v198 = vld [vmem:[#allocation2 + $0x460] sm:$0xff]
    %v199 = vld [vmem:[#allocation2 + $0x468] sm:$0xff]
    %v200 = vld [vmem:[#allocation2 + $0x470] sm:$0xff]
    %v201 = vld [vmem:[#allocation2 + $0x478] sm:$0xff]
    %v202 = vld [vmem:[#allocation2 + $0x480] sm:$0xff]
    %v203 = vld [vmem:[#allocation2 + $0x488] sm:$0xff]
    %v204 = vld [vmem:[#allocation2 + $0x490] sm:$0xff]
    %v205 = vld [vmem:[#allocation2 + $0x498] sm:$0xff]
    %v206 = vld [vmem:[#allocation2 + $0x4a0] sm:$0xff]
    %v207 = vld [vmem:[#allocation2 + $0x4a8] sm:$0xff]
    %v208 = vld [vmem:[#allocation2 + $0x4b0] sm:$0xff]
    %v209 = vld [vmem:[#allocation2 + $0x4b8] sm:$0xff]
    %v210 = vld [vmem:[#allocation2 + $0x4c0] sm:$0xff]
    %v211 = vld [vmem:[#allocation2 + $0x4c8] sm:$0xff]
    %v212 = vld [vmem:[#allocation2 + $0x4d0] sm:$0xff]
    %v213 = vld [vmem:[#allocation2 + $0x4d8] sm:$0xff]
    %v214 = vld [vmem:[#allocation2 + $0x4e0] sm:$0xff]
    %v215 = vld [vmem:[#allocation2 + $0x4e8] sm:$0xff]
    %v216 = vld [vmem:[#allocation2 + $0x4f0] sm:$0xff]
    %v217 = vld [vmem:[#allocation2 + $0x4f8] sm:$0xff]
    %v218 = vld [vmem:[#allocation2 + $0x500] sm:$0xff]
    %v219 = vld [vmem:[#allocation2 + $0x508] sm:$0xff]
    %v220 = vld [vmem:[#allocation2 + $0x510] sm:$0xff]
    %v221 = vld [vmem:[#allocation2 + $0x518] sm:$0xff]
    %v222 = vld [vmem:[#allocation2 + $0x520] sm:$0xff]
    %v223 = vld [vmem:[#allocation2 + $0x528] sm:$0xff]
    %v224 = vld [vmem:[#allocation2 + $0x530] sm:$0xff]
    %v225 = vld [vmem:[#allocation2 + $0x538] sm:$0xff]
    %v226 = vld [vmem:[#allocation2 + $0x540] sm:$0xff]
    %v227 = vld [vmem:[#allocation2 + $0x548] sm:$0xff]
    %v228 = vld [vmem:[#allocation2 + $0x550] sm:$0xff]
    %v229 = vld [vmem:[#allocation2 + $0x558] sm:$0xff]
    %v230 = vld [vmem:[#allocation2 + $0x560] sm:$0xff]
    %v231 = vld [vmem:[#allocation2 + $0x568] sm:$0xff]
    %v232 = vld [vmem:[#allocation2 + $0x570] sm:$0xff]
    %v233 = vld [vmem:[#allocation2 + $0x578] sm:$0xff]
    %v234 = vld [vmem:[#allocation2 + $0x580] sm:$0xff]
    %v235 = vld [vmem:[#allocation2 + $0x588] sm:$0xff]
    %v236 = vld [vmem:[#allocation2 + $0x590] sm:$0xff]
    %v237 = vld [vmem:[#allocation2 + $0x598] sm:$0xff]
    %v238 = vld [vmem:[#allocation2 + $0x5a0] sm:$0xff]
    %v239 = vld [vmem:[#allocation2 + $0x5a8] sm:$0xff]
    %v240 = vld [vmem:[#allocation2 + $0x5b0] sm:$0xff]
    %v241 = vld [vmem:[#allocation2 + $0x5b8] sm:$0xff]
    %v242 = vld [vmem:[#allocation2 + $0x5c0] sm:$0xff]
    %v243 = vld [vmem:[#allocation2 + $0x5c8] sm:$0xff]
    %v244 = vld [vmem:[#allocation2 + $0x5d0] sm:$0xff]
    %v245 = vld [vmem:[#allocation2 + $0x5d8] sm:$0xff]
    %v246 = vld [vmem:[#allocation2 + $0x5e0] sm:$0xff]
    %v247 = vld [vmem:[#allocation2 + $0x5e8] sm:$0xff]
    %v248 = vld [vmem:[#allocation2 + $0x5f0] sm:$0xff]
    %v249 = vld [vmem:[#allocation2 + $0x5f8] sm:$0xff]
    %v250 = vld [vmem:[#allocation2 + $0x600] sm:$0xff]
    %v251 = vld [vmem:[#allocation2 + $0x608] sm:$0xff]
    %v252 = vld [vmem:[#allocation2 + $0x610] sm:$0xff]
    %v253 = vld [vmem:[#allocation2 + $0x618] sm:$0xff]
    %v254 = vld [vmem:[#allocation2 + $0x620] sm:$0xff]
    %v255 = vld [vmem:[#allocation2 + $0x628] sm:$0xff]
    %v256 = vld [vmem:[#allocation2 + $0x630] sm:$0xff]
    %v257 = vld [vmem:[#allocation2 + $0x638] sm:$0xff]
    %v258 = vld [vmem:[#allocation2 + $0x640] sm:$0xff]
    %v259 = vld [vmem:[#allocation2 + $0x648] sm:$0xff]
    %v260 = vld [vmem:[#allocation2 + $0x650] sm:$0xff]
    %v261 = vld [vmem:[#allocation2 + $0x658] sm:$0xff]
    %v262 = vld [vmem:[#allocation2 + $0x660] sm:$0xff]
    %v263 = vld [vmem:[#allocation2 + $0x668] sm:$0xff]
    %v264 = vld [vmem:[#allocation2 + $0x670] sm:$0xff]
    %v265 = vld [vmem:[#allocation2 + $0x678] sm:$0xff]
    %v266 = vld [vmem:[#allocation2 + $0x680] sm:$0xff]
    %v267 = vld [vmem:[#allocation2 + $0x688] sm:$0xff]
    %v268 = vld [vmem:[#allocation2 + $0x690] sm:$0xff]
    %v269 = vld [vmem:[#allocation2 + $0x698] sm:$0xff]
    %v270 = vld [vmem:[#allocation2 + $0x6a0] sm:$0xff]
    %v271 = vld [vmem:[#allocation2 + $0x6a8] sm:$0xff]
    %v272 = vld [vmem:[#allocation2 + $0x6b0] sm:$0xff]
    %v273 = vld [vmem:[#allocation2 + $0x6b8] sm:$0xff]
    %v274 = vld [vmem:[#allocation2 + $0x6c0] sm:$0xff]
    %v275 = vld [vmem:[#allocation2 + $0x6c8] sm:$0xff]
    %v276 = vld [vmem:[#allocation2 + $0x6d0] sm:$0xff]
    %v277 = vld [vmem:[#allocation2 + $0x6d8] sm:$0xff]
    %v278 = vld [vmem:[#allocation2 + $0x6e0] sm:$0xff]
    %v279 = vld [vmem:[#allocation2 + $0x6e8] sm:$0xff]
    %v280 = vld [vmem:[#allocation2 + $0x6f0] sm:$0xff]
    %v281 = vld [vmem:[#allocation2 + $0x6f8] sm:$0xff]
    %v282 = vld [vmem:[#allocation2 + $0x700] sm:$0xff]
    %v283 = vld [vmem:[#allocation2 + $0x708] sm:$0xff]
    %v284 = vld [vmem:[#allocation2 + $0x710] sm:$0xff]
    %v285 = vld [vmem:[#allocation2 + $0x718] sm:$0xff]
    %v286 = vld [vmem:[#allocation2 + $0x720] sm:$0xff]
    %v287 = vld [vmem:[#allocation2 + $0x728] sm:$0xff]
    %v288 = vld [vmem:[#allocation2 + $0x730] sm:$0xff]
    %v289 = vld [vmem:[#allocation2 + $0x738] sm:$0xff]
    %v290 = vld [vmem:[#allocation2 + $0x740] sm:$0xff]
    %v291 = vld [vmem:[#allocation2 + $0x748] sm:$0xff]
    %v292 = vld [vmem:[#allocation2 + $0x750] sm:$0xff]
    %v293 = vld [vmem:[#allocation2 + $0x758] sm:$0xff]
    %v294 = vld [vmem:[#allocation2 + $0x760] sm:$0xff]
    %v295 = vld [vmem:[#allocation2 + $0x768] sm:$0xff]
    %v296 = vld [vmem:[#allocation2 + $0x770] sm:$0xff]
    %v297 = vld [vmem:[#allocation2 + $0x778] sm:$0xff]
    %v298 = vld [vmem:[#allocation2 + $0x780] sm:$0xff]
    %v299 = vld [vmem:[#allocation2 + $0x788] sm:$0xff]
    %v300 = vld [vmem:[#allocation2 + $0x790] sm:$0xff]
    %v301 = vld [vmem:[#allocation2 + $0x798] sm:$0xff]
    %v302 = vld [vmem:[#allocation2 + $0x7a0] sm:$0xff]
    %v303 = vld [vmem:[#allocation2 + $0x7a8] sm:$0xff]
    %v304 = vld [vmem:[#allocation2 + $0x7b0] sm:$0xff]
    %v305 = vld [vmem:[#allocation2 + $0x7b8] sm:$0xff]
    %v306 = vld [vmem:[#allocation2 + $0x7c0] sm:$0xff]
    %v307 = vld [vmem:[#allocation2 + $0x7c8] sm:$0xff]
    %v308 = vld [vmem:[#allocation2 + $0x7d0] sm:$0xff]
    %v309 = vld [vmem:[#allocation2 + $0x7d8] sm:$0xff]
    %v310 = vld [vmem:[#allocation2 + $0x7e0] sm:$0xff]
    %v311 = vld [vmem:[#allocation2 + $0x7e8] sm:$0xff]
    %v312 = vld [vmem:[#allocation2 + $0x7f0] sm:$0xff]
    %v313 = vld [vmem:[#allocation2 + $0x7f8] sm:$0xff]
    %v314 = vld [vmem:[#allocation2 + $0x800] sm:$0xff]
    %v315 = vld [vmem:[#allocation2 + $0x808] sm:$0xff]
    %v316 = vld [vmem:[#allocation2 + $0x810] sm:$0xff]
    %v317 = vld [vmem:[#allocation2 + $0x818] sm:$0xff]
    %v318 = vld [vmem:[#allocation2 + $0x820] sm:$0xff]
    %v319 = vld [vmem:[#allocation2 + $0x828] sm:$0xff]
    %v320 = vld [vmem:[#allocation2 + $0x830] sm:$0xff]
    %v321 = vld [vmem:[#allocation2 + $0x838] sm:$0xff]
    %v322 = vld [vmem:[#allocation2 + $0x840] sm:$0xff]
    %v323 = vld [vmem:[#allocation2 + $0x848] sm:$0xff]
    %v324 = vld [vmem:[#allocation2 + $0x850] sm:$0xff]
    %v325 = vld [vmem:[#allocation2 + $0x858] sm:$0xff]
    %v326 = vld [vmem:[#allocation2 + $0x860] sm:$0xff]
    %v327 = vld [vmem:[#allocation2 + $0x868] sm:$0xff]
    %v328 = vld [vmem:[#allocation2 + $0x870] sm:$0xff]
    %v329 = vld [vmem:[#allocation2 + $0x878] sm:$0xff]
    %v330 = vld [vmem:[#allocation2 + $0x880] sm:$0xff]
    %v331 = vld [vmem:[#allocation2 + $0x888] sm:$0xff]
    %v332 = vld [vmem:[#allocation2 + $0x890] sm:$0xff]
    %v333 = vld [vmem:[#allocation2 + $0x898] sm:$0xff]
    %v334 = vld [vmem:[#allocation2 + $0x8a0] sm:$0xff]
    %v335 = vld [vmem:[#allocation2 + $0x8a8] sm:$0xff]
    %v336 = vld [vmem:[#allocation2 + $0x8b0] sm:$0xff]
    %v337 = vld [vmem:[#allocation2 + $0x8b8] sm:$0xff]
    %v338 = vld [vmem:[#allocation2 + $0x8c0] sm:$0xff]
    %v339 = vld [vmem:[#allocation2 + $0x8c8] sm:$0xff]
    %v340 = vld [vmem:[#allocation2 + $0x8d0] sm:$0xff]
    %v341 = vld [vmem:[#allocation2 + $0x8d8] sm:$0xff]
    %v342 = vld [vmem:[#allocation2 + $0x8e0] sm:$0xff]
    %v343 = vld [vmem:[#allocation2 + $0x8e8] sm:$0xff]
    %v344 = vld [vmem:[#allocation2 + $0x8f0] sm:$0xff]
    %v345 = vld [vmem:[#allocation2 + $0x8f8] sm:$0xff]
    %v346 = vld [vmem:[#allocation2 + $0x900] sm:$0xff]
    %v347 = vld [vmem:[#allocation2 + $0x908] sm:$0xff]
    %v348 = vld [vmem:[#allocation2 + $0x910] sm:$0xff]
    %v349 = vld [vmem:[#allocation2 + $0x918] sm:$0xff]
    %v350 = vld [vmem:[#allocation2 + $0x920] sm:$0xff]
    %v351 = vld [vmem:[#allocation2 + $0x928] sm:$0xff]
    %v352 = vld [vmem:[#allocation2 + $0x930] sm:$0xff]
    %v353 = vld [vmem:[#allocation2 + $0x938] sm:$0xff]
    %v354 = vld [vmem:[#allocation2 + $0x940] sm:$0xff]
    %v355 = vld [vmem:[#allocation2 + $0x948] sm:$0xff]
    %v356 = vld [vmem:[#allocation2 + $0x950] sm:$0xff]
    %v357 = vld [vmem:[#allocation2 + $0x958] sm:$0xff]
    %v358 = vld [vmem:[#allocation2 + $0x960] sm:$0xff]
    %v359 = vld [vmem:[#allocation2 + $0x968] sm:$0xff]
    %v360 = vld [vmem:[#allocation2 + $0x970] sm:$0xff]
    %v361 = vld [vmem:[#allocation2 + $0x978] sm:$0xff]
    %v362 = vld [vmem:[#allocation2 + $0x980] sm:$0xff]
    %v363 = vld [vmem:[#allocation2 + $0x988] sm:$0xff]
    %v364 = vld [vmem:[#allocation2 + $0x990] sm:$0xff]
    %v365 = vld [vmem:[#allocation2 + $0x998] sm:$0xff]
    %v366 = vld [vmem:[#allocation2 + $0x9a0] sm:$0xff]
    %v367 = vld [vmem:[#allocation2 + $0x9a8] sm:$0xff]
    %v368 = vld [vmem:[#allocation2 + $0x9b0] sm:$0xff]
    %v369 = vld [vmem:[#allocation2 + $0x9b8] sm:$0xff]
    %v370 = vld [vmem:[#allocation2 + $0x9c0] sm:$0xff]
    %v371 = vld [vmem:[#allocation2 + $0x9c8] sm:$0xff]
    %v372 = vld [vmem:[#allocation2 + $0x9d0] sm:$0xff]
    %v373 = vld [vmem:[#allocation2 + $0x9d8] sm:$0xff]
    %v374 = vld [vmem:[#allocation2 + $0x9e0] sm:$0xff]
    %v375 = vld [vmem:[#allocation2 + $0x9e8] sm:$0xff]
    %v376 = vld [vmem:[#allocation2 + $0x9f0] sm:$0xff]
    %v377 = vld [vmem:[#allocation2 + $0x9f8] sm:$0xff]
    %v378 = vld [vmem:[#allocation2 + $0xa00] sm:$0xff]
    %v379 = vld [vmem:[#allocation2 + $0xa08] sm:$0xff]
    %v380 = vld [vmem:[#allocation2 + $0xa10] sm:$0xff]
    %v381 = vld [vmem:[#allocation2 + $0xa18] sm:$0xff]
    %v382 = vld [vmem:[#allocation2 + $0xa20] sm:$0xff]
    %v383 = vld [vmem:[#allocation2 + $0xa28] sm:$0xff]
    %v384 = vld [vmem:[#allocation2 + $0xa30] sm:$0xff]
    %v385 = vld [vmem:[#allocation2 + $0xa38] sm:$0xff]
    %v386 = vld [vmem:[#allocation2 + $0xa40] sm:$0xff]
    %v387 = vld [vmem:[#allocation2 + $0xa48] sm:$0xff]
    %v388 = vld [vmem:[#allocation2 + $0xa50] sm:$0xff]
    %v389 = vld [vmem:[#allocation2 + $0xa58] sm:$0xff]
    %v390 = vld [vmem:[#allocation2 + $0xa60] sm:$0xff]
    %v391 = vld [vmem:[#allocation2 + $0xa68] sm:$0xff]
    %v392 = vld [vmem:[#allocation2 + $0xa70] sm:$0xff]
    %v393 = vld [vmem:[#allocation2 + $0xa78] sm:$0xff]
    %v394 = vld [vmem:[#allocation2 + $0xa80] sm:$0xff]
    %v395 = vld [vmem:[#allocation2 + $0xa88] sm:$0xff]
    %v396 = vld [vmem:[#allocation2 + $0xa90] sm:$0xff]
    %v397 = vld [vmem:[#allocation2 + $0xa98] sm:$0xff]
    %v398 = vld [vmem:[#allocation2 + $0xaa0] sm:$0xff]
    %v399 = vld [vmem:[#allocation2 + $0xaa8] sm:$0xff]
    %v400 = vld [vmem:[#allocation2 + $0xab0] sm:$0xff]
    %v401 = vld [vmem:[#allocation2 + $0xab8] sm:$0xff]
    %v402 = vld [vmem:[#allocation2 + $0xac0] sm:$0xff]
    %v403 = vld [vmem:[#allocation2 + $0xac8] sm:$0xff]
    %v404 = vld [vmem:[#allocation2 + $0xad0] sm:$0xff]
    %v405 = vld [vmem:[#allocation2 + $0xad8] sm:$0xff]
    %v406 = vld [vmem:[#allocation2 + $0xae0] sm:$0xff]
    %v407 = vld [vmem:[#allocation2 + $0xae8] sm:$0xff]
    %v408 = vld [vmem:[#allocation2 + $0xaf0] sm:$0xff]
    %v409 = vld [vmem:[#allocation2 + $0xaf8] sm:$0xff]
    %v410 = vld [vmem:[#allocation2 + $0xb00] sm:$0xff]
    %v411 = vld [vmem:[#allocation2 + $0xb08] sm:$0xff]
    %v412 = vld [vmem:[#allocation2 + $0xb10] sm:$0xff]
    %v413 = vld [vmem:[#allocation2 + $0xb18] sm:$0xff]
    %v414 = vld [vmem:[#allocation2 + $0xb20] sm:$0xff]
    %v415 = vld [vmem:[#allocation2 + $0xb28] sm:$0xff]
    %v416 = vld [vmem:[#allocation2 + $0xb30] sm:$0xff]
    %v417 = vld [vmem:[#allocation2 + $0xb38] sm:$0xff]
    %v418 = vld [vmem:[#allocation2 + $0xb40] sm:$0xff]
    %v419 = vld [vmem:[#allocation2 + $0xb48] sm:$0xff]
    %v420 = vld [vmem:[#allocation2 + $0xb50] sm:$0xff]
    %v421 = vld [vmem:[#allocation2 + $0xb58] sm:$0xff]
    %v422 = vld [vmem:[#allocation2 + $0xb60] sm:$0xff]
    %v423 = vld [vmem:[#allocation2 + $0xb68] sm:$0xff]
    %v424 = vld [vmem:[#allocation2 + $0xb70] sm:$0xff]
    %v425 = vld [vmem:[#allocation2 + $0xb78] sm:$0xff]
    %v426 = vld [vmem:[#allocation2 + $0xb80] sm:$0xff]
    %v427 = vld [vmem:[#allocation2 + $0xb88] sm:$0xff]
    %v428 = vld [vmem:[#allocation2 + $0xb90] sm:$0xff]
    %v429 = vld [vmem:[#allocation2 + $0xb98] sm:$0xff]
    %v430 = vld [vmem:[#allocation2 + $0xba0] sm:$0xff]
    %v431 = vld [vmem:[#allocation2 + $0xba8] sm:$0xff]
    %v432 = vld [vmem:[#allocation2 + $0xbb0] sm:$0xff]
    %v433 = vld [vmem:[#allocation2 + $0xbb8] sm:$0xff]
    %v434 = vld [vmem:[#allocation2 + $0xbc0] sm:$0xff]
    %v435 = vld [vmem:[#allocation2 + $0xbc8] sm:$0xff]
    %v436 = vld [vmem:[#allocation2 + $0xbd0] sm:$0xff]
    %v437 = vld [vmem:[#allocation2 + $0xbd8] sm:$0xff]
    %v438 = vld [vmem:[#allocation2 + $0xbe0] sm:$0xff]
    %v439 = vld [vmem:[#allocation2 + $0xbe8] sm:$0xff]
    %v440 = vld [vmem:[#allocation2 + $0xbf0] sm:$0xff]
    %v441 = vld [vmem:[#allocation2 + $0xbf8] sm:$0xff]
    %v442 = vld [vmem:[#allocation2 + $0xc00] sm:$0xff]
    %v443 = vld [vmem:[#allocation2 + $0xc08] sm:$0xff]
    %v444 = vld [vmem:[#allocation2 + $0xc10] sm:$0xff]
    %v445 = vld [vmem:[#allocation2 + $0xc18] sm:$0xff]
    %v446 = vld [vmem:[#allocation2 + $0xc20] sm:$0xff]
    %v447 = vld [vmem:[#allocation2 + $0xc28] sm:$0xff]
    %v448 = vld [vmem:[#allocation2 + $0xc30] sm:$0xff]
    %v449 = vld [vmem:[#allocation2 + $0xc38] sm:$0xff]
    %v450 = vld [vmem:[#allocation2 + $0xc40] sm:$0xff]
    %v451 = vld [vmem:[#allocation2 + $0xc48] sm:$0xff]
    %v452 = vld [vmem:[#allocation2 + $0xc50] sm:$0xff]
    %v453 = vld [vmem:[#allocation2 + $0xc58] sm:$0xff]
    %v454 = vld [vmem:[#allocation2 + $0xc60] sm:$0xff]
    %v455 = vld [vmem:[#allocation2 + $0xc68] sm:$0xff]
    %v456 = vld [vmem:[#allocation2 + $0xc70] sm:$0xff]
    %v457 = vld [vmem:[#allocation2 + $0xc78] sm:$0xff]
    %v458 = vld [vmem:[#allocation2 + $0xc80] sm:$0xff]
    %v459 = vld [vmem:[#allocation2 + $0xc88] sm:$0xff]
    %v460 = vld [vmem:[#allocation2 + $0xc90] sm:$0xff]
    %v461 = vld [vmem:[#allocation2 + $0xc98] sm:$0xff]
    %v462 = vld [vmem:[#allocation2 + $0xca0] sm:$0xff]
    %v463 = vld [vmem:[#allocation2 + $0xca8] sm:$0xff]
    %v464 = vld [vmem:[#allocation2 + $0xcb0] sm:$0xff]
    %v465 = vld [vmem:[#allocation2 + $0xcb8] sm:$0xff]
    %v466 = vld [vmem:[#allocation2 + $0xcc0] sm:$0xff]
    %v467 = vld [vmem:[#allocation2 + $0xcc8] sm:$0xff]
    %v468 = vld [vmem:[#allocation2 + $0xcd0] sm:$0xff]
    %v469 = vld [vmem:[#allocation2 + $0xcd8] sm:$0xff]
    %v470 = vld [vmem:[#allocation2 + $0xce0] sm:$0xff]
    %v471 = vld [vmem:[#allocation2 + $0xce8] sm:$0xff]
    %v472 = vld [vmem:[#allocation2 + $0xcf0] sm:$0xff]
    %v473 = vld [vmem:[#allocation2 + $0xcf8] sm:$0xff]
    %v474 = vld [vmem:[#allocation2 + $0xd00] sm:$0xff]
    %v475 = vld [vmem:[#allocation2 + $0xd08] sm:$0xff]
    %v476 = vld [vmem:[#allocation2 + $0xd10] sm:$0xff]
    %v477 = vld [vmem:[#allocation2 + $0xd18] sm:$0xff]
    %v478 = vld [vmem:[#allocation2 + $0xd20] sm:$0xff]
    %v479 = vld [vmem:[#allocation2 + $0xd28] sm:$0xff]
    %v480 = vld [vmem:[#allocation2 + $0xd30] sm:$0xff]
    %v481 = vld [vmem:[#allocation2 + $0xd38] sm:$0xff]
    %v482 = vld [vmem:[#allocation2 + $0xd40] sm:$0xff]
    %v483 = vld [vmem:[#allocation2 + $0xd48] sm:$0xff]
    %v484 = vld [vmem:[#allocation2 + $0xd50] sm:$0xff]
    %v485 = vld [vmem:[#allocation2 + $0xd58] sm:$0xff]
    %v486 = vld [vmem:[#allocation2 + $0xd60] sm:$0xff]
    %v487 = vld [vmem:[#allocation2 + $0xd68] sm:$0xff]
    %v488 = vld [vmem:[#allocation2 + $0xd70] sm:$0xff]
    %v489 = vld [vmem:[#allocation2 + $0xd78] sm:$0xff]
    %v490 = vld [vmem:[#allocation2 + $0xd80] sm:$0xff]
    %v491 = vld [vmem:[#allocation2 + $0xd88] sm:$0xff]
    %v492 = vld [vmem:[#allocation2 + $0xd90] sm:$0xff]
    %v493 = vld [vmem:[#allocation2 + $0xd98] sm:$0xff]
    %v494 = vld [vmem:[#allocation2 + $0xda0] sm:$0xff]
    %v495 = vld [vmem:[#allocation2 + $0xda8] sm:$0xff]
    %v496 = vld [vmem:[#allocation2 + $0xdb0] sm:$0xff]
    %v497 = vld [vmem:[#allocation2 + $0xdb8] sm:$0xff]
    %v498 = vld [vmem:[#allocation2 + $0xdc0] sm:$0xff]
    %v499 = vld [vmem:[#allocation2 + $0xdc8] sm:$0xff]
    %v500 = vld [vmem:[#allocation2 + $0xdd0] sm:$0xff]
    %v501 = vld [vmem:[#allocation2 + $0xdd8] sm:$0xff]
    %v502 = vld [vmem:[#allocation2 + $0xde0] sm:$0xff]
    %v503 = vld [vmem:[#allocation2 + $0xde8] sm:$0xff]
    %v504 = vld [vmem:[#allocation2 + $0xdf0] sm:$0xff]
    %v505 = vld [vmem:[#allocation2 + $0xdf8] sm:$0xff]
    %v506 = vld [vmem:[#allocation2 + $0xe00] sm:$0xff]
    %v507 = vld [vmem:[#allocation2 + $0xe08] sm:$0xff]
    %v508 = vld [vmem:[#allocation2 + $0xe10] sm:$0xff]
    %v509 = vld [vmem:[#allocation2 + $0xe18] sm:$0xff]
    %v510 = vld [vmem:[#allocation2 + $0xe20] sm:$0xff]
    %v511 = vld [vmem:[#allocation2 + $0xe28] sm:$0xff]
    %v512 = vld [vmem:[#allocation2 + $0xe30] sm:$0xff]
    %v513 = vld [vmem:[#allocation2 + $0xe38] sm:$0xff]
    %v514 = vld [vmem:[#allocation2 + $0xe40] sm:$0xff]
    %v515 = vld [vmem:[#allocation2 + $0xe48] sm:$0xff]
    %v516 = vld [vmem:[#allocation2 + $0xe50] sm:$0xff]
    %v517 = vld [vmem:[#allocation2 + $0xe58] sm:$0xff]
    %v518 = vld [vmem:[#allocation2 + $0xe60] sm:$0xff]
    %v519 = vld [vmem:[#allocation2 + $0xe68] sm:$0xff]
    %v520 = vld [vmem:[#allocation2 + $0xe70] sm:$0xff]
    %v521 = vld [vmem:[#allocation2 + $0xe78] sm:$0xff]
    %v522 = vld [vmem:[#allocation2 + $0xe80] sm:$0xff]
    %v523 = vld [vmem:[#allocation2 + $0xe88] sm:$0xff]
    %v524 = vld [vmem:[#allocation2 + $0xe90] sm:$0xff]
    %v525 = vld [vmem:[#allocation2 + $0xe98] sm:$0xff]
    %v526 = vld [vmem:[#allocation2 + $0xea0] sm:$0xff]
    %v527 = vld [vmem:[#allocation2 + $0xea8] sm:$0xff]
    %v528 = vld [vmem:[#allocation2 + $0xeb0] sm:$0xff]
    %v529 = vld [vmem:[#allocation2 + $0xeb8] sm:$0xff]
    %v530 = vld [vmem:[#allocation2 + $0xec0] sm:$0xff]
    %v531 = vld [vmem:[#allocation2 + $0xec8] sm:$0xff]
    %v532 = vld [vmem:[#allocation2 + $0xed0] sm:$0xff]
    %v533 = vld [vmem:[#allocation2 + $0xed8] sm:$0xff]
    %v534 = vld [vmem:[#allocation2 + $0xee0] sm:$0xff]
    %v535 = vld [vmem:[#allocation2 + $0xee8] sm:$0xff]
    %v536 = vld [vmem:[#allocation2 + $0xef0] sm:$0xff]
    %v537 = vld [vmem:[#allocation2 + $0xef8] sm:$0xff]
    %v538 = vld [vmem:[#allocation2 + $0xf00] sm:$0xff]
    %v539 = vld [vmem:[#allocation2 + $0xf08] sm:$0xff]
    %v540 = vld [vmem:[#allocation2 + $0xf10] sm:$0xff]
    %v541 = vld [vmem:[#allocation2 + $0xf18] sm:$0xff]
    %v542 = vld [vmem:[#allocation2 + $0xf20] sm:$0xff]
    %v543 = vld [vmem:[#allocation2 + $0xf28] sm:$0xff]
    %v544 = vld [vmem:[#allocation2 + $0xf30] sm:$0xff]
    %v545 = vld [vmem:[#allocation2 + $0xf38] sm:$0xff]
    %v546 = vld [vmem:[#allocation2 + $0xf40] sm:$0xff]
    %v547 = vld [vmem:[#allocation2 + $0xf48] sm:$0xff]
    %v548 = vld [vmem:[#allocation2 + $0xf50] sm:$0xff]
    %v549 = vld [vmem:[#allocation2 + $0xf58] sm:$0xff]
    %v550 = vld [vmem:[#allocation2 + $0xf60] sm:$0xff]
    %v551 = vld [vmem:[#allocation2 + $0xf68] sm:$0xff]
    %v552 = vld [vmem:[#allocation2 + $0xf70] sm:$0xff]
    %v553 = vld [vmem:[#allocation2 + $0xf78] sm:$0xff]
    %v554 = vld [vmem:[#allocation2 + $0xf80] sm:$0xff]
    %v555 = vld [vmem:[#allocation2 + $0xf88] sm:$0xff]
    %v556 = vld [vmem:[#allocation2 + $0xf90] sm:$0xff]
    %v557 = vld [vmem:[#allocation2 + $0xf98] sm:$0xff]
    %v558 = vld [vmem:[#allocation2 + $0xfa0] sm:$0xff]
    %v559 = vld [vmem:[#allocation2 + $0xfa8] sm:$0xff]
    %v560 = vld [vmem:[#allocation2 + $0xfb0] sm:$0xff]
    %v561 = vld [vmem:[#allocation2 + $0xfb8] sm:$0xff]
    %v562 = vld [vmem:[#allocation2 + $0xfc0] sm:$0xff]
    %v563 = vld [vmem:[#allocation2 + $0xfc8] sm:$0xff]
    %v564 = vld [vmem:[#allocation2 + $0xfd0] sm:$0xff]
    %v565 = vld [vmem:[#allocation2 + $0xfd8] sm:$0xff]
    %v566 = vld [vmem:[#allocation2 + $0xfe0] sm:$0xff]
    %v567 = vld [vmem:[#allocation2 + $0xfe8] sm:$0xff]
    %v568 = vld [vmem:[#allocation2 + $0xff0] sm:$0xff]
    %v569 = vld [vmem:[#allocation2 + $0xff8] sm:$0xff]
    %v570 = vld [vmem:[#allocation2 + $0x1000] sm:$0xff]
    %v571 = vld [vmem:[#allocation2 + $0x1008] sm:$0xff]
    %v572 = vld [vmem:[#allocation2 + $0x1010] sm:$0xff]
    %v573 = vld [vmem:[#allocation2 + $0x1018] sm:$0xff]
    %v574 = vld [vmem:[#allocation2 + $0x1020] sm:$0xff]
    %v575 = vld [vmem:[#allocation2 + $0x1028] sm:$0xff]
    %v576 = vld [vmem:[#allocation2 + $0x1030] sm:$0xff]
    %v577 = vld [vmem:[#allocation2 + $0x1038] sm:$0xff]
    %v578 = vld [vmem:[#allocation2 + $0x1040] sm:$0xff]
    %v579 = vld [vmem:[#allocation2 + $0x1048] sm:$0xff]
    %v580 = vld [vmem:[#allocation2 + $0x1050] sm:$0xff]
    %v581 = vld [vmem:[#allocation2 + $0x1058] sm:$0xff]
    %v582 = vld [vmem:[#allocation2 + $0x1060] sm:$0xff]
    %v583 = vld [vmem:[#allocation2 + $0x1068] sm:$0xff]
    %v584 = vld [vmem:[#allocation2 + $0x1070] sm:$0xff]
    %v585 = vld [vmem:[#allocation2 + $0x1078] sm:$0xff]
    %v586 = vld [vmem:[#allocation2 + $0x1080] sm:$0xff]
    %v587 = vld [vmem:[#allocation2 + $0x1088] sm:$0xff]
    %v588 = vld [vmem:[#allocation2 + $0x1090] sm:$0xff]
    %v589 = vld [vmem:[#allocation2 + $0x1098] sm:$0xff]
    %v590 = vld [vmem:[#allocation2 + $0x10a0] sm:$0xff]
    %v591 = vld [vmem:[#allocation2 + $0x10a8] sm:$0xff]
    %v592 = vld [vmem:[#allocation2 + $0x10b0] sm:$0xff]
    %v593 = vld [vmem:[#allocation2 + $0x10b8] sm:$0xff]
    %v594 = vld [vmem:[#allocation2 + $0x10c0] sm:$0xff]
    %v595 = vld [vmem:[#allocation2 + $0x10c8] sm:$0xff]
    %v596 = vld [vmem:[#allocation2 + $0x10d0] sm:$0xff]
    %v597 = vld [vmem:[#allocation2 + $0x10d8] sm:$0xff]
    %v598 = vld [vmem:[#allocation2 + $0x10e0] sm:$0xff]
    %v599 = vld [vmem:[#allocation2 + $0x10e8] sm:$0xff]
    %v600 = vld [vmem:[#allocation2 + $0x10f0] sm:$0xff]
    %v601 = vld [vmem:[#allocation2 + $0x10f8] sm:$0xff]
    %v602 = vld [vmem:[#allocation2 + $0x1100] sm:$0xff]
    %v603 = vld [vmem:[#allocation2 + $0x1108] sm:$0xff]
    %v604 = vld [vmem:[#allocation2 + $0x1110] sm:$0xff]
    %v605 = vld [vmem:[#allocation2 + $0x1118] sm:$0xff]
    %v606 = vld [vmem:[#allocation2 + $0x1120] sm:$0xff]
    %v607 = vld [vmem:[#allocation2 + $0x1128] sm:$0xff]
    %v608 = vld [vmem:[#allocation2 + $0x1130] sm:$0xff]
    %v609 = vld [vmem:[#allocation2 + $0x1138] sm:$0xff]
    %v610 = vld [vmem:[#allocation2 + $0x1140] sm:$0xff]
    %v611 = vld [vmem:[#allocation2 + $0x1148] sm:$0xff]
    %v612 = vld [vmem:[#allocation2 + $0x1150] sm:$0xff]
    %v613 = vld [vmem:[#allocation2 + $0x1158] sm:$0xff]
    %v614 = vld [vmem:[#allocation2 + $0x1160] sm:$0xff]
    %v615 = vld [vmem:[#allocation2 + $0x1168] sm:$0xff]
    %v616 = vld [vmem:[#allocation2 + $0x1170] sm:$0xff]
    %v617 = vld [vmem:[#allocation2 + $0x1178] sm:$0xff]
    %v618 = vld [vmem:[#allocation2 + $0x1180] sm:$0xff]
    %v619 = vld [vmem:[#allocation2 + $0x1188] sm:$0xff]
    %v620 = vld [vmem:[#allocation2 + $0x1190] sm:$0xff]
    %v621 = vld [vmem:[#allocation2 + $0x1198] sm:$0xff]
    %v622 = vld [vmem:[#allocation2 + $0x11a0] sm:$0xff]
    %v623 = vld [vmem:[#allocation2 + $0x11a8] sm:$0xff]
    %v624 = vld [vmem:[#allocation2 + $0x11b0] sm:$0xff]
    %v625 = vld [vmem:[#allocation2 + $0x11b8] sm:$0xff]
    %v626 = vld [vmem:[#allocation2 + $0x11c0] sm:$0xff]
    %v627 = vld [vmem:[#allocation2 + $0x11c8] sm:$0xff]
    %v628 = vld [vmem:[#allocation2 + $0x11d0] sm:$0xff]
    %v629 = vld [vmem:[#allocation2 + $0x11d8] sm:$0xff]
    %v630 = vld [vmem:[#allocation2 + $0x11e0] sm:$0xff]
    %v631 = vld [vmem:[#allocation2 + $0x11e8] sm:$0xff]
    %v632 = vld [vmem:[#allocation2 + $0x11f0] sm:$0xff]
    %v633 = vld [vmem:[#allocation2 + $0x11f8] sm:$0xff]
    %v634 = vld [vmem:[#allocation2 + $0x1200] sm:$0xff]
    %v635 = vld [vmem:[#allocation2 + $0x1208] sm:$0xff]
    %v636 = vld [vmem:[#allocation2 + $0x1210] sm:$0xff]
    %v637 = vld [vmem:[#allocation2 + $0x1218] sm:$0xff]
    %v638 = vld [vmem:[#allocation2 + $0x1220] sm:$0xff]
    %v639 = vld [vmem:[#allocation2 + $0x1228] sm:$0xff]
    %v640 = vld [vmem:[#allocation2 + $0x1230] sm:$0xff]
    %v641 = vld [vmem:[#allocation2 + $0x1238] sm:$0xff]
    %v642 = vld [vmem:[#allocation2 + $0x1240] sm:$0xff]
    %v643 = vld [vmem:[#allocation2 + $0x1248] sm:$0xff]
    %v644 = vld [vmem:[#allocation2 + $0x1250] sm:$0xff]
    %v645 = vld [vmem:[#allocation2 + $0x1258] sm:$0xff]
    %v646 = vld [vmem:[#allocation2 + $0x1260] sm:$0xff]
    %v647 = vld [vmem:[#allocation2 + $0x1268] sm:$0xff]
    %v648 = vld [vmem:[#allocation2 + $0x1270] sm:$0xff]
    %v649 = vld [vmem:[#allocation2 + $0x1278] sm:$0xff]
    %v650 = vld [vmem:[#allocation2 + $0x1280] sm:$0xff]
    %v651 = vld [vmem:[#allocation2 + $0x1288] sm:$0xff]
    %v652 = vld [vmem:[#allocation2 + $0x1290] sm:$0xff]
    %v653 = vld [vmem:[#allocation2 + $0x1298] sm:$0xff]
    %v654 = vld [vmem:[#allocation2 + $0x12a0] sm:$0xff]
    %v655 = vld [vmem:[#allocation2 + $0x12a8] sm:$0xff]
    %v656 = vld [vmem:[#allocation2 + $0x12b0] sm:$0xff]
    %v657 = vld [vmem:[#allocation2 + $0x12b8] sm:$0xff]
    %v658 = vld [vmem:[#allocation2 + $0x12c0] sm:$0xff]
    %v659 = vld [vmem:[#allocation2 + $0x12c8] sm:$0xff]
    %v660 = vld [vmem:[#allocation2 + $0x12d0] sm:$0xff]
    %v661 = vld [vmem:[#allocation2 + $0x12d8] sm:$0xff]
    %v662 = vld [vmem:[#allocation2 + $0x12e0] sm:$0xff]
    %v663 = vld [vmem:[#allocation2 + $0x12e8] sm:$0xff]
    %v664 = vld [vmem:[#allocation2 + $0x12f0] sm:$0xff]
    %v665 = vld [vmem:[#allocation2 + $0x12f8] sm:$0xff]
    %v666 = vld [vmem:[#allocation2 + $0x1300] sm:$0xff]
    %v667 = vld [vmem:[#allocation2 + $0x1308] sm:$0xff]
    %v668 = vld [vmem:[#allocation2 + $0x1310] sm:$0xff]
    %v669 = vld [vmem:[#allocation2 + $0x1318] sm:$0xff]
    %v670 = vld [vmem:[#allocation2 + $0x1320] sm:$0xff]
    %v671 = vld [vmem:[#allocation2 + $0x1328] sm:$0xff]
    %v672 = vld [vmem:[#allocation2 + $0x1330] sm:$0xff]
    %v673 = vld [vmem:[#allocation2 + $0x1338] sm:$0xff]
    %v674 = vld [vmem:[#allocation2 + $0x1340] sm:$0xff]
    %v675 = vld [vmem:[#allocation2 + $0x1348] sm:$0xff]
    %v676 = vld [vmem:[#allocation2 + $0x1350] sm:$0xff]
    %v677 = vld [vmem:[#allocation2 + $0x1358] sm:$0xff]
    %v678 = vld [vmem:[#allocation2 + $0x1360] sm:$0xff]
    %v679 = vld [vmem:[#allocation2 + $0x1368] sm:$0xff]
    %v680 = vld [vmem:[#allocation2 + $0x1370] sm:$0xff]
    %v681 = vld [vmem:[#allocation2 + $0x1378] sm:$0xff]
    %v682 = vld [vmem:[#allocation2 + $0x1380] sm:$0xff]
    %v683 = vld [vmem:[#allocation2 + $0x1388] sm:$0xff]
    %v684 = vld [vmem:[#allocation2 + $0x1390] sm:$0xff]
    %v685 = vld [vmem:[#allocation2 + $0x1398] sm:$0xff]
    %v686 = vld [vmem:[#allocation2 + $0x13a0] sm:$0xff]
    %v687 = vld [vmem:[#allocation2 + $0x13a8] sm:$0xff]
    %v688 = vld [vmem:[#allocation2 + $0x13b0] sm:$0xff]
    %v689 = vld [vmem:[#allocation2 + $0x13b8] sm:$0xff]
    %v690 = vld [vmem:[#allocation2 + $0x13c0] sm:$0xff]
    %v691 = vld [vmem:[#allocation2 + $0x13c8] sm:$0xff]
    %v692 = vld [vmem:[#allocation2 + $0x13d0] sm:$0xff]
    %v693 = vld [vmem:[#allocation2 + $0x13d8] sm:$0xff]
    %v694 = vld [vmem:[#allocation2 + $0x13e0] sm:$0xff]
    %v695 = vld [vmem:[#allocation2 + $0x13e8] sm:$0xff]
    %v696 = vld [vmem:[#allocation2 + $0x13f0] sm:$0xff]
    %v697 = vld [vmem:[#allocation2 + $0x13f8] sm:$0xff]
    %v698 = vld [vmem:[#allocation2 + $0x1400] sm:$0xff]
    %v699 = vld [vmem:[#allocation2 + $0x1408] sm:$0xff]
    %v700 = vld [vmem:[#allocation2 + $0x1410] sm:$0xff]
    %v701 = vld [vmem:[#allocation2 + $0x1418] sm:$0xff]
    %v702 = vld [vmem:[#allocation2 + $0x1420] sm:$0xff]
    %v703 = vld [vmem:[#allocation2 + $0x1428] sm:$0xff]
    %v704 = vld [vmem:[#allocation2 + $0x1430] sm:$0xff]
    %v705 = vld [vmem:[#allocation2 + $0x1438] sm:$0xff]
    %v706 = vld [vmem:[#allocation2 + $0x1440] sm:$0xff]
    %v707 = vld [vmem:[#allocation2 + $0x1448] sm:$0xff]
    %v708 = vld [vmem:[#allocation2 + $0x1450] sm:$0xff]
    %v709 = vld [vmem:[#allocation2 + $0x1458] sm:$0xff]
    %v710 = vld [vmem:[#allocation2 + $0x1460] sm:$0xff]
    %v711 = vld [vmem:[#allocation2 + $0x1468] sm:$0xff]
    %v712 = vld [vmem:[#allocation2 + $0x1470] sm:$0xff]
    %v713 = vld [vmem:[#allocation2 + $0x1478] sm:$0xff]
    %v714 = vld [vmem:[#allocation2 + $0x1480] sm:$0xff]
    %v715 = vld [vmem:[#allocation2 + $0x1488] sm:$0xff]
    %v716 = vld [vmem:[#allocation2 + $0x1490] sm:$0xff]
    %v717 = vld [vmem:[#allocation2 + $0x1498] sm:$0xff]
    %v718 = vld [vmem:[#allocation2 + $0x14a0] sm:$0xff]
    %v719 = vld [vmem:[#allocation2 + $0x14a8] sm:$0xff]
    %v720 = vld [vmem:[#allocation2 + $0x14b0] sm:$0xff]
    %v721 = vld [vmem:[#allocation2 + $0x14b8] sm:$0xff]
    %v722 = vld [vmem:[#allocation2 + $0x14c0] sm:$0xff]
    %v723 = vld [vmem:[#allocation2 + $0x14c8] sm:$0xff]
    %v724 = vld [vmem:[#allocation2 + $0x14d0] sm:$0xff]
    %v725 = vld [vmem:[#allocation2 + $0x14d8] sm:$0xff]
    %v726 = vld [vmem:[#allocation2 + $0x14e0] sm:$0xff]
    %v727 = vld [vmem:[#allocation2 + $0x14e8] sm:$0xff]
    %v728 = vld [vmem:[#allocation2 + $0x14f0] sm:$0xff]
    %v729 = vld [vmem:[#allocation2 + $0x14f8] sm:$0xff]
    %v730 = vld [vmem:[#allocation2 + $0x1500] sm:$0xff]
    %v731 = vld [vmem:[#allocation2 + $0x1508] sm:$0xff]
    %v732 = vld [vmem:[#allocation2 + $0x1510] sm:$0xff]
    %v733 = vld [vmem:[#allocation2 + $0x1518] sm:$0xff]
    %v734 = vld [vmem:[#allocation2 + $0x1520] sm:$0xff]
    %v735 = vld [vmem:[#allocation2 + $0x1528] sm:$0xff]
    %v736 = vld [vmem:[#allocation2 + $0x1530] sm:$0xff]
    %v737 = vld [vmem:[#allocation2 + $0x1538] sm:$0xff]
    %v738 = vld [vmem:[#allocation2 + $0x1540] sm:$0xff]
    %v739 = vld [vmem:[#allocation2 + $0x1548] sm:$0xff]
    %v740 = vld [vmem:[#allocation2 + $0x1550] sm:$0xff]
    %v741 = vld [vmem:[#allocation2 + $0x1558] sm:$0xff]
    %v742 = vld [vmem:[#allocation2 + $0x1560] sm:$0xff]
    %v743 = vld [vmem:[#allocation2 + $0x1568] sm:$0xff]
    %v744 = vld [vmem:[#allocation2 + $0x1570] sm:$0xff]
    %v745 = vld [vmem:[#allocation2 + $0x1578] sm:$0xff]
    %v746 = vld [vmem:[#allocation2 + $0x1580] sm:$0xff]
    %v747 = vld [vmem:[#allocation2 + $0x1588] sm:$0xff]
    %v748 = vld [vmem:[#allocation2 + $0x1590] sm:$0xff]
    %v749 = vld [vmem:[#allocation2 + $0x1598] sm:$0xff]
    %v750 = vld [vmem:[#allocation2 + $0x15a0] sm:$0xff]
    %v751 = vld [vmem:[#allocation2 + $0x15a8] sm:$0xff]
    %v752 = vld [vmem:[#allocation2 + $0x15b0] sm:$0xff]
    %v753 = vld [vmem:[#allocation2 + $0x15b8] sm:$0xff]
    %v754 = vld [vmem:[#allocation2 + $0x15c0] sm:$0xff]
    %v755 = vld [vmem:[#allocation2 + $0x15c8] sm:$0xff]
    %v756 = vld [vmem:[#allocation2 + $0x15d0] sm:$0xff]
    %v757 = vld [vmem:[#allocation2 + $0x15d8] sm:$0xff]
    %v758 = vld [vmem:[#allocation2 + $0x15e0] sm:$0xff]
    %v759 = vld [vmem:[#allocation2 + $0x15e8] sm:$0xff]
    %v760 = vld [vmem:[#allocation2 + $0x15f0] sm:$0xff]
    %v761 = vld [vmem:[#allocation2 + $0x15f8] sm:$0xff]
    %v762 = vld [vmem:[#allocation2 + $0x1600] sm:$0xff]
    %v763 = vld [vmem:[#allocation2 + $0x1608] sm:$0xff]
    %v764 = vld [vmem:[#allocation2 + $0x1610] sm:$0xff]
    %v765 = vld [vmem:[#allocation2 + $0x1618] sm:$0xff]
    %v766 = vld [vmem:[#allocation2 + $0x1620] sm:$0xff]
    %v767 = vld [vmem:[#allocation2 + $0x1628] sm:$0xff]
    %v768 = vld [vmem:[#allocation2 + $0x1630] sm:$0xff]
    %v769 = vld [vmem:[#allocation2 + $0x1638] sm:$0xff]
    %v770 = vld [vmem:[#allocation2 + $0x1640] sm:$0xff]
    %v771 = vld [vmem:[#allocation2 + $0x1648] sm:$0xff]
    %v772 = vld [vmem:[#allocation2 + $0x1650] sm:$0xff]
    %v773 = vld [vmem:[#allocation2 + $0x1658] sm:$0xff]
    %v774 = vld [vmem:[#allocation2 + $0x1660] sm:$0xff]
    %v775 = vld [vmem:[#allocation2 + $0x1668] sm:$0xff]
    %v776 = vld [vmem:[#allocation2 + $0x1670] sm:$0xff]
    %v777 = vld [vmem:[#allocation2 + $0x1678] sm:$0xff]
    %v778 = vld [vmem:[#allocation2 + $0x1680] sm:$0xff]
    %v779 = vld [vmem:[#allocation2 + $0x1688] sm:$0xff]
    %v780 = vld [vmem:[#allocation2 + $0x1690] sm:$0xff]
    %v781 = vld [vmem:[#allocation2 + $0x1698] sm:$0xff]
    %v782 = vld [vmem:[#allocation2 + $0x16a0] sm:$0xff]
    %v783 = vld [vmem:[#allocation2 + $0x16a8] sm:$0xff]
    %v784 = vld [vmem:[#allocation2 + $0x16b0] sm:$0xff]
    %v785 = vld [vmem:[#allocation2 + $0x16b8] sm:$0xff]
    %v786 = vld [vmem:[#allocation2 + $0x16c0] sm:$0xff]
    %v787 = vld [vmem:[#allocation2 + $0x16c8] sm:$0xff]
    %v788 = vld [vmem:[#allocation2 + $0x16d0] sm:$0xff]
    %v789 = vld [vmem:[#allocation2 + $0x16d8] sm:$0xff]
    %v790 = vld [vmem:[#allocation2 + $0x16e0] sm:$0xff]
    %v791 = vld [vmem:[#allocation2 + $0x16e8] sm:$0xff]
    %v792 = vld [vmem:[#allocation2 + $0x16f0] sm:$0xff]
    %v793 = vld [vmem:[#allocation2 + $0x16f8] sm:$0xff]
    %v794 = vld [vmem:[#allocation2 + $0x1700] sm:$0xff]
    %v795 = vld [vmem:[#allocation2 + $0x1708] sm:$0xff]
    %v796 = vld [vmem:[#allocation2 + $0x1710] sm:$0xff]
    %v797 = vld [vmem:[#allocation2 + $0x1718] sm:$0xff]
    %v798 = vld [vmem:[#allocation2 + $0x1720] sm:$0xff]
    %v799 = vld [vmem:[#allocation2 + $0x1728] sm:$0xff]
    %v800 = vld [vmem:[#allocation2 + $0x1730] sm:$0xff]
    %v801 = vld [vmem:[#allocation2 + $0x1738] sm:$0xff]
    %v802 = vld [vmem:[#allocation2 + $0x1740] sm:$0xff]
    %v803 = vld [vmem:[#allocation2 + $0x1748] sm:$0xff]
    %v804 = vld [vmem:[#allocation2 + $0x1750] sm:$0xff]
    %v805 = vld [vmem:[#allocation2 + $0x1758] sm:$0xff]
    %v806 = vld [vmem:[#allocation2 + $0x1760] sm:$0xff]
    %v807 = vld [vmem:[#allocation2 + $0x1768] sm:$0xff]
    %v808 = vld [vmem:[#allocation2 + $0x1770] sm:$0xff]
    %v809 = vld [vmem:[#allocation2 + $0x1778] sm:$0xff]
    %v810 = vld [vmem:[#allocation2 + $0x1780] sm:$0xff]
    %v811 = vld [vmem:[#allocation2 + $0x1788] sm:$0xff]
    %v812 = vld [vmem:[#allocation2 + $0x1790] sm:$0xff]
    %v813 = vld [vmem:[#allocation2 + $0x1798] sm:$0xff]
    %v814 = vld [vmem:[#allocation2 + $0x17a0] sm:$0xff]
    %v815 = vld [vmem:[#allocation2 + $0x17a8] sm:$0xff]
    %v816 = vld [vmem:[#allocation2 + $0x17b0] sm:$0xff]
    %v817 = vld [vmem:[#allocation2 + $0x17b8] sm:$0xff]
    %v818 = vld [vmem:[#allocation2 + $0x17c0] sm:$0xff]
    %v819 = vld [vmem:[#allocation2 + $0x17c8] sm:$0xff]
    %v820 = vld [vmem:[#allocation2 + $0x17d0] sm:$0xff]
    %v821 = vld [vmem:[#allocation2 + $0x17d8] sm:$0xff]
    %v822 = vld [vmem:[#allocation2 + $0x17e0] sm:$0xff]
    %v823 = vld [vmem:[#allocation2 + $0x17e8] sm:$0xff]
    %v824 = vld [vmem:[#allocation2 + $0x17f0] sm:$0xff]
    %v825 = vld [vmem:[#allocation2 + $0x17f8] sm:$0xff]
    %v826 = vld [vmem:[#allocation2 + $0x1800] sm:$0xff]
    %v827 = vld [vmem:[#allocation2 + $0x1808] sm:$0xff]
    %v828 = vld [vmem:[#allocation2 + $0x1810] sm:$0xff]
    %v829 = vld [vmem:[#allocation2 + $0x1818] sm:$0xff]
    %v830 = vld [vmem:[#allocation2 + $0x1820] sm:$0xff]
    %v831 = vld [vmem:[#allocation2 + $0x1828] sm:$0xff]
    %v832 = vld [vmem:[#allocation2 + $0x1830] sm:$0xff]
    %v833 = vld [vmem:[#allocation2 + $0x1838] sm:$0xff]
    %v834 = vld [vmem:[#allocation2 + $0x1840] sm:$0xff]
    %v835 = vld [vmem:[#allocation2 + $0x1848] sm:$0xff]
    %v836 = vld [vmem:[#allocation2 + $0x1850] sm:$0xff]
    %v837 = vld [vmem:[#allocation2 + $0x1858] sm:$0xff]
    %v838 = vld [vmem:[#allocation2 + $0x1860] sm:$0xff]
    %v839 = vld [vmem:[#allocation2 + $0x1868] sm:$0xff]
    %v840 = vld [vmem:[#allocation2 + $0x1870] sm:$0xff]
    %v841 = vld [vmem:[#allocation2 + $0x1878] sm:$0xff]
    %v842 = vld [vmem:[%s1] sm:$0xff]
    %v843 = vld [vmem:[%s1 + $0x8] sm:$0xff]
    %v844 = vld [vmem:[%s1 + $0x10] sm:$0xff]
    %v845 = vld [vmem:[%s1 + $0x18] sm:$0xff]
    %v846 = vld [vmem:[%s1 + $0x20] sm:$0xff]
    %v847 = vld [vmem:[%s1 + $0x28] sm:$0xff]
    %v848 = vld [vmem:[%s1 + $0x30] sm:$0xff]
    %v849 = vld [vmem:[%s1 + $0x38] sm:$0xff]
    %v850 = vld [vmem:[%s1 + $0x40] sm:$0xff]
    %v851 = vld [vmem:[%s1 + $0x48] sm:$0xff]
    %v852 = vld [vmem:[%s1 + $0x50] sm:$0xff]
    %v853 = vld [vmem:[%s1 + $0x58] sm:$0xff]
    %v854 = vld [vmem:[%s1 + $0x60] sm:$0xff]
    %v855 = vld [vmem:[%s1 + $0x68] sm:$0xff]
    %v856 = vld [vmem:[%s1 + $0x70] sm:$0xff]
    %v857 = vld [vmem:[%s1 + $0x78] sm:$0xff]
    %v858 = vld [vmem:[%s1 + $0x80] sm:$0xff]
    %v859 = vld [vmem:[%s1 + $0x88] sm:$0xff]
    %v860 = vld [vmem:[%s1 + $0x90] sm:$0xff]
    %v861 = vld [vmem:[%s1 + $0x98] sm:$0xff]
    %v862 = vld [vmem:[%s1 + $0xa0] sm:$0xff]
    %v863 = vld [vmem:[%s1 + $0xa8] sm:$0xff]
    %v864 = vld [vmem:[%s1 + $0xb0] sm:$0xff]
    %v865 = vld [vmem:[%s1 + $0xb8] sm:$0xff]
    %v866 = vld [vmem:[%s1 + $0xc0] sm:$0xff]
    %v867 = vld [vmem:[%s1 + $0xc8] sm:$0xff]
    %v868 = vld [vmem:[%s1 + $0xd0] sm:$0xff]
    %v869 = vld [vmem:[%s1 + $0xd8] sm:$0xff]
    %v870 = vld [vmem:[%s1 + $0xe0] sm:$0xff]
    %v871 = vld [vmem:[%s1 + $0xe8] sm:$0xff]
    %v872 = vld [vmem:[%s1 + $0xf0] sm:$0xff]
    %v873 = vld [vmem:[%s1 + $0xf8] sm:$0xff]
    %v874 = vld [vmem:[%s1 + $0x100] sm:$0xff]
    %v875 = vld [vmem:[%s1 + $0x108] sm:$0xff]
    %v876 = vld [vmem:[%s1 + $0x110] sm:$0xff]
    %v877 = vld [vmem:[%s1 + $0x118] sm:$0xff]
    %v878 = vld [vmem:[%s1 + $0x120] sm:$0xff]
    %v879 = vld [vmem:[%s1 + $0x128] sm:$0xff]
    %v880 = vld [vmem:[%s1 + $0x130] sm:$0xff]
    %v881 = vld [vmem:[%s1 + $0x138] sm:$0xff]
    %v882 = vld [vmem:[%s1 + $0x140] sm:$0xff]
    %v883 = vld [vmem:[%s1 + $0x148] sm:$0xff]
    %v884 = vld [vmem:[%s1 + $0x150] sm:$0xff]
    %v885 = vld [vmem:[%s1 + $0x158] sm:$0xff]
    %v886 = vld [vmem:[%s1 + $0x160] sm:$0xff]
    %v887 = vld [vmem:[%s1 + $0x168] sm:$0xff]
    %v888 = vld [vmem:[%s1 + $0x170] sm:$0xff]
    %v889 = vld [vmem:[%s1 + $0x178] sm:$0xff]
    %v890 = vld [vmem:[%s1 + $0x180] sm:$0xff]
    %v891 = vld [vmem:[%s1 + $0x188] sm:$0xff]
    %vm892 = vcmask 130048
    %v894 = vsel %vm892, %v61, 0
    %v897 = vsel %vm892, %v65, 0
    %v900 = vsel %vm892, %v69, 0
    %v903 = vsel %vm892, %v73, 0
    %v906 = vsel %vm892, %v77, 0
    %v909 = vsel %vm892, %v81, 0
    %v912 = vsel %vm892, %v85, 0
    %v915 = vsel %vm892, %v89, 0
    %v918 = vsel %vm892, %v93, 0
    %v921 = vsel %vm892, %v97, 0
    %v924 = vsel %vm892, %v101, 0
    %v927 = vsel %vm892, %v105, 0
    %v930 = vsel %vm892, %v109, 0
    %v933 = vsel %vm892, %v113, 0
    %v936 = vsel %vm892, %v117, 0
    %v939 = vsel %vm892, %v121, 0
    %v942 = vsel %vm892, %v125, 0
    %v945 = vsel %vm892, %v129, 0
    %v948 = vsel %vm892, %v133, 0
    %v951 = vsel %vm892, %v137, 0
    %v954 = vsel %vm892, %v141, 0
    %v957 = vsel %vm892, %v145, 0
    %v960 = vsel %vm892, %v149, 0
    %v963 = vsel %vm892, %v153, 0
    %v966 = vsel %vm892, %v157, 0
    %v969 = vsel %vm892, %v161, 0
    %v972 = vsel %vm892, %v165, 0
    %v975 = vsel %vm892, %v169, 0
    %v978 = vsel %vm892, %v173, 0
    %v981 = vsel %vm892, %v177, 0
    %v984 = vsel %vm892, %v181, 0
    %v987 = vsel %vm892, %v185, 0
    %v990 = vsel %vm892, %v189, 0
    %v993 = vsel %vm892, %v193, 0
    %v996 = vsel %vm892, %v197, 0
    %v999 = vsel %vm892, %v201, 0
    %v1002 = vsel %vm892, %v205, 0
    %v1005 = vsel %vm892, %v209, 0
    %v1008 = vsel %vm892, %v213, 0
    %v1011 = vsel %vm892, %v217, 0
    %v1014 = vsel %vm892, %v221, 0
    %v1017 = vsel %vm892, %v225, 0
    %v1020 = vsel %vm892, %v229, 0
    %v1023 = vsel %vm892, %v233, 0
    %v1026 = vsel %vm892, %v237, 0
    %v1029 = vsel %vm892, %v241, 0
    %v1032 = vsel %vm892, %v245, 0
    %v1035 = vsel %vm892, %v249, 0
    %v1038 = vsel %vm892, %v253, 0
    %v1041 = vsel %vm892, %v257, 0
    %v1044 = vsel %vm892, %v261, 0
    %v1047 = vsel %vm892, %v265, 0
    %v1050 = vsel %vm892, %v269, 0
    %v1053 = vsel %vm892, %v273, 0
    %v1056 = vsel %vm892, %v277, 0
    %v1059 = vsel %vm892, %v281, 0
    %v1062 = vsel %vm892, %v285, 0
    %v1065 = vsel %vm892, %v289, 0
    %v1068 = vsel %vm892, %v293, 0
    %v1071 = vsel %vm892, %v297, 0
    %v1074 = vsel %vm892, %v301, 0
    %v1077 = vsel %vm892, %v305, 0
    %v1080 = vsel %vm892, %v309, 0
    %v1083 = vsel %vm892, %v313, 0
    %v1086 = vsel %vm892, %v317, 0
    %v1089 = vsel %vm892, %v321, 0
    %v1092 = vsel %vm892, %v325, 0
    %v1095 = vsel %vm892, %v329, 0
    %v1098 = vsel %vm892, %v333, 0
    %v1101 = vsel %vm892, %v337, 0
    %v1104 = vsel %vm892, %v341, 0
    %v1107 = vsel %vm892, %v345, 0
    %v1110 = vsel %vm892, %v349, 0
    %v1113 = vsel %vm892, %v353, 0
    %v1116 = vsel %vm892, %v357, 0
    %v1119 = vsel %vm892, %v361, 0
    %v1122 = vsel %vm892, %v365, 0
    %v1125 = vsel %vm892, %v369, 0
    %v1128 = vsel %vm892, %v373, 0
    %v1131 = vsel %vm892, %v377, 0
    %v1134 = vsel %vm892, %v381, 0
    %v1137 = vsel %vm892, %v385, 0
    %v1140 = vsel %vm892, %v389, 0
    %v1143 = vsel %vm892, %v393, 0
    %v1146 = vsel %vm892, %v397, 0
    %v1149 = vsel %vm892, %v401, 0
    %v1152 = vsel %vm892, %v405, 0
    %v1155 = vsel %vm892, %v409, 0
    %v1158 = vsel %vm892, %v413, 0
    %v1161 = vsel %vm892, %v417, 0
    %v1164 = vsel %vm892, %v421, 0
    %v1167 = vsel %vm892, %v425, 0
    %v1170 = vsel %vm892, %v429, 0
    %v1173 = vsel %vm892, %v433, 0
    %v1176 = vsel %vm892, %v437, 0
    %v1179 = vsel %vm892, %v441, 0
    %v1182 = vsel %vm892, %v445, 0
    %v1185 = vsel %vm892, %v449, 0
    %v1188 = vsel %vm892, %v453, 0
    %v1191 = vsel %vm892, %v457, 0
    %v1194 = vsel %vm892, %v461, 0
    %v1197 = vsel %vm892, %v465, 0
    %v1200 = vsel %vm892, %v469, 0
    %v1203 = vsel %vm892, %v473, 0
    %v1206 = vsel %vm892, %v477, 0
    %v1209 = vsel %vm892, %v481, 0
    %v1212 = vsel %vm892, %v485, 0
    %v1215 = vsel %vm892, %v489, 0
    %v1218 = vsel %vm892, %v493, 0
    %v1221 = vsel %vm892, %v497, 0
    %v1224 = vsel %vm892, %v501, 0
    %v1227 = vsel %vm892, %v505, 0
    %v1230 = vsel %vm892, %v509, 0
    %v1233 = vsel %vm892, %v513, 0
    %v1236 = vsel %vm892, %v517, 0
    %v1239 = vsel %vm892, %v521, 0
    %v1242 = vsel %vm892, %v525, 0
    %v1245 = vsel %vm892, %v529, 0
    %v1248 = vsel %vm892, %v533, 0
    %v1251 = vsel %vm892, %v537, 0
    %v1254 = vsel %vm892, %v541, 0
    %v1257 = vsel %vm892, %v545, 0
    %v1260 = vsel %vm892, %v549, 0
    %v1263 = vsel %vm892, %v553, 0
    %v1266 = vsel %vm892, %v557, 0
    %v1269 = vsel %vm892, %v561, 0
    %v1272 = vsel %vm892, %v565, 0
    %v1275 = vsel %vm892, %v569, 0
    %v1278 = vsel %vm892, %v573, 0
    %v1281 = vsel %vm892, %v577, 0
    %v1284 = vsel %vm892, %v581, 0
    %v1287 = vsel %vm892, %v585, 0
    %v1290 = vsel %vm892, %v589, 0
    %v1293 = vsel %vm892, %v593, 0
    %v1296 = vsel %vm892, %v597, 0
    %v1299 = vsel %vm892, %v601, 0
    %v1302 = vsel %vm892, %v605, 0
    %v1305 = vsel %vm892, %v609, 0
    %v1308 = vsel %vm892, %v613, 0
    %v1311 = vsel %vm892, %v617, 0
    %v1314 = vsel %vm892, %v621, 0
    %v1317 = vsel %vm892, %v625, 0
    %v1320 = vsel %vm892, %v629, 0
    %v1323 = vsel %vm892, %v633, 0
    %v1326 = vsel %vm892, %v637, 0
    %v1329 = vsel %vm892, %v641, 0
    %v1332 = vsel %vm892, %v645, 0
    %v1335 = vsel %vm892, %v649, 0
    %v1338 = vsel %vm892, %v653, 0
    %v1341 = vsel %vm892, %v657, 0
    %v1344 = vsel %vm892, %v661, 0
    %v1347 = vsel %vm892, %v665, 0
    %v1350 = vsel %vm892, %v669, 0
    %v1353 = vsel %vm892, %v673, 0
    %v1356 = vsel %vm892, %v677, 0
    %v1359 = vsel %vm892, %v681, 0
    %v1362 = vsel %vm892, %v685, 0
    %v1365 = vsel %vm892, %v689, 0
    %v1368 = vsel %vm892, %v693, 0
    %v1371 = vsel %vm892, %v697, 0
    %v1374 = vsel %vm892, %v701, 0
    %v1377 = vsel %vm892, %v705, 0
    %v1380 = vsel %vm892, %v709, 0
    %v1383 = vsel %vm892, %v713, 0
    %v1386 = vsel %vm892, %v717, 0
    %v1389 = vsel %vm892, %v721, 0
    %v1392 = vsel %vm892, %v725, 0
    %v1395 = vsel %vm892, %v729, 0
    %v1398 = vsel %vm892, %v733, 0
    %v1401 = vsel %vm892, %v737, 0
    %v1404 = vsel %vm892, %v741, 0
    %v1407 = vsel %vm892, %v745, 0
    %v1410 = vsel %vm892, %v749, 0
    %v1413 = vsel %vm892, %v753, 0
    %v1416 = vsel %vm892, %v757, 0
    %v1419 = vsel %vm892, %v761, 0
    %v1422 = vsel %vm892, %v765, 0
    %v1425 = vsel %vm892, %v769, 0
    %v1428 = vsel %vm892, %v773, 0
    %v1431 = vsel %vm892, %v777, 0
    %v1434 = vsel %vm892, %v781, 0
    %v1437 = vsel %vm892, %v785, 0
    %v1440 = vsel %vm892, %v789, 0
    %v1443 = vsel %vm892, %v793, 0
    %v1446 = vsel %vm892, %v797, 0
    %v1449 = vsel %vm892, %v801, 0
    %v1452 = vsel %vm892, %v805, 0
    %v1455 = vsel %vm892, %v809, 0
    %v1458 = vsel %vm892, %v813, 0
    %v1461 = vsel %vm892, %v817, 0
    %v1464 = vsel %vm892, %v821, 0
    %v1467 = vsel %vm892, %v825, 0
    %v1470 = vsel %vm892, %v829, 0
    %v1473 = vsel %vm892, %v833, 0
    %v1476 = vsel %vm892, %v837, 0
    %v1479 = vsel %vm892, %v841, 0
    %1481 = vmatprep.subr.mxu0 0.0
    %1482 = vmatpush1.msra.mxu0 %v842
    %1483 = vmatprep.subr.mxu0 0.0
    %1484 = vmatpush1.msra.mxu0 %v843
    %1485 = vmatprep.subr.mxu0 0.0
    %1486 = vmatpush1.msra.mxu0 %v844
    %1487 = vmatprep.subr.mxu0 0.0
    %1488 = vmatpush1.msra.mxu0 %v845
    %1489 = vmatprep.subr.mxu0 0.0
    %1490 = vmatpush1.msra.mxu0 %v846
    %1491 = vmatprep.subr.mxu0 0.0
    %1492 = vmatpush1.msra.mxu0 %v847
    %1493 = vmatprep.subr.mxu0 0.0
    %1494 = vmatpush1.msra.mxu0 %v848
    %1495 = vmatprep.subr.mxu0 0.0
    %1496 = vmatpush1.msra.mxu0 %v849
    %1497 = vmatprep.subr.mxu0 0.0
    %1498 = vmatpush1.msra.mxu0 %v850
    %1499 = vmatprep.subr.mxu0 0.0
    %1500 = vmatpush1.msra.mxu0 %v851
    %1501 = vmatprep.subr.mxu0 0.0
    %1502 = vmatpush1.msra.mxu0 %v852
    %1503 = vmatprep.subr.mxu0 0.0
    %1504 = vmatpush1.msra.mxu0 %v853
    %1505 = vmatprep.subr.mxu0 0.0
    %1506 = vmatpush1.msra.mxu0 %v854
    %1507 = vmatprep.subr.mxu0 0.0
    %1508 = vmatpush1.msra.mxu0 %v855
    %1509 = vmatprep.subr.mxu0 0.0
    %1510 = vmatpush1.msra.mxu0 %v856
    %1511 = vmatprep.subr.mxu0 0.0
    %1512 = vmatpush1.msra.mxu0 %v857
    %1513 = vmatprep.subr.mxu0 0.0
    %1514 = vmatpush1.msra.mxu0 %v858
    %1515 = vmatprep.subr.mxu0 0.0
    %1516 = vmatpush1.msra.mxu0 %v859
    %1517 = vmatprep.subr.mxu0 0.0
    %1518 = vmatpush1.msra.mxu0 %v860
    %1519 = vmatprep.subr.mxu0 0.0
    %1520 = vmatpush1.msra.mxu0 %v861
    %1521 = vmatprep.subr.mxu0 0.0
    %1522 = vmatpush1.msra.mxu0 %v862
    %1523 = vmatprep.subr.mxu0 0.0
    %1524 = vmatpush1.msra.mxu0 %v863
    %1525 = vmatprep.subr.mxu0 0.0
    %1526 = vmatpush1.msra.mxu0 %v864
    %1527 = vmatprep.subr.mxu0 0.0
    %1528 = vmatpush1.msra.mxu0 %v865
    %1529 = vmatprep.subr.mxu0 0.0
    %1530 = vmatpush1.msra.mxu0 %v866
    %1531 = vmatprep.subr.mxu0 0.0
    %1532 = vmatpush1.msra.mxu0 %v867
    %1533 = vmatprep.subr.mxu0 0.0
    %1534 = vmatpush1.msra.mxu0 %v868
    %1535 = vmatprep.subr.mxu0 0.0
    %1536 = vmatpush1.msra.mxu0 %v869
    %1537 = vmatprep.subr.mxu0 0.0
    %1538 = vmatpush1.msra.mxu0 %v870
    %1539 = vmatprep.subr.mxu0 0.0
    %1540 = vmatpush1.msra.mxu0 %v871
    %1541 = vmatprep.subr.mxu0 0.0
    %1542 = vmatpush1.msra.mxu0 %v872
    %1543 = vmatprep.subr.mxu0 0.0
    %1544 = vmatpush1.msra.mxu0 %v873
    %1545 = vmatprep.mubr.f32.mxu0 %v59
    %1546 = vmatmul.mubr.f32.gmra.mrb[0].mxu0 %v58
    %v1547 = vpop.f32.mrb[0].mxu0
    %v1548 = vadd.f32 0.0, %v1547
    %v1549 = vpop.f32.mrb[0].mxu0
    %1550 = vmatprep.mubr.f32.mxu0 %v63
    %1551 = vmatmul.mubr.f32.gmra.mrb[0].mxu0 %v62
    %v1552 = vpop.f32.mrb[0].mxu0
    %v1553 = vadd.f32 0.0, %v1552
    %v1554 = vpop.f32.mrb[0].mxu0
    %1555 = vmatprep.mubr.f32.mxu0 %v67
    %1556 = vmatmul.mubr.f32.gmra.mrb[0].mxu0 %v66
    %v1557 = vpop.f32.mrb[0].mxu0
    %v1558 = vadd.f32 0.0, %v1557
    %v1559 = vpop.f32.mrb[0].mxu0
    %1560 = vmatprep.mubr.f32.mxu0 %v71
    %1561 = vmatmul.mubr.f32.gmra.mrb[0].mxu0 %v70
    %v1562 = vpop.f32.mrb[0].mxu0
    %v1563 = vadd.f32 0.0, %v1562
    %v1564 = vpop.f32.mrb[0].mxu0
    %1565 = vmatprep.mubr.f32.mxu0 %v75
    %1566 = vmatmul.mubr.f32.gmra.mrb[0].mxu0 %v74
    %v1567 = vpop.f32.mrb[0].mxu0
    %v1568 = vadd.f32 0.0, %v1567
    %v1569 = vpop.f32.mrb[0].mxu0
    %1570 = vmatprep.mubr.f32.mxu0 %v79
    %1571 = vmatmul.mubr.f32.gmra.mrb[0].mxu0 %v78
    %v1572 = vpop.f32.mrb[0].mxu0
    %v1573 = vadd.f32 0.0, %v1572
    %v1574 = vpop.f32.mrb[0].mxu0
    %1575 = vmatprep.mubr.f32.mxu0 %v83
    %1576 = vmatmul.mubr.f32.gmra.mrb[0].mxu0 %v82
    %v1577 = vpop.f32.mrb[0].mxu0
    %v1578 = vadd.f32 0.0, %v1577
    %v1579 = vpop.f32.mrb[0].mxu0
    %1580 = vmatprep.mubr.f32.mxu0 %v87
    %1581 = vmatmul.mubr.f32.gmra.mrb[0].mxu0 %v86
    %v1582 = vpop.f32.mrb[0].mxu0
    %v1583 = vadd.f32 0.0, %v1582
    %v1584 = vpop.f32.mrb[0].mxu0
    %1585 = vmatprep.mubr.f32.mxu0 %v91
    %1586 = vmatmul.mubr.f32.gmra.mrb[0].mxu0 %v90
    %v1587 = vpop.f32.mrb[0].mxu0
    %v1588 = vadd.f32 0.0, %v1587
    %v1589 = vpop.f32.mrb[0].mxu0
    %1590 = vmatprep.mubr.f32.mxu0 %v95
    %1591 = vmatmul.mubr.f32.gmra.mrb[0].mxu0 %v94
    %v1592 = vpop.f32.mrb[0].mxu0
    %v1593 = vadd.f32 0.0, %v1592
    %v1594 = vpop.f32.mrb[0].mxu0
    %1595 = vmatprep.mubr.f32.mxu0 %v99
    %1596 = vmatmul.mubr.f32.gmra.mrb[0].mxu0 %v98
    %v1597 = vpop.f32.mrb[0].mxu0
    %v1598 = vadd.f32 0.0, %v1597
    %v1599 = vpop.f32.mrb[0].mxu0
    %1600 = vmatprep.mubr.f32.mxu0 %v103
    %1601 = vmatmul.mubr.f32.gmra.mrb[0].mxu0 %v102
    %v1602 = vpop.f32.mrb[0].mxu0
    %v1603 = vadd.f32 0.0, %v1602
    %v1604 = vpop.f32.mrb[0].mxu0
    %1605 = vmatprep.mubr.f32.mxu0 %v107
    %1606 = vmatmul.mubr.f32.gmra.mrb[0].mxu0 %v106
    %v1607 = vpop.f32.mrb[0].mxu0
    %v1608 = vadd.f32 0.0, %v1607
    %v1609 = vpop.f32.mrb[0].mxu0
    %1610 = vmatprep.mubr.f32.mxu0 %v111
    %1611 = vmatmul.mubr.f32.gmra.mrb[0].mxu0 %v110
    %v1612 = vpop.f32.mrb[0].mxu0
    %v1613 = vadd.f32 0.0, %v1612
    %v1614 = vpop.f32.mrb[0].mxu0
    %1615 = vmatprep.mubr.f32.mxu0 %v115
    %1616 = vmatmul.mubr.f32.gmra.mrb[0].mxu0 %v114
    %v1617 = vpop.f32.mrb[0].mxu0
    %v1618 = vadd.f32 0.0, %v1617
    %v1619 = vpop.f32.mrb[0].mxu0
    %1620 = vmatprep.mubr.f32.mxu0 %v119
    %1621 = vmatmul.mubr.f32.gmra.mrb[0].mxu0 %v118
    %v1622 = vpop.f32.mrb[0].mxu0
    %v1623 = vadd.f32 0.0, %v1622
    %v1624 = vpop.f32.mrb[0].mxu0
    %1625 = vmatprep.mubr.f32.mxu0 %v123
    %1626 = vmatmul.mubr.f32.gmra.mrb[0].mxu0 %v122
    %v1627 = vpop.f32.mrb[0].mxu0
    %v1628 = vadd.f32 0.0, %v1627
    %v1629 = vpop.f32.mrb[0].mxu0
    %1630 = vmatprep.mubr.f32.mxu0 %v127
    %1631 = vmatmul.mubr.f32.gmra.mrb[0].mxu0 %v126
    %v1632 = vpop.f32.mrb[0].mxu0
    %v1633 = vadd.f32 0.0, %v1632
    %v1634 = vpop.f32.mrb[0].mxu0
    %1635 = vmatprep.mubr.f32.mxu0 %v131
    %1636 = vmatmul.mubr.f32.gmra.mrb[0].mxu0 %v130
    %v1637 = vpop.f32.mrb[0].mxu0
    %v1638 = vadd.f32 0.0, %v1637
    %v1639 = vpop.f32.mrb[0].mxu0
    %1640 = vmatprep.mubr.f32.mxu0 %v135
    %1641 = vmatmul.mubr.f32.gmra.mrb[0].mxu0 %v134
    %v1642 = vpop.f32.mrb[0].mxu0
    %v1643 = vadd.f32 0.0, %v1642
    %v1644 = vpop.f32.mrb[0].mxu0
    %1645 = vmatprep.mubr.f32.mxu0 %v139
    %1646 = vmatmul.mubr.f32.gmra.mrb[0].mxu0 %v138
    %v1647 = vpop.f32.mrb[0].mxu0
    %v1648 = vadd.f32 0.0, %v1647
    %v1649 = vpop.f32.mrb[0].mxu0
    %1650 = vmatprep.mubr.f32.mxu0 %v143
    %1651 = vmatmul.mubr.f32.gmra.mrb[0].mxu0 %v142
    %v1652 = vpop.f32.mrb[0].mxu0
    %v1653 = vadd.f32 0.0, %v1652
    %v1654 = vpop.f32.mrb[0].mxu0
    %1655 = vmatprep.mubr.f32.mxu0 %v147
    %1656 = vmatmul.mubr.f32.gmra.mrb[0].mxu0 %v146
    %v1657 = vpop.f32.mrb[0].mxu0
    %v1658 = vadd.f32 0.0, %v1657
    %v1659 = vpop.f32.mrb[0].mxu0
    %1660 = vmatprep.mubr.f32.mxu0 %v151
    %1661 = vmatmul.mubr.f32.gmra.mrb[0].mxu0 %v150
    %v1662 = vpop.f32.mrb[0].mxu0
    %v1663 = vadd.f32 0.0, %v1662
    %v1664 = vpop.f32.mrb[0].mxu0
    %1665 = vmatprep.mubr.f32.mxu0 %v155
    %1666 = vmatmul.mubr.f32.gmra.mrb[0].mxu0 %v154
    %v1667 = vpop.f32.mrb[0].mxu0
    %v1668 = vadd.f32 0.0, %v1667
    %v1669 = vpop.f32.mrb[0].mxu0
    %1670 = vmatprep.mubr.f32.mxu0 %v159
    %1671 = vmatmul.mubr.f32.gmra.mrb[0].mxu0 %v158
    %v1672 = vpop.f32.mrb[0].mxu0
    %v1673 = vadd.f32 0.0, %v1672
    %v1674 = vpop.f32.mrb[0].mxu0
    %1675 = vmatprep.mubr.f32.mxu0 %v163
    %1676 = vmatmul.mubr.f32.gmra.mrb[0].mxu0 %v162
    %v1677 = vpop.f32.mrb[0].mxu0
    %v1678 = vadd.f32 0.0, %v1677
    %v1679 = vpop.f32.mrb[0].mxu0
    %1680 = vmatprep.mubr.f32.mxu0 %v167
    %1681 = vmatmul.mubr.f32.gmra.mrb[0].mxu0 %v166
    %v1682 = vpop.f32.mrb[0].mxu0
    %v1683 = vadd.f32 0.0, %v1682
    %v1684 = vpop.f32.mrb[0].mxu0
    %1685 = vmatprep.mubr.f32.mxu0 %v171
    %1686 = vmatmul.mubr.f32.gmra.mrb[0].mxu0 %v170
    %v1687 = vpop.f32.mrb[0].mxu0
    %v1688 = vadd.f32 0.0, %v1687
    %v1689 = vpop.f32.mrb[0].mxu0
    %1690 = vmatprep.mubr.f32.mxu0 %v175
    %1691 = vmatmul.mubr.f32.gmra.mrb[0].mxu0 %v174
    %v1692 = vpop.f32.mrb[0].mxu0
    %v1693 = vadd.f32 0.0, %v1692
    %v1694 = vpop.f32.mrb[0].mxu0
    %1695 = vmatprep.mubr.f32.mxu0 %v179
    %1696 = vmatmul.mubr.f32.gmra.mrb[0].mxu0 %v178
    %v1697 = vpop.f32.mrb[0].mxu0
    %v1698 = vadd.f32 0.0, %v1697
    %v1699 = vpop.f32.mrb[0].mxu0
    %1700 = vmatprep.mubr.f32.mxu0 %v183
    %1701 = vmatmul.mubr.f32.gmra.mrb[0].mxu0 %v182
    %v1702 = vpop.f32.mrb[0].mxu0
    %v1703 = vadd.f32 0.0, %v1702
    %v1704 = vpop.f32.mrb[0].mxu0
    %1705 = vmatprep.mubr.f32.mxu0 %v187
    %1706 = vmatmul.mubr.f32.gmra.mrb[0].mxu0 %v186
    %v1707 = vpop.f32.mrb[0].mxu0
    %v1708 = vadd.f32 0.0, %v1707
    %v1709 = vpop.f32.mrb[0].mxu0
    %1710 = vmatprep.mubr.f32.mxu0 %v191
    %1711 = vmatmul.mubr.f32.gmra.mrb[0].mxu0 %v190
    %v1712 = vpop.f32.mrb[0].mxu0
    %v1713 = vadd.f32 0.0, %v1712
    %v1714 = vpop.f32.mrb[0].mxu0
    %1715 = vmatprep.mubr.f32.mxu0 %v195
    %1716 = vmatmul.mubr.f32.gmra.mrb[0].mxu0 %v194
    %v1717 = vpop.f32.mrb[0].mxu0
    %v1718 = vadd.f32 0.0, %v1717
    %v1719 = vpop.f32.mrb[0].mxu0
    %1720 = vmatprep.mubr.f32.mxu0 %v199
    %1721 = vmatmul.mubr.f32.gmra.mrb[0].mxu0 %v198
    %v1722 = vpop.f32.mrb[0].mxu0
    %v1723 = vadd.f32 0.0, %v1722
    %v1724 = vpop.f32.mrb[0].mxu0
    %1725 = vmatprep.mubr.f32.mxu0 %v203
    %1726 = vmatmul.mubr.f32.gmra.mrb[0].mxu0 %v202
    %v1727 = vpop.f32.mrb[0].mxu0
    %v1728 = vadd.f32 0.0, %v1727
    %v1729 = vpop.f32.mrb[0].mxu0
    %1730 = vmatprep.mubr.f32.mxu0 %v207
    %1731 = vmatmul.mubr.f32.gmra.mrb[0].mxu0 %v206
    %v1732 = vpop.f32.mrb[0].mxu0
    %v1733 = vadd.f32 0.0, %v1732
    %v1734 = vpop.f32.mrb[0].mxu0
    %1735 = vmatprep.mubr.f32.mxu0 %v211
    %1736 = vmatmul.mubr.f32.gmra.mrb[0].mxu0 %v210
    %v1737 = vpop.f32.mrb[0].mxu0
    %v1738 = vadd.f32 0.0, %v1737
    %v1739 = vpop.f32.mrb[0].mxu0
    %1740 = vmatprep.mubr.f32.mxu0 %v215
    %1741 = vmatmul.mubr.f32.gmra.mrb[0].mxu0 %v214
    %v1742 = vpop.f32.mrb[0].mxu0
    %v1743 = vadd.f32 0.0, %v1742
    %v1744 = vpop.f32.mrb[0].mxu0
    %1745 = vmatprep.mubr.f32.mxu0 %v219
    %1746 = vmatmul.mubr.f32.gmra.mrb[0].mxu0 %v218
    %v1747 = vpop.f32.mrb[0].mxu0
    %v1748 = vadd.f32 0.0, %v1747
    %v1749 = vpop.f32.mrb[0].mxu0
    %1750 = vmatprep.mubr.f32.mxu0 %v223
    %1751 = vmatmul.mubr.f32.gmra.mrb[0].mxu0 %v222
    %v1752 = vpop.f32.mrb[0].mxu0
    %v1753 = vadd.f32 0.0, %v1752
    %v1754 = vpop.f32.mrb[0].mxu0
    %1755 = vmatprep.mubr.f32.mxu0 %v227
    %1756 = vmatmul.mubr.f32.gmra.mrb[0].mxu0 %v226
    %v1757 = vpop.f32.mrb[0].mxu0
    %v1758 = vadd.f32 0.0, %v1757
    %v1759 = vpop.f32.mrb[0].mxu0
    %1760 = vmatprep.mubr.f32.mxu0 %v231
    %1761 = vmatmul.mubr.f32.gmra.mrb[0].mxu0 %v230
    %v1762 = vpop.f32.mrb[0].mxu0
    %v1763 = vadd.f32 0.0, %v1762
    %v1764 = vpop.f32.mrb[0].mxu0
    %1765 = vmatprep.mubr.f32.mxu0 %v235
    %1766 = vmatmul.mubr.f32.gmra.mrb[0].mxu0 %v234
    %v1767 = vpop.f32.mrb[0].mxu0
    %v1768 = vadd.f32 0.0, %v1767
    %v1769 = vpop.f32.mrb[0].mxu0
    %1770 = vmatprep.mubr.f32.mxu0 %v239
    %1771 = vmatmul.mubr.f32.gmra.mrb[0].mxu0 %v238
    %v1772 = vpop.f32.mrb[0].mxu0
    %v1773 = vadd.f32 0.0, %v1772
    %v1774 = vpop.f32.mrb[0].mxu0
    %1775 = vmatprep.mubr.f32.mxu0 %v243
    %1776 = vmatmul.mubr.f32.gmra.mrb[0].mxu0 %v242
    %v1777 = vpop.f32.mrb[0].mxu0
    %v1778 = vadd.f32 0.0, %v1777
    %v1779 = vpop.f32.mrb[0].mxu0
    %1780 = vmatprep.mubr.f32.mxu0 %v247
    %1781 = vmatmul.mubr.f32.gmra.mrb[0].mxu0 %v246
    %v1782 = vpop.f32.mrb[0].mxu0
    %v1783 = vadd.f32 0.0, %v1782
    %v1784 = vpop.f32.mrb[0].mxu0
    %1785 = vmatprep.mubr.f32.mxu0 %v251
    %1786 = vmatmul.mubr.f32.gmra.mrb[0].mxu0 %v250
    %v1787 = vpop.f32.mrb[0].mxu0
    %v1788 = vadd.f32 0.0, %v1787
    %v1789 = vpop.f32.mrb[0].mxu0
    %1790 = vmatprep.mubr.f32.mxu0 %v255
    %1791 = vmatmul.mubr.f32.gmra.mrb[0].mxu0 %v254
    %v1792 = vpop.f32.mrb[0].mxu0
    %v1793 = vadd.f32 0.0, %v1792
    %v1794 = vpop.f32.mrb[0].mxu0
    %1795 = vmatprep.mubr.f32.mxu0 %v259
    %1796 = vmatmul.mubr.f32.gmra.mrb[0].mxu0 %v258
    %v1797 = vpop.f32.mrb[0].mxu0
    %v1798 = vadd.f32 0.0, %v1797
    %v1799 = vpop.f32.mrb[0].mxu0
    %1800 = vmatprep.mubr.f32.mxu0 %v263
    %1801 = vmatmul.mubr.f32.gmra.mrb[0].mxu0 %v262
    %v1802 = vpop.f32.mrb[0].mxu0
    %v1803 = vadd.f32 0.0, %v1802
    %v1804 = vpop.f32.mrb[0].mxu0
    %1805 = vmatprep.mubr.f32.mxu0 %v267
    %1806 = vmatmul.mubr.f32.gmra.mrb[0].mxu0 %v266
    %v1807 = vpop.f32.mrb[0].mxu0
    %v1808 = vadd.f32 0.0, %v1807
    %v1809 = vpop.f32.mrb[0].mxu0
    %1810 = vmatprep.mubr.f32.mxu0 %v271
    %1811 = vmatmul.mubr.f32.gmra.mrb[0].mxu0 %v270
    %v1812 = vpop.f32.mrb[0].mxu0
    %v1813 = vadd.f32 0.0, %v1812
    %v1814 = vpop.f32.mrb[0].mxu0
    %1815 = vmatprep.mubr.f32.mxu0 %v275
    %1816 = vmatmul.mubr.f32.gmra.mrb[0].mxu0 %v274
    %v1817 = vpop.f32.mrb[0].mxu0
    %v1818 = vadd.f32 0.0, %v1817
    %v1819 = vpop.f32.mrb[0].mxu0
    %1820 = vmatprep.mubr.f32.mxu0 %v279
    %1821 = vmatmul.mubr.f32.gmra.mrb[0].mxu0 %v278
    %v1822 = vpop.f32.mrb[0].mxu0
    %v1823 = vadd.f32 0.0, %v1822
    %v1824 = vpop.f32.mrb[0].mxu0
    %1825 = vmatprep.mubr.f32.mxu0 %v283
    %1826 = vmatmul.mubr.f32.gmra.mrb[0].mxu0 %v282
    %v1827 = vpop.f32.mrb[0].mxu0
    %v1828 = vadd.f32 0.0, %v1827
    %v1829 = vpop.f32.mrb[0].mxu0
    %1830 = vmatprep.mubr.f32.mxu0 %v287
    %1831 = vmatmul.mubr.f32.gmra.mrb[0].mxu0 %v286
    %v1832 = vpop.f32.mrb[0].mxu0
    %v1833 = vadd.f32 0.0, %v1832
    %v1834 = vpop.f32.mrb[0].mxu0
    %1835 = vmatprep.mubr.f32.mxu0 %v291
    %1836 = vmatmul.mubr.f32.gmra.mrb[0].mxu0 %v290
    %v1837 = vpop.f32.mrb[0].mxu0
    %v1838 = vadd.f32 0.0, %v1837
    %v1839 = vpop.f32.mrb[0].mxu0
    %1840 = vmatprep.mubr.f32.mxu0 %v295
    %1841 = vmatmul.mubr.f32.gmra.mrb[0].mxu0 %v294
    %v1842 = vpop.f32.mrb[0].mxu0
    %v1843 = vadd.f32 0.0, %v1842
    %v1844 = vpop.f32.mrb[0].mxu0
    %1845 = vmatprep.mubr.f32.mxu0 %v299
    %1846 = vmatmul.mubr.f32.gmra.mrb[0].mxu0 %v298
    %v1847 = vpop.f32.mrb[0].mxu0
    %v1848 = vadd.f32 0.0, %v1847
    %v1849 = vpop.f32.mrb[0].mxu0
    %1850 = vmatprep.mubr.f32.mxu0 %v303
    %1851 = vmatmul.mubr.f32.gmra.mrb[0].mxu0 %v302
    %v1852 = vpop.f32.mrb[0].mxu0
    %v1853 = vadd.f32 0.0, %v1852
    %v1854 = vpop.f32.mrb[0].mxu0
    %1855 = vmatprep.mubr.f32.mxu0 %v307
    %1856 = vmatmul.mubr.f32.gmra.mrb[0].mxu0 %v306
    %v1857 = vpop.f32.mrb[0].mxu0
    %v1858 = vadd.f32 0.0, %v1857
    %v1859 = vpop.f32.mrb[0].mxu0
    %1860 = vmatprep.mubr.f32.mxu0 %v311
    %1861 = vmatmul.mubr.f32.gmra.mrb[0].mxu0 %v310
    %v1862 = vpop.f32.mrb[0].mxu0
    %v1863 = vadd.f32 0.0, %v1862
    %v1864 = vpop.f32.mrb[0].mxu0
    %1865 = vmatprep.mubr.f32.mxu0 %v315
    %1866 = vmatmul.mubr.f32.gmra.mrb[0].mxu0 %v314
    %v1867 = vpop.f32.mrb[0].mxu0
    %v1868 = vadd.f32 0.0, %v1867
    %v1869 = vpop.f32.mrb[0].mxu0
    %1870 = vmatprep.mubr.f32.mxu0 %v319
    %1871 = vmatmul.mubr.f32.gmra.mrb[0].mxu0 %v318
    %v1872 = vpop.f32.mrb[0].mxu0
    %v1873 = vadd.f32 0.0, %v1872
    %v1874 = vpop.f32.mrb[0].mxu0
    %1875 = vmatprep.mubr.f32.mxu0 %v323
    %1876 = vmatmul.mubr.f32.gmra.mrb[0].mxu0 %v322
    %v1877 = vpop.f32.mrb[0].mxu0
    %v1878 = vadd.f32 0.0, %v1877
    %v1879 = vpop.f32.mrb[0].mxu0
    %1880 = vmatprep.mubr.f32.mxu0 %v327
    %1881 = vmatmul.mubr.f32.gmra.mrb[0].mxu0 %v326
    %v1882 = vpop.f32.mrb[0].mxu0
    %v1883 = vadd.f32 0.0, %v1882
    %v1884 = vpop.f32.mrb[0].mxu0
    %1885 = vmatprep.mubr.f32.mxu0 %v331
    %1886 = vmatmul.mubr.f32.gmra.mrb[0].mxu0 %v330
    %v1887 = vpop.f32.mrb[0].mxu0
    %v1888 = vadd.f32 0.0, %v1887
    %v1889 = vpop.f32.mrb[0].mxu0
    %1890 = vmatprep.mubr.f32.mxu0 %v335
    %1891 = vmatmul.mubr.f32.gmra.mrb[0].mxu0 %v334
    %v1892 = vpop.f32.mrb[0].mxu0
    %v1893 = vadd.f32 0.0, %v1892
    %v1894 = vpop.f32.mrb[0].mxu0
    %1895 = vmatprep.mubr.f32.mxu0 %v339
    %1896 = vmatmul.mubr.f32.gmra.mrb[0].mxu0 %v338
    %v1897 = vpop.f32.mrb[0].mxu0
    %v1898 = vadd.f32 0.0, %v1897
    %v1899 = vpop.f32.mrb[0].mxu0
    %1900 = vmatprep.mubr.f32.mxu0 %v343
    %1901 = vmatmul.mubr.f32.gmra.mrb[0].mxu0 %v342
    %v1902 = vpop.f32.mrb[0].mxu0
    %v1903 = vadd.f32 0.0, %v1902
    %v1904 = vpop.f32.mrb[0].mxu0
    %1905 = vmatprep.mubr.f32.mxu0 %v347
    %1906 = vmatmul.mubr.f32.gmra.mrb[0].mxu0 %v346
    %v1907 = vpop.f32.mrb[0].mxu0
    %v1908 = vadd.f32 0.0, %v1907
    %v1909 = vpop.f32.mrb[0].mxu0
    %1910 = vmatprep.mubr.f32.mxu0 %v351
    %1911 = vmatmul.mubr.f32.gmra.mrb[0].mxu0 %v350
    %v1912 = vpop.f32.mrb[0].mxu0
    %v1913 = vadd.f32 0.0, %v1912
    %v1914 = vpop.f32.mrb[0].mxu0
    %1915 = vmatprep.mubr.f32.mxu0 %v355
    %1916 = vmatmul.mubr.f32.gmra.mrb[0].mxu0 %v354
    %v1917 = vpop.f32.mrb[0].mxu0
    %v1918 = vadd.f32 0.0, %v1917
    %v1919 = vpop.f32.mrb[0].mxu0
    %1920 = vmatprep.mubr.f32.mxu0 %v359
    %1921 = vmatmul.mubr.f32.gmra.mrb[0].mxu0 %v358
    %v1922 = vpop.f32.mrb[0].mxu0
    %v1923 = vadd.f32 0.0, %v1922
    %v1924 = vpop.f32.mrb[0].mxu0
    %1925 = vmatprep.mubr.f32.mxu0 %v363
    %1926 = vmatmul.mubr.f32.gmra.mrb[0].mxu0 %v362
    %v1927 = vpop.f32.mrb[0].mxu0
    %v1928 = vadd.f32 0.0, %v1927
    %v1929 = vpop.f32.mrb[0].mxu0
    %1930 = vmatprep.mubr.f32.mxu0 %v367
    %1931 = vmatmul.mubr.f32.gmra.mrb[0].mxu0 %v366
    %v1932 = vpop.f32.mrb[0].mxu0
    %v1933 = vadd.f32 0.0, %v1932
    %v1934 = vpop.f32.mrb[0].mxu0
    %1935 = vmatprep.mubr.f32.mxu0 %v371
    %1936 = vmatmul.mubr.f32.gmra.mrb[0].mxu0 %v370
    %v1937 = vpop.f32.mrb[0].mxu0
    %v1938 = vadd.f32 0.0, %v1937
    %v1939 = vpop.f32.mrb[0].mxu0
    %1940 = vmatprep.mubr.f32.mxu0 %v375
    %1941 = vmatmul.mubr.f32.gmra.mrb[0].mxu0 %v374
    %v1942 = vpop.f32.mrb[0].mxu0
    %v1943 = vadd.f32 0.0, %v1942
    %v1944 = vpop.f32.mrb[0].mxu0
    %1945 = vmatprep.mubr.f32.mxu0 %v379
    %1946 = vmatmul.mubr.f32.gmra.mrb[0].mxu0 %v378
    %v1947 = vpop.f32.mrb[0].mxu0
    %v1948 = vadd.f32 0.0, %v1947
    %v1949 = vpop.f32.mrb[0].mxu0
    %1950 = vmatprep.mubr.f32.mxu0 %v383
    %1951 = vmatmul.mubr.f32.gmra.mrb[0].mxu0 %v382
    %v1952 = vpop.f32.mrb[0].mxu0
    %v1953 = vadd.f32 0.0, %v1952
    %v1954 = vpop.f32.mrb[0].mxu0
    %1955 = vmatprep.mubr.f32.mxu0 %v387
    %1956 = vmatmul.mubr.f32.gmra.mrb[0].mxu0 %v386
    %v1957 = vpop.f32.mrb[0].mxu0
    %v1958 = vadd.f32 0.0, %v1957
    %v1959 = vpop.f32.mrb[0].mxu0
    %1960 = vmatprep.mubr.f32.mxu0 %v391
    %1961 = vmatmul.mubr.f32.gmra.mrb[0].mxu0 %v390
    %v1962 = vpop.f32.mrb[0].mxu0
    %v1963 = vadd.f32 0.0, %v1962
    %v1964 = vpop.f32.mrb[0].mxu0
    %1965 = vmatprep.mubr.f32.mxu0 %v395
    %1966 = vmatmul.mubr.f32.gmra.mrb[0].mxu0 %v394
    %v1967 = vpop.f32.mrb[0].mxu0
    %v1968 = vadd.f32 0.0, %v1967
    %v1969 = vpop.f32.mrb[0].mxu0
    %1970 = vmatprep.mubr.f32.mxu0 %v399
    %1971 = vmatmul.mubr.f32.gmra.mrb[0].mxu0 %v398
    %v1972 = vpop.f32.mrb[0].mxu0
    %v1973 = vadd.f32 0.0, %v1972
    %v1974 = vpop.f32.mrb[0].mxu0
    %1975 = vmatprep.mubr.f32.mxu0 %v403
    %1976 = vmatmul.mubr.f32.gmra.mrb[0].mxu0 %v402
    %v1977 = vpop.f32.mrb[0].mxu0
    %v1978 = vadd.f32 0.0, %v1977
    %v1979 = vpop.f32.mrb[0].mxu0
    %1980 = vmatprep.mubr.f32.mxu0 %v407
    %1981 = vmatmul.mubr.f32.gmra.mrb[0].mxu0 %v406
    %v1982 = vpop.f32.mrb[0].mxu0
    %v1983 = vadd.f32 0.0, %v1982
    %v1984 = vpop.f32.mrb[0].mxu0
    %1985 = vmatprep.mubr.f32.mxu0 %v411
    %1986 = vmatmul.mubr.f32.gmra.mrb[0].mxu0 %v410
    %v1987 = vpop.f32.mrb[0].mxu0
    %v1988 = vadd.f32 0.0, %v1987
    %v1989 = vpop.f32.mrb[0].mxu0
    %1990 = vmatprep.mubr.f32.mxu0 %v415
    %1991 = vmatmul.mubr.f32.gmra.mrb[0].mxu0 %v414
    %v1992 = vpop.f32.mrb[0].mxu0
    %v1993 = vadd.f32 0.0, %v1992
    %v1994 = vpop.f32.mrb[0].mxu0
    %1995 = vmatprep.mubr.f32.mxu0 %v419
    %1996 = vmatmul.mubr.f32.gmra.mrb[0].mxu0 %v418
    %v1997 = vpop.f32.mrb[0].mxu0
    %v1998 = vadd.f32 0.0, %v1997
    %v1999 = vpop.f32.mrb[0].mxu0
    %2000 = vmatprep.mubr.f32.mxu0 %v423
    %2001 = vmatmul.mubr.f32.gmra.mrb[0].mxu0 %v422
    %v2002 = vpop.f32.mrb[0].mxu0
    %v2003 = vadd.f32 0.0, %v2002
    %v2004 = vpop.f32.mrb[0].mxu0
    %2005 = vmatprep.mubr.f32.mxu0 %v427
    %2006 = vmatmul.mubr.f32.gmra.mrb[0].mxu0 %v426
    %v2007 = vpop.f32.mrb[0].mxu0
    %v2008 = vadd.f32 0.0, %v2007
    %v2009 = vpop.f32.mrb[0].mxu0
    %2010 = vmatprep.mubr.f32.mxu0 %v431
    %2011 = vmatmul.mubr.f32.gmra.mrb[0].mxu0 %v430
    %v2012 = vpop.f32.mrb[0].mxu0
    %v2013 = vadd.f32 0.0, %v2012
    %v2014 = vpop.f32.mrb[0].mxu0
    %2015 = vmatprep.mubr.f32.mxu0 %v435
    %2016 = vmatmul.mubr.f32.gmra.mrb[0].mxu0 %v434
    %v2017 = vpop.f32.mrb[0].mxu0
    %v2018 = vadd.f32 0.0, %v2017
    %v2019 = vpop.f32.mrb[0].mxu0
    %2020 = vmatprep.mubr.f32.mxu0 %v439
    %2021 = vmatmul.mubr.f32.gmra.mrb[0].mxu0 %v438
    %v2022 = vpop.f32.mrb[0].mxu0
    %v2023 = vadd.f32 0.0, %v2022
    %v2024 = vpop.f32.mrb[0].mxu0
    %2025 = vmatprep.mubr.f32.mxu0 %v443
    %2026 = vmatmul.mubr.f32.gmra.mrb[0].mxu0 %v442
    %v2027 = vpop.f32.mrb[0].mxu0
    %v2028 = vadd.f32 0.0, %v2027
    %v2029 = vpop.f32.mrb[0].mxu0
    %2030 = vmatprep.mubr.f32.mxu0 %v447
    %2031 = vmatmul.mubr.f32.gmra.mrb[0].mxu0 %v446
    %v2032 = vpop.f32.mrb[0].mxu0
    %v2033 = vadd.f32 0.0, %v2032
    %v2034 = vpop.f32.mrb[0].mxu0
    %2035 = vmatprep.mubr.f32.mxu0 %v451
    %2036 = vmatmul.mubr.f32.gmra.mrb[0].mxu0 %v450
    %v2037 = vpop.f32.mrb[0].mxu0
    %v2038 = vadd.f32 0.0, %v2037
    %v2039 = vpop.f32.mrb[0].mxu0
    %2040 = vmatprep.mubr.f32.mxu0 %v455
    %2041 = vmatmul.mubr.f32.gmra.mrb[0].mxu0 %v454
    %v2042 = vpop.f32.mrb[0].mxu0
    %v2043 = vadd.f32 0.0, %v2042
    %v2044 = vpop.f32.mrb[0].mxu0
    %2045 = vmatprep.mubr.f32.mxu0 %v459
    %2046 = vmatmul.mubr.f32.gmra.mrb[0].mxu0 %v458
    %v2047 = vpop.f32.mrb[0].mxu0
    %v2048 = vadd.f32 0.0, %v2047
    %v2049 = vpop.f32.mrb[0].mxu0
    %2050 = vmatprep.mubr.f32.mxu0 %v463
    %2051 = vmatmul.mubr.f32.gmra.mrb[0].mxu0 %v462
    %v2052 = vpop.f32.mrb[0].mxu0
    %v2053 = vadd.f32 0.0, %v2052
    %v2054 = vpop.f32.mrb[0].mxu0
    %2055 = vmatprep.mubr.f32.mxu0 %v467
    %2056 = vmatmul.mubr.f32.gmra.mrb[0].mxu0 %v466
    %v2057 = vpop.f32.mrb[0].mxu0
    %v2058 = vadd.f32 0.0, %v2057
    %v2059 = vpop.f32.mrb[0].mxu0
    %2060 = vmatprep.mubr.f32.mxu0 %v471
    %2061 = vmatmul.mubr.f32.gmra.mrb[0].mxu0 %v470
    %v2062 = vpop.f32.mrb[0].mxu0
    %v2063 = vadd.f32 0.0, %v2062
    %v2064 = vpop.f32.mrb[0].mxu0
    %2065 = vmatprep.mubr.f32.mxu0 %v475
    %2066 = vmatmul.mubr.f32.gmra.mrb[0].mxu0 %v474
    %v2067 = vpop.f32.mrb[0].mxu0
    %v2068 = vadd.f32 0.0, %v2067
    %v2069 = vpop.f32.mrb[0].mxu0
    %2070 = vmatprep.mubr.f32.mxu0 %v479
    %2071 = vmatmul.mubr.f32.gmra.mrb[0].mxu0 %v478
    %v2072 = vpop.f32.mrb[0].mxu0
    %v2073 = vadd.f32 0.0, %v2072
    %v2074 = vpop.f32.mrb[0].mxu0
    %2075 = vmatprep.mubr.f32.mxu0 %v483
    %2076 = vmatmul.mubr.f32.gmra.mrb[0].mxu0 %v482
    %v2077 = vpop.f32.mrb[0].mxu0
    %v2078 = vadd.f32 0.0, %v2077
    %v2079 = vpop.f32.mrb[0].mxu0
    %2080 = vmatprep.mubr.f32.mxu0 %v487
    %2081 = vmatmul.mubr.f32.gmra.mrb[0].mxu0 %v486
    %v2082 = vpop.f32.mrb[0].mxu0
    %v2083 = vadd.f32 0.0, %v2082
    %v2084 = vpop.f32.mrb[0].mxu0
    %2085 = vmatprep.mubr.f32.mxu0 %v491
    %2086 = vmatmul.mubr.f32.gmra.mrb[0].mxu0 %v490
    %v2087 = vpop.f32.mrb[0].mxu0
    %v2088 = vadd.f32 0.0, %v2087
    %v2089 = vpop.f32.mrb[0].mxu0
    %2090 = vmatprep.mubr.f32.mxu0 %v495
    %2091 = vmatmul.mubr.f32.gmra.mrb[0].mxu0 %v494
    %v2092 = vpop.f32.mrb[0].mxu0
    %v2093 = vadd.f32 0.0, %v2092
    %v2094 = vpop.f32.mrb[0].mxu0
    %2095 = vmatprep.mubr.f32.mxu0 %v499
    %2096 = vmatmul.mubr.f32.gmra.mrb[0].mxu0 %v498
    %v2097 = vpop.f32.mrb[0].mxu0
    %v2098 = vadd.f32 0.0, %v2097
    %v2099 = vpop.f32.mrb[0].mxu0
    %2100 = vmatprep.mubr.f32.mxu0 %v503
    %2101 = vmatmul.mubr.f32.gmra.mrb[0].mxu0 %v502
    %v2102 = vpop.f32.mrb[0].mxu0
    %v2103 = vadd.f32 0.0, %v2102
    %v2104 = vpop.f32.mrb[0].mxu0
    %2105 = vmatprep.mubr.f32.mxu0 %v507
    %2106 = vmatmul.mubr.f32.gmra.mrb[0].mxu0 %v506
    %v2107 = vpop.f32.mrb[0].mxu0
    %v2108 = vadd.f32 0.0, %v2107
    %v2109 = vpop.f32.mrb[0].mxu0
    %2110 = vmatprep.mubr.f32.mxu0 %v511
    %2111 = vmatmul.mubr.f32.gmra.mrb[0].mxu0 %v510
    %v2112 = vpop.f32.mrb[0].mxu0
    %v2113 = vadd.f32 0.0, %v2112
    %v2114 = vpop.f32.mrb[0].mxu0
    %2115 = vmatprep.mubr.f32.mxu0 %v515
    %2116 = vmatmul.mubr.f32.gmra.mrb[0].mxu0 %v514
    %v2117 = vpop.f32.mrb[0].mxu0
    %v2118 = vadd.f32 0.0, %v2117
    %v2119 = vpop.f32.mrb[0].mxu0
    %2120 = vmatprep.mubr.f32.mxu0 %v519
    %2121 = vmatmul.mubr.f32.gmra.mrb[0].mxu0 %v518
    %v2122 = vpop.f32.mrb[0].mxu0
    %v2123 = vadd.f32 0.0, %v2122
    %v2124 = vpop.f32.mrb[0].mxu0
    %2125 = vmatprep.mubr.f32.mxu0 %v523
    %2126 = vmatmul.mubr.f32.gmra.mrb[0].mxu0 %v522
    %v2127 = vpop.f32.mrb[0].mxu0
    %v2128 = vadd.f32 0.0, %v2127
    %v2129 = vpop.f32.mrb[0].mxu0
    %2130 = vmatprep.mubr.f32.mxu0 %v527
    %2131 = vmatmul.mubr.f32.gmra.mrb[0].mxu0 %v526
    %v2132 = vpop.f32.mrb[0].mxu0
    %v2133 = vadd.f32 0.0, %v2132
    %v2134 = vpop.f32.mrb[0].mxu0
    %2135 = vmatprep.mubr.f32.mxu0 %v531
    %2136 = vmatmul.mubr.f32.gmra.mrb[0].mxu0 %v530
    %v2137 = vpop.f32.mrb[0].mxu0
    %v2138 = vadd.f32 0.0, %v2137
    %v2139 = vpop.f32.mrb[0].mxu0
    %2140 = vmatprep.mubr.f32.mxu0 %v535
    %2141 = vmatmul.mubr.f32.gmra.mrb[0].mxu0 %v534
    %v2142 = vpop.f32.mrb[0].mxu0
    %v2143 = vadd.f32 0.0, %v2142
    %v2144 = vpop.f32.mrb[0].mxu0
    %2145 = vmatprep.mubr.f32.mxu0 %v539
    %2146 = vmatmul.mubr.f32.gmra.mrb[0].mxu0 %v538
    %v2147 = vpop.f32.mrb[0].mxu0
    %v2148 = vadd.f32 0.0, %v2147
    %v2149 = vpop.f32.mrb[0].mxu0
    %2150 = vmatprep.mubr.f32.mxu0 %v543
    %2151 = vmatmul.mubr.f32.gmra.mrb[0].mxu0 %v542
    %v2152 = vpop.f32.mrb[0].mxu0
    %v2153 = vadd.f32 0.0, %v2152
    %v2154 = vpop.f32.mrb[0].mxu0
    %2155 = vmatprep.mubr.f32.mxu0 %v547
    %2156 = vmatmul.mubr.f32.gmra.mrb[0].mxu0 %v546
    %v2157 = vpop.f32.mrb[0].mxu0
    %v2158 = vadd.f32 0.0, %v2157
    %v2159 = vpop.f32.mrb[0].mxu0
    %2160 = vmatprep.mubr.f32.mxu0 %v551
    %2161 = vmatmul.mubr.f32.gmra.mrb[0].mxu0 %v550
    %v2162 = vpop.f32.mrb[0].mxu0
    %v2163 = vadd.f32 0.0, %v2162
    %v2164 = vpop.f32.mrb[0].mxu0
    %2165 = vmatprep.mubr.f32.mxu0 %v555
    %2166 = vmatmul.mubr.f32.gmra.mrb[0].mxu0 %v554
    %v2167 = vpop.f32.mrb[0].mxu0
    %v2168 = vadd.f32 0.0, %v2167
    %v2169 = vpop.f32.mrb[0].mxu0
    %2170 = vmatprep.mubr.f32.mxu0 %v559
    %2171 = vmatmul.mubr.f32.gmra.mrb[0].mxu0 %v558
    %v2172 = vpop.f32.mrb[0].mxu0
    %v2173 = vadd.f32 0.0, %v2172
    %v2174 = vpop.f32.mrb[0].mxu0
    %2175 = vmatprep.mubr.f32.mxu0 %v563
    %2176 = vmatmul.mubr.f32.gmra.mrb[0].mxu0 %v562
    %v2177 = vpop.f32.mrb[0].mxu0
    %v2178 = vadd.f32 0.0, %v2177
    %v2179 = vpop.f32.mrb[0].mxu0
    %2180 = vmatprep.mubr.f32.mxu0 %v567
    %2181 = vmatmul.mubr.f32.gmra.mrb[0].mxu0 %v566
    %v2182 = vpop.f32.mrb[0].mxu0
    %v2183 = vadd.f32 0.0, %v2182
    %v2184 = vpop.f32.mrb[0].mxu0
    %2185 = vmatprep.mubr.f32.mxu0 %v571
    %2186 = vmatmul.mubr.f32.gmra.mrb[0].mxu0 %v570
    %v2187 = vpop.f32.mrb[0].mxu0
    %v2188 = vadd.f32 0.0, %v2187
    %v2189 = vpop.f32.mrb[0].mxu0
    %2190 = vmatprep.mubr.f32.mxu0 %v575
    %2191 = vmatmul.mubr.f32.gmra.mrb[0].mxu0 %v574
    %v2192 = vpop.f32.mrb[0].mxu0
    %v2193 = vadd.f32 0.0, %v2192
    %v2194 = vpop.f32.mrb[0].mxu0
    %2195 = vmatprep.mubr.f32.mxu0 %v579
    %2196 = vmatmul.mubr.f32.gmra.mrb[0].mxu0 %v578
    %v2197 = vpop.f32.mrb[0].mxu0
    %v2198 = vadd.f32 0.0, %v2197
    %v2199 = vpop.f32.mrb[0].mxu0
    %2200 = vmatprep.mubr.f32.mxu0 %v583
    %2201 = vmatmul.mubr.f32.gmra.mrb[0].mxu0 %v582
    %v2202 = vpop.f32.mrb[0].mxu0
    %v2203 = vadd.f32 0.0, %v2202
    %v2204 = vpop.f32.mrb[0].mxu0
    %2205 = vmatprep.mubr.f32.mxu0 %v587
    %2206 = vmatmul.mubr.f32.gmra.mrb[0].mxu0 %v586
    %v2207 = vpop.f32.mrb[0].mxu0
    %v2208 = vadd.f32 0.0, %v2207
    %v2209 = vpop.f32.mrb[0].mxu0
    %2210 = vmatprep.mubr.f32.mxu0 %v591
    %2211 = vmatmul.mubr.f32.gmra.mrb[0].mxu0 %v590
    %v2212 = vpop.f32.mrb[0].mxu0
    %v2213 = vadd.f32 0.0, %v2212
    %v2214 = vpop.f32.mrb[0].mxu0
    %2215 = vmatprep.mubr.f32.mxu0 %v595
    %2216 = vmatmul.mubr.f32.gmra.mrb[0].mxu0 %v594
    %v2217 = vpop.f32.mrb[0].mxu0
    %v2218 = vadd.f32 0.0, %v2217
    %v2219 = vpop.f32.mrb[0].mxu0
    %2220 = vmatprep.mubr.f32.mxu0 %v599
    %2221 = vmatmul.mubr.f32.gmra.mrb[0].mxu0 %v598
    %v2222 = vpop.f32.mrb[0].mxu0
    %v2223 = vadd.f32 0.0, %v2222
    %v2224 = vpop.f32.mrb[0].mxu0
    %2225 = vmatprep.mubr.f32.mxu0 %v603
    %2226 = vmatmul.mubr.f32.gmra.mrb[0].mxu0 %v602
    %v2227 = vpop.f32.mrb[0].mxu0
    %v2228 = vadd.f32 0.0, %v2227
    %v2229 = vpop.f32.mrb[0].mxu0
    %2230 = vmatprep.mubr.f32.mxu0 %v607
    %2231 = vmatmul.mubr.f32.gmra.mrb[0].mxu0 %v606
    %v2232 = vpop.f32.mrb[0].mxu0
    %v2233 = vadd.f32 0.0, %v2232
    %v2234 = vpop.f32.mrb[0].mxu0
    %2235 = vmatprep.mubr.f32.mxu0 %v611
    %2236 = vmatmul.mubr.f32.gmra.mrb[0].mxu0 %v610
    %v2237 = vpop.f32.mrb[0].mxu0
    %v2238 = vadd.f32 0.0, %v2237
    %v2239 = vpop.f32.mrb[0].mxu0
    %2240 = vmatprep.mubr.f32.mxu0 %v615
    %2241 = vmatmul.mubr.f32.gmra.mrb[0].mxu0 %v614
    %v2242 = vpop.f32.mrb[0].mxu0
    %v2243 = vadd.f32 0.0, %v2242
    %v2244 = vpop.f32.mrb[0].mxu0
    %2245 = vmatprep.mubr.f32.mxu0 %v619
    %2246 = vmatmul.mubr.f32.gmra.mrb[0].mxu0 %v618
    %v2247 = vpop.f32.mrb[0].mxu0
    %v2248 = vadd.f32 0.0, %v2247
    %v2249 = vpop.f32.mrb[0].mxu0
    %2250 = vmatprep.mubr.f32.mxu0 %v623
    %2251 = vmatmul.mubr.f32.gmra.mrb[0].mxu0 %v622
    %v2252 = vpop.f32.mrb[0].mxu0
    %v2253 = vadd.f32 0.0, %v2252
    %v2254 = vpop.f32.mrb[0].mxu0
    %2255 = vmatprep.mubr.f32.mxu0 %v627
    %2256 = vmatmul.mubr.f32.gmra.mrb[0].mxu0 %v626
    %v2257 = vpop.f32.mrb[0].mxu0
    %v2258 = vadd.f32 0.0, %v2257
    %v2259 = vpop.f32.mrb[0].mxu0
    %2260 = vmatprep.mubr.f32.mxu0 %v631
    %2261 = vmatmul.mubr.f32.gmra.mrb[0].mxu0 %v630
    %v2262 = vpop.f32.mrb[0].mxu0
    %v2263 = vadd.f32 0.0, %v2262
    %v2264 = vpop.f32.mrb[0].mxu0
    %2265 = vmatprep.mubr.f32.mxu0 %v635
    %2266 = vmatmul.mubr.f32.gmra.mrb[0].mxu0 %v634
    %v2267 = vpop.f32.mrb[0].mxu0
    %v2268 = vadd.f32 0.0, %v2267
    %v2269 = vpop.f32.mrb[0].mxu0
    %2270 = vmatprep.mubr.f32.mxu0 %v639
    %2271 = vmatmul.mubr.f32.gmra.mrb[0].mxu0 %v638
    %v2272 = vpop.f32.mrb[0].mxu0
    %v2273 = vadd.f32 0.0, %v2272
    %v2274 = vpop.f32.mrb[0].mxu0
    %2275 = vmatprep.mubr.f32.mxu0 %v643
    %2276 = vmatmul.mubr.f32.gmra.mrb[0].mxu0 %v642
    %v2277 = vpop.f32.mrb[0].mxu0
    %v2278 = vadd.f32 0.0, %v2277
    %v2279 = vpop.f32.mrb[0].mxu0
    %2280 = vmatprep.mubr.f32.mxu0 %v647
    %2281 = vmatmul.mubr.f32.gmra.mrb[0].mxu0 %v646
    %v2282 = vpop.f32.mrb[0].mxu0
    %v2283 = vadd.f32 0.0, %v2282
    %v2284 = vpop.f32.mrb[0].mxu0
    %2285 = vmatprep.mubr.f32.mxu0 %v651
    %2286 = vmatmul.mubr.f32.gmra.mrb[0].mxu0 %v650
    %v2287 = vpop.f32.mrb[0].mxu0
    %v2288 = vadd.f32 0.0, %v2287
    %v2289 = vpop.f32.mrb[0].mxu0
    %2290 = vmatprep.mubr.f32.mxu0 %v655
    %2291 = vmatmul.mubr.f32.gmra.mrb[0].mxu0 %v654
    %v2292 = vpop.f32.mrb[0].mxu0
    %v2293 = vadd.f32 0.0, %v2292
    %v2294 = vpop.f32.mrb[0].mxu0
    %2295 = vmatprep.mubr.f32.mxu0 %v659
    %2296 = vmatmul.mubr.f32.gmra.mrb[0].mxu0 %v658
    %v2297 = vpop.f32.mrb[0].mxu0
    %v2298 = vadd.f32 0.0, %v2297
    %v2299 = vpop.f32.mrb[0].mxu0
    %2300 = vmatprep.mubr.f32.mxu0 %v663
    %2301 = vmatmul.mubr.f32.gmra.mrb[0].mxu0 %v662
    %v2302 = vpop.f32.mrb[0].mxu0
    %v2303 = vadd.f32 0.0, %v2302
    %v2304 = vpop.f32.mrb[0].mxu0
    %2305 = vmatprep.mubr.f32.mxu0 %v667
    %2306 = vmatmul.mubr.f32.gmra.mrb[0].mxu0 %v666
    %v2307 = vpop.f32.mrb[0].mxu0
    %v2308 = vadd.f32 0.0, %v2307
    %v2309 = vpop.f32.mrb[0].mxu0
    %2310 = vmatprep.mubr.f32.mxu0 %v671
    %2311 = vmatmul.mubr.f32.gmra.mrb[0].mxu0 %v670
    %v2312 = vpop.f32.mrb[0].mxu0
    %v2313 = vadd.f32 0.0, %v2312
    %v2314 = vpop.f32.mrb[0].mxu0
    %2315 = vmatprep.mubr.f32.mxu0 %v675
    %2316 = vmatmul.mubr.f32.gmra.mrb[0].mxu0 %v674
    %v2317 = vpop.f32.mrb[0].mxu0
    %v2318 = vadd.f32 0.0, %v2317
    %v2319 = vpop.f32.mrb[0].mxu0
    %2320 = vmatprep.mubr.f32.mxu0 %v679
    %2321 = vmatmul.mubr.f32.gmra.mrb[0].mxu0 %v678
    %v2322 = vpop.f32.mrb[0].mxu0
    %v2323 = vadd.f32 0.0, %v2322
    %v2324 = vpop.f32.mrb[0].mxu0
    %2325 = vmatprep.mubr.f32.mxu0 %v683
    %2326 = vmatmul.mubr.f32.gmra.mrb[0].mxu0 %v682
    %v2327 = vpop.f32.mrb[0].mxu0
    %v2328 = vadd.f32 0.0, %v2327
    %v2329 = vpop.f32.mrb[0].mxu0
    %2330 = vmatprep.mubr.f32.mxu0 %v687
    %2331 = vmatmul.mubr.f32.gmra.mrb[0].mxu0 %v686
    %v2332 = vpop.f32.mrb[0].mxu0
    %v2333 = vadd.f32 0.0, %v2332
    %v2334 = vpop.f32.mrb[0].mxu0
    %2335 = vmatprep.mubr.f32.mxu0 %v691
    %2336 = vmatmul.mubr.f32.gmra.mrb[0].mxu0 %v690
    %v2337 = vpop.f32.mrb[0].mxu0
    %v2338 = vadd.f32 0.0, %v2337
    %v2339 = vpop.f32.mrb[0].mxu0
    %2340 = vmatprep.mubr.f32.mxu0 %v695
    %2341 = vmatmul.mubr.f32.gmra.mrb[0].mxu0 %v694
    %v2342 = vpop.f32.mrb[0].mxu0
    %v2343 = vadd.f32 0.0, %v2342
    %v2344 = vpop.f32.mrb[0].mxu0
    %2345 = vmatprep.mubr.f32.mxu0 %v699
    %2346 = vmatmul.mubr.f32.gmra.mrb[0].mxu0 %v698
    %v2347 = vpop.f32.mrb[0].mxu0
    %v2348 = vadd.f32 0.0, %v2347
    %v2349 = vpop.f32.mrb[0].mxu0
    %2350 = vmatprep.mubr.f32.mxu0 %v703
    %2351 = vmatmul.mubr.f32.gmra.mrb[0].mxu0 %v702
    %v2352 = vpop.f32.mrb[0].mxu0
    %v2353 = vadd.f32 0.0, %v2352
    %v2354 = vpop.f32.mrb[0].mxu0
    %2355 = vmatprep.mubr.f32.mxu0 %v707
    %2356 = vmatmul.mubr.f32.gmra.mrb[0].mxu0 %v706
    %v2357 = vpop.f32.mrb[0].mxu0
    %v2358 = vadd.f32 0.0, %v2357
    %v2359 = vpop.f32.mrb[0].mxu0
    %2360 = vmatprep.mubr.f32.mxu0 %v711
    %2361 = vmatmul.mubr.f32.gmra.mrb[0].mxu0 %v710
    %v2362 = vpop.f32.mrb[0].mxu0
    %v2363 = vadd.f32 0.0, %v2362
    %v2364 = vpop.f32.mrb[0].mxu0
    %2365 = vmatprep.mubr.f32.mxu0 %v715
    %2366 = vmatmul.mubr.f32.gmra.mrb[0].mxu0 %v714
    %v2367 = vpop.f32.mrb[0].mxu0
    %v2368 = vadd.f32 0.0, %v2367
    %v2369 = vpop.f32.mrb[0].mxu0
    %2370 = vmatprep.mubr.f32.mxu0 %v719
    %2371 = vmatmul.mubr.f32.gmra.mrb[0].mxu0 %v718
    %v2372 = vpop.f32.mrb[0].mxu0
    %v2373 = vadd.f32 0.0, %v2372
    %v2374 = vpop.f32.mrb[0].mxu0
    %2375 = vmatprep.mubr.f32.mxu0 %v723
    %2376 = vmatmul.mubr.f32.gmra.mrb[0].mxu0 %v722
    %v2377 = vpop.f32.mrb[0].mxu0
    %v2378 = vadd.f32 0.0, %v2377
    %v2379 = vpop.f32.mrb[0].mxu0
    %2380 = vmatprep.mubr.f32.mxu0 %v727
    %2381 = vmatmul.mubr.f32.gmra.mrb[0].mxu0 %v726
    %v2382 = vpop.f32.mrb[0].mxu0
    %v2383 = vadd.f32 0.0, %v2382
    %v2384 = vpop.f32.mrb[0].mxu0
    %2385 = vmatprep.mubr.f32.mxu0 %v731
    %2386 = vmatmul.mubr.f32.gmra.mrb[0].mxu0 %v730
    %v2387 = vpop.f32.mrb[0].mxu0
    %v2388 = vadd.f32 0.0, %v2387
    %v2389 = vpop.f32.mrb[0].mxu0
    %2390 = vmatprep.mubr.f32.mxu0 %v735
    %2391 = vmatmul.mubr.f32.gmra.mrb[0].mxu0 %v734
    %v2392 = vpop.f32.mrb[0].mxu0
    %v2393 = vadd.f32 0.0, %v2392
    %v2394 = vpop.f32.mrb[0].mxu0
    %2395 = vmatprep.mubr.f32.mxu0 %v739
    %2396 = vmatmul.mubr.f32.gmra.mrb[0].mxu0 %v738
    %v2397 = vpop.f32.mrb[0].mxu0
    %v2398 = vadd.f32 0.0, %v2397
    %v2399 = vpop.f32.mrb[0].mxu0
    %2400 = vmatprep.mubr.f32.mxu0 %v743
    %2401 = vmatmul.mubr.f32.gmra.mrb[0].mxu0 %v742
    %v2402 = vpop.f32.mrb[0].mxu0
    %v2403 = vadd.f32 0.0, %v2402
    %v2404 = vpop.f32.mrb[0].mxu0
    %2405 = vmatprep.mubr.f32.mxu0 %v747
    %2406 = vmatmul.mubr.f32.gmra.mrb[0].mxu0 %v746
    %v2407 = vpop.f32.mrb[0].mxu0
    %v2408 = vadd.f32 0.0, %v2407
    %v2409 = vpop.f32.mrb[0].mxu0
    %2410 = vmatprep.mubr.f32.mxu0 %v751
    %2411 = vmatmul.mubr.f32.gmra.mrb[0].mxu0 %v750
    %v2412 = vpop.f32.mrb[0].mxu0
    %v2413 = vadd.f32 0.0, %v2412
    %v2414 = vpop.f32.mrb[0].mxu0
    %2415 = vmatprep.mubr.f32.mxu0 %v755
    %2416 = vmatmul.mubr.f32.gmra.mrb[0].mxu0 %v754
    %v2417 = vpop.f32.mrb[0].mxu0
    %v2418 = vadd.f32 0.0, %v2417
    %v2419 = vpop.f32.mrb[0].mxu0
    %2420 = vmatprep.mubr.f32.mxu0 %v759
    %2421 = vmatmul.mubr.f32.gmra.mrb[0].mxu0 %v758
    %v2422 = vpop.f32.mrb[0].mxu0
    %v2423 = vadd.f32 0.0, %v2422
    %v2424 = vpop.f32.mrb[0].mxu0
    %2425 = vmatprep.mubr.f32.mxu0 %v763
    %2426 = vmatmul.mubr.f32.gmra.mrb[0].mxu0 %v762
    %v2427 = vpop.f32.mrb[0].mxu0
    %v2428 = vadd.f32 0.0, %v2427
    %v2429 = vpop.f32.mrb[0].mxu0
    %2430 = vmatprep.mubr.f32.mxu0 %v767
    %2431 = vmatmul.mubr.f32.gmra.mrb[0].mxu0 %v766
    %v2432 = vpop.f32.mrb[0].mxu0
    %v2433 = vadd.f32 0.0, %v2432
    %v2434 = vpop.f32.mrb[0].mxu0
    %2435 = vmatprep.mubr.f32.mxu0 %v771
    %2436 = vmatmul.mubr.f32.gmra.mrb[0].mxu0 %v770
    %v2437 = vpop.f32.mrb[0].mxu0
    %v2438 = vadd.f32 0.0, %v2437
    %v2439 = vpop.f32.mrb[0].mxu0
    %2440 = vmatprep.mubr.f32.mxu0 %v775
    %2441 = vmatmul.mubr.f32.gmra.mrb[0].mxu0 %v774
    %v2442 = vpop.f32.mrb[0].mxu0
    %v2443 = vadd.f32 0.0, %v2442
    %v2444 = vpop.f32.mrb[0].mxu0
    %2445 = vmatprep.mubr.f32.mxu0 %v779
    %2446 = vmatmul.mubr.f32.gmra.mrb[0].mxu0 %v778
    %v2447 = vpop.f32.mrb[0].mxu0
    %v2448 = vadd.f32 0.0, %v2447
    %v2449 = vpop.f32.mrb[0].mxu0
    %2450 = vmatprep.mubr.f32.mxu0 %v783
    %2451 = vmatmul.mubr.f32.gmra.mrb[0].mxu0 %v782
    %v2452 = vpop.f32.mrb[0].mxu0
    %v2453 = vadd.f32 0.0, %v2452
    %v2454 = vpop.f32.mrb[0].mxu0
    %2455 = vmatprep.mubr.f32.mxu0 %v787
    %2456 = vmatmul.mubr.f32.gmra.mrb[0].mxu0 %v786
    %v2457 = vpop.f32.mrb[0].mxu0
    %v2458 = vadd.f32 0.0, %v2457
    %v2459 = vpop.f32.mrb[0].mxu0
    %2460 = vmatprep.mubr.f32.mxu0 %v791
    %2461 = vmatmul.mubr.f32.gmra.mrb[0].mxu0 %v790
    %v2462 = vpop.f32.mrb[0].mxu0
    %v2463 = vadd.f32 0.0, %v2462
    %v2464 = vpop.f32.mrb[0].mxu0
    %2465 = vmatprep.mubr.f32.mxu0 %v795
    %2466 = vmatmul.mubr.f32.gmra.mrb[0].mxu0 %v794
    %v2467 = vpop.f32.mrb[0].mxu0
    %v2468 = vadd.f32 0.0, %v2467
    %v2469 = vpop.f32.mrb[0].mxu0
    %2470 = vmatprep.mubr.f32.mxu0 %v799
    %2471 = vmatmul.mubr.f32.gmra.mrb[0].mxu0 %v798
    %v2472 = vpop.f32.mrb[0].mxu0
    %v2473 = vadd.f32 0.0, %v2472
    %v2474 = vpop.f32.mrb[0].mxu0
    %2475 = vmatprep.mubr.f32.mxu0 %v803
    %2476 = vmatmul.mubr.f32.gmra.mrb[0].mxu0 %v802
    %v2477 = vpop.f32.mrb[0].mxu0
    %v2478 = vadd.f32 0.0, %v2477
    %v2479 = vpop.f32.mrb[0].mxu0
    %2480 = vmatprep.mubr.f32.mxu0 %v807
    %2481 = vmatmul.mubr.f32.gmra.mrb[0].mxu0 %v806
    %v2482 = vpop.f32.mrb[0].mxu0
    %v2483 = vadd.f32 0.0, %v2482
    %v2484 = vpop.f32.mrb[0].mxu0
    %2485 = vmatprep.mubr.f32.mxu0 %v811
    %2486 = vmatmul.mubr.f32.gmra.mrb[0].mxu0 %v810
    %v2487 = vpop.f32.mrb[0].mxu0
    %v2488 = vadd.f32 0.0, %v2487
    %v2489 = vpop.f32.mrb[0].mxu0
    %2490 = vmatprep.mubr.f32.mxu0 %v815
    %2491 = vmatmul.mubr.f32.gmra.mrb[0].mxu0 %v814
    %v2492 = vpop.f32.mrb[0].mxu0
    %v2493 = vadd.f32 0.0, %v2492
    %v2494 = vpop.f32.mrb[0].mxu0
    %2495 = vmatprep.mubr.f32.mxu0 %v819
    %2496 = vmatmul.mubr.f32.gmra.mrb[0].mxu0 %v818
    %v2497 = vpop.f32.mrb[0].mxu0
    %v2498 = vadd.f32 0.0, %v2497
    %v2499 = vpop.f32.mrb[0].mxu0
    %2500 = vmatprep.mubr.f32.mxu0 %v823
    %2501 = vmatmul.mubr.f32.gmra.mrb[0].mxu0 %v822
    %v2502 = vpop.f32.mrb[0].mxu0
    %v2503 = vadd.f32 0.0, %v2502
    %v2504 = vpop.f32.mrb[0].mxu0
    %2505 = vmatprep.mubr.f32.mxu0 %v827
    %2506 = vmatmul.mubr.f32.gmra.mrb[0].mxu0 %v826
    %v2507 = vpop.f32.mrb[0].mxu0
    %v2508 = vadd.f32 0.0, %v2507
    %v2509 = vpop.f32.mrb[0].mxu0
    %2510 = vmatprep.mubr.f32.mxu0 %v831
    %2511 = vmatmul.mubr.f32.gmra.mrb[0].mxu0 %v830
    %v2512 = vpop.f32.mrb[0].mxu0
    %v2513 = vadd.f32 0.0, %v2512
    %v2514 = vpop.f32.mrb[0].mxu0
    %2515 = vmatprep.mubr.f32.mxu0 %v835
    %2516 = vmatmul.mubr.f32.gmra.mrb[0].mxu0 %v834
    %v2517 = vpop.f32.mrb[0].mxu0
    %v2518 = vadd.f32 0.0, %v2517
    %v2519 = vpop.f32.mrb[0].mxu0
    %2520 = vmatprep.mubr.f32.mxu0 %v839
    %2521 = vmatmul.mubr.f32.gmra.mrb[0].mxu0 %v838
    %v2522 = vpop.f32.mrb[0].mxu0
    %v2523 = vadd.f32 0.0, %v2522
    %v2524 = vpop.f32.mrb[0].mxu0
    %2525 = vdwg.mxu0
    %2526 = vmatprep.subr.mxu0 0.0
    %2527 = vmatpush1.msra.mxu0 %v874
    %2528 = vmatprep.subr.mxu0 0.0
    %2529 = vmatpush1.msra.mxu0 %v875
    %2530 = vmatprep.subr.mxu0 0.0
    %2531 = vmatpush1.msra.mxu0 %v876
    %2532 = vmatprep.subr.mxu0 0.0
    %2533 = vmatpush1.msra.mxu0 %v877
    %2534 = vmatprep.subr.mxu0 0.0
    %2535 = vmatpush1.msra.mxu0 %v878
    %2536 = vmatprep.subr.mxu0 0.0
    %2537 = vmatpush1.msra.mxu0 %v879
    %2538 = vmatprep.subr.mxu0 0.0
    %2539 = vmatpush1.msra.mxu0 %v880
    %2540 = vmatprep.subr.mxu0 0.0
    %2541 = vmatpush1.msra.mxu0 %v881
    %2542 = vmatprep.subr.mxu0 0.0
    %2543 = vmatpush1.msra.mxu0 %v882
    %2544 = vmatprep.subr.mxu0 0.0
    %2545 = vmatpush1.msra.mxu0 %v883
    %2546 = vmatprep.subr.mxu0 0.0
    %2547 = vmatpush1.msra.mxu0 %v884
    %2548 = vmatprep.subr.mxu0 0.0
    %2549 = vmatpush1.msra.mxu0 %v885
    %2550 = vmatprep.subr.mxu0 0.0
    %2551 = vmatpush1.msra.mxu0 %v886
    %2552 = vmatprep.subr.mxu0 0.0
    %2553 = vmatpush1.msra.mxu0 %v887
    %2554 = vmatprep.subr.mxu0 0.0
    %2555 = vmatpush1.msra.mxu0 %v888
    %2556 = vmatprep.subr.mxu0 0.0
    %2557 = vmatpush1.msra.mxu0 %v889
    %2558 = vmatprep.subr.mxu0 0.0
    %2559 = vmatpush1.msra.mxu0 %v890
    %2560 = vmatprep.subr.mxu0 0.0
    %2561 = vmatpush1.msra.mxu0 %v891
    %2562 = vmatprep.subr.mxu0 0.0
    %2563 = vmatpush1.msra.mxu0 0.0
    %2564 = vmatprep.subr.mxu0 0.0
    %2565 = vmatpush1.msra.mxu0 0.0
    %2566 = vmatprep.subr.mxu0 0.0
    %2567 = vmatpush1.msra.mxu0 0.0
    %2568 = vmatprep.subr.mxu0 0.0
    %2569 = vmatpush1.msra.mxu0 0.0
    %2570 = vmatprep.subr.mxu0 0.0
    %2571 = vmatpush1.msra.mxu0 0.0
    %2572 = vmatprep.subr.mxu0 0.0
    %2573 = vmatpush1.msra.mxu0 0.0
    %2574 = vmatprep.subr.mxu0 0.0
    %2575 = vmatpush1.msra.mxu0 0.0
    %2576 = vmatprep.subr.mxu0 0.0
    %2577 = vmatpush1.msra.mxu0 0.0
    %2578 = vmatprep.subr.mxu0 0.0
    %2579 = vmatpush1.msra.mxu0 0.0
    %2580 = vmatprep.subr.mxu0 0.0
    %2581 = vmatpush1.msra.mxu0 0.0
    %2582 = vmatprep.subr.mxu0 0.0
    %2583 = vmatpush1.msra.mxu0 0.0
    %2584 = vmatprep.subr.mxu0 0.0
    %2585 = vmatpush1.msra.mxu0 0.0
    %2586 = vmatprep.subr.mxu0 0.0
    %2587 = vmatpush1.msra.mxu0 0.0
    %2588 = vmatprep.subr.mxu0 0.0
    %2589 = vmatpush1.msra.mxu0 0.0
    %2590 = vmatprep.mubr.f32.mxu0 %v894
    %2591 = vmatmul.mubr.f32.gmra.mrb[0].mxu0 %v60
    %v2592 = vpop.f32.mrb[0].mxu0
    %v2593 = vadd.f32 %v1548, %v2592
    %v2594 = vpop.f32.mrb[0].mxu0
    %2595 = vmatprep.mubr.f32.mxu0 %v897
    %2596 = vmatmul.mubr.f32.gmra.mrb[0].mxu0 %v64
    %v2597 = vpop.f32.mrb[0].mxu0
    %v2598 = vadd.f32 %v1553, %v2597
    %v2599 = vpop.f32.mrb[0].mxu0
    %2600 = vmatprep.mubr.f32.mxu0 %v900
    %2601 = vmatmul.mubr.f32.gmra.mrb[0].mxu0 %v68
    %v2602 = vpop.f32.mrb[0].mxu0
    %v2603 = vadd.f32 %v1558, %v2602
    %v2604 = vpop.f32.mrb[0].mxu0
    %2605 = vmatprep.mubr.f32.mxu0 %v903
    %2606 = vmatmul.mubr.f32.gmra.mrb[0].mxu0 %v72
    %v2607 = vpop.f32.mrb[0].mxu0
    %v2608 = vadd.f32 %v1563, %v2607
    %v2609 = vpop.f32.mrb[0].mxu0
    %2610 = vmatprep.mubr.f32.mxu0 %v906
    %2611 = vmatmul.mubr.f32.gmra.mrb[0].mxu0 %v76
    %v2612 = vpop.f32.mrb[0].mxu0
    %v2613 = vadd.f32 %v1568, %v2612
    %v2614 = vpop.f32.mrb[0].mxu0
    %2615 = vmatprep.mubr.f32.mxu0 %v909
    %2616 = vmatmul.mubr.f32.gmra.mrb[0].mxu0 %v80
    %v2617 = vpop.f32.mrb[0].mxu0
    %v2618 = vadd.f32 %v1573, %v2617
    %v2619 = vpop.f32.mrb[0].mxu0
    %2620 = vmatprep.mubr.f32.mxu0 %v912
    %2621 = vmatmul.mubr.f32.gmra.mrb[0].mxu0 %v84
    %v2622 = vpop.f32.mrb[0].mxu0
    %v2623 = vadd.f32 %v1578, %v2622
    %v2624 = vpop.f32.mrb[0].mxu0
    %2625 = vmatprep.mubr.f32.mxu0 %v915
    %2626 = vmatmul.mubr.f32.gmra.mrb[0].mxu0 %v88
    %v2627 = vpop.f32.mrb[0].mxu0
    %v2628 = vadd.f32 %v1583, %v2627
    %v2629 = vpop.f32.mrb[0].mxu0
    %2630 = vmatprep.mubr.f32.mxu0 %v918
    %2631 = vmatmul.mubr.f32.gmra.mrb[0].mxu0 %v92
    %v2632 = vpop.f32.mrb[0].mxu0
    %v2633 = vadd.f32 %v1588, %v2632
    %v2634 = vpop.f32.mrb[0].mxu0
    %2635 = vmatprep.mubr.f32.mxu0 %v921
    %2636 = vmatmul.mubr.f32.gmra.mrb[0].mxu0 %v96
    %v2637 = vpop.f32.mrb[0].mxu0
    %v2638 = vadd.f32 %v1593, %v2637
    %v2639 = vpop.f32.mrb[0].mxu0
    %2640 = vmatprep.mubr.f32.mxu0 %v924
    %2641 = vmatmul.mubr.f32.gmra.mrb[0].mxu0 %v100
    %v2642 = vpop.f32.mrb[0].mxu0
    %v2643 = vadd.f32 %v1598, %v2642
    %v2644 = vpop.f32.mrb[0].mxu0
    %2645 = vmatprep.mubr.f32.mxu0 %v927
    %2646 = vmatmul.mubr.f32.gmra.mrb[0].mxu0 %v104
    %v2647 = vpop.f32.mrb[0].mxu0
    %v2648 = vadd.f32 %v1603, %v2647
    %v2649 = vpop.f32.mrb[0].mxu0
    %2650 = vmatprep.mubr.f32.mxu0 %v930
    %2651 = vmatmul.mubr.f32.gmra.mrb[0].mxu0 %v108
    %v2652 = vpop.f32.mrb[0].mxu0
    %v2653 = vadd.f32 %v1608, %v2652
    %v2654 = vpop.f32.mrb[0].mxu0
    %2655 = vmatprep.mubr.f32.mxu0 %v933
    %2656 = vmatmul.mubr.f32.gmra.mrb[0].mxu0 %v112
    %v2657 = vpop.f32.mrb[0].mxu0
    %v2658 = vadd.f32 %v1613, %v2657
    %v2659 = vpop.f32.mrb[0].mxu0
    %2660 = vmatprep.mubr.f32.mxu0 %v936
    %2661 = vmatmul.mubr.f32.gmra.mrb[0].mxu0 %v116
    %v2662 = vpop.f32.mrb[0].mxu0
    %v2663 = vadd.f32 %v1618, %v2662
    %v2664 = vpop.f32.mrb[0].mxu0
    %2665 = vmatprep.mubr.f32.mxu0 %v939
    %2666 = vmatmul.mubr.f32.gmra.mrb[0].mxu0 %v120
    %v2667 = vpop.f32.mrb[0].mxu0
    %v2668 = vadd.f32 %v1623, %v2667
    %v2669 = vpop.f32.mrb[0].mxu0
    %2670 = vmatprep.mubr.f32.mxu0 %v942
    %2671 = vmatmul.mubr.f32.gmra.mrb[0].mxu0 %v124
    %v2672 = vpop.f32.mrb[0].mxu0
    %v2673 = vadd.f32 %v1628, %v2672
    %v2674 = vpop.f32.mrb[0].mxu0
    %2675 = vmatprep.mubr.f32.mxu0 %v945
    %2676 = vmatmul.mubr.f32.gmra.mrb[0].mxu0 %v128
    %v2677 = vpop.f32.mrb[0].mxu0
    %v2678 = vadd.f32 %v1633, %v2677
    %v2679 = vpop.f32.mrb[0].mxu0
    %2680 = vmatprep.mubr.f32.mxu0 %v948
    %2681 = vmatmul.mubr.f32.gmra.mrb[0].mxu0 %v132
    %v2682 = vpop.f32.mrb[0].mxu0
    %v2683 = vadd.f32 %v1638, %v2682
    %v2684 = vpop.f32.mrb[0].mxu0
    %2685 = vmatprep.mubr.f32.mxu0 %v951
    %2686 = vmatmul.mubr.f32.gmra.mrb[0].mxu0 %v136
    %v2687 = vpop.f32.mrb[0].mxu0
    %v2688 = vadd.f32 %v1643, %v2687
    %v2689 = vpop.f32.mrb[0].mxu0
    %2690 = vmatprep.mubr.f32.mxu0 %v954
    %2691 = vmatmul.mubr.f32.gmra.mrb[0].mxu0 %v140
    %v2692 = vpop.f32.mrb[0].mxu0
    %v2693 = vadd.f32 %v1648, %v2692
    %v2694 = vpop.f32.mrb[0].mxu0
    %2695 = vmatprep.mubr.f32.mxu0 %v957
    %2696 = vmatmul.mubr.f32.gmra.mrb[0].mxu0 %v144
    %v2697 = vpop.f32.mrb[0].mxu0
    %v2698 = vadd.f32 %v1653, %v2697
    %v2699 = vpop.f32.mrb[0].mxu0
    %2700 = vmatprep.mubr.f32.mxu0 %v960
    %2701 = vmatmul.mubr.f32.gmra.mrb[0].mxu0 %v148
    %v2702 = vpop.f32.mrb[0].mxu0
    %v2703 = vadd.f32 %v1658, %v2702
    %v2704 = vpop.f32.mrb[0].mxu0
    %2705 = vmatprep.mubr.f32.mxu0 %v963
    %2706 = vmatmul.mubr.f32.gmra.mrb[0].mxu0 %v152
    %v2707 = vpop.f32.mrb[0].mxu0
    %v2708 = vadd.f32 %v1663, %v2707
    %v2709 = vpop.f32.mrb[0].mxu0
    %2710 = vmatprep.mubr.f32.mxu0 %v966
    %2711 = vmatmul.mubr.f32.gmra.mrb[0].mxu0 %v156
    %v2712 = vpop.f32.mrb[0].mxu0
    %v2713 = vadd.f32 %v1668, %v2712
    %v2714 = vpop.f32.mrb[0].mxu0
    %2715 = vmatprep.mubr.f32.mxu0 %v969
    %2716 = vmatmul.mubr.f32.gmra.mrb[0].mxu0 %v160
    %v2717 = vpop.f32.mrb[0].mxu0
    %v2718 = vadd.f32 %v1673, %v2717
    %v2719 = vpop.f32.mrb[0].mxu0
    %2720 = vmatprep.mubr.f32.mxu0 %v972
    %2721 = vmatmul.mubr.f32.gmra.mrb[0].mxu0 %v164
    %v2722 = vpop.f32.mrb[0].mxu0
    %v2723 = vadd.f32 %v1678, %v2722
    %v2724 = vpop.f32.mrb[0].mxu0
    %2725 = vmatprep.mubr.f32.mxu0 %v975
    %2726 = vmatmul.mubr.f32.gmra.mrb[0].mxu0 %v168
    %v2727 = vpop.f32.mrb[0].mxu0
    %v2728 = vadd.f32 %v1683, %v2727
    %v2729 = vpop.f32.mrb[0].mxu0
    %2730 = vmatprep.mubr.f32.mxu0 %v978
    %2731 = vmatmul.mubr.f32.gmra.mrb[0].mxu0 %v172
    %v2732 = vpop.f32.mrb[0].mxu0
    %v2733 = vadd.f32 %v1688, %v2732
    %v2734 = vpop.f32.mrb[0].mxu0
    %2735 = vmatprep.mubr.f32.mxu0 %v981
    %2736 = vmatmul.mubr.f32.gmra.mrb[0].mxu0 %v176
    %v2737 = vpop.f32.mrb[0].mxu0
    %v2738 = vadd.f32 %v1693, %v2737
    %v2739 = vpop.f32.mrb[0].mxu0
    %2740 = vmatprep.mubr.f32.mxu0 %v984
    %2741 = vmatmul.mubr.f32.gmra.mrb[0].mxu0 %v180
    %v2742 = vpop.f32.mrb[0].mxu0
    %v2743 = vadd.f32 %v1698, %v2742
    %v2744 = vpop.f32.mrb[0].mxu0
    %2745 = vmatprep.mubr.f32.mxu0 %v987
    %2746 = vmatmul.mubr.f32.gmra.mrb[0].mxu0 %v184
    %v2747 = vpop.f32.mrb[0].mxu0
    %v2748 = vadd.f32 %v1703, %v2747
    %v2749 = vpop.f32.mrb[0].mxu0
    %2750 = vmatprep.mubr.f32.mxu0 %v990
    %2751 = vmatmul.mubr.f32.gmra.mrb[0].mxu0 %v188
    %v2752 = vpop.f32.mrb[0].mxu0
    %v2753 = vadd.f32 %v1708, %v2752
    %v2754 = vpop.f32.mrb[0].mxu0
    %2755 = vmatprep.mubr.f32.mxu0 %v993
    %2756 = vmatmul.mubr.f32.gmra.mrb[0].mxu0 %v192
    %v2757 = vpop.f32.mrb[0].mxu0
    %v2758 = vadd.f32 %v1713, %v2757
    %v2759 = vpop.f32.mrb[0].mxu0
    %2760 = vmatprep.mubr.f32.mxu0 %v996
    %2761 = vmatmul.mubr.f32.gmra.mrb[0].mxu0 %v196
    %v2762 = vpop.f32.mrb[0].mxu0
    %v2763 = vadd.f32 %v1718, %v2762
    %v2764 = vpop.f32.mrb[0].mxu0
    %2765 = vmatprep.mubr.f32.mxu0 %v999
    %2766 = vmatmul.mubr.f32.gmra.mrb[0].mxu0 %v200
    %v2767 = vpop.f32.mrb[0].mxu0
    %v2768 = vadd.f32 %v1723, %v2767
    %v2769 = vpop.f32.mrb[0].mxu0
    %2770 = vmatprep.mubr.f32.mxu0 %v1002
    %2771 = vmatmul.mubr.f32.gmra.mrb[0].mxu0 %v204
    %v2772 = vpop.f32.mrb[0].mxu0
    %v2773 = vadd.f32 %v1728, %v2772
    %v2774 = vpop.f32.mrb[0].mxu0
    %2775 = vmatprep.mubr.f32.mxu0 %v1005
    %2776 = vmatmul.mubr.f32.gmra.mrb[0].mxu0 %v208
    %v2777 = vpop.f32.mrb[0].mxu0
    %v2778 = vadd.f32 %v1733, %v2777
    %v2779 = vpop.f32.mrb[0].mxu0
    %2780 = vmatprep.mubr.f32.mxu0 %v1008
    %2781 = vmatmul.mubr.f32.gmra.mrb[0].mxu0 %v212
    %v2782 = vpop.f32.mrb[0].mxu0
    %v2783 = vadd.f32 %v1738, %v2782
    %v2784 = vpop.f32.mrb[0].mxu0
    %2785 = vmatprep.mubr.f32.mxu0 %v1011
    %2786 = vmatmul.mubr.f32.gmra.mrb[0].mxu0 %v216
    %v2787 = vpop.f32.mrb[0].mxu0
    %v2788 = vadd.f32 %v1743, %v2787
    %v2789 = vpop.f32.mrb[0].mxu0
    %2790 = vmatprep.mubr.f32.mxu0 %v1014
    %2791 = vmatmul.mubr.f32.gmra.mrb[0].mxu0 %v220
    %v2792 = vpop.f32.mrb[0].mxu0
    %v2793 = vadd.f32 %v1748, %v2792
    %v2794 = vpop.f32.mrb[0].mxu0
    %2795 = vmatprep.mubr.f32.mxu0 %v1017
    %2796 = vmatmul.mubr.f32.gmra.mrb[0].mxu0 %v224
    %v2797 = vpop.f32.mrb[0].mxu0
    %v2798 = vadd.f32 %v1753, %v2797
    %v2799 = vpop.f32.mrb[0].mxu0
    %2800 = vmatprep.mubr.f32.mxu0 %v1020
    %2801 = vmatmul.mubr.f32.gmra.mrb[0].mxu0 %v228
    %v2802 = vpop.f32.mrb[0].mxu0
    %v2803 = vadd.f32 %v1758, %v2802
    %v2804 = vpop.f32.mrb[0].mxu0
    %2805 = vmatprep.mubr.f32.mxu0 %v1023
    %2806 = vmatmul.mubr.f32.gmra.mrb[0].mxu0 %v232
    %v2807 = vpop.f32.mrb[0].mxu0
    %v2808 = vadd.f32 %v1763, %v2807
    %v2809 = vpop.f32.mrb[0].mxu0
    %2810 = vmatprep.mubr.f32.mxu0 %v1026
    %2811 = vmatmul.mubr.f32.gmra.mrb[0].mxu0 %v236
    %v2812 = vpop.f32.mrb[0].mxu0
    %v2813 = vadd.f32 %v1768, %v2812
    %v2814 = vpop.f32.mrb[0].mxu0
    %2815 = vmatprep.mubr.f32.mxu0 %v1029
    %2816 = vmatmul.mubr.f32.gmra.mrb[0].mxu0 %v240
    %v2817 = vpop.f32.mrb[0].mxu0
    %v2818 = vadd.f32 %v1773, %v2817
    %v2819 = vpop.f32.mrb[0].mxu0
    %2820 = vmatprep.mubr.f32.mxu0 %v1032
    %2821 = vmatmul.mubr.f32.gmra.mrb[0].mxu0 %v244
    %v2822 = vpop.f32.mrb[0].mxu0
    %v2823 = vadd.f32 %v1778, %v2822
    %v2824 = vpop.f32.mrb[0].mxu0
    %2825 = vmatprep.mubr.f32.mxu0 %v1035
    %2826 = vmatmul.mubr.f32.gmra.mrb[0].mxu0 %v248
    %v2827 = vpop.f32.mrb[0].mxu0
    %v2828 = vadd.f32 %v1783, %v2827
    %v2829 = vpop.f32.mrb[0].mxu0
    %2830 = vmatprep.mubr.f32.mxu0 %v1038
    %2831 = vmatmul.mubr.f32.gmra.mrb[0].mxu0 %v252
    %v2832 = vpop.f32.mrb[0].mxu0
    %v2833 = vadd.f32 %v1788, %v2832
    %v2834 = vpop.f32.mrb[0].mxu0
    %2835 = vmatprep.mubr.f32.mxu0 %v1041
    %2836 = vmatmul.mubr.f32.gmra.mrb[0].mxu0 %v256
    %v2837 = vpop.f32.mrb[0].mxu0
    %v2838 = vadd.f32 %v1793, %v2837
    %v2839 = vpop.f32.mrb[0].mxu0
    %2840 = vmatprep.mubr.f32.mxu0 %v1044
    %2841 = vmatmul.mubr.f32.gmra.mrb[0].mxu0 %v260
    %v2842 = vpop.f32.mrb[0].mxu0
    %v2843 = vadd.f32 %v1798, %v2842
    %v2844 = vpop.f32.mrb[0].mxu0
    %2845 = vmatprep.mubr.f32.mxu0 %v1047
    %2846 = vmatmul.mubr.f32.gmra.mrb[0].mxu0 %v264
    %v2847 = vpop.f32.mrb[0].mxu0
    %v2848 = vadd.f32 %v1803, %v2847
    %v2849 = vpop.f32.mrb[0].mxu0
    %2850 = vmatprep.mubr.f32.mxu0 %v1050
    %2851 = vmatmul.mubr.f32.gmra.mrb[0].mxu0 %v268
    %v2852 = vpop.f32.mrb[0].mxu0
    %v2853 = vadd.f32 %v1808, %v2852
    %v2854 = vpop.f32.mrb[0].mxu0
    %2855 = vmatprep.mubr.f32.mxu0 %v1053
    %2856 = vmatmul.mubr.f32.gmra.mrb[0].mxu0 %v272
    %v2857 = vpop.f32.mrb[0].mxu0
    %v2858 = vadd.f32 %v1813, %v2857
    %v2859 = vpop.f32.mrb[0].mxu0
    %2860 = vmatprep.mubr.f32.mxu0 %v1056
    %2861 = vmatmul.mubr.f32.gmra.mrb[0].mxu0 %v276
    %v2862 = vpop.f32.mrb[0].mxu0
    %v2863 = vadd.f32 %v1818, %v2862
    %v2864 = vpop.f32.mrb[0].mxu0
    %2865 = vmatprep.mubr.f32.mxu0 %v1059
    %2866 = vmatmul.mubr.f32.gmra.mrb[0].mxu0 %v280
    %v2867 = vpop.f32.mrb[0].mxu0
    %v2868 = vadd.f32 %v1823, %v2867
    %v2869 = vpop.f32.mrb[0].mxu0
    %2870 = vmatprep.mubr.f32.mxu0 %v1062
    %2871 = vmatmul.mubr.f32.gmra.mrb[0].mxu0 %v284
    %v2872 = vpop.f32.mrb[0].mxu0
    %v2873 = vadd.f32 %v1828, %v2872
    %v2874 = vpop.f32.mrb[0].mxu0
    %2875 = vmatprep.mubr.f32.mxu0 %v1065
    %2876 = vmatmul.mubr.f32.gmra.mrb[0].mxu0 %v288
    %v2877 = vpop.f32.mrb[0].mxu0
    %v2878 = vadd.f32 %v1833, %v2877
    %v2879 = vpop.f32.mrb[0].mxu0
    %2880 = vmatprep.mubr.f32.mxu0 %v1068
    %2881 = vmatmul.mubr.f32.gmra.mrb[0].mxu0 %v292
    %v2882 = vpop.f32.mrb[0].mxu0
    %v2883 = vadd.f32 %v1838, %v2882
    %v2884 = vpop.f32.mrb[0].mxu0
    %2885 = vmatprep.mubr.f32.mxu0 %v1071
    %2886 = vmatmul.mubr.f32.gmra.mrb[0].mxu0 %v296
    %v2887 = vpop.f32.mrb[0].mxu0
    %v2888 = vadd.f32 %v1843, %v2887
    %v2889 = vpop.f32.mrb[0].mxu0
    %2890 = vmatprep.mubr.f32.mxu0 %v1074
    %2891 = vmatmul.mubr.f32.gmra.mrb[0].mxu0 %v300
    %v2892 = vpop.f32.mrb[0].mxu0
    %v2893 = vadd.f32 %v1848, %v2892
    %v2894 = vpop.f32.mrb[0].mxu0
    %2895 = vmatprep.mubr.f32.mxu0 %v1077
    %2896 = vmatmul.mubr.f32.gmra.mrb[0].mxu0 %v304
    %v2897 = vpop.f32.mrb[0].mxu0
    %v2898 = vadd.f32 %v1853, %v2897
    %v2899 = vpop.f32.mrb[0].mxu0
    %2900 = vmatprep.mubr.f32.mxu0 %v1080
    %2901 = vmatmul.mubr.f32.gmra.mrb[0].mxu0 %v308
    %v2902 = vpop.f32.mrb[0].mxu0
    %v2903 = vadd.f32 %v1858, %v2902
    %v2904 = vpop.f32.mrb[0].mxu0
    %2905 = vmatprep.mubr.f32.mxu0 %v1083
    %2906 = vmatmul.mubr.f32.gmra.mrb[0].mxu0 %v312
    %v2907 = vpop.f32.mrb[0].mxu0
    %v2908 = vadd.f32 %v1863, %v2907
    %v2909 = vpop.f32.mrb[0].mxu0
    %2910 = vmatprep.mubr.f32.mxu0 %v1086
    %2911 = vmatmul.mubr.f32.gmra.mrb[0].mxu0 %v316
    %v2912 = vpop.f32.mrb[0].mxu0
    %v2913 = vadd.f32 %v1868, %v2912
    %v2914 = vpop.f32.mrb[0].mxu0
    %2915 = vmatprep.mubr.f32.mxu0 %v1089
    %2916 = vmatmul.mubr.f32.gmra.mrb[0].mxu0 %v320
    %v2917 = vpop.f32.mrb[0].mxu0
    %v2918 = vadd.f32 %v1873, %v2917
    %v2919 = vpop.f32.mrb[0].mxu0
    %2920 = vmatprep.mubr.f32.mxu0 %v1092
    %2921 = vmatmul.mubr.f32.gmra.mrb[0].mxu0 %v324
    %v2922 = vpop.f32.mrb[0].mxu0
    %v2923 = vadd.f32 %v1878, %v2922
    %v2924 = vpop.f32.mrb[0].mxu0
    %2925 = vmatprep.mubr.f32.mxu0 %v1095
    %2926 = vmatmul.mubr.f32.gmra.mrb[0].mxu0 %v328
    %v2927 = vpop.f32.mrb[0].mxu0
    %v2928 = vadd.f32 %v1883, %v2927
    %v2929 = vpop.f32.mrb[0].mxu0
    %2930 = vmatprep.mubr.f32.mxu0 %v1098
    %2931 = vmatmul.mubr.f32.gmra.mrb[0].mxu0 %v332
    %v2932 = vpop.f32.mrb[0].mxu0
    %v2933 = vadd.f32 %v1888, %v2932
    %v2934 = vpop.f32.mrb[0].mxu0
    %2935 = vmatprep.mubr.f32.mxu0 %v1101
    %2936 = vmatmul.mubr.f32.gmra.mrb[0].mxu0 %v336
    %v2937 = vpop.f32.mrb[0].mxu0
    %v2938 = vadd.f32 %v1893, %v2937
    %v2939 = vpop.f32.mrb[0].mxu0
    %2940 = vmatprep.mubr.f32.mxu0 %v1104
    %2941 = vmatmul.mubr.f32.gmra.mrb[0].mxu0 %v340
    %v2942 = vpop.f32.mrb[0].mxu0
    %v2943 = vadd.f32 %v1898, %v2942
    %v2944 = vpop.f32.mrb[0].mxu0
    %2945 = vmatprep.mubr.f32.mxu0 %v1107
    %2946 = vmatmul.mubr.f32.gmra.mrb[0].mxu0 %v344
    %v2947 = vpop.f32.mrb[0].mxu0
    %v2948 = vadd.f32 %v1903, %v2947
    %v2949 = vpop.f32.mrb[0].mxu0
    %2950 = vmatprep.mubr.f32.mxu0 %v1110
    %2951 = vmatmul.mubr.f32.gmra.mrb[0].mxu0 %v348
    %v2952 = vpop.f32.mrb[0].mxu0
    %v2953 = vadd.f32 %v1908, %v2952
    %v2954 = vpop.f32.mrb[0].mxu0
    %2955 = vmatprep.mubr.f32.mxu0 %v1113
    %2956 = vmatmul.mubr.f32.gmra.mrb[0].mxu0 %v352
    %v2957 = vpop.f32.mrb[0].mxu0
    %v2958 = vadd.f32 %v1913, %v2957
    %v2959 = vpop.f32.mrb[0].mxu0
    %2960 = vmatprep.mubr.f32.mxu0 %v1116
    %2961 = vmatmul.mubr.f32.gmra.mrb[0].mxu0 %v356
    %v2962 = vpop.f32.mrb[0].mxu0
    %v2963 = vadd.f32 %v1918, %v2962
    %v2964 = vpop.f32.mrb[0].mxu0
    %2965 = vmatprep.mubr.f32.mxu0 %v1119
    %2966 = vmatmul.mubr.f32.gmra.mrb[0].mxu0 %v360
    %v2967 = vpop.f32.mrb[0].mxu0
    %v2968 = vadd.f32 %v1923, %v2967
    %v2969 = vpop.f32.mrb[0].mxu0
    %2970 = vmatprep.mubr.f32.mxu0 %v1122
    %2971 = vmatmul.mubr.f32.gmra.mrb[0].mxu0 %v364
    %v2972 = vpop.f32.mrb[0].mxu0
    %v2973 = vadd.f32 %v1928, %v2972
    %v2974 = vpop.f32.mrb[0].mxu0
    %2975 = vmatprep.mubr.f32.mxu0 %v1125
    %2976 = vmatmul.mubr.f32.gmra.mrb[0].mxu0 %v368
    %v2977 = vpop.f32.mrb[0].mxu0
    %v2978 = vadd.f32 %v1933, %v2977
    %v2979 = vpop.f32.mrb[0].mxu0
    %2980 = vmatprep.mubr.f32.mxu0 %v1128
    %2981 = vmatmul.mubr.f32.gmra.mrb[0].mxu0 %v372
    %v2982 = vpop.f32.mrb[0].mxu0
    %v2983 = vadd.f32 %v1938, %v2982
    %v2984 = vpop.f32.mrb[0].mxu0
    %2985 = vmatprep.mubr.f32.mxu0 %v1131
    %2986 = vmatmul.mubr.f32.gmra.mrb[0].mxu0 %v376
    %v2987 = vpop.f32.mrb[0].mxu0
    %v2988 = vadd.f32 %v1943, %v2987
    %v2989 = vpop.f32.mrb[0].mxu0
    %2990 = vmatprep.mubr.f32.mxu0 %v1134
    %2991 = vmatmul.mubr.f32.gmra.mrb[0].mxu0 %v380
    %v2992 = vpop.f32.mrb[0].mxu0
    %v2993 = vadd.f32 %v1948, %v2992
    %v2994 = vpop.f32.mrb[0].mxu0
    %2995 = vmatprep.mubr.f32.mxu0 %v1137
    %2996 = vmatmul.mubr.f32.gmra.mrb[0].mxu0 %v384
    %v2997 = vpop.f32.mrb[0].mxu0
    %v2998 = vadd.f32 %v1953, %v2997
    %v2999 = vpop.f32.mrb[0].mxu0
    %3000 = vmatprep.mubr.f32.mxu0 %v1140
    %3001 = vmatmul.mubr.f32.gmra.mrb[0].mxu0 %v388
    %v3002 = vpop.f32.mrb[0].mxu0
    %v3003 = vadd.f32 %v1958, %v3002
    %v3004 = vpop.f32.mrb[0].mxu0
    %3005 = vmatprep.mubr.f32.mxu0 %v1143
    %3006 = vmatmul.mubr.f32.gmra.mrb[0].mxu0 %v392
    %v3007 = vpop.f32.mrb[0].mxu0
    %v3008 = vadd.f32 %v1963, %v3007
    %v3009 = vpop.f32.mrb[0].mxu0
    %3010 = vmatprep.mubr.f32.mxu0 %v1146
    %3011 = vmatmul.mubr.f32.gmra.mrb[0].mxu0 %v396
    %v3012 = vpop.f32.mrb[0].mxu0
    %v3013 = vadd.f32 %v1968, %v3012
    %v3014 = vpop.f32.mrb[0].mxu0
    %3015 = vmatprep.mubr.f32.mxu0 %v1149
    %3016 = vmatmul.mubr.f32.gmra.mrb[0].mxu0 %v400
    %v3017 = vpop.f32.mrb[0].mxu0
    %v3018 = vadd.f32 %v1973, %v3017
    %v3019 = vpop.f32.mrb[0].mxu0
    %3020 = vmatprep.mubr.f32.mxu0 %v1152
    %3021 = vmatmul.mubr.f32.gmra.mrb[0].mxu0 %v404
    %v3022 = vpop.f32.mrb[0].mxu0
    %v3023 = vadd.f32 %v1978, %v3022
    %v3024 = vpop.f32.mrb[0].mxu0
    %3025 = vmatprep.mubr.f32.mxu0 %v1155
    %3026 = vmatmul.mubr.f32.gmra.mrb[0].mxu0 %v408
    %v3027 = vpop.f32.mrb[0].mxu0
    %v3028 = vadd.f32 %v1983, %v3027
    %v3029 = vpop.f32.mrb[0].mxu0
    %3030 = vmatprep.mubr.f32.mxu0 %v1158
    %3031 = vmatmul.mubr.f32.gmra.mrb[0].mxu0 %v412
    %v3032 = vpop.f32.mrb[0].mxu0
    %v3033 = vadd.f32 %v1988, %v3032
    %v3034 = vpop.f32.mrb[0].mxu0
    %3035 = vmatprep.mubr.f32.mxu0 %v1161
    %3036 = vmatmul.mubr.f32.gmra.mrb[0].mxu0 %v416
    %v3037 = vpop.f32.mrb[0].mxu0
    %v3038 = vadd.f32 %v1993, %v3037
    %v3039 = vpop.f32.mrb[0].mxu0
    %3040 = vmatprep.mubr.f32.mxu0 %v1164
    %3041 = vmatmul.mubr.f32.gmra.mrb[0].mxu0 %v420
    %v3042 = vpop.f32.mrb[0].mxu0
    %v3043 = vadd.f32 %v1998, %v3042
    %v3044 = vpop.f32.mrb[0].mxu0
    %3045 = vmatprep.mubr.f32.mxu0 %v1167
    %3046 = vmatmul.mubr.f32.gmra.mrb[0].mxu0 %v424
    %v3047 = vpop.f32.mrb[0].mxu0
    %v3048 = vadd.f32 %v2003, %v3047
    %v3049 = vpop.f32.mrb[0].mxu0
    %3050 = vmatprep.mubr.f32.mxu0 %v1170
    %3051 = vmatmul.mubr.f32.gmra.mrb[0].mxu0 %v428
    %v3052 = vpop.f32.mrb[0].mxu0
    %v3053 = vadd.f32 %v2008, %v3052
    %v3054 = vpop.f32.mrb[0].mxu0
    %3055 = vmatprep.mubr.f32.mxu0 %v1173
    %3056 = vmatmul.mubr.f32.gmra.mrb[0].mxu0 %v432
    %v3057 = vpop.f32.mrb[0].mxu0
    %v3058 = vadd.f32 %v2013, %v3057
    %v3059 = vpop.f32.mrb[0].mxu0
    %3060 = vmatprep.mubr.f32.mxu0 %v1176
    %3061 = vmatmul.mubr.f32.gmra.mrb[0].mxu0 %v436
    %v3062 = vpop.f32.mrb[0].mxu0
    %v3063 = vadd.f32 %v2018, %v3062
    %v3064 = vpop.f32.mrb[0].mxu0
    %3065 = vmatprep.mubr.f32.mxu0 %v1179
    %3066 = vmatmul.mubr.f32.gmra.mrb[0].mxu0 %v440
    %v3067 = vpop.f32.mrb[0].mxu0
    %v3068 = vadd.f32 %v2023, %v3067
    %v3069 = vpop.f32.mrb[0].mxu0
    %3070 = vmatprep.mubr.f32.mxu0 %v1182
    %3071 = vmatmul.mubr.f32.gmra.mrb[0].mxu0 %v444
    %v3072 = vpop.f32.mrb[0].mxu0
    %v3073 = vadd.f32 %v2028, %v3072
    %v3074 = vpop.f32.mrb[0].mxu0
    %3075 = vmatprep.mubr.f32.mxu0 %v1185
    %3076 = vmatmul.mubr.f32.gmra.mrb[0].mxu0 %v448
    %v3077 = vpop.f32.mrb[0].mxu0
    %v3078 = vadd.f32 %v2033, %v3077
    %v3079 = vpop.f32.mrb[0].mxu0
    %3080 = vmatprep.mubr.f32.mxu0 %v1188
    %3081 = vmatmul.mubr.f32.gmra.mrb[0].mxu0 %v452
    %v3082 = vpop.f32.mrb[0].mxu0
    %v3083 = vadd.f32 %v2038, %v3082
    %v3084 = vpop.f32.mrb[0].mxu0
    %3085 = vmatprep.mubr.f32.mxu0 %v1191
    %3086 = vmatmul.mubr.f32.gmra.mrb[0].mxu0 %v456
    %v3087 = vpop.f32.mrb[0].mxu0
    %v3088 = vadd.f32 %v2043, %v3087
    %v3089 = vpop.f32.mrb[0].mxu0
    %3090 = vmatprep.mubr.f32.mxu0 %v1194
    %3091 = vmatmul.mubr.f32.gmra.mrb[0].mxu0 %v460
    %v3092 = vpop.f32.mrb[0].mxu0
    %v3093 = vadd.f32 %v2048, %v3092
    %v3094 = vpop.f32.mrb[0].mxu0
    %3095 = vmatprep.mubr.f32.mxu0 %v1197
    %3096 = vmatmul.mubr.f32.gmra.mrb[0].mxu0 %v464
    %v3097 = vpop.f32.mrb[0].mxu0
    %v3098 = vadd.f32 %v2053, %v3097
    %v3099 = vpop.f32.mrb[0].mxu0
    %3100 = vmatprep.mubr.f32.mxu0 %v1200
    %3101 = vmatmul.mubr.f32.gmra.mrb[0].mxu0 %v468
    %v3102 = vpop.f32.mrb[0].mxu0
    %v3103 = vadd.f32 %v2058, %v3102
    %v3104 = vpop.f32.mrb[0].mxu0
    %3105 = vmatprep.mubr.f32.mxu0 %v1203
    %3106 = vmatmul.mubr.f32.gmra.mrb[0].mxu0 %v472
    %v3107 = vpop.f32.mrb[0].mxu0
    %v3108 = vadd.f32 %v2063, %v3107
    %v3109 = vpop.f32.mrb[0].mxu0
    %3110 = vmatprep.mubr.f32.mxu0 %v1206
    %3111 = vmatmul.mubr.f32.gmra.mrb[0].mxu0 %v476
    %v3112 = vpop.f32.mrb[0].mxu0
    %v3113 = vadd.f32 %v2068, %v3112
    %v3114 = vpop.f32.mrb[0].mxu0
    %3115 = vmatprep.mubr.f32.mxu0 %v1209
    %3116 = vmatmul.mubr.f32.gmra.mrb[0].mxu0 %v480
    %v3117 = vpop.f32.mrb[0].mxu0
    %v3118 = vadd.f32 %v2073, %v3117
    %v3119 = vpop.f32.mrb[0].mxu0
    %3120 = vmatprep.mubr.f32.mxu0 %v1212
    %3121 = vmatmul.mubr.f32.gmra.mrb[0].mxu0 %v484
    %v3122 = vpop.f32.mrb[0].mxu0
    %v3123 = vadd.f32 %v2078, %v3122
    %v3124 = vpop.f32.mrb[0].mxu0
    %3125 = vmatprep.mubr.f32.mxu0 %v1215
    %3126 = vmatmul.mubr.f32.gmra.mrb[0].mxu0 %v488
    %v3127 = vpop.f32.mrb[0].mxu0
    %v3128 = vadd.f32 %v2083, %v3127
    %v3129 = vpop.f32.mrb[0].mxu0
    %3130 = vmatprep.mubr.f32.mxu0 %v1218
    %3131 = vmatmul.mubr.f32.gmra.mrb[0].mxu0 %v492
    %v3132 = vpop.f32.mrb[0].mxu0
    %v3133 = vadd.f32 %v2088, %v3132
    %v3134 = vpop.f32.mrb[0].mxu0
    %3135 = vmatprep.mubr.f32.mxu0 %v1221
    %3136 = vmatmul.mubr.f32.gmra.mrb[0].mxu0 %v496
    %v3137 = vpop.f32.mrb[0].mxu0
    %v3138 = vadd.f32 %v2093, %v3137
    %v3139 = vpop.f32.mrb[0].mxu0
    %3140 = vmatprep.mubr.f32.mxu0 %v1224
    %3141 = vmatmul.mubr.f32.gmra.mrb[0].mxu0 %v500
    %v3142 = vpop.f32.mrb[0].mxu0
    %v3143 = vadd.f32 %v2098, %v3142
    %v3144 = vpop.f32.mrb[0].mxu0
    %3145 = vmatprep.mubr.f32.mxu0 %v1227
    %3146 = vmatmul.mubr.f32.gmra.mrb[0].mxu0 %v504
    %v3147 = vpop.f32.mrb[0].mxu0
    %v3148 = vadd.f32 %v2103, %v3147
    %v3149 = vpop.f32.mrb[0].mxu0
    %3150 = vmatprep.mubr.f32.mxu0 %v1230
    %3151 = vmatmul.mubr.f32.gmra.mrb[0].mxu0 %v508
    %v3152 = vpop.f32.mrb[0].mxu0
    %v3153 = vadd.f32 %v2108, %v3152
    %v3154 = vpop.f32.mrb[0].mxu0
    %3155 = vmatprep.mubr.f32.mxu0 %v1233
    %3156 = vmatmul.mubr.f32.gmra.mrb[0].mxu0 %v512
    %v3157 = vpop.f32.mrb[0].mxu0
    %v3158 = vadd.f32 %v2113, %v3157
    %v3159 = vpop.f32.mrb[0].mxu0
    %3160 = vmatprep.mubr.f32.mxu0 %v1236
    %3161 = vmatmul.mubr.f32.gmra.mrb[0].mxu0 %v516
    %v3162 = vpop.f32.mrb[0].mxu0
    %v3163 = vadd.f32 %v2118, %v3162
    %v3164 = vpop.f32.mrb[0].mxu0
    %3165 = vmatprep.mubr.f32.mxu0 %v1239
    %3166 = vmatmul.mubr.f32.gmra.mrb[0].mxu0 %v520
    %v3167 = vpop.f32.mrb[0].mxu0
    %v3168 = vadd.f32 %v2123, %v3167
    %v3169 = vpop.f32.mrb[0].mxu0
    %3170 = vmatprep.mubr.f32.mxu0 %v1242
    %3171 = vmatmul.mubr.f32.gmra.mrb[0].mxu0 %v524
    %v3172 = vpop.f32.mrb[0].mxu0
    %v3173 = vadd.f32 %v2128, %v3172
    %v3174 = vpop.f32.mrb[0].mxu0
    %3175 = vmatprep.mubr.f32.mxu0 %v1245
    %3176 = vmatmul.mubr.f32.gmra.mrb[0].mxu0 %v528
    %v3177 = vpop.f32.mrb[0].mxu0
    %v3178 = vadd.f32 %v2133, %v3177
    %v3179 = vpop.f32.mrb[0].mxu0
    %3180 = vmatprep.mubr.f32.mxu0 %v1248
    %3181 = vmatmul.mubr.f32.gmra.mrb[0].mxu0 %v532
    %v3182 = vpop.f32.mrb[0].mxu0
    %v3183 = vadd.f32 %v2138, %v3182
    %v3184 = vpop.f32.mrb[0].mxu0
    %3185 = vmatprep.mubr.f32.mxu0 %v1251
    %3186 = vmatmul.mubr.f32.gmra.mrb[0].mxu0 %v536
    %v3187 = vpop.f32.mrb[0].mxu0
    %v3188 = vadd.f32 %v2143, %v3187
    %v3189 = vpop.f32.mrb[0].mxu0
    %3190 = vmatprep.mubr.f32.mxu0 %v1254
    %3191 = vmatmul.mubr.f32.gmra.mrb[0].mxu0 %v540
    %v3192 = vpop.f32.mrb[0].mxu0
    %v3193 = vadd.f32 %v2148, %v3192
    %v3194 = vpop.f32.mrb[0].mxu0
    %3195 = vmatprep.mubr.f32.mxu0 %v1257
    %3196 = vmatmul.mubr.f32.gmra.mrb[0].mxu0 %v544
    %v3197 = vpop.f32.mrb[0].mxu0
    %v3198 = vadd.f32 %v2153, %v3197
    %v3199 = vpop.f32.mrb[0].mxu0
    %3200 = vmatprep.mubr.f32.mxu0 %v1260
    %3201 = vmatmul.mubr.f32.gmra.mrb[0].mxu0 %v548
    %v3202 = vpop.f32.mrb[0].mxu0
    %v3203 = vadd.f32 %v2158, %v3202
    %v3204 = vpop.f32.mrb[0].mxu0
    %3205 = vmatprep.mubr.f32.mxu0 %v1263
    %3206 = vmatmul.mubr.f32.gmra.mrb[0].mxu0 %v552
    %v3207 = vpop.f32.mrb[0].mxu0
    %v3208 = vadd.f32 %v2163, %v3207
    %v3209 = vpop.f32.mrb[0].mxu0
    %3210 = vmatprep.mubr.f32.mxu0 %v1266
    %3211 = vmatmul.mubr.f32.gmra.mrb[0].mxu0 %v556
    %v3212 = vpop.f32.mrb[0].mxu0
    %v3213 = vadd.f32 %v2168, %v3212
    %v3214 = vpop.f32.mrb[0].mxu0
    %3215 = vmatprep.mubr.f32.mxu0 %v1269
    %3216 = vmatmul.mubr.f32.gmra.mrb[0].mxu0 %v560
    %v3217 = vpop.f32.mrb[0].mxu0
    %v3218 = vadd.f32 %v2173, %v3217
    %v3219 = vpop.f32.mrb[0].mxu0
    %3220 = vmatprep.mubr.f32.mxu0 %v1272
    %3221 = vmatmul.mubr.f32.gmra.mrb[0].mxu0 %v564
    %v3222 = vpop.f32.mrb[0].mxu0
    %v3223 = vadd.f32 %v2178, %v3222
    %v3224 = vpop.f32.mrb[0].mxu0
    %3225 = vmatprep.mubr.f32.mxu0 %v1275
    %3226 = vmatmul.mubr.f32.gmra.mrb[0].mxu0 %v568
    %v3227 = vpop.f32.mrb[0].mxu0
    %v3228 = vadd.f32 %v2183, %v3227
    %v3229 = vpop.f32.mrb[0].mxu0
    %3230 = vmatprep.mubr.f32.mxu0 %v1278
    %3231 = vmatmul.mubr.f32.gmra.mrb[0].mxu0 %v572
    %v3232 = vpop.f32.mrb[0].mxu0
    %v3233 = vadd.f32 %v2188, %v3232
    %v3234 = vpop.f32.mrb[0].mxu0
    %3235 = vmatprep.mubr.f32.mxu0 %v1281
    %3236 = vmatmul.mubr.f32.gmra.mrb[0].mxu0 %v576
    %v3237 = vpop.f32.mrb[0].mxu0
    %v3238 = vadd.f32 %v2193, %v3237
    %v3239 = vpop.f32.mrb[0].mxu0
    %3240 = vmatprep.mubr.f32.mxu0 %v1284
    %3241 = vmatmul.mubr.f32.gmra.mrb[0].mxu0 %v580
    %v3242 = vpop.f32.mrb[0].mxu0
    %v3243 = vadd.f32 %v2198, %v3242
    %v3244 = vpop.f32.mrb[0].mxu0
    %3245 = vmatprep.mubr.f32.mxu0 %v1287
    %3246 = vmatmul.mubr.f32.gmra.mrb[0].mxu0 %v584
    %v3247 = vpop.f32.mrb[0].mxu0
    %v3248 = vadd.f32 %v2203, %v3247
    %v3249 = vpop.f32.mrb[0].mxu0
    %3250 = vmatprep.mubr.f32.mxu0 %v1290
    %3251 = vmatmul.mubr.f32.gmra.mrb[0].mxu0 %v588
    %v3252 = vpop.f32.mrb[0].mxu0
    %v3253 = vadd.f32 %v2208, %v3252
    %v3254 = vpop.f32.mrb[0].mxu0
    %3255 = vmatprep.mubr.f32.mxu0 %v1293
    %3256 = vmatmul.mubr.f32.gmra.mrb[0].mxu0 %v592
    %v3257 = vpop.f32.mrb[0].mxu0
    %v3258 = vadd.f32 %v2213, %v3257
    %v3259 = vpop.f32.mrb[0].mxu0
    %3260 = vmatprep.mubr.f32.mxu0 %v1296
    %3261 = vmatmul.mubr.f32.gmra.mrb[0].mxu0 %v596
    %v3262 = vpop.f32.mrb[0].mxu0
    %v3263 = vadd.f32 %v2218, %v3262
    %v3264 = vpop.f32.mrb[0].mxu0
    %3265 = vmatprep.mubr.f32.mxu0 %v1299
    %3266 = vmatmul.mubr.f32.gmra.mrb[0].mxu0 %v600
    %v3267 = vpop.f32.mrb[0].mxu0
    %v3268 = vadd.f32 %v2223, %v3267
    %v3269 = vpop.f32.mrb[0].mxu0
    %3270 = vmatprep.mubr.f32.mxu0 %v1302
    %3271 = vmatmul.mubr.f32.gmra.mrb[0].mxu0 %v604
    %v3272 = vpop.f32.mrb[0].mxu0
    %v3273 = vadd.f32 %v2228, %v3272
    %v3274 = vpop.f32.mrb[0].mxu0
    %3275 = vmatprep.mubr.f32.mxu0 %v1305
    %3276 = vmatmul.mubr.f32.gmra.mrb[0].mxu0 %v608
    %v3277 = vpop.f32.mrb[0].mxu0
    %v3278 = vadd.f32 %v2233, %v3277
    %v3279 = vpop.f32.mrb[0].mxu0
    %3280 = vmatprep.mubr.f32.mxu0 %v1308
    %3281 = vmatmul.mubr.f32.gmra.mrb[0].mxu0 %v612
    %v3282 = vpop.f32.mrb[0].mxu0
    %v3283 = vadd.f32 %v2238, %v3282
    %v3284 = vpop.f32.mrb[0].mxu0
    %3285 = vmatprep.mubr.f32.mxu0 %v1311
    %3286 = vmatmul.mubr.f32.gmra.mrb[0].mxu0 %v616
    %v3287 = vpop.f32.mrb[0].mxu0
    %v3288 = vadd.f32 %v2243, %v3287
    %v3289 = vpop.f32.mrb[0].mxu0
    %3290 = vmatprep.mubr.f32.mxu0 %v1314
    %3291 = vmatmul.mubr.f32.gmra.mrb[0].mxu0 %v620
    %v3292 = vpop.f32.mrb[0].mxu0
    %v3293 = vadd.f32 %v2248, %v3292
    %v3294 = vpop.f32.mrb[0].mxu0
    %3295 = vmatprep.mubr.f32.mxu0 %v1317
    %3296 = vmatmul.mubr.f32.gmra.mrb[0].mxu0 %v624
    %v3297 = vpop.f32.mrb[0].mxu0
    %v3298 = vadd.f32 %v2253, %v3297
    %v3299 = vpop.f32.mrb[0].mxu0
    %3300 = vmatprep.mubr.f32.mxu0 %v1320
    %3301 = vmatmul.mubr.f32.gmra.mrb[0].mxu0 %v628
    %v3302 = vpop.f32.mrb[0].mxu0
    %v3303 = vadd.f32 %v2258, %v3302
    %v3304 = vpop.f32.mrb[0].mxu0
    %3305 = vmatprep.mubr.f32.mxu0 %v1323
    %3306 = vmatmul.mubr.f32.gmra.mrb[0].mxu0 %v632
    %v3307 = vpop.f32.mrb[0].mxu0
    %v3308 = vadd.f32 %v2263, %v3307
    %v3309 = vpop.f32.mrb[0].mxu0
    %3310 = vmatprep.mubr.f32.mxu0 %v1326
    %3311 = vmatmul.mubr.f32.gmra.mrb[0].mxu0 %v636
    %v3312 = vpop.f32.mrb[0].mxu0
    %v3313 = vadd.f32 %v2268, %v3312
    %v3314 = vpop.f32.mrb[0].mxu0
    %3315 = vmatprep.mubr.f32.mxu0 %v1329
    %3316 = vmatmul.mubr.f32.gmra.mrb[0].mxu0 %v640
    %v3317 = vpop.f32.mrb[0].mxu0
    %v3318 = vadd.f32 %v2273, %v3317
    %v3319 = vpop.f32.mrb[0].mxu0
    %3320 = vmatprep.mubr.f32.mxu0 %v1332
    %3321 = vmatmul.mubr.f32.gmra.mrb[0].mxu0 %v644
    %v3322 = vpop.f32.mrb[0].mxu0
    %v3323 = vadd.f32 %v2278, %v3322
    %v3324 = vpop.f32.mrb[0].mxu0
    %3325 = vmatprep.mubr.f32.mxu0 %v1335
    %3326 = vmatmul.mubr.f32.gmra.mrb[0].mxu0 %v648
    %v3327 = vpop.f32.mrb[0].mxu0
    %v3328 = vadd.f32 %v2283, %v3327
    %v3329 = vpop.f32.mrb[0].mxu0
    %3330 = vmatprep.mubr.f32.mxu0 %v1338
    %3331 = vmatmul.mubr.f32.gmra.mrb[0].mxu0 %v652
    %v3332 = vpop.f32.mrb[0].mxu0
    %v3333 = vadd.f32 %v2288, %v3332
    %v3334 = vpop.f32.mrb[0].mxu0
    %3335 = vmatprep.mubr.f32.mxu0 %v1341
    %3336 = vmatmul.mubr.f32.gmra.mrb[0].mxu0 %v656
    %v3337 = vpop.f32.mrb[0].mxu0
    %v3338 = vadd.f32 %v2293, %v3337
    %v3339 = vpop.f32.mrb[0].mxu0
    %3340 = vmatprep.mubr.f32.mxu0 %v1344
    %3341 = vmatmul.mubr.f32.gmra.mrb[0].mxu0 %v660
    %v3342 = vpop.f32.mrb[0].mxu0
    %v3343 = vadd.f32 %v2298, %v3342
    %v3344 = vpop.f32.mrb[0].mxu0
    %3345 = vmatprep.mubr.f32.mxu0 %v1347
    %3346 = vmatmul.mubr.f32.gmra.mrb[0].mxu0 %v664
    %v3347 = vpop.f32.mrb[0].mxu0
    %v3348 = vadd.f32 %v2303, %v3347
    %v3349 = vpop.f32.mrb[0].mxu0
    %3350 = vmatprep.mubr.f32.mxu0 %v1350
    %3351 = vmatmul.mubr.f32.gmra.mrb[0].mxu0 %v668
    %v3352 = vpop.f32.mrb[0].mxu0
    %v3353 = vadd.f32 %v2308, %v3352
    %v3354 = vpop.f32.mrb[0].mxu0
    %3355 = vmatprep.mubr.f32.mxu0 %v1353
    %3356 = vmatmul.mubr.f32.gmra.mrb[0].mxu0 %v672
    %v3357 = vpop.f32.mrb[0].mxu0
    %v3358 = vadd.f32 %v2313, %v3357
    %v3359 = vpop.f32.mrb[0].mxu0
    %3360 = vmatprep.mubr.f32.mxu0 %v1356
    %3361 = vmatmul.mubr.f32.gmra.mrb[0].mxu0 %v676
    %v3362 = vpop.f32.mrb[0].mxu0
    %v3363 = vadd.f32 %v2318, %v3362
    %v3364 = vpop.f32.mrb[0].mxu0
    %3365 = vmatprep.mubr.f32.mxu0 %v1359
    %3366 = vmatmul.mubr.f32.gmra.mrb[0].mxu0 %v680
    %v3367 = vpop.f32.mrb[0].mxu0
    %v3368 = vadd.f32 %v2323, %v3367
    %v3369 = vpop.f32.mrb[0].mxu0
    %3370 = vmatprep.mubr.f32.mxu0 %v1362
    %3371 = vmatmul.mubr.f32.gmra.mrb[0].mxu0 %v684
    %v3372 = vpop.f32.mrb[0].mxu0
    %v3373 = vadd.f32 %v2328, %v3372
    %v3374 = vpop.f32.mrb[0].mxu0
    %3375 = vmatprep.mubr.f32.mxu0 %v1365
    %3376 = vmatmul.mubr.f32.gmra.mrb[0].mxu0 %v688
    %v3377 = vpop.f32.mrb[0].mxu0
    %v3378 = vadd.f32 %v2333, %v3377
    %v3379 = vpop.f32.mrb[0].mxu0
    %3380 = vmatprep.mubr.f32.mxu0 %v1368
    %3381 = vmatmul.mubr.f32.gmra.mrb[0].mxu0 %v692
    %v3382 = vpop.f32.mrb[0].mxu0
    %v3383 = vadd.f32 %v2338, %v3382
    %v3384 = vpop.f32.mrb[0].mxu0
    %3385 = vmatprep.mubr.f32.mxu0 %v1371
    %3386 = vmatmul.mubr.f32.gmra.mrb[0].mxu0 %v696
    %v3387 = vpop.f32.mrb[0].mxu0
    %v3388 = vadd.f32 %v2343, %v3387
    %v3389 = vpop.f32.mrb[0].mxu0
    %3390 = vmatprep.mubr.f32.mxu0 %v1374
    %3391 = vmatmul.mubr.f32.gmra.mrb[0].mxu0 %v700
    %v3392 = vpop.f32.mrb[0].mxu0
    %v3393 = vadd.f32 %v2348, %v3392
    %v3394 = vpop.f32.mrb[0].mxu0
    %3395 = vmatprep.mubr.f32.mxu0 %v1377
    %3396 = vmatmul.mubr.f32.gmra.mrb[0].mxu0 %v704
    %v3397 = vpop.f32.mrb[0].mxu0
    %v3398 = vadd.f32 %v2353, %v3397
    %v3399 = vpop.f32.mrb[0].mxu0
    %3400 = vmatprep.mubr.f32.mxu0 %v1380
    %3401 = vmatmul.mubr.f32.gmra.mrb[0].mxu0 %v708
    %v3402 = vpop.f32.mrb[0].mxu0
    %v3403 = vadd.f32 %v2358, %v3402
    %v3404 = vpop.f32.mrb[0].mxu0
    %3405 = vmatprep.mubr.f32.mxu0 %v1383
    %3406 = vmatmul.mubr.f32.gmra.mrb[0].mxu0 %v712
    %v3407 = vpop.f32.mrb[0].mxu0
    %v3408 = vadd.f32 %v2363, %v3407
    %v3409 = vpop.f32.mrb[0].mxu0
    %3410 = vmatprep.mubr.f32.mxu0 %v1386
    %3411 = vmatmul.mubr.f32.gmra.mrb[0].mxu0 %v716
    %v3412 = vpop.f32.mrb[0].mxu0
    %v3413 = vadd.f32 %v2368, %v3412
    %v3414 = vpop.f32.mrb[0].mxu0
    %3415 = vmatprep.mubr.f32.mxu0 %v1389
    %3416 = vmatmul.mubr.f32.gmra.mrb[0].mxu0 %v720
    %v3417 = vpop.f32.mrb[0].mxu0
    %v3418 = vadd.f32 %v2373, %v3417
    %v3419 = vpop.f32.mrb[0].mxu0
    %3420 = vmatprep.mubr.f32.mxu0 %v1392
    %3421 = vmatmul.mubr.f32.gmra.mrb[0].mxu0 %v724
    %v3422 = vpop.f32.mrb[0].mxu0
    %v3423 = vadd.f32 %v2378, %v3422
    %v3424 = vpop.f32.mrb[0].mxu0
    %3425 = vmatprep.mubr.f32.mxu0 %v1395
    %3426 = vmatmul.mubr.f32.gmra.mrb[0].mxu0 %v728
    %v3427 = vpop.f32.mrb[0].mxu0
    %v3428 = vadd.f32 %v2383, %v3427
    %v3429 = vpop.f32.mrb[0].mxu0
    %3430 = vmatprep.mubr.f32.mxu0 %v1398
    %3431 = vmatmul.mubr.f32.gmra.mrb[0].mxu0 %v732
    %v3432 = vpop.f32.mrb[0].mxu0
    %v3433 = vadd.f32 %v2388, %v3432
    %v3434 = vpop.f32.mrb[0].mxu0
    %3435 = vmatprep.mubr.f32.mxu0 %v1401
    %3436 = vmatmul.mubr.f32.gmra.mrb[0].mxu0 %v736
    %v3437 = vpop.f32.mrb[0].mxu0
    %v3438 = vadd.f32 %v2393, %v3437
    %v3439 = vpop.f32.mrb[0].mxu0
    %3440 = vmatprep.mubr.f32.mxu0 %v1404
    %3441 = vmatmul.mubr.f32.gmra.mrb[0].mxu0 %v740
    %v3442 = vpop.f32.mrb[0].mxu0
    %v3443 = vadd.f32 %v2398, %v3442
    %v3444 = vpop.f32.mrb[0].mxu0
    %3445 = vmatprep.mubr.f32.mxu0 %v1407
    %3446 = vmatmul.mubr.f32.gmra.mrb[0].mxu0 %v744
    %v3447 = vpop.f32.mrb[0].mxu0
    %v3448 = vadd.f32 %v2403, %v3447
    %v3449 = vpop.f32.mrb[0].mxu0
    %3450 = vmatprep.mubr.f32.mxu0 %v1410
    %3451 = vmatmul.mubr.f32.gmra.mrb[0].mxu0 %v748
    %v3452 = vpop.f32.mrb[0].mxu0
    %v3453 = vadd.f32 %v2408, %v3452
    %v3454 = vpop.f32.mrb[0].mxu0
    %3455 = vmatprep.mubr.f32.mxu0 %v1413
    %3456 = vmatmul.mubr.f32.gmra.mrb[0].mxu0 %v752
    %v3457 = vpop.f32.mrb[0].mxu0
    %v3458 = vadd.f32 %v2413, %v3457
    %v3459 = vpop.f32.mrb[0].mxu0
    %3460 = vmatprep.mubr.f32.mxu0 %v1416
    %3461 = vmatmul.mubr.f32.gmra.mrb[0].mxu0 %v756
    %v3462 = vpop.f32.mrb[0].mxu0
    %v3463 = vadd.f32 %v2418, %v3462
    %v3464 = vpop.f32.mrb[0].mxu0
    %3465 = vmatprep.mubr.f32.mxu0 %v1419
    %3466 = vmatmul.mubr.f32.gmra.mrb[0].mxu0 %v760
    %v3467 = vpop.f32.mrb[0].mxu0
    %v3468 = vadd.f32 %v2423, %v3467
    %v3469 = vpop.f32.mrb[0].mxu0
    %3470 = vmatprep.mubr.f32.mxu0 %v1422
    %3471 = vmatmul.mubr.f32.gmra.mrb[0].mxu0 %v764
    %v3472 = vpop.f32.mrb[0].mxu0
    %v3473 = vadd.f32 %v2428, %v3472
    %v3474 = vpop.f32.mrb[0].mxu0
    %3475 = vmatprep.mubr.f32.mxu0 %v1425
    %3476 = vmatmul.mubr.f32.gmra.mrb[0].mxu0 %v768
    %v3477 = vpop.f32.mrb[0].mxu0
    %v3478 = vadd.f32 %v2433, %v3477
    %v3479 = vpop.f32.mrb[0].mxu0
    %3480 = vmatprep.mubr.f32.mxu0 %v1428
    %3481 = vmatmul.mubr.f32.gmra.mrb[0].mxu0 %v772
    %v3482 = vpop.f32.mrb[0].mxu0
    %v3483 = vadd.f32 %v2438, %v3482
    %v3484 = vpop.f32.mrb[0].mxu0
    %3485 = vmatprep.mubr.f32.mxu0 %v1431
    %3486 = vmatmul.mubr.f32.gmra.mrb[0].mxu0 %v776
    %v3487 = vpop.f32.mrb[0].mxu0
    %v3488 = vadd.f32 %v2443, %v3487
    %v3489 = vpop.f32.mrb[0].mxu0
    %3490 = vmatprep.mubr.f32.mxu0 %v1434
    %3491 = vmatmul.mubr.f32.gmra.mrb[0].mxu0 %v780
    %v3492 = vpop.f32.mrb[0].mxu0
    %v3493 = vadd.f32 %v2448, %v3492
    %v3494 = vpop.f32.mrb[0].mxu0
    %3495 = vmatprep.mubr.f32.mxu0 %v1437
    %3496 = vmatmul.mubr.f32.gmra.mrb[0].mxu0 %v784
    %v3497 = vpop.f32.mrb[0].mxu0
    %v3498 = vadd.f32 %v2453, %v3497
    %v3499 = vpop.f32.mrb[0].mxu0
    %3500 = vmatprep.mubr.f32.mxu0 %v1440
    %3501 = vmatmul.mubr.f32.gmra.mrb[0].mxu0 %v788
    %v3502 = vpop.f32.mrb[0].mxu0
    %v3503 = vadd.f32 %v2458, %v3502
    %v3504 = vpop.f32.mrb[0].mxu0
    %3505 = vmatprep.mubr.f32.mxu0 %v1443
    %3506 = vmatmul.mubr.f32.gmra.mrb[0].mxu0 %v792
    %v3507 = vpop.f32.mrb[0].mxu0
    %v3508 = vadd.f32 %v2463, %v3507
    %v3509 = vpop.f32.mrb[0].mxu0
    %3510 = vmatprep.mubr.f32.mxu0 %v1446
    %3511 = vmatmul.mubr.f32.gmra.mrb[0].mxu0 %v796
    %v3512 = vpop.f32.mrb[0].mxu0
    %v3513 = vadd.f32 %v2468, %v3512
    %v3514 = vpop.f32.mrb[0].mxu0
    %3515 = vmatprep.mubr.f32.mxu0 %v1449
    %3516 = vmatmul.mubr.f32.gmra.mrb[0].mxu0 %v800
    %v3517 = vpop.f32.mrb[0].mxu0
    %v3518 = vadd.f32 %v2473, %v3517
    %v3519 = vpop.f32.mrb[0].mxu0
    %3520 = vmatprep.mubr.f32.mxu0 %v1452
    %3521 = vmatmul.mubr.f32.gmra.mrb[0].mxu0 %v804
    %v3522 = vpop.f32.mrb[0].mxu0
    %v3523 = vadd.f32 %v2478, %v3522
    %v3524 = vpop.f32.mrb[0].mxu0
    %3525 = vmatprep.mubr.f32.mxu0 %v1455
    %3526 = vmatmul.mubr.f32.gmra.mrb[0].mxu0 %v808
    %v3527 = vpop.f32.mrb[0].mxu0
    %v3528 = vadd.f32 %v2483, %v3527
    %v3529 = vpop.f32.mrb[0].mxu0
    %3530 = vmatprep.mubr.f32.mxu0 %v1458
    %3531 = vmatmul.mubr.f32.gmra.mrb[0].mxu0 %v812
    %v3532 = vpop.f32.mrb[0].mxu0
    %v3533 = vadd.f32 %v2488, %v3532
    %v3534 = vpop.f32.mrb[0].mxu0
    %3535 = vmatprep.mubr.f32.mxu0 %v1461
    %3536 = vmatmul.mubr.f32.gmra.mrb[0].mxu0 %v816
    %v3537 = vpop.f32.mrb[0].mxu0
    %v3538 = vadd.f32 %v2493, %v3537
    %v3539 = vpop.f32.mrb[0].mxu0
    %3540 = vmatprep.mubr.f32.mxu0 %v1464
    %3541 = vmatmul.mubr.f32.gmra.mrb[0].mxu0 %v820
    %v3542 = vpop.f32.mrb[0].mxu0
    %v3543 = vadd.f32 %v2498, %v3542
    %v3544 = vpop.f32.mrb[0].mxu0
    %3545 = vmatprep.mubr.f32.mxu0 %v1467
    %3546 = vmatmul.mubr.f32.gmra.mrb[0].mxu0 %v824
    %v3547 = vpop.f32.mrb[0].mxu0
    %v3548 = vadd.f32 %v2503, %v3547
    %v3549 = vpop.f32.mrb[0].mxu0
    %3550 = vmatprep.mubr.f32.mxu0 %v1470
    %3551 = vmatmul.mubr.f32.gmra.mrb[0].mxu0 %v828
    %v3552 = vpop.f32.mrb[0].mxu0
    %v3553 = vadd.f32 %v2508, %v3552
    %v3554 = vpop.f32.mrb[0].mxu0
    %3555 = vmatprep.mubr.f32.mxu0 %v1473
    %3556 = vmatmul.mubr.f32.gmra.mrb[0].mxu0 %v832
    %v3557 = vpop.f32.mrb[0].mxu0
    %v3558 = vadd.f32 %v2513, %v3557
    %v3559 = vpop.f32.mrb[0].mxu0
    %3560 = vmatprep.mubr.f32.mxu0 %v1476
    %3561 = vmatmul.mubr.f32.gmra.mrb[0].mxu0 %v836
    %v3562 = vpop.f32.mrb[0].mxu0
    %v3563 = vadd.f32 %v2518, %v3562
    %v3564 = vpop.f32.mrb[0].mxu0
    %3565 = vmatprep.mubr.f32.mxu0 %v1479
    %3566 = vmatmul.mubr.f32.gmra.mrb[0].mxu0 %v840
    %v3567 = vpop.f32.mrb[0].mxu0
    %v3568 = vadd.f32 %v2523, %v3567
    %v3569 = vpop.f32.mrb[0].mxu0
    %3570 = vdwg.mxu0
    %vm3571 = vcmask 261120
    %v3572 = vsel %vm3571, %v2593, -inf
    %v3573 = vsel %vm3571, %v2838, -inf
    %v3574 = vmax.f32 %v3572, %v3573
    %v3575 = vsel %vm3571, %v3083, -inf
    %v3576 = vmax.f32 %v3574, %v3575
    %v3577 = vsel %vm3571, %v3328, -inf
    %v3578 = vmax.f32 %v3576, %v3577
    %v3579 = vsel %vm3571, %v2598, -inf
    %v3580 = vsel %vm3571, %v2843, -inf
    %v3581 = vmax.f32 %v3579, %v3580
    %v3582 = vsel %vm3571, %v3088, -inf
    %v3583 = vmax.f32 %v3581, %v3582
    %v3584 = vsel %vm3571, %v3333, -inf
    %v3585 = vmax.f32 %v3583, %v3584
    %v3586 = vsel %vm3571, %v2603, -inf
    %v3587 = vsel %vm3571, %v2848, -inf
    %v3588 = vmax.f32 %v3586, %v3587
    %v3589 = vsel %vm3571, %v3093, -inf
    %v3590 = vmax.f32 %v3588, %v3589
    %v3591 = vsel %vm3571, %v3338, -inf
    %v3592 = vmax.f32 %v3590, %v3591
    %v3593 = vsel %vm3571, %v2608, -inf
    %v3594 = vsel %vm3571, %v2853, -inf
    %v3595 = vmax.f32 %v3593, %v3594
    %v3596 = vsel %vm3571, %v3098, -inf
    %v3597 = vmax.f32 %v3595, %v3596
    %v3598 = vsel %vm3571, %v3343, -inf
    %v3599 = vmax.f32 %v3597, %v3598
    %v3600 = vsel %vm3571, %v2613, -inf
    %v3601 = vsel %vm3571, %v2858, -inf
    %v3602 = vmax.f32 %v3600, %v3601
    %v3603 = vsel %vm3571, %v3103, -inf
    %v3604 = vmax.f32 %v3602, %v3603
    %v3605 = vsel %vm3571, %v3348, -inf
    %v3606 = vmax.f32 %v3604, %v3605
    %v3607 = vsel %vm3571, %v2618, -inf
    %v3608 = vsel %vm3571, %v2863, -inf
    %v3609 = vmax.f32 %v3607, %v3608
    %v3610 = vsel %vm3571, %v3108, -inf
    %v3611 = vmax.f32 %v3609, %v3610
    %v3612 = vsel %vm3571, %v3353, -inf
    %v3613 = vmax.f32 %v3611, %v3612
    %v3614 = vsel %vm3571, %v2623, -inf
    %v3615 = vsel %vm3571, %v2868, -inf
    %v3616 = vmax.f32 %v3614, %v3615
    %v3617 = vsel %vm3571, %v3113, -inf
    %v3618 = vmax.f32 %v3616, %v3617
    %v3619 = vsel %vm3571, %v3358, -inf
    %v3620 = vmax.f32 %v3618, %v3619
    %v3621 = vsel %vm3571, %v2628, -inf
    %v3622 = vsel %vm3571, %v2873, -inf
    %v3623 = vmax.f32 %v3621, %v3622
    %v3624 = vsel %vm3571, %v3118, -inf
    %v3625 = vmax.f32 %v3623, %v3624
    %v3626 = vsel %vm3571, %v3363, -inf
    %v3627 = vmax.f32 %v3625, %v3626
    %v3628 = vsel %vm3571, %v2633, -inf
    %v3629 = vsel %vm3571, %v2878, -inf
    %v3630 = vmax.f32 %v3628, %v3629
    %v3631 = vsel %vm3571, %v3123, -inf
    %v3632 = vmax.f32 %v3630, %v3631
    %v3633 = vsel %vm3571, %v3368, -inf
    %v3634 = vmax.f32 %v3632, %v3633
    %v3635 = vsel %vm3571, %v2638, -inf
    %v3636 = vsel %vm3571, %v2883, -inf
    %v3637 = vmax.f32 %v3635, %v3636
    %v3638 = vsel %vm3571, %v3128, -inf
    %v3639 = vmax.f32 %v3637, %v3638
    %v3640 = vsel %vm3571, %v3373, -inf
    %v3641 = vmax.f32 %v3639, %v3640
    %v3642 = vsel %vm3571, %v2643, -inf
    %v3643 = vsel %vm3571, %v2888, -inf
    %v3644 = vmax.f32 %v3642, %v3643
    %v3645 = vsel %vm3571, %v3133, -inf
    %v3646 = vmax.f32 %v3644, %v3645
    %v3647 = vsel %vm3571, %v3378, -inf
    %v3648 = vmax.f32 %v3646, %v3647
    %v3649 = vsel %vm3571, %v2648, -inf
    %v3650 = vsel %vm3571, %v2893, -inf
    %v3651 = vmax.f32 %v3649, %v3650
    %v3652 = vsel %vm3571, %v3138, -inf
    %v3653 = vmax.f32 %v3651, %v3652
    %v3654 = vsel %vm3571, %v3383, -inf
    %v3655 = vmax.f32 %v3653, %v3654
    %v3656 = vsel %vm3571, %v2653, -inf
    %v3657 = vsel %vm3571, %v2898, -inf
    %v3658 = vmax.f32 %v3656, %v3657
    %v3659 = vsel %vm3571, %v3143, -inf
    %v3660 = vmax.f32 %v3658, %v3659
    %v3661 = vsel %vm3571, %v3388, -inf
    %v3662 = vmax.f32 %v3660, %v3661
    %v3663 = vsel %vm3571, %v2658, -inf
    %v3664 = vsel %vm3571, %v2903, -inf
    %v3665 = vmax.f32 %v3663, %v3664
    %v3666 = vsel %vm3571, %v3148, -inf
    %v3667 = vmax.f32 %v3665, %v3666
    %v3668 = vsel %vm3571, %v3393, -inf
    %v3669 = vmax.f32 %v3667, %v3668
    %v3670 = vsel %vm3571, %v2663, -inf
    %v3671 = vsel %vm3571, %v2908, -inf
    %v3672 = vmax.f32 %v3670, %v3671
    %v3673 = vsel %vm3571, %v3153, -inf
    %v3674 = vmax.f32 %v3672, %v3673
    %v3675 = vsel %vm3571, %v3398, -inf
    %v3676 = vmax.f32 %v3674, %v3675
    %v3677 = vsel %vm3571, %v2668, -inf
    %v3678 = vsel %vm3571, %v2913, -inf
    %v3679 = vmax.f32 %v3677, %v3678
    %v3680 = vsel %vm3571, %v3158, -inf
    %v3681 = vmax.f32 %v3679, %v3680
    %v3682 = vsel %vm3571, %v3403, -inf
    %v3683 = vmax.f32 %v3681, %v3682
    %v3684 = vsel %vm3571, %v2673, -inf
    %v3685 = vsel %vm3571, %v2918, -inf
    %v3686 = vmax.f32 %v3684, %v3685
    %v3687 = vsel %vm3571, %v3163, -inf
    %v3688 = vmax.f32 %v3686, %v3687
    %v3689 = vsel %vm3571, %v3408, -inf
    %v3690 = vmax.f32 %v3688, %v3689
    %v3691 = vsel %vm3571, %v2678, -inf
    %v3692 = vsel %vm3571, %v2923, -inf
    %v3693 = vmax.f32 %v3691, %v3692
    %v3694 = vsel %vm3571, %v3168, -inf
    %v3695 = vmax.f32 %v3693, %v3694
    %v3696 = vsel %vm3571, %v3413, -inf
    %v3697 = vmax.f32 %v3695, %v3696
    %v3698 = vsel %vm3571, %v2683, -inf
    %v3699 = vsel %vm3571, %v2928, -inf
    %v3700 = vmax.f32 %v3698, %v3699
    %v3701 = vsel %vm3571, %v3173, -inf
    %v3702 = vmax.f32 %v3700, %v3701
    %v3703 = vsel %vm3571, %v3418, -inf
    %v3704 = vmax.f32 %v3702, %v3703
    %v3705 = vsel %vm3571, %v2688, -inf
    %v3706 = vsel %vm3571, %v2933, -inf
    %v3707 = vmax.f32 %v3705, %v3706
    %v3708 = vsel %vm3571, %v3178, -inf
    %v3709 = vmax.f32 %v3707, %v3708
    %v3710 = vsel %vm3571, %v3423, -inf
    %v3711 = vmax.f32 %v3709, %v3710
    %v3712 = vsel %vm3571, %v2693, -inf
    %v3713 = vsel %vm3571, %v2938, -inf
    %v3714 = vmax.f32 %v3712, %v3713
    %v3715 = vsel %vm3571, %v3183, -inf
    %v3716 = vmax.f32 %v3714, %v3715
    %v3717 = vsel %vm3571, %v3428, -inf
    %v3718 = vmax.f32 %v3716, %v3717
    %v3719 = vsel %vm3571, %v2698, -inf
    %v3720 = vsel %vm3571, %v2943, -inf
    %v3721 = vmax.f32 %v3719, %v3720
    %v3722 = vsel %vm3571, %v3188, -inf
    %v3723 = vmax.f32 %v3721, %v3722
    %v3724 = vsel %vm3571, %v3433, -inf
    %v3725 = vmax.f32 %v3723, %v3724
    %v3726 = vsel %vm3571, %v2703, -inf
    %v3727 = vsel %vm3571, %v2948, -inf
    %v3728 = vmax.f32 %v3726, %v3727
    %v3729 = vsel %vm3571, %v3193, -inf
    %v3730 = vmax.f32 %v3728, %v3729
    %v3731 = vsel %vm3571, %v3438, -inf
    %v3732 = vmax.f32 %v3730, %v3731
    %v3733 = vsel %vm3571, %v2708, -inf
    %v3734 = vsel %vm3571, %v2953, -inf
    %v3735 = vmax.f32 %v3733, %v3734
    %v3736 = vsel %vm3571, %v3198, -inf
    %v3737 = vmax.f32 %v3735, %v3736
    %v3738 = vsel %vm3571, %v3443, -inf
    %v3739 = vmax.f32 %v3737, %v3738
    %v3740 = vsel %vm3571, %v2713, -inf
    %v3741 = vsel %vm3571, %v2958, -inf
    %v3742 = vmax.f32 %v3740, %v3741
    %v3743 = vsel %vm3571, %v3203, -inf
    %v3744 = vmax.f32 %v3742, %v3743
    %v3745 = vsel %vm3571, %v3448, -inf
    %v3746 = vmax.f32 %v3744, %v3745
    %v3747 = vsel %vm3571, %v2718, -inf
    %v3748 = vsel %vm3571, %v2963, -inf
    %v3749 = vmax.f32 %v3747, %v3748
    %v3750 = vsel %vm3571, %v3208, -inf
    %v3751 = vmax.f32 %v3749, %v3750
    %v3752 = vsel %vm3571, %v3453, -inf
    %v3753 = vmax.f32 %v3751, %v3752
    %v3754 = vsel %vm3571, %v2723, -inf
    %v3755 = vsel %vm3571, %v2968, -inf
    %v3756 = vmax.f32 %v3754, %v3755
    %v3757 = vsel %vm3571, %v3213, -inf
    %v3758 = vmax.f32 %v3756, %v3757
    %v3759 = vsel %vm3571, %v3458, -inf
    %v3760 = vmax.f32 %v3758, %v3759
    %v3761 = vsel %vm3571, %v2728, -inf
    %v3762 = vsel %vm3571, %v2973, -inf
    %v3763 = vmax.f32 %v3761, %v3762
    %v3764 = vsel %vm3571, %v3218, -inf
    %v3765 = vmax.f32 %v3763, %v3764
    %v3766 = vsel %vm3571, %v3463, -inf
    %v3767 = vmax.f32 %v3765, %v3766
    %v3768 = vsel %vm3571, %v2733, -inf
    %v3769 = vsel %vm3571, %v2978, -inf
    %v3770 = vmax.f32 %v3768, %v3769
    %v3771 = vsel %vm3571, %v3223, -inf
    %v3772 = vmax.f32 %v3770, %v3771
    %v3773 = vsel %vm3571, %v3468, -inf
    %v3774 = vmax.f32 %v3772, %v3773
    %v3775 = vsel %vm3571, %v2738, -inf
    %v3776 = vsel %vm3571, %v2983, -inf
    %v3777 = vmax.f32 %v3775, %v3776
    %v3778 = vsel %vm3571, %v3228, -inf
    %v3779 = vmax.f32 %v3777, %v3778
    %v3780 = vsel %vm3571, %v3473, -inf
    %v3781 = vmax.f32 %v3779, %v3780
    %v3782 = vsel %vm3571, %v2743, -inf
    %v3783 = vsel %vm3571, %v2988, -inf
    %v3784 = vmax.f32 %v3782, %v3783
    %v3785 = vsel %vm3571, %v3233, -inf
    %v3786 = vmax.f32 %v3784, %v3785
    %v3787 = vsel %vm3571, %v3478, -inf
    %v3788 = vmax.f32 %v3786, %v3787
    %v3789 = vsel %vm3571, %v2748, -inf
    %v3790 = vsel %vm3571, %v2993, -inf
    %v3791 = vmax.f32 %v3789, %v3790
    %v3792 = vsel %vm3571, %v3238, -inf
    %v3793 = vmax.f32 %v3791, %v3792
    %v3794 = vsel %vm3571, %v3483, -inf
    %v3795 = vmax.f32 %v3793, %v3794
    %v3796 = vsel %vm3571, %v2753, -inf
    %v3797 = vsel %vm3571, %v2998, -inf
    %v3798 = vmax.f32 %v3796, %v3797
    %v3799 = vsel %vm3571, %v3243, -inf
    %v3800 = vmax.f32 %v3798, %v3799
    %v3801 = vsel %vm3571, %v3488, -inf
    %v3802 = vmax.f32 %v3800, %v3801
    %v3803 = vsel %vm3571, %v2758, -inf
    %v3804 = vsel %vm3571, %v3003, -inf
    %v3805 = vmax.f32 %v3803, %v3804
    %v3806 = vsel %vm3571, %v3248, -inf
    %v3807 = vmax.f32 %v3805, %v3806
    %v3808 = vsel %vm3571, %v3493, -inf
    %v3809 = vmax.f32 %v3807, %v3808
    %v3810 = vsel %vm3571, %v2763, -inf
    %v3811 = vsel %vm3571, %v3008, -inf
    %v3812 = vmax.f32 %v3810, %v3811
    %v3813 = vsel %vm3571, %v3253, -inf
    %v3814 = vmax.f32 %v3812, %v3813
    %v3815 = vsel %vm3571, %v3498, -inf
    %v3816 = vmax.f32 %v3814, %v3815
    %v3817 = vsel %vm3571, %v2768, -inf
    %v3818 = vsel %vm3571, %v3013, -inf
    %v3819 = vmax.f32 %v3817, %v3818
    %v3820 = vsel %vm3571, %v3258, -inf
    %v3821 = vmax.f32 %v3819, %v3820
    %v3822 = vsel %vm3571, %v3503, -inf
    %v3823 = vmax.f32 %v3821, %v3822
    %v3824 = vsel %vm3571, %v2773, -inf
    %v3825 = vsel %vm3571, %v3018, -inf
    %v3826 = vmax.f32 %v3824, %v3825
    %v3827 = vsel %vm3571, %v3263, -inf
    %v3828 = vmax.f32 %v3826, %v3827
    %v3829 = vsel %vm3571, %v3508, -inf
    %v3830 = vmax.f32 %v3828, %v3829
    %v3831 = vsel %vm3571, %v2778, -inf
    %v3832 = vsel %vm3571, %v3023, -inf
    %v3833 = vmax.f32 %v3831, %v3832
    %v3834 = vsel %vm3571, %v3268, -inf
    %v3835 = vmax.f32 %v3833, %v3834
    %v3836 = vsel %vm3571, %v3513, -inf
    %v3837 = vmax.f32 %v3835, %v3836
    %v3838 = vsel %vm3571, %v2783, -inf
    %v3839 = vsel %vm3571, %v3028, -inf
    %v3840 = vmax.f32 %v3838, %v3839
    %v3841 = vsel %vm3571, %v3273, -inf
    %v3842 = vmax.f32 %v3840, %v3841
    %v3843 = vsel %vm3571, %v3518, -inf
    %v3844 = vmax.f32 %v3842, %v3843
    %v3845 = vsel %vm3571, %v2788, -inf
    %v3846 = vsel %vm3571, %v3033, -inf
    %v3847 = vmax.f32 %v3845, %v3846
    %v3848 = vsel %vm3571, %v3278, -inf
    %v3849 = vmax.f32 %v3847, %v3848
    %v3850 = vsel %vm3571, %v3523, -inf
    %v3851 = vmax.f32 %v3849, %v3850
    %v3852 = vsel %vm3571, %v2793, -inf
    %v3853 = vsel %vm3571, %v3038, -inf
    %v3854 = vmax.f32 %v3852, %v3853
    %v3855 = vsel %vm3571, %v3283, -inf
    %v3856 = vmax.f32 %v3854, %v3855
    %v3857 = vsel %vm3571, %v3528, -inf
    %v3858 = vmax.f32 %v3856, %v3857
    %v3859 = vsel %vm3571, %v2798, -inf
    %v3860 = vsel %vm3571, %v3043, -inf
    %v3861 = vmax.f32 %v3859, %v3860
    %v3862 = vsel %vm3571, %v3288, -inf
    %v3863 = vmax.f32 %v3861, %v3862
    %v3864 = vsel %vm3571, %v3533, -inf
    %v3865 = vmax.f32 %v3863, %v3864
    %v3866 = vsel %vm3571, %v2803, -inf
    %v3867 = vsel %vm3571, %v3048, -inf
    %v3868 = vmax.f32 %v3866, %v3867
    %v3869 = vsel %vm3571, %v3293, -inf
    %v3870 = vmax.f32 %v3868, %v3869
    %v3871 = vsel %vm3571, %v3538, -inf
    %v3872 = vmax.f32 %v3870, %v3871
    %v3873 = vsel %vm3571, %v2808, -inf
    %v3874 = vsel %vm3571, %v3053, -inf
    %v3875 = vmax.f32 %v3873, %v3874
    %v3876 = vsel %vm3571, %v3298, -inf
    %v3877 = vmax.f32 %v3875, %v3876
    %v3878 = vsel %vm3571, %v3543, -inf
    %v3879 = vmax.f32 %v3877, %v3878
    %v3880 = vsel %vm3571, %v2813, -inf
    %v3881 = vsel %vm3571, %v3058, -inf
    %v3882 = vmax.f32 %v3880, %v3881
    %v3883 = vsel %vm3571, %v3303, -inf
    %v3884 = vmax.f32 %v3882, %v3883
    %v3885 = vsel %vm3571, %v3548, -inf
    %v3886 = vmax.f32 %v3884, %v3885
    %v3887 = vsel %vm3571, %v2818, -inf
    %v3888 = vsel %vm3571, %v3063, -inf
    %v3889 = vmax.f32 %v3887, %v3888
    %v3890 = vsel %vm3571, %v3308, -inf
    %v3891 = vmax.f32 %v3889, %v3890
    %v3892 = vsel %vm3571, %v3553, -inf
    %v3893 = vmax.f32 %v3891, %v3892
    %v3894 = vsel %vm3571, %v2823, -inf
    %v3895 = vsel %vm3571, %v3068, -inf
    %v3896 = vmax.f32 %v3894, %v3895
    %v3897 = vsel %vm3571, %v3313, -inf
    %v3898 = vmax.f32 %v3896, %v3897
    %v3899 = vsel %vm3571, %v3558, -inf
    %v3900 = vmax.f32 %v3898, %v3899
    %v3901 = vsel %vm3571, %v2828, -inf
    %v3902 = vsel %vm3571, %v3073, -inf
    %v3903 = vmax.f32 %v3901, %v3902
    %v3904 = vsel %vm3571, %v3318, -inf
    %v3905 = vmax.f32 %v3903, %v3904
    %v3906 = vsel %vm3571, %v3563, -inf
    %v3907 = vmax.f32 %v3905, %v3906
    %v3908 = vsel %vm3571, %v2833, -inf
    %v3909 = vsel %vm3571, %v3078, -inf
    %v3910 = vmax.f32 %v3908, %v3909
    %v3911 = vsel %vm3571, %v3323, -inf
    %v3912 = vmax.f32 %v3910, %v3911
    %v3913 = vsel %vm3571, %v3568, -inf
    %v3914 = vmax.f32 %v3912, %v3913
    %v3915 = vld [vmem:[#allocation5] sm:$0x1]
    %v3917 = vlaneseq
    %v3918 = vshrl.u32 %v3917, 7
    %v3919 = vsub.s32 0, %v3918
    %v3920 = vrot.slane %v3915, %v3919
    %v3922 = vadd.f32 %v3578, %v3920
    %v3923 = vadd.f32 %v3585, %v3920
    %v3924 = vadd.f32 %v3592, %v3920
    %v3925 = vadd.f32 %v3599, %v3920
    %v3926 = vadd.f32 %v3606, %v3920
    %v3927 = vadd.f32 %v3613, %v3920
    %v3928 = vadd.f32 %v3620, %v3920
    %v3929 = vadd.f32 %v3627, %v3920
    %v3930 = vadd.f32 %v3634, %v3920
    %v3931 = vadd.f32 %v3641, %v3920
    %v3932 = vadd.f32 %v3648, %v3920
    %v3933 = vadd.f32 %v3655, %v3920
    %v3934 = vadd.f32 %v3662, %v3920
    %v3935 = vadd.f32 %v3669, %v3920
    %v3936 = vadd.f32 %v3676, %v3920
    %v3937 = vadd.f32 %v3683, %v3920
    %v3938 = vadd.f32 %v3690, %v3920
    %v3939 = vadd.f32 %v3697, %v3920
    %v3940 = vadd.f32 %v3704, %v3920
    %v3941 = vadd.f32 %v3711, %v3920
    %v3942 = vadd.f32 %v3718, %v3920
    %v3943 = vadd.f32 %v3725, %v3920
    %v3944 = vadd.f32 %v3732, %v3920
    %v3945 = vadd.f32 %v3739, %v3920
    %v3946 = vadd.f32 %v3746, %v3920
    %v3947 = vadd.f32 %v3753, %v3920
    %v3948 = vadd.f32 %v3760, %v3920
    %v3949 = vadd.f32 %v3767, %v3920
    %v3950 = vadd.f32 %v3774, %v3920
    %v3951 = vadd.f32 %v3781, %v3920
    %v3952 = vadd.f32 %v3788, %v3920
    %v3953 = vadd.f32 %v3795, %v3920
    %v3954 = vadd.f32 %v3802, %v3920
    %v3955 = vadd.f32 %v3809, %v3920
    %v3956 = vadd.f32 %v3816, %v3920
    %v3957 = vadd.f32 %v3823, %v3920
    %v3958 = vadd.f32 %v3830, %v3920
    %v3959 = vadd.f32 %v3837, %v3920
    %v3960 = vadd.f32 %v3844, %v3920
    %v3961 = vadd.f32 %v3851, %v3920
    %v3962 = vadd.f32 %v3858, %v3920
    %v3963 = vadd.f32 %v3865, %v3920
    %v3964 = vadd.f32 %v3872, %v3920
    %v3965 = vadd.f32 %v3879, %v3920
    %v3966 = vadd.f32 %v3886, %v3920
    %v3967 = vadd.f32 %v3893, %v3920
    %v3968 = vadd.f32 %v3900, %v3920
    %v3969 = vadd.f32 %v3907, %v3920
    %v3970 = vadd.f32 %v3914, %v3920
    %v3971 = vmax.f32 %v3922, 0.0
    %v3972 = vmax.f32 %v3923, 0.0
    %v3973 = vmax.f32 %v3924, 0.0
    %v3974 = vmax.f32 %v3925, 0.0
    %v3975 = vmax.f32 %v3926, 0.0
    %v3976 = vmax.f32 %v3927, 0.0
    %v3977 = vmax.f32 %v3928, 0.0
    %v3978 = vmax.f32 %v3929, 0.0
    %v3979 = vmax.f32 %v3930, 0.0
    %v3980 = vmax.f32 %v3931, 0.0
    %v3981 = vmax.f32 %v3932, 0.0
    %v3982 = vmax.f32 %v3933, 0.0
    %v3983 = vmax.f32 %v3934, 0.0
    %v3984 = vmax.f32 %v3935, 0.0
    %v3985 = vmax.f32 %v3936, 0.0
    %v3986 = vmax.f32 %v3937, 0.0
    %v3987 = vmax.f32 %v3938, 0.0
    %v3988 = vmax.f32 %v3939, 0.0
    %v3989 = vmax.f32 %v3940, 0.0
    %v3990 = vmax.f32 %v3941, 0.0
    %v3991 = vmax.f32 %v3942, 0.0
    %v3992 = vmax.f32 %v3943, 0.0
    %v3993 = vmax.f32 %v3944, 0.0
    %v3994 = vmax.f32 %v3945, 0.0
    %v3995 = vmax.f32 %v3946, 0.0
    %v3996 = vmax.f32 %v3947, 0.0
    %v3997 = vmax.f32 %v3948, 0.0
    %v3998 = vmax.f32 %v3949, 0.0
    %v3999 = vmax.f32 %v3950, 0.0
    %v4000 = vmax.f32 %v3951, 0.0
    %v4001 = vmax.f32 %v3952, 0.0
    %v4002 = vmax.f32 %v3953, 0.0
    %v4003 = vmax.f32 %v3954, 0.0
    %v4004 = vmax.f32 %v3955, 0.0
    %v4005 = vmax.f32 %v3956, 0.0
    %v4006 = vmax.f32 %v3957, 0.0
    %v4007 = vmax.f32 %v3958, 0.0
    %v4008 = vmax.f32 %v3959, 0.0
    %v4009 = vmax.f32 %v3960, 0.0
    %v4010 = vmax.f32 %v3961, 0.0
    %v4011 = vmax.f32 %v3962, 0.0
    %v4012 = vmax.f32 %v3963, 0.0
    %v4013 = vmax.f32 %v3964, 0.0
    %v4014 = vmax.f32 %v3965, 0.0
    %v4015 = vmax.f32 %v3966, 0.0
    %v4016 = vmax.f32 %v3967, 0.0
    %v4017 = vmax.f32 %v3968, 0.0
    %v4018 = vmax.f32 %v3969, 0.0
    %v4019 = vmax.f32 %v3970, 0.0
    %v4020 = vld [vmem:[%s3] sm:$0xff]
    %v4021 = vld [vmem:[%s3 + $0x8] sm:$0xff]
    %v4022 = vld [vmem:[%s3 + $0x10] sm:$0xff]
    %v4023 = vld [vmem:[%s3 + $0x18] sm:$0xff]
    %v4024 = vld [vmem:[%s3 + $0x20] sm:$0xff]
    %v4025 = vld [vmem:[%s3 + $0x28] sm:$0xff]
    %v4026 = vld [vmem:[%s3 + $0x30] sm:$0xff]
    %v4027 = vld [vmem:[%s3 + $0x38] sm:$0xff]
    %v4028 = vld [vmem:[%s3 + $0x40] sm:$0xff]
    %v4029 = vld [vmem:[%s3 + $0x48] sm:$0xff]
    %v4030 = vld [vmem:[%s3 + $0x50] sm:$0xff]
    %v4031 = vld [vmem:[%s3 + $0x58] sm:$0xff]
    %v4032 = vld [vmem:[%s3 + $0x60] sm:$0xff]
    %v4033 = vld [vmem:[%s3 + $0x68] sm:$0xff]
    %v4034 = vld [vmem:[%s3 + $0x70] sm:$0xff]
    %v4035 = vld [vmem:[%s3 + $0x78] sm:$0xff]
    %v4036 = vld [vmem:[%s3 + $0x80] sm:$0xff]
    %v4037 = vld [vmem:[%s3 + $0x88] sm:$0xff]
    %v4038 = vld [vmem:[%s3 + $0x90] sm:$0xff]
    %v4039 = vld [vmem:[%s3 + $0x98] sm:$0xff]
    %v4040 = vld [vmem:[%s3 + $0xa0] sm:$0xff]
    %v4041 = vld [vmem:[%s3 + $0xa8] sm:$0xff]
    %v4042 = vld [vmem:[%s3 + $0xb0] sm:$0xff]
    %v4043 = vld [vmem:[%s3 + $0xb8] sm:$0xff]
    %v4044 = vld [vmem:[%s3 + $0xc0] sm:$0xff]
    %v4045 = vld [vmem:[%s3 + $0xc8] sm:$0xff]
    %v4046 = vld [vmem:[%s3 + $0xd0] sm:$0xff]
    %v4047 = vld [vmem:[%s3 + $0xd8] sm:$0xff]
    %v4048 = vld [vmem:[%s3 + $0xe0] sm:$0xff]
    %v4049 = vld [vmem:[%s3 + $0xe8] sm:$0xff]
    %v4050 = vld [vmem:[%s3 + $0xf0] sm:$0xff]
    %v4051 = vld [vmem:[%s3 + $0xf8] sm:$0xff]
    %v4052 = vld [vmem:[%s3 + $0x100] sm:$0xff]
    %v4053 = vld [vmem:[%s3 + $0x108] sm:$0xff]
    %v4054 = vld [vmem:[%s3 + $0x110] sm:$0xff]
    %v4055 = vld [vmem:[%s3 + $0x118] sm:$0xff]
    %v4056 = vld [vmem:[%s3 + $0x120] sm:$0xff]
    %v4057 = vld [vmem:[%s3 + $0x128] sm:$0xff]
    %v4058 = vld [vmem:[%s3 + $0x130] sm:$0xff]
    %v4059 = vld [vmem:[%s3 + $0x138] sm:$0xff]
    %v4060 = vld [vmem:[%s3 + $0x140] sm:$0xff]
    %v4061 = vld [vmem:[%s3 + $0x148] sm:$0xff]
    %v4062 = vld [vmem:[%s3 + $0x150] sm:$0xff]
    %v4063 = vld [vmem:[%s3 + $0x158] sm:$0xff]
    %v4064 = vld [vmem:[%s3 + $0x160] sm:$0xff]
    %v4065 = vld [vmem:[%s3 + $0x168] sm:$0xff]
    %v4066 = vld [vmem:[%s3 + $0x170] sm:$0xff]
    %v4067 = vld [vmem:[%s3 + $0x178] sm:$0xff]
    %v4068 = vld [vmem:[%s3 + $0x180] sm:$0xff]
    %v4069 = vld [vmem:[%s3 + $0x188] sm:$0xff]
    %v4070 = vld [vmem:[%s3 + $0x190] sm:$0xff]
    %v4071 = vld [vmem:[%s3 + $0x198] sm:$0xff]
    %v4072 = vld [vmem:[%s3 + $0x1a0] sm:$0xff]
    %v4073 = vld [vmem:[%s3 + $0x1a8] sm:$0xff]
    %v4074 = vld [vmem:[%s3 + $0x1b0] sm:$0xff]
    %v4075 = vld [vmem:[%s3 + $0x1b8] sm:$0xff]
    %v4076 = vld [vmem:[%s3 + $0x1c0] sm:$0xff]
    %v4077 = vld [vmem:[%s3 + $0x1c8] sm:$0xff]
    %v4078 = vld [vmem:[%s3 + $0x1d0] sm:$0xff]
    %v4079 = vld [vmem:[%s3 + $0x1d8] sm:$0xff]
    %v4080 = vld [vmem:[%s3 + $0x1e0] sm:$0xff]
    %v4081 = vld [vmem:[%s3 + $0x1e8] sm:$0xff]
    %v4082 = vld [vmem:[%s3 + $0x1f0] sm:$0xff]
    %v4083 = vld [vmem:[%s3 + $0x1f8] sm:$0xff]
    %v4084 = vld [vmem:[%s3 + $0x200] sm:$0xff]
    %v4085 = vld [vmem:[%s3 + $0x208] sm:$0xff]
    %v4086 = vld [vmem:[%s3 + $0x210] sm:$0xff]
    %v4087 = vld [vmem:[%s3 + $0x218] sm:$0xff]
    %v4088 = vld [vmem:[%s3 + $0x220] sm:$0xff]
    %v4089 = vld [vmem:[%s3 + $0x228] sm:$0xff]
    %v4090 = vld [vmem:[%s3 + $0x230] sm:$0xff]
    %v4091 = vld [vmem:[%s3 + $0x238] sm:$0xff]
    %v4092 = vld [vmem:[%s3 + $0x240] sm:$0xff]
    %v4093 = vld [vmem:[%s3 + $0x248] sm:$0xff]
    %v4094 = vld [vmem:[%s3 + $0x250] sm:$0xff]
    %v4095 = vld [vmem:[%s3 + $0x258] sm:$0xff]
    %v4096 = vld [vmem:[%s3 + $0x260] sm:$0xff]
    %v4097 = vld [vmem:[%s3 + $0x268] sm:$0xff]
    %v4098 = vld [vmem:[%s3 + $0x270] sm:$0xff]
    %v4099 = vld [vmem:[%s3 + $0x278] sm:$0xff]
    %v4100 = vld [vmem:[%s3 + $0x280] sm:$0xff]
    %v4101 = vld [vmem:[%s3 + $0x288] sm:$0xff]
    %v4102 = vld [vmem:[%s3 + $0x290] sm:$0xff]
    %v4103 = vld [vmem:[%s3 + $0x298] sm:$0xff]
    %v4104 = vld [vmem:[%s3 + $0x2a0] sm:$0xff]
    %v4105 = vld [vmem:[%s3 + $0x2a8] sm:$0xff]
    %v4106 = vld [vmem:[%s3 + $0x2b0] sm:$0xff]
    %v4107 = vld [vmem:[%s3 + $0x2b8] sm:$0xff]
    %v4108 = vld [vmem:[%s3 + $0x2c0] sm:$0xff]
    %v4109 = vld [vmem:[%s3 + $0x2c8] sm:$0xff]
    %v4110 = vld [vmem:[%s3 + $0x2d0] sm:$0xff]
    %v4111 = vld [vmem:[%s3 + $0x2d8] sm:$0xff]
    %v4112 = vld [vmem:[%s3 + $0x2e0] sm:$0xff]
    %v4113 = vld [vmem:[%s3 + $0x2e8] sm:$0xff]
    %v4114 = vld [vmem:[%s3 + $0x2f0] sm:$0xff]
    %v4115 = vld [vmem:[%s3 + $0x2f8] sm:$0xff]
    %v4116 = vld [vmem:[%s3 + $0x300] sm:$0xff]
    %v4117 = vld [vmem:[%s3 + $0x308] sm:$0xff]
    %v4118 = vld [vmem:[%s3 + $0x310] sm:$0xff]
    %v4119 = vld [vmem:[%s3 + $0x318] sm:$0xff]
    %v4120 = vld [vmem:[%s3 + $0x320] sm:$0xff]
    %v4121 = vld [vmem:[%s3 + $0x328] sm:$0xff]
    %v4122 = vld [vmem:[%s3 + $0x330] sm:$0xff]
    %v4123 = vld [vmem:[%s3 + $0x338] sm:$0xff]
    %v4124 = vld [vmem:[%s3 + $0x340] sm:$0xff]
    %v4125 = vld [vmem:[%s3 + $0x348] sm:$0xff]
    %v4126 = vld [vmem:[%s3 + $0x350] sm:$0xff]
    %v4127 = vld [vmem:[%s3 + $0x358] sm:$0xff]
    %v4128 = vld [vmem:[%s3 + $0x360] sm:$0xff]
    %v4129 = vld [vmem:[%s3 + $0x368] sm:$0xff]
    %v4130 = vld [vmem:[%s3 + $0x370] sm:$0xff]
    %v4131 = vld [vmem:[%s3 + $0x378] sm:$0xff]
    %v4132 = vld [vmem:[%s3 + $0x380] sm:$0xff]
    %v4133 = vld [vmem:[%s3 + $0x388] sm:$0xff]
    %v4134 = vld [vmem:[%s3 + $0x390] sm:$0xff]
    %v4135 = vld [vmem:[%s3 + $0x398] sm:$0xff]
    %v4136 = vld [vmem:[%s3 + $0x3a0] sm:$0xff]
    %v4137 = vld [vmem:[%s3 + $0x3a8] sm:$0xff]
    %v4138 = vld [vmem:[%s3 + $0x3b0] sm:$0xff]
    %v4139 = vld [vmem:[%s3 + $0x3b8] sm:$0xff]
    %v4140 = vld [vmem:[%s3 + $0x3c0] sm:$0xff]
    %v4141 = vld [vmem:[%s3 + $0x3c8] sm:$0xff]
    %v4142 = vld [vmem:[%s3 + $0x3d0] sm:$0xff]
    %v4143 = vld [vmem:[%s3 + $0x3d8] sm:$0xff]
    %v4144 = vld [vmem:[%s3 + $0x3e0] sm:$0xff]
    %v4145 = vld [vmem:[%s3 + $0x3e8] sm:$0xff]
    %v4146 = vld [vmem:[%s3 + $0x3f0] sm:$0xff]
    %v4147 = vld [vmem:[%s3 + $0x3f8] sm:$0xff]
    %v4148 = vld [vmem:[%s3 + $0x400] sm:$0xff]
    %v4149 = vld [vmem:[%s3 + $0x408] sm:$0xff]
    %v4150 = vld [vmem:[%s3 + $0x410] sm:$0xff]
    %v4151 = vld [vmem:[%s3 + $0x418] sm:$0xff]
    %v4152 = vld [vmem:[%s3 + $0x420] sm:$0xff]
    %v4153 = vld [vmem:[%s3 + $0x428] sm:$0xff]
    %v4154 = vld [vmem:[%s3 + $0x430] sm:$0xff]
    %v4155 = vld [vmem:[%s3 + $0x438] sm:$0xff]
    %v4156 = vld [vmem:[%s3 + $0x440] sm:$0xff]
    %v4157 = vld [vmem:[%s3 + $0x448] sm:$0xff]
    %v4158 = vld [vmem:[%s3 + $0x450] sm:$0xff]
    %v4159 = vld [vmem:[%s3 + $0x458] sm:$0xff]
    %v4160 = vld [vmem:[%s3 + $0x460] sm:$0xff]
    %v4161 = vld [vmem:[%s3 + $0x468] sm:$0xff]
    %v4162 = vld [vmem:[%s3 + $0x470] sm:$0xff]
    %v4163 = vld [vmem:[%s3 + $0x478] sm:$0xff]
    %v4164 = vld [vmem:[%s3 + $0x480] sm:$0xff]
    %v4165 = vld [vmem:[%s3 + $0x488] sm:$0xff]
    %v4166 = vld [vmem:[%s3 + $0x490] sm:$0xff]
    %v4167 = vld [vmem:[%s3 + $0x498] sm:$0xff]
    %v4168 = vld [vmem:[%s3 + $0x4a0] sm:$0xff]
    %v4169 = vld [vmem:[%s3 + $0x4a8] sm:$0xff]
    %v4170 = vld [vmem:[%s3 + $0x4b0] sm:$0xff]
    %v4171 = vld [vmem:[%s3 + $0x4b8] sm:$0xff]
    %v4172 = vld [vmem:[%s3 + $0x4c0] sm:$0xff]
    %v4173 = vld [vmem:[%s3 + $0x4c8] sm:$0xff]
    %v4174 = vld [vmem:[%s3 + $0x4d0] sm:$0xff]
    %v4175 = vld [vmem:[%s3 + $0x4d8] sm:$0xff]
    %v4176 = vld [vmem:[%s3 + $0x4e0] sm:$0xff]
    %v4177 = vld [vmem:[%s3 + $0x4e8] sm:$0xff]
    %v4178 = vld [vmem:[%s3 + $0x4f0] sm:$0xff]
    %v4179 = vld [vmem:[%s3 + $0x4f8] sm:$0xff]
    %v4180 = vld [vmem:[%s3 + $0x500] sm:$0xff]
    %v4181 = vld [vmem:[%s3 + $0x508] sm:$0xff]
    %v4182 = vld [vmem:[%s3 + $0x510] sm:$0xff]
    %v4183 = vld [vmem:[%s3 + $0x518] sm:$0xff]
    %v4184 = vld [vmem:[%s3 + $0x520] sm:$0xff]
    %v4185 = vld [vmem:[%s3 + $0x528] sm:$0xff]
    %v4186 = vld [vmem:[%s3 + $0x530] sm:$0xff]
    %v4187 = vld [vmem:[%s3 + $0x538] sm:$0xff]
    %v4188 = vld [vmem:[%s3 + $0x540] sm:$0xff]
    %v4189 = vld [vmem:[%s3 + $0x548] sm:$0xff]
    %v4190 = vld [vmem:[%s3 + $0x550] sm:$0xff]
    %v4191 = vld [vmem:[%s3 + $0x558] sm:$0xff]
    %v4192 = vld [vmem:[%s3 + $0x560] sm:$0xff]
    %v4193 = vld [vmem:[%s3 + $0x568] sm:$0xff]
    %v4194 = vld [vmem:[%s3 + $0x570] sm:$0xff]
    %v4195 = vld [vmem:[%s3 + $0x578] sm:$0xff]
    %v4196 = vld [vmem:[%s3 + $0x580] sm:$0xff]
    %v4197 = vld [vmem:[%s3 + $0x588] sm:$0xff]
    %v4198 = vld [vmem:[%s3 + $0x590] sm:$0xff]
    %v4199 = vld [vmem:[%s3 + $0x598] sm:$0xff]
    %v4200 = vld [vmem:[%s3 + $0x5a0] sm:$0xff]
    %v4201 = vld [vmem:[%s3 + $0x5a8] sm:$0xff]
    %v4202 = vld [vmem:[%s3 + $0x5b0] sm:$0xff]
    %v4203 = vld [vmem:[%s3 + $0x5b8] sm:$0xff]
    %v4204 = vld [vmem:[%s3 + $0x5c0] sm:$0xff]
    %v4205 = vld [vmem:[%s3 + $0x5c8] sm:$0xff]
    %v4206 = vld [vmem:[%s3 + $0x5d0] sm:$0xff]
    %v4207 = vld [vmem:[%s3 + $0x5d8] sm:$0xff]
    %v4208 = vld [vmem:[%s3 + $0x5e0] sm:$0xff]
    %v4209 = vld [vmem:[%s3 + $0x5e8] sm:$0xff]
    %v4210 = vld [vmem:[%s3 + $0x5f0] sm:$0xff]
    %v4211 = vld [vmem:[%s3 + $0x5f8] sm:$0xff]
    %v4212 = vld [vmem:[%s3 + $0x600] sm:$0xff]
    %v4213 = vld [vmem:[%s3 + $0x608] sm:$0xff]
    %v4214 = vld [vmem:[%s3 + $0x610] sm:$0xff]
    %v4215 = vld [vmem:[%s3 + $0x618] sm:$0xff]
    %v4217 = vsel %vm3571, %v3971, 0
    %4219 = vmatprep.subr.mxu0 0.0
    %4220 = vmatpush1.msra.mxu0 %v4020
    %4221 = vmatprep.subr.mxu0 0.0
    %4222 = vmatpush1.msra.mxu0 %v4021
    %4223 = vmatprep.subr.mxu0 0.0
    %4224 = vmatpush1.msra.mxu0 %v4022
    %4225 = vmatprep.subr.mxu0 0.0
    %4226 = vmatpush1.msra.mxu0 %v4023
    %4227 = vmatprep.subr.mxu0 0.0
    %4228 = vmatpush1.msra.mxu0 0.0
    %4229 = vmatprep.subr.mxu0 0.0
    %4230 = vmatpush1.msra.mxu0 0.0
    %4231 = vmatprep.subr.mxu0 0.0
    %4232 = vmatpush1.msra.mxu0 0.0
    %4233 = vmatprep.subr.mxu0 0.0
    %4234 = vmatpush1.msra.mxu0 0.0
    %4235 = vmatprep.subr.mxu0 0.0
    %4236 = vmatpush1.msra.mxu0 0.0
    %4237 = vmatprep.subr.mxu0 0.0
    %4238 = vmatpush1.msra.mxu0 0.0
    %4239 = vmatprep.subr.mxu0 0.0
    %4240 = vmatpush1.msra.mxu0 0.0
    %4241 = vmatprep.subr.mxu0 0.0
    %4242 = vmatpush1.msra.mxu0 0.0
    %4243 = vmatprep.subr.mxu0 0.0
    %4244 = vmatpush1.msra.mxu0 0.0
    %4245 = vmatprep.subr.mxu0 0.0
    %4246 = vmatpush1.msra.mxu0 0.0
    %4247 = vmatprep.subr.mxu0 0.0
    %4248 = vmatpush1.msra.mxu0 0.0
    %4249 = vmatprep.subr.mxu0 0.0
    %4250 = vmatpush1.msra.mxu0 0.0
    %4251 = vmatprep.subr.mxu0 0.0
    %4252 = vmatpush1.msra.mxu0 0.0
    %4253 = vmatprep.subr.mxu0 0.0
    %4254 = vmatpush1.msra.mxu0 0.0
    %4255 = vmatprep.subr.mxu0 0.0
    %4256 = vmatpush1.msra.mxu0 0.0
    %4257 = vmatprep.subr.mxu0 0.0
    %4258 = vmatpush1.msra.mxu0 0.0
    %4259 = vmatprep.subr.mxu0 0.0
    %4260 = vmatpush1.msra.mxu0 0.0
    %4261 = vmatprep.subr.mxu0 0.0
    %4262 = vmatpush1.msra.mxu0 0.0
    %4263 = vmatprep.subr.mxu0 0.0
    %4264 = vmatpush1.msra.mxu0 0.0
    %4265 = vmatprep.subr.mxu0 0.0
    %4266 = vmatpush1.msra.mxu0 0.0
    %4267 = vmatprep.subr.mxu0 0.0
    %4268 = vmatpush1.msra.mxu0 0.0
    %4269 = vmatprep.subr.mxu0 0.0
    %4270 = vmatpush1.msra.mxu0 0.0
    %4271 = vmatprep.subr.mxu0 0.0
    %4272 = vmatpush1.msra.mxu0 0.0
    %4273 = vmatprep.subr.mxu0 0.0
    %4274 = vmatpush1.msra.mxu0 0.0
    %4275 = vmatprep.subr.mxu0 0.0
    %4276 = vmatpush1.msra.mxu0 0.0
    %4277 = vmatprep.subr.mxu0 0.0
    %4278 = vmatpush1.msra.mxu0 0.0
    %4279 = vmatprep.subr.mxu0 0.0
    %4280 = vmatpush1.msra.mxu0 0.0
    %4281 = vmatprep.subr.mxu0 0.0
    %4282 = vmatpush1.msra.mxu0 0.0
    %4283 = vmatprep.mubr.f32.mxu0 0.0
    %4284 = vmatmul.mubr.f32.gmra.mrb[0].mxu0 %v4217
    %v4285 = vpop.f32.mrb[0].mxu0
    %v4286 = vadd.f32 0.0, %v4285
    %v4287 = vpop.f32.mrb[0].mxu0
    %4288 = vdwg.mxu0
    %v4290 = vsel %vm3571, %v3972, 0
    %4292 = vmatprep.subr.mxu0 0.0
    %4293 = vmatpush1.msra.mxu0 %v4024
    %4294 = vmatprep.subr.mxu0 0.0
    %4295 = vmatpush1.msra.mxu0 %v4025
    %4296 = vmatprep.subr.mxu0 0.0
    %4297 = vmatpush1.msra.mxu0 %v4026
    %4298 = vmatprep.subr.mxu0 0.0
    %4299 = vmatpush1.msra.mxu0 %v4027
    %4300 = vmatprep.subr.mxu0 0.0
    %4301 = vmatpush1.msra.mxu0 0.0
    %4302 = vmatprep.subr.mxu0 0.0
    %4303 = vmatpush1.msra.mxu0 0.0
    %4304 = vmatprep.subr.mxu0 0.0
    %4305 = vmatpush1.msra.mxu0 0.0
    %4306 = vmatprep.subr.mxu0 0.0
    %4307 = vmatpush1.msra.mxu0 0.0
    %4308 = vmatprep.subr.mxu0 0.0
    %4309 = vmatpush1.msra.mxu0 0.0
    %4310 = vmatprep.subr.mxu0 0.0
    %4311 = vmatpush1.msra.mxu0 0.0
    %4312 = vmatprep.subr.mxu0 0.0
    %4313 = vmatpush1.msra.mxu0 0.0
    %4314 = vmatprep.subr.mxu0 0.0
    %4315 = vmatpush1.msra.mxu0 0.0
    %4316 = vmatprep.subr.mxu0 0.0
    %4317 = vmatpush1.msra.mxu0 0.0
    %4318 = vmatprep.subr.mxu0 0.0
    %4319 = vmatpush1.msra.mxu0 0.0
    %4320 = vmatprep.subr.mxu0 0.0
    %4321 = vmatpush1.msra.mxu0 0.0
    %4322 = vmatprep.subr.mxu0 0.0
    %4323 = vmatpush1.msra.mxu0 0.0
    %4324 = vmatprep.subr.mxu0 0.0
    %4325 = vmatpush1.msra.mxu0 0.0
    %4326 = vmatprep.subr.mxu0 0.0
    %4327 = vmatpush1.msra.mxu0 0.0
    %4328 = vmatprep.subr.mxu0 0.0
    %4329 = vmatpush1.msra.mxu0 0.0
    %4330 = vmatprep.subr.mxu0 0.0
    %4331 = vmatpush1.msra.mxu0 0.0
    %4332 = vmatprep.subr.mxu0 0.0
    %4333 = vmatpush1.msra.mxu0 0.0
    %4334 = vmatprep.subr.mxu0 0.0
    %4335 = vmatpush1.msra.mxu0 0.0
    %4336 = vmatprep.subr.mxu0 0.0
    %4337 = vmatpush1.msra.mxu0 0.0
    %4338 = vmatprep.subr.mxu0 0.0
    %4339 = vmatpush1.msra.mxu0 0.0
    %4340 = vmatprep.subr.mxu0 0.0
    %4341 = vmatpush1.msra.mxu0 0.0
    %4342 = vmatprep.subr.mxu0 0.0
    %4343 = vmatpush1.msra.mxu0 0.0
    %4344 = vmatprep.subr.mxu0 0.0
    %4345 = vmatpush1.msra.mxu0 0.0
    %4346 = vmatprep.subr.mxu0 0.0
    %4347 = vmatpush1.msra.mxu0 0.0
    %4348 = vmatprep.subr.mxu0 0.0
    %4349 = vmatpush1.msra.mxu0 0.0
    %4350 = vmatprep.subr.mxu0 0.0
    %4351 = vmatpush1.msra.mxu0 0.0
    %4352 = vmatprep.subr.mxu0 0.0
    %4353 = vmatpush1.msra.mxu0 0.0
    %4354 = vmatprep.subr.mxu0 0.0
    %4355 = vmatpush1.msra.mxu0 0.0
    %4356 = vmatprep.mubr.f32.mxu0 0.0
    %4357 = vmatmul.mubr.f32.gmra.mrb[0].mxu0 %v4290
    %v4358 = vpop.f32.mrb[0].mxu0
    %v4359 = vadd.f32 0.0, %v4358
    %v4360 = vpop.f32.mrb[0].mxu0
    %4361 = vdwg.mxu0
    %v4363 = vsel %vm3571, %v3973, 0
    %4365 = vmatprep.subr.mxu0 0.0
    %4366 = vmatpush1.msra.mxu0 %v4028
    %4367 = vmatprep.subr.mxu0 0.0
    %4368 = vmatpush1.msra.mxu0 %v4029
    %4369 = vmatprep.subr.mxu0 0.0
    %4370 = vmatpush1.msra.mxu0 %v4030
    %4371 = vmatprep.subr.mxu0 0.0
    %4372 = vmatpush1.msra.mxu0 %v4031
    %4373 = vmatprep.subr.mxu0 0.0
    %4374 = vmatpush1.msra.mxu0 0.0
    %4375 = vmatprep.subr.mxu0 0.0
    %4376 = vmatpush1.msra.mxu0 0.0
    %4377 = vmatprep.subr.mxu0 0.0
    %4378 = vmatpush1.msra.mxu0 0.0
    %4379 = vmatprep.subr.mxu0 0.0
    %4380 = vmatpush1.msra.mxu0 0.0
    %4381 = vmatprep.subr.mxu0 0.0
    %4382 = vmatpush1.msra.mxu0 0.0
    %4383 = vmatprep.subr.mxu0 0.0
    %4384 = vmatpush1.msra.mxu0 0.0
    %4385 = vmatprep.subr.mxu0 0.0
    %4386 = vmatpush1.msra.mxu0 0.0
    %4387 = vmatprep.subr.mxu0 0.0
    %4388 = vmatpush1.msra.mxu0 0.0
    %4389 = vmatprep.subr.mxu0 0.0
    %4390 = vmatpush1.msra.mxu0 0.0
    %4391 = vmatprep.subr.mxu0 0.0
    %4392 = vmatpush1.msra.mxu0 0.0
    %4393 = vmatprep.subr.mxu0 0.0
    %4394 = vmatpush1.msra.mxu0 0.0
    %4395 = vmatprep.subr.mxu0 0.0
    %4396 = vmatpush1.msra.mxu0 0.0
    %4397 = vmatprep.subr.mxu0 0.0
    %4398 = vmatpush1.msra.mxu0 0.0
    %4399 = vmatprep.subr.mxu0 0.0
    %4400 = vmatpush1.msra.mxu0 0.0
    %4401 = vmatprep.subr.mxu0 0.0
    %4402 = vmatpush1.msra.mxu0 0.0
    %4403 = vmatprep.subr.mxu0 0.0
    %4404 = vmatpush1.msra.mxu0 0.0
    %4405 = vmatprep.subr.mxu0 0.0
    %4406 = vmatpush1.msra.mxu0 0.0
    %4407 = vmatprep.subr.mxu0 0.0
    %4408 = vmatpush1.msra.mxu0 0.0
    %4409 = vmatprep.subr.mxu0 0.0
    %4410 = vmatpush1.msra.mxu0 0.0
    %4411 = vmatprep.subr.mxu0 0.0
    %4412 = vmatpush1.msra.mxu0 0.0
    %4413 = vmatprep.subr.mxu0 0.0
    %4414 = vmatpush1.msra.mxu0 0.0
    %4415 = vmatprep.subr.mxu0 0.0
    %4416 = vmatpush1.msra.mxu0 0.0
    %4417 = vmatprep.subr.mxu0 0.0
    %4418 = vmatpush1.msra.mxu0 0.0
    %4419 = vmatprep.subr.mxu0 0.0
    %4420 = vmatpush1.msra.mxu0 0.0
    %4421 = vmatprep.subr.mxu0 0.0
    %4422 = vmatpush1.msra.mxu0 0.0
    %4423 = vmatprep.subr.mxu0 0.0
    %4424 = vmatpush1.msra.mxu0 0.0
    %4425 = vmatprep.subr.mxu0 0.0
    %4426 = vmatpush1.msra.mxu0 0.0
    %4427 = vmatprep.subr.mxu0 0.0
    %4428 = vmatpush1.msra.mxu0 0.0
    %4429 = vmatprep.mubr.f32.mxu0 0.0
    %4430 = vmatmul.mubr.f32.gmra.mrb[0].mxu0 %v4363
    %v4431 = vpop.f32.mrb[0].mxu0
    %v4432 = vadd.f32 0.0, %v4431
    %v4433 = vpop.f32.mrb[0].mxu0
    %4434 = vdwg.mxu0
    %v4436 = vsel %vm3571, %v3974, 0
    %4438 = vmatprep.subr.mxu0 0.0
    %4439 = vmatpush1.msra.mxu0 %v4032
    %4440 = vmatprep.subr.mxu0 0.0
    %4441 = vmatpush1.msra.mxu0 %v4033
    %4442 = vmatprep.subr.mxu0 0.0
    %4443 = vmatpush1.msra.mxu0 %v4034
    %4444 = vmatprep.subr.mxu0 0.0
    %4445 = vmatpush1.msra.mxu0 %v4035
    %4446 = vmatprep.subr.mxu0 0.0
    %4447 = vmatpush1.msra.mxu0 0.0
    %4448 = vmatprep.subr.mxu0 0.0
    %4449 = vmatpush1.msra.mxu0 0.0
    %4450 = vmatprep.subr.mxu0 0.0
    %4451 = vmatpush1.msra.mxu0 0.0
    %4452 = vmatprep.subr.mxu0 0.0
    %4453 = vmatpush1.msra.mxu0 0.0
    %4454 = vmatprep.subr.mxu0 0.0
    %4455 = vmatpush1.msra.mxu0 0.0
    %4456 = vmatprep.subr.mxu0 0.0
    %4457 = vmatpush1.msra.mxu0 0.0
    %4458 = vmatprep.subr.mxu0 0.0
    %4459 = vmatpush1.msra.mxu0 0.0
    %4460 = vmatprep.subr.mxu0 0.0
    %4461 = vmatpush1.msra.mxu0 0.0
    %4462 = vmatprep.subr.mxu0 0.0
    %4463 = vmatpush1.msra.mxu0 0.0
    %4464 = vmatprep.subr.mxu0 0.0
    %4465 = vmatpush1.msra.mxu0 0.0
    %4466 = vmatprep.subr.mxu0 0.0
    %4467 = vmatpush1.msra.mxu0 0.0
    %4468 = vmatprep.subr.mxu0 0.0
    %4469 = vmatpush1.msra.mxu0 0.0
    %4470 = vmatprep.subr.mxu0 0.0
    %4471 = vmatpush1.msra.mxu0 0.0
    %4472 = vmatprep.subr.mxu0 0.0
    %4473 = vmatpush1.msra.mxu0 0.0
    %4474 = vmatprep.subr.mxu0 0.0
    %4475 = vmatpush1.msra.mxu0 0.0
    %4476 = vmatprep.subr.mxu0 0.0
    %4477 = vmatpush1.msra.mxu0 0.0
    %4478 = vmatprep.subr.mxu0 0.0
    %4479 = vmatpush1.msra.mxu0 0.0
    %4480 = vmatprep.subr.mxu0 0.0
    %4481 = vmatpush1.msra.mxu0 0.0
    %4482 = vmatprep.subr.mxu0 0.0
    %4483 = vmatpush1.msra.mxu0 0.0
    %4484 = vmatprep.subr.mxu0 0.0
    %4485 = vmatpush1.msra.mxu0 0.0
    %4486 = vmatprep.subr.mxu0 0.0
    %4487 = vmatpush1.msra.mxu0 0.0
    %4488 = vmatprep.subr.mxu0 0.0
    %4489 = vmatpush1.msra.mxu0 0.0
    %4490 = vmatprep.subr.mxu0 0.0
    %4491 = vmatpush1.msra.mxu0 0.0
    %4492 = vmatprep.subr.mxu0 0.0
    %4493 = vmatpush1.msra.mxu0 0.0
    %4494 = vmatprep.subr.mxu0 0.0
    %4495 = vmatpush1.msra.mxu0 0.0
    %4496 = vmatprep.subr.mxu0 0.0
    %4497 = vmatpush1.msra.mxu0 0.0
    %4498 = vmatprep.subr.mxu0 0.0
    %4499 = vmatpush1.msra.mxu0 0.0
    %4500 = vmatprep.subr.mxu0 0.0
    %4501 = vmatpush1.msra.mxu0 0.0
    %4502 = vmatprep.mubr.f32.mxu0 0.0
    %4503 = vmatmul.mubr.f32.gmra.mrb[0].mxu0 %v4436
    %v4504 = vpop.f32.mrb[0].mxu0
    %v4505 = vadd.f32 0.0, %v4504
    %v4506 = vpop.f32.mrb[0].mxu0
    %4507 = vdwg.mxu0
    %v4509 = vsel %vm3571, %v3975, 0
    %4511 = vmatprep.subr.mxu0 0.0
    %4512 = vmatpush1.msra.mxu0 %v4036
    %4513 = vmatprep.subr.mxu0 0.0
    %4514 = vmatpush1.msra.mxu0 %v4037
    %4515 = vmatprep.subr.mxu0 0.0
    %4516 = vmatpush1.msra.mxu0 %v4038
    %4517 = vmatprep.subr.mxu0 0.0
    %4518 = vmatpush1.msra.mxu0 %v4039
    %4519 = vmatprep.subr.mxu0 0.0
    %4520 = vmatpush1.msra.mxu0 0.0
    %4521 = vmatprep.subr.mxu0 0.0
    %4522 = vmatpush1.msra.mxu0 0.0
    %4523 = vmatprep.subr.mxu0 0.0
    %4524 = vmatpush1.msra.mxu0 0.0
    %4525 = vmatprep.subr.mxu0 0.0
    %4526 = vmatpush1.msra.mxu0 0.0
    %4527 = vmatprep.subr.mxu0 0.0
    %4528 = vmatpush1.msra.mxu0 0.0
    %4529 = vmatprep.subr.mxu0 0.0
    %4530 = vmatpush1.msra.mxu0 0.0
    %4531 = vmatprep.subr.mxu0 0.0
    %4532 = vmatpush1.msra.mxu0 0.0
    %4533 = vmatprep.subr.mxu0 0.0
    %4534 = vmatpush1.msra.mxu0 0.0
    %4535 = vmatprep.subr.mxu0 0.0
    %4536 = vmatpush1.msra.mxu0 0.0
    %4537 = vmatprep.subr.mxu0 0.0
    %4538 = vmatpush1.msra.mxu0 0.0
    %4539 = vmatprep.subr.mxu0 0.0
    %4540 = vmatpush1.msra.mxu0 0.0
    %4541 = vmatprep.subr.mxu0 0.0
    %4542 = vmatpush1.msra.mxu0 0.0
    %4543 = vmatprep.subr.mxu0 0.0
    %4544 = vmatpush1.msra.mxu0 0.0
    %4545 = vmatprep.subr.mxu0 0.0
    %4546 = vmatpush1.msra.mxu0 0.0
    %4547 = vmatprep.subr.mxu0 0.0
    %4548 = vmatpush1.msra.mxu0 0.0
    %4549 = vmatprep.subr.mxu0 0.0
    %4550 = vmatpush1.msra.mxu0 0.0
    %4551 = vmatprep.subr.mxu0 0.0
    %4552 = vmatpush1.msra.mxu0 0.0
    %4553 = vmatprep.subr.mxu0 0.0
    %4554 = vmatpush1.msra.mxu0 0.0
    %4555 = vmatprep.subr.mxu0 0.0
    %4556 = vmatpush1.msra.mxu0 0.0
    %4557 = vmatprep.subr.mxu0 0.0
    %4558 = vmatpush1.msra.mxu0 0.0
    %4559 = vmatprep.subr.mxu0 0.0
    %4560 = vmatpush1.msra.mxu0 0.0
    %4561 = vmatprep.subr.mxu0 0.0
    %4562 = vmatpush1.msra.mxu0 0.0
    %4563 = vmatprep.subr.mxu0 0.0
    %4564 = vmatpush1.msra.mxu0 0.0
    %4565 = vmatprep.subr.mxu0 0.0
    %4566 = vmatpush1.msra.mxu0 0.0
    %4567 = vmatprep.subr.mxu0 0.0
    %4568 = vmatpush1.msra.mxu0 0.0
    %4569 = vmatprep.subr.mxu0 0.0
    %4570 = vmatpush1.msra.mxu0 0.0
    %4571 = vmatprep.subr.mxu0 0.0
    %4572 = vmatpush1.msra.mxu0 0.0
    %4573 = vmatprep.subr.mxu0 0.0
    %4574 = vmatpush1.msra.mxu0 0.0
    %4575 = vmatprep.mubr.f32.mxu0 0.0
    %4576 = vmatmul.mubr.f32.gmra.mrb[0].mxu0 %v4509
    %v4577 = vpop.f32.mrb[0].mxu0
    %v4578 = vadd.f32 0.0, %v4577
    %v4579 = vpop.f32.mrb[0].mxu0
    %4580 = vdwg.mxu0
    %v4582 = vsel %vm3571, %v3976, 0
    %4584 = vmatprep.subr.mxu0 0.0
    %4585 = vmatpush1.msra.mxu0 %v4040
    %4586 = vmatprep.subr.mxu0 0.0
    %4587 = vmatpush1.msra.mxu0 %v4041
    %4588 = vmatprep.subr.mxu0 0.0
    %4589 = vmatpush1.msra.mxu0 %v4042
    %4590 = vmatprep.subr.mxu0 0.0
    %4591 = vmatpush1.msra.mxu0 %v4043
    %4592 = vmatprep.subr.mxu0 0.0
    %4593 = vmatpush1.msra.mxu0 0.0
    %4594 = vmatprep.subr.mxu0 0.0
    %4595 = vmatpush1.msra.mxu0 0.0
    %4596 = vmatprep.subr.mxu0 0.0
    %4597 = vmatpush1.msra.mxu0 0.0
    %4598 = vmatprep.subr.mxu0 0.0
    %4599 = vmatpush1.msra.mxu0 0.0
    %4600 = vmatprep.subr.mxu0 0.0
    %4601 = vmatpush1.msra.mxu0 0.0
    %4602 = vmatprep.subr.mxu0 0.0
    %4603 = vmatpush1.msra.mxu0 0.0
    %4604 = vmatprep.subr.mxu0 0.0
    %4605 = vmatpush1.msra.mxu0 0.0
    %4606 = vmatprep.subr.mxu0 0.0
    %4607 = vmatpush1.msra.mxu0 0.0
    %4608 = vmatprep.subr.mxu0 0.0
    %4609 = vmatpush1.msra.mxu0 0.0
    %4610 = vmatprep.subr.mxu0 0.0
    %4611 = vmatpush1.msra.mxu0 0.0
    %4612 = vmatprep.subr.mxu0 0.0
    %4613 = vmatpush1.msra.mxu0 0.0
    %4614 = vmatprep.subr.mxu0 0.0
    %4615 = vmatpush1.msra.mxu0 0.0
    %4616 = vmatprep.subr.mxu0 0.0
    %4617 = vmatpush1.msra.mxu0 0.0
    %4618 = vmatprep.subr.mxu0 0.0
    %4619 = vmatpush1.msra.mxu0 0.0
    %4620 = vmatprep.subr.mxu0 0.0
    %4621 = vmatpush1.msra.mxu0 0.0
    %4622 = vmatprep.subr.mxu0 0.0
    %4623 = vmatpush1.msra.mxu0 0.0
    %4624 = vmatprep.subr.mxu0 0.0
    %4625 = vmatpush1.msra.mxu0 0.0
    %4626 = vmatprep.subr.mxu0 0.0
    %4627 = vmatpush1.msra.mxu0 0.0
    %4628 = vmatprep.subr.mxu0 0.0
    %4629 = vmatpush1.msra.mxu0 0.0
    %4630 = vmatprep.subr.mxu0 0.0
    %4631 = vmatpush1.msra.mxu0 0.0
    %4632 = vmatprep.subr.mxu0 0.0
    %4633 = vmatpush1.msra.mxu0 0.0
    %4634 = vmatprep.subr.mxu0 0.0
    %4635 = vmatpush1.msra.mxu0 0.0
    %4636 = vmatprep.subr.mxu0 0.0
    %4637 = vmatpush1.msra.mxu0 0.0
    %4638 = vmatprep.subr.mxu0 0.0
    %4639 = vmatpush1.msra.mxu0 0.0
    %4640 = vmatprep.subr.mxu0 0.0
    %4641 = vmatpush1.msra.mxu0 0.0
    %4642 = vmatprep.subr.mxu0 0.0
    %4643 = vmatpush1.msra.mxu0 0.0
    %4644 = vmatprep.subr.mxu0 0.0
    %4645 = vmatpush1.msra.mxu0 0.0
    %4646 = vmatprep.subr.mxu0 0.0
    %4647 = vmatpush1.msra.mxu0 0.0
    %4648 = vmatprep.mubr.f32.mxu0 0.0
    %4649 = vmatmul.mubr.f32.gmra.mrb[0].mxu0 %v4582
    %v4650 = vpop.f32.mrb[0].mxu0
    %v4651 = vadd.f32 0.0, %v4650
    %v4652 = vpop.f32.mrb[0].mxu0
    %4653 = vdwg.mxu0
    %v4655 = vsel %vm3571, %v3977, 0
    %4657 = vmatprep.subr.mxu0 0.0
    %4658 = vmatpush1.msra.mxu0 %v4044
    %4659 = vmatprep.subr.mxu0 0.0
    %4660 = vmatpush1.msra.mxu0 %v4045
    %4661 = vmatprep.subr.mxu0 0.0
    %4662 = vmatpush1.msra.mxu0 %v4046
    %4663 = vmatprep.subr.mxu0 0.0
    %4664 = vmatpush1.msra.mxu0 %v4047
    %4665 = vmatprep.subr.mxu0 0.0
    %4666 = vmatpush1.msra.mxu0 0.0
    %4667 = vmatprep.subr.mxu0 0.0
    %4668 = vmatpush1.msra.mxu0 0.0
    %4669 = vmatprep.subr.mxu0 0.0
    %4670 = vmatpush1.msra.mxu0 0.0
    %4671 = vmatprep.subr.mxu0 0.0
    %4672 = vmatpush1.msra.mxu0 0.0
    %4673 = vmatprep.subr.mxu0 0.0
    %4674 = vmatpush1.msra.mxu0 0.0
    %4675 = vmatprep.subr.mxu0 0.0
    %4676 = vmatpush1.msra.mxu0 0.0
    %4677 = vmatprep.subr.mxu0 0.0
    %4678 = vmatpush1.msra.mxu0 0.0
    %4679 = vmatprep.subr.mxu0 0.0
    %4680 = vmatpush1.msra.mxu0 0.0
    %4681 = vmatprep.subr.mxu0 0.0
    %4682 = vmatpush1.msra.mxu0 0.0
    %4683 = vmatprep.subr.mxu0 0.0
    %4684 = vmatpush1.msra.mxu0 0.0
    %4685 = vmatprep.subr.mxu0 0.0
    %4686 = vmatpush1.msra.mxu0 0.0
    %4687 = vmatprep.subr.mxu0 0.0
    %4688 = vmatpush1.msra.mxu0 0.0
    %4689 = vmatprep.subr.mxu0 0.0
    %4690 = vmatpush1.msra.mxu0 0.0
    %4691 = vmatprep.subr.mxu0 0.0
    %4692 = vmatpush1.msra.mxu0 0.0
    %4693 = vmatprep.subr.mxu0 0.0
    %4694 = vmatpush1.msra.mxu0 0.0
    %4695 = vmatprep.subr.mxu0 0.0
    %4696 = vmatpush1.msra.mxu0 0.0
    %4697 = vmatprep.subr.mxu0 0.0
    %4698 = vmatpush1.msra.mxu0 0.0
    %4699 = vmatprep.subr.mxu0 0.0
    %4700 = vmatpush1.msra.mxu0 0.0
    %4701 = vmatprep.subr.mxu0 0.0
    %4702 = vmatpush1.msra.mxu0 0.0
    %4703 = vmatprep.subr.mxu0 0.0
    %4704 = vmatpush1.msra.mxu0 0.0
    %4705 = vmatprep.subr.mxu0 0.0
    %4706 = vmatpush1.msra.mxu0 0.0
    %4707 = vmatprep.subr.mxu0 0.0
    %4708 = vmatpush1.msra.mxu0 0.0
    %4709 = vmatprep.subr.mxu0 0.0
    %4710 = vmatpush1.msra.mxu0 0.0
    %4711 = vmatprep.subr.mxu0 0.0
    %4712 = vmatpush1.msra.mxu0 0.0
    %4713 = vmatprep.subr.mxu0 0.0
    %4714 = vmatpush1.msra.mxu0 0.0
    %4715 = vmatprep.subr.mxu0 0.0
    %4716 = vmatpush1.msra.mxu0 0.0
    %4717 = vmatprep.subr.mxu0 0.0
    %4718 = vmatpush1.msra.mxu0 0.0
    %4719 = vmatprep.subr.mxu0 0.0
    %4720 = vmatpush1.msra.mxu0 0.0
    %4721 = vmatprep.mubr.f32.mxu0 0.0
    %4722 = vmatmul.mubr.f32.gmra.mrb[0].mxu0 %v4655
    %v4723 = vpop.f32.mrb[0].mxu0
    %v4724 = vadd.f32 0.0, %v4723
    %v4725 = vpop.f32.mrb[0].mxu0
    %4726 = vdwg.mxu0
    %v4728 = vsel %vm3571, %v3978, 0
    %4730 = vmatprep.subr.mxu0 0.0
    %4731 = vmatpush1.msra.mxu0 %v4048
    %4732 = vmatprep.subr.mxu0 0.0
    %4733 = vmatpush1.msra.mxu0 %v4049
    %4734 = vmatprep.subr.mxu0 0.0
    %4735 = vmatpush1.msra.mxu0 %v4050
    %4736 = vmatprep.subr.mxu0 0.0
    %4737 = vmatpush1.msra.mxu0 %v4051
    %4738 = vmatprep.subr.mxu0 0.0
    %4739 = vmatpush1.msra.mxu0 0.0
    %4740 = vmatprep.subr.mxu0 0.0
    %4741 = vmatpush1.msra.mxu0 0.0
    %4742 = vmatprep.subr.mxu0 0.0
    %4743 = vmatpush1.msra.mxu0 0.0
    %4744 = vmatprep.subr.mxu0 0.0
    %4745 = vmatpush1.msra.mxu0 0.0
    %4746 = vmatprep.subr.mxu0 0.0
    %4747 = vmatpush1.msra.mxu0 0.0
    %4748 = vmatprep.subr.mxu0 0.0
    %4749 = vmatpush1.msra.mxu0 0.0
    %4750 = vmatprep.subr.mxu0 0.0
    %4751 = vmatpush1.msra.mxu0 0.0
    %4752 = vmatprep.subr.mxu0 0.0
    %4753 = vmatpush1.msra.mxu0 0.0
    %4754 = vmatprep.subr.mxu0 0.0
    %4755 = vmatpush1.msra.mxu0 0.0
    %4756 = vmatprep.subr.mxu0 0.0
    %4757 = vmatpush1.msra.mxu0 0.0
    %4758 = vmatprep.subr.mxu0 0.0
    %4759 = vmatpush1.msra.mxu0 0.0
    %4760 = vmatprep.subr.mxu0 0.0
    %4761 = vmatpush1.msra.mxu0 0.0
    %4762 = vmatprep.subr.mxu0 0.0
    %4763 = vmatpush1.msra.mxu0 0.0
    %4764 = vmatprep.subr.mxu0 0.0
    %4765 = vmatpush1.msra.mxu0 0.0
    %4766 = vmatprep.subr.mxu0 0.0
    %4767 = vmatpush1.msra.mxu0 0.0
    %4768 = vmatprep.subr.mxu0 0.0
    %4769 = vmatpush1.msra.mxu0 0.0
    %4770 = vmatprep.subr.mxu0 0.0
    %4771 = vmatpush1.msra.mxu0 0.0
    %4772 = vmatprep.subr.mxu0 0.0
    %4773 = vmatpush1.msra.mxu0 0.0
    %4774 = vmatprep.subr.mxu0 0.0
    %4775 = vmatpush1.msra.mxu0 0.0
    %4776 = vmatprep.subr.mxu0 0.0
    %4777 = vmatpush1.msra.mxu0 0.0
    %4778 = vmatprep.subr.mxu0 0.0
    %4779 = vmatpush1.msra.mxu0 0.0
    %4780 = vmatprep.subr.mxu0 0.0
    %4781 = vmatpush1.msra.mxu0 0.0
    %4782 = vmatprep.subr.mxu0 0.0
    %4783 = vmatpush1.msra.mxu0 0.0
    %4784 = vmatprep.subr.mxu0 0.0
    %4785 = vmatpush1.msra.mxu0 0.0
    %4786 = vmatprep.subr.mxu0 0.0
    %4787 = vmatpush1.msra.mxu0 0.0
    %4788 = vmatprep.subr.mxu0 0.0
    %4789 = vmatpush1.msra.mxu0 0.0
    %4790 = vmatprep.subr.mxu0 0.0
    %4791 = vmatpush1.msra.mxu0 0.0
    %4792 = vmatprep.subr.mxu0 0.0
    %4793 = vmatpush1.msra.mxu0 0.0
    %4794 = vmatprep.mubr.f32.mxu0 0.0
    %4795 = vmatmul.mubr.f32.gmra.mrb[0].mxu0 %v4728
    %v4796 = vpop.f32.mrb[0].mxu0
    %v4797 = vadd.f32 0.0, %v4796
    %v4798 = vpop.f32.mrb[0].mxu0
    %4799 = vdwg.mxu0
    %v4801 = vsel %vm3571, %v3979, 0
    %4803 = vmatprep.subr.mxu0 0.0
    %4804 = vmatpush1.msra.mxu0 %v4052
    %4805 = vmatprep.subr.mxu0 0.0
    %4806 = vmatpush1.msra.mxu0 %v4053
    %4807 = vmatprep.subr.mxu0 0.0
    %4808 = vmatpush1.msra.mxu0 %v4054
    %4809 = vmatprep.subr.mxu0 0.0
    %4810 = vmatpush1.msra.mxu0 %v4055
    %4811 = vmatprep.subr.mxu0 0.0
    %4812 = vmatpush1.msra.mxu0 0.0
    %4813 = vmatprep.subr.mxu0 0.0
    %4814 = vmatpush1.msra.mxu0 0.0
    %4815 = vmatprep.subr.mxu0 0.0
    %4816 = vmatpush1.msra.mxu0 0.0
    %4817 = vmatprep.subr.mxu0 0.0
    %4818 = vmatpush1.msra.mxu0 0.0
    %4819 = vmatprep.subr.mxu0 0.0
    %4820 = vmatpush1.msra.mxu0 0.0
    %4821 = vmatprep.subr.mxu0 0.0
    %4822 = vmatpush1.msra.mxu0 0.0
    %4823 = vmatprep.subr.mxu0 0.0
    %4824 = vmatpush1.msra.mxu0 0.0
    %4825 = vmatprep.subr.mxu0 0.0
    %4826 = vmatpush1.msra.mxu0 0.0
    %4827 = vmatprep.subr.mxu0 0.0
    %4828 = vmatpush1.msra.mxu0 0.0
    %4829 = vmatprep.subr.mxu0 0.0
    %4830 = vmatpush1.msra.mxu0 0.0
    %4831 = vmatprep.subr.mxu0 0.0
    %4832 = vmatpush1.msra.mxu0 0.0
    %4833 = vmatprep.subr.mxu0 0.0
    %4834 = vmatpush1.msra.mxu0 0.0
    %4835 = vmatprep.subr.mxu0 0.0
    %4836 = vmatpush1.msra.mxu0 0.0
    %4837 = vmatprep.subr.mxu0 0.0
    %4838 = vmatpush1.msra.mxu0 0.0
    %4839 = vmatprep.subr.mxu0 0.0
    %4840 = vmatpush1.msra.mxu0 0.0
    %4841 = vmatprep.subr.mxu0 0.0
    %4842 = vmatpush1.msra.mxu0 0.0
    %4843 = vmatprep.subr.mxu0 0.0
    %4844 = vmatpush1.msra.mxu0 0.0
    %4845 = vmatprep.subr.mxu0 0.0
    %4846 = vmatpush1.msra.mxu0 0.0
    %4847 = vmatprep.subr.mxu0 0.0
    %4848 = vmatpush1.msra.mxu0 0.0
    %4849 = vmatprep.subr.mxu0 0.0
    %4850 = vmatpush1.msra.mxu0 0.0
    %4851 = vmatprep.subr.mxu0 0.0
    %4852 = vmatpush1.msra.mxu0 0.0
    %4853 = vmatprep.subr.mxu0 0.0
    %4854 = vmatpush1.msra.mxu0 0.0
    %4855 = vmatprep.subr.mxu0 0.0
    %4856 = vmatpush1.msra.mxu0 0.0
    %4857 = vmatprep.subr.mxu0 0.0
    %4858 = vmatpush1.msra.mxu0 0.0
    %4859 = vmatprep.subr.mxu0 0.0
    %4860 = vmatpush1.msra.mxu0 0.0
    %4861 = vmatprep.subr.mxu0 0.0
    %4862 = vmatpush1.msra.mxu0 0.0
    %4863 = vmatprep.subr.mxu0 0.0
    %4864 = vmatpush1.msra.mxu0 0.0
    %4865 = vmatprep.subr.mxu0 0.0
    %4866 = vmatpush1.msra.mxu0 0.0
    %4867 = vmatprep.mubr.f32.mxu0 0.0
    %4868 = vmatmul.mubr.f32.gmra.mrb[0].mxu0 %v4801
    %v4869 = vpop.f32.mrb[0].mxu0
    %v4870 = vadd.f32 0.0, %v4869
    %v4871 = vpop.f32.mrb[0].mxu0
    %4872 = vdwg.mxu0
    %v4874 = vsel %vm3571, %v3980, 0
    %4876 = vmatprep.subr.mxu0 0.0
    %4877 = vmatpush1.msra.mxu0 %v4056
    %4878 = vmatprep.subr.mxu0 0.0
    %4879 = vmatpush1.msra.mxu0 %v4057
    %4880 = vmatprep.subr.mxu0 0.0
    %4881 = vmatpush1.msra.mxu0 %v4058
    %4882 = vmatprep.subr.mxu0 0.0
    %4883 = vmatpush1.msra.mxu0 %v4059
    %4884 = vmatprep.subr.mxu0 0.0
    %4885 = vmatpush1.msra.mxu0 0.0
    %4886 = vmatprep.subr.mxu0 0.0
    %4887 = vmatpush1.msra.mxu0 0.0
    %4888 = vmatprep.subr.mxu0 0.0
    %4889 = vmatpush1.msra.mxu0 0.0
    %4890 = vmatprep.subr.mxu0 0.0
    %4891 = vmatpush1.msra.mxu0 0.0
    %4892 = vmatprep.subr.mxu0 0.0
    %4893 = vmatpush1.msra.mxu0 0.0
    %4894 = vmatprep.subr.mxu0 0.0
    %4895 = vmatpush1.msra.mxu0 0.0
    %4896 = vmatprep.subr.mxu0 0.0
    %4897 = vmatpush1.msra.mxu0 0.0
    %4898 = vmatprep.subr.mxu0 0.0
    %4899 = vmatpush1.msra.mxu0 0.0
    %4900 = vmatprep.subr.mxu0 0.0
    %4901 = vmatpush1.msra.mxu0 0.0
    %4902 = vmatprep.subr.mxu0 0.0
    %4903 = vmatpush1.msra.mxu0 0.0
    %4904 = vmatprep.subr.mxu0 0.0
    %4905 = vmatpush1.msra.mxu0 0.0
    %4906 = vmatprep.subr.mxu0 0.0
    %4907 = vmatpush1.msra.mxu0 0.0
    %4908 = vmatprep.subr.mxu0 0.0
    %4909 = vmatpush1.msra.mxu0 0.0
    %4910 = vmatprep.subr.mxu0 0.0
    %4911 = vmatpush1.msra.mxu0 0.0
    %4912 = vmatprep.subr.mxu0 0.0
    %4913 = vmatpush1.msra.mxu0 0.0
    %4914 = vmatprep.subr.mxu0 0.0
    %4915 = vmatpush1.msra.mxu0 0.0
    %4916 = vmatprep.subr.mxu0 0.0
    %4917 = vmatpush1.msra.mxu0 0.0
    %4918 = vmatprep.subr.mxu0 0.0
    %4919 = vmatpush1.msra.mxu0 0.0
    %4920 = vmatprep.subr.mxu0 0.0
    %4921 = vmatpush1.msra.mxu0 0.0
    %4922 = vmatprep.subr.mxu0 0.0
    %4923 = vmatpush1.msra.mxu0 0.0
    %4924 = vmatprep.subr.mxu0 0.0
    %4925 = vmatpush1.msra.mxu0 0.0
    %4926 = vmatprep.subr.mxu0 0.0
    %4927 = vmatpush1.msra.mxu0 0.0
    %4928 = vmatprep.subr.mxu0 0.0
    %4929 = vmatpush1.msra.mxu0 0.0
    %4930 = vmatprep.subr.mxu0 0.0
    %4931 = vmatpush1.msra.mxu0 0.0
    %4932 = vmatprep.subr.mxu0 0.0
    %4933 = vmatpush1.msra.mxu0 0.0
    %4934 = vmatprep.subr.mxu0 0.0
    %4935 = vmatpush1.msra.mxu0 0.0
    %4936 = vmatprep.subr.mxu0 0.0
    %4937 = vmatpush1.msra.mxu0 0.0
    %4938 = vmatprep.subr.mxu0 0.0
    %4939 = vmatpush1.msra.mxu0 0.0
    %4940 = vmatprep.mubr.f32.mxu0 0.0
    %4941 = vmatmul.mubr.f32.gmra.mrb[0].mxu0 %v4874
    %v4942 = vpop.f32.mrb[0].mxu0
    %v4943 = vadd.f32 0.0, %v4942
    %v4944 = vpop.f32.mrb[0].mxu0
    %4945 = vdwg.mxu0
    %v4947 = vsel %vm3571, %v3981, 0
    %4949 = vmatprep.subr.mxu0 0.0
    %4950 = vmatpush1.msra.mxu0 %v4060
    %4951 = vmatprep.subr.mxu0 0.0
    %4952 = vmatpush1.msra.mxu0 %v4061
    %4953 = vmatprep.subr.mxu0 0.0
    %4954 = vmatpush1.msra.mxu0 %v4062
    %4955 = vmatprep.subr.mxu0 0.0
    %4956 = vmatpush1.msra.mxu0 %v4063
    %4957 = vmatprep.subr.mxu0 0.0
    %4958 = vmatpush1.msra.mxu0 0.0
    %4959 = vmatprep.subr.mxu0 0.0
    %4960 = vmatpush1.msra.mxu0 0.0
    %4961 = vmatprep.subr.mxu0 0.0
    %4962 = vmatpush1.msra.mxu0 0.0
    %4963 = vmatprep.subr.mxu0 0.0
    %4964 = vmatpush1.msra.mxu0 0.0
    %4965 = vmatprep.subr.mxu0 0.0
    %4966 = vmatpush1.msra.mxu0 0.0
    %4967 = vmatprep.subr.mxu0 0.0
    %4968 = vmatpush1.msra.mxu0 0.0
    %4969 = vmatprep.subr.mxu0 0.0
    %4970 = vmatpush1.msra.mxu0 0.0
    %4971 = vmatprep.subr.mxu0 0.0
    %4972 = vmatpush1.msra.mxu0 0.0
    %4973 = vmatprep.subr.mxu0 0.0
    %4974 = vmatpush1.msra.mxu0 0.0
    %4975 = vmatprep.subr.mxu0 0.0
    %4976 = vmatpush1.msra.mxu0 0.0
    %4977 = vmatprep.subr.mxu0 0.0
    %4978 = vmatpush1.msra.mxu0 0.0
    %4979 = vmatprep.subr.mxu0 0.0
    %4980 = vmatpush1.msra.mxu0 0.0
    %4981 = vmatprep.subr.mxu0 0.0
    %4982 = vmatpush1.msra.mxu0 0.0
    %4983 = vmatprep.subr.mxu0 0.0
    %4984 = vmatpush1.msra.mxu0 0.0
    %4985 = vmatprep.subr.mxu0 0.0
    %4986 = vmatpush1.msra.mxu0 0.0
    %4987 = vmatprep.subr.mxu0 0.0
    %4988 = vmatpush1.msra.mxu0 0.0
    %4989 = vmatprep.subr.mxu0 0.0
    %4990 = vmatpush1.msra.mxu0 0.0
    %4991 = vmatprep.subr.mxu0 0.0
    %4992 = vmatpush1.msra.mxu0 0.0
    %4993 = vmatprep.subr.mxu0 0.0
    %4994 = vmatpush1.msra.mxu0 0.0
    %4995 = vmatprep.subr.mxu0 0.0
    %4996 = vmatpush1.msra.mxu0 0.0
    %4997 = vmatprep.subr.mxu0 0.0
    %4998 = vmatpush1.msra.mxu0 0.0
    %4999 = vmatprep.subr.mxu0 0.0
    %5000 = vmatpush1.msra.mxu0 0.0
    %5001 = vmatprep.subr.mxu0 0.0
    %5002 = vmatpush1.msra.mxu0 0.0
    %5003 = vmatprep.subr.mxu0 0.0
    %5004 = vmatpush1.msra.mxu0 0.0
    %5005 = vmatprep.subr.mxu0 0.0
    %5006 = vmatpush1.msra.mxu0 0.0
    %5007 = vmatprep.subr.mxu0 0.0
    %5008 = vmatpush1.msra.mxu0 0.0
    %5009 = vmatprep.subr.mxu0 0.0
    %5010 = vmatpush1.msra.mxu0 0.0
    %5011 = vmatprep.subr.mxu0 0.0
    %5012 = vmatpush1.msra.mxu0 0.0
    %5013 = vmatprep.mubr.f32.mxu0 0.0
    %5014 = vmatmul.mubr.f32.gmra.mrb[0].mxu0 %v4947
    %v5015 = vpop.f32.mrb[0].mxu0
    %v5016 = vadd.f32 0.0, %v5015
    %v5017 = vpop.f32.mrb[0].mxu0
    %5018 = vdwg.mxu0
    %v5020 = vsel %vm3571, %v3982, 0
    %5022 = vmatprep.subr.mxu0 0.0
    %5023 = vmatpush1.msra.mxu0 %v4064
    %5024 = vmatprep.subr.mxu0 0.0
    %5025 = vmatpush1.msra.mxu0 %v4065
    %5026 = vmatprep.subr.mxu0 0.0
    %5027 = vmatpush1.msra.mxu0 %v4066
    %5028 = vmatprep.subr.mxu0 0.0
    %5029 = vmatpush1.msra.mxu0 %v4067
    %5030 = vmatprep.subr.mxu0 0.0
    %5031 = vmatpush1.msra.mxu0 0.0
    %5032 = vmatprep.subr.mxu0 0.0
    %5033 = vmatpush1.msra.mxu0 0.0
    %5034 = vmatprep.subr.mxu0 0.0
    %5035 = vmatpush1.msra.mxu0 0.0
    %5036 = vmatprep.subr.mxu0 0.0
    %5037 = vmatpush1.msra.mxu0 0.0
    %5038 = vmatprep.subr.mxu0 0.0
    %5039 = vmatpush1.msra.mxu0 0.0
    %5040 = vmatprep.subr.mxu0 0.0
    %5041 = vmatpush1.msra.mxu0 0.0
    %5042 = vmatprep.subr.mxu0 0.0
    %5043 = vmatpush1.msra.mxu0 0.0
    %5044 = vmatprep.subr.mxu0 0.0
    %5045 = vmatpush1.msra.mxu0 0.0
    %5046 = vmatprep.subr.mxu0 0.0
    %5047 = vmatpush1.msra.mxu0 0.0
    %5048 = vmatprep.subr.mxu0 0.0
    %5049 = vmatpush1.msra.mxu0 0.0
    %5050 = vmatprep.subr.mxu0 0.0
    %5051 = vmatpush1.msra.mxu0 0.0
    %5052 = vmatprep.subr.mxu0 0.0
    %5053 = vmatpush1.msra.mxu0 0.0
    %5054 = vmatprep.subr.mxu0 0.0
    %5055 = vmatpush1.msra.mxu0 0.0
    %5056 = vmatprep.subr.mxu0 0.0
    %5057 = vmatpush1.msra.mxu0 0.0
    %5058 = vmatprep.subr.mxu0 0.0
    %5059 = vmatpush1.msra.mxu0 0.0
    %5060 = vmatprep.subr.mxu0 0.0
    %5061 = vmatpush1.msra.mxu0 0.0
    %5062 = vmatprep.subr.mxu0 0.0
    %5063 = vmatpush1.msra.mxu0 0.0
    %5064 = vmatprep.subr.mxu0 0.0
    %5065 = vmatpush1.msra.mxu0 0.0
    %5066 = vmatprep.subr.mxu0 0.0
    %5067 = vmatpush1.msra.mxu0 0.0
    %5068 = vmatprep.subr.mxu0 0.0
    %5069 = vmatpush1.msra.mxu0 0.0
    %5070 = vmatprep.subr.mxu0 0.0
    %5071 = vmatpush1.msra.mxu0 0.0
    %5072 = vmatprep.subr.mxu0 0.0
    %5073 = vmatpush1.msra.mxu0 0.0
    %5074 = vmatprep.subr.mxu0 0.0
    %5075 = vmatpush1.msra.mxu0 0.0
    %5076 = vmatprep.subr.mxu0 0.0
    %5077 = vmatpush1.msra.mxu0 0.0
    %5078 = vmatprep.subr.mxu0 0.0
    %5079 = vmatpush1.msra.mxu0 0.0
    %5080 = vmatprep.subr.mxu0 0.0
    %5081 = vmatpush1.msra.mxu0 0.0
    %5082 = vmatprep.subr.mxu0 0.0
    %5083 = vmatpush1.msra.mxu0 0.0
    %5084 = vmatprep.subr.mxu0 0.0
    %5085 = vmatpush1.msra.mxu0 0.0
    %5086 = vmatprep.mubr.f32.mxu0 0.0
    %5087 = vmatmul.mubr.f32.gmra.mrb[0].mxu0 %v5020
    %v5088 = vpop.f32.mrb[0].mxu0
    %v5089 = vadd.f32 0.0, %v5088
    %v5090 = vpop.f32.mrb[0].mxu0
    %5091 = vdwg.mxu0
    %v5093 = vsel %vm3571, %v3983, 0
    %5095 = vmatprep.subr.mxu0 0.0
    %5096 = vmatpush1.msra.mxu0 %v4068
    %5097 = vmatprep.subr.mxu0 0.0
    %5098 = vmatpush1.msra.mxu0 %v4069
    %5099 = vmatprep.subr.mxu0 0.0
    %5100 = vmatpush1.msra.mxu0 %v4070
    %5101 = vmatprep.subr.mxu0 0.0
    %5102 = vmatpush1.msra.mxu0 %v4071
    %5103 = vmatprep.subr.mxu0 0.0
    %5104 = vmatpush1.msra.mxu0 0.0
    %5105 = vmatprep.subr.mxu0 0.0
    %5106 = vmatpush1.msra.mxu0 0.0
    %5107 = vmatprep.subr.mxu0 0.0
    %5108 = vmatpush1.msra.mxu0 0.0
    %5109 = vmatprep.subr.mxu0 0.0
    %5110 = vmatpush1.msra.mxu0 0.0
    %5111 = vmatprep.subr.mxu0 0.0
    %5112 = vmatpush1.msra.mxu0 0.0
    %5113 = vmatprep.subr.mxu0 0.0
    %5114 = vmatpush1.msra.mxu0 0.0
    %5115 = vmatprep.subr.mxu0 0.0
    %5116 = vmatpush1.msra.mxu0 0.0
    %5117 = vmatprep.subr.mxu0 0.0
    %5118 = vmatpush1.msra.mxu0 0.0
    %5119 = vmatprep.subr.mxu0 0.0
    %5120 = vmatpush1.msra.mxu0 0.0
    %5121 = vmatprep.subr.mxu0 0.0
    %5122 = vmatpush1.msra.mxu0 0.0
    %5123 = vmatprep.subr.mxu0 0.0
    %5124 = vmatpush1.msra.mxu0 0.0
    %5125 = vmatprep.subr.mxu0 0.0
    %5126 = vmatpush1.msra.mxu0 0.0
    %5127 = vmatprep.subr.mxu0 0.0
    %5128 = vmatpush1.msra.mxu0 0.0
    %5129 = vmatprep.subr.mxu0 0.0
    %5130 = vmatpush1.msra.mxu0 0.0
    %5131 = vmatprep.subr.mxu0 0.0
    %5132 = vmatpush1.msra.mxu0 0.0
    %5133 = vmatprep.subr.mxu0 0.0
    %5134 = vmatpush1.msra.mxu0 0.0
    %5135 = vmatprep.subr.mxu0 0.0
    %5136 = vmatpush1.msra.mxu0 0.0
    %5137 = vmatprep.subr.mxu0 0.0
    %5138 = vmatpush1.msra.mxu0 0.0
    %5139 = vmatprep.subr.mxu0 0.0
    %5140 = vmatpush1.msra.mxu0 0.0
    %5141 = vmatprep.subr.mxu0 0.0
    %5142 = vmatpush1.msra.mxu0 0.0
    %5143 = vmatprep.subr.mxu0 0.0
    %5144 = vmatpush1.msra.mxu0 0.0
    %5145 = vmatprep.subr.mxu0 0.0
    %5146 = vmatpush1.msra.mxu0 0.0
    %5147 = vmatprep.subr.mxu0 0.0
    %5148 = vmatpush1.msra.mxu0 0.0
    %5149 = vmatprep.subr.mxu0 0.0
    %5150 = vmatpush1.msra.mxu0 0.0
    %5151 = vmatprep.subr.mxu0 0.0
    %5152 = vmatpush1.msra.mxu0 0.0
    %5153 = vmatprep.subr.mxu0 0.0
    %5154 = vmatpush1.msra.mxu0 0.0
    %5155 = vmatprep.subr.mxu0 0.0
    %5156 = vmatpush1.msra.mxu0 0.0
    %5157 = vmatprep.subr.mxu0 0.0
    %5158 = vmatpush1.msra.mxu0 0.0
    %5159 = vmatprep.mubr.f32.mxu0 0.0
    %5160 = vmatmul.mubr.f32.gmra.mrb[0].mxu0 %v5093
    %v5161 = vpop.f32.mrb[0].mxu0
    %v5162 = vadd.f32 0.0, %v5161
    %v5163 = vpop.f32.mrb[0].mxu0
    %5164 = vdwg.mxu0
    %v5166 = vsel %vm3571, %v3984, 0
    %5168 = vmatprep.subr.mxu0 0.0
    %5169 = vmatpush1.msra.mxu0 %v4072
    %5170 = vmatprep.subr.mxu0 0.0
    %5171 = vmatpush1.msra.mxu0 %v4073
    %5172 = vmatprep.subr.mxu0 0.0
    %5173 = vmatpush1.msra.mxu0 %v4074
    %5174 = vmatprep.subr.mxu0 0.0
    %5175 = vmatpush1.msra.mxu0 %v4075
    %5176 = vmatprep.subr.mxu0 0.0
    %5177 = vmatpush1.msra.mxu0 0.0
    %5178 = vmatprep.subr.mxu0 0.0
    %5179 = vmatpush1.msra.mxu0 0.0
    %5180 = vmatprep.subr.mxu0 0.0
    %5181 = vmatpush1.msra.mxu0 0.0
    %5182 = vmatprep.subr.mxu0 0.0
    %5183 = vmatpush1.msra.mxu0 0.0
    %5184 = vmatprep.subr.mxu0 0.0
    %5185 = vmatpush1.msra.mxu0 0.0
    %5186 = vmatprep.subr.mxu0 0.0
    %5187 = vmatpush1.msra.mxu0 0.0
    %5188 = vmatprep.subr.mxu0 0.0
    %5189 = vmatpush1.msra.mxu0 0.0
    %5190 = vmatprep.subr.mxu0 0.0
    %5191 = vmatpush1.msra.mxu0 0.0
    %5192 = vmatprep.subr.mxu0 0.0
    %5193 = vmatpush1.msra.mxu0 0.0
    %5194 = vmatprep.subr.mxu0 0.0
    %5195 = vmatpush1.msra.mxu0 0.0
    %5196 = vmatprep.subr.mxu0 0.0
    %5197 = vmatpush1.msra.mxu0 0.0
    %5198 = vmatprep.subr.mxu0 0.0
    %5199 = vmatpush1.msra.mxu0 0.0
    %5200 = vmatprep.subr.mxu0 0.0
    %5201 = vmatpush1.msra.mxu0 0.0
    %5202 = vmatprep.subr.mxu0 0.0
    %5203 = vmatpush1.msra.mxu0 0.0
    %5204 = vmatprep.subr.mxu0 0.0
    %5205 = vmatpush1.msra.mxu0 0.0
    %5206 = vmatprep.subr.mxu0 0.0
    %5207 = vmatpush1.msra.mxu0 0.0
    %5208 = vmatprep.subr.mxu0 0.0
    %5209 = vmatpush1.msra.mxu0 0.0
    %5210 = vmatprep.subr.mxu0 0.0
    %5211 = vmatpush1.msra.mxu0 0.0
    %5212 = vmatprep.subr.mxu0 0.0
    %5213 = vmatpush1.msra.mxu0 0.0
    %5214 = vmatprep.subr.mxu0 0.0
    %5215 = vmatpush1.msra.mxu0 0.0
    %5216 = vmatprep.subr.mxu0 0.0
    %5217 = vmatpush1.msra.mxu0 0.0
    %5218 = vmatprep.subr.mxu0 0.0
    %5219 = vmatpush1.msra.mxu0 0.0
    %5220 = vmatprep.subr.mxu0 0.0
    %5221 = vmatpush1.msra.mxu0 0.0
    %5222 = vmatprep.subr.mxu0 0.0
    %5223 = vmatpush1.msra.mxu0 0.0
    %5224 = vmatprep.subr.mxu0 0.0
    %5225 = vmatpush1.msra.mxu0 0.0
    %5226 = vmatprep.subr.mxu0 0.0
    %5227 = vmatpush1.msra.mxu0 0.0
    %5228 = vmatprep.subr.mxu0 0.0
    %5229 = vmatpush1.msra.mxu0 0.0
    %5230 = vmatprep.subr.mxu0 0.0
    %5231 = vmatpush1.msra.mxu0 0.0
    %5232 = vmatprep.mubr.f32.mxu0 0.0
    %5233 = vmatmul.mubr.f32.gmra.mrb[0].mxu0 %v5166
    %v5234 = vpop.f32.mrb[0].mxu0
    %v5235 = vadd.f32 0.0, %v5234
    %v5236 = vpop.f32.mrb[0].mxu0
    %5237 = vdwg.mxu0
    %v5239 = vsel %vm3571, %v3985, 0
    %5241 = vmatprep.subr.mxu0 0.0
    %5242 = vmatpush1.msra.mxu0 %v4076
    %5243 = vmatprep.subr.mxu0 0.0
    %5244 = vmatpush1.msra.mxu0 %v4077
    %5245 = vmatprep.subr.mxu0 0.0
    %5246 = vmatpush1.msra.mxu0 %v4078
    %5247 = vmatprep.subr.mxu0 0.0
    %5248 = vmatpush1.msra.mxu0 %v4079
    %5249 = vmatprep.subr.mxu0 0.0
    %5250 = vmatpush1.msra.mxu0 0.0
    %5251 = vmatprep.subr.mxu0 0.0
    %5252 = vmatpush1.msra.mxu0 0.0
    %5253 = vmatprep.subr.mxu0 0.0
    %5254 = vmatpush1.msra.mxu0 0.0
    %5255 = vmatprep.subr.mxu0 0.0
    %5256 = vmatpush1.msra.mxu0 0.0
    %5257 = vmatprep.subr.mxu0 0.0
    %5258 = vmatpush1.msra.mxu0 0.0
    %5259 = vmatprep.subr.mxu0 0.0
    %5260 = vmatpush1.msra.mxu0 0.0
    %5261 = vmatprep.subr.mxu0 0.0
    %5262 = vmatpush1.msra.mxu0 0.0
    %5263 = vmatprep.subr.mxu0 0.0
    %5264 = vmatpush1.msra.mxu0 0.0
    %5265 = vmatprep.subr.mxu0 0.0
    %5266 = vmatpush1.msra.mxu0 0.0
    %5267 = vmatprep.subr.mxu0 0.0
    %5268 = vmatpush1.msra.mxu0 0.0
    %5269 = vmatprep.subr.mxu0 0.0
    %5270 = vmatpush1.msra.mxu0 0.0
    %5271 = vmatprep.subr.mxu0 0.0
    %5272 = vmatpush1.msra.mxu0 0.0
    %5273 = vmatprep.subr.mxu0 0.0
    %5274 = vmatpush1.msra.mxu0 0.0
    %5275 = vmatprep.subr.mxu0 0.0
    %5276 = vmatpush1.msra.mxu0 0.0
    %5277 = vmatprep.subr.mxu0 0.0
    %5278 = vmatpush1.msra.mxu0 0.0
    %5279 = vmatprep.subr.mxu0 0.0
    %5280 = vmatpush1.msra.mxu0 0.0
    %5281 = vmatprep.subr.mxu0 0.0
    %5282 = vmatpush1.msra.mxu0 0.0
    %5283 = vmatprep.subr.mxu0 0.0
    %5284 = vmatpush1.msra.mxu0 0.0
    %5285 = vmatprep.subr.mxu0 0.0
    %5286 = vmatpush1.msra.mxu0 0.0
    %5287 = vmatprep.subr.mxu0 0.0
    %5288 = vmatpush1.msra.mxu0 0.0
    %5289 = vmatprep.subr.mxu0 0.0
    %5290 = vmatpush1.msra.mxu0 0.0
    %5291 = vmatprep.subr.mxu0 0.0
    %5292 = vmatpush1.msra.mxu0 0.0
    %5293 = vmatprep.subr.mxu0 0.0
    %5294 = vmatpush1.msra.mxu0 0.0
    %5295 = vmatprep.subr.mxu0 0.0
    %5296 = vmatpush1.msra.mxu0 0.0
    %5297 = vmatprep.subr.mxu0 0.0
    %5298 = vmatpush1.msra.mxu0 0.0
    %5299 = vmatprep.subr.mxu0 0.0
    %5300 = vmatpush1.msra.mxu0 0.0
    %5301 = vmatprep.subr.mxu0 0.0
    %5302 = vmatpush1.msra.mxu0 0.0
    %5303 = vmatprep.subr.mxu0 0.0
    %5304 = vmatpush1.msra.mxu0 0.0
    %5305 = vmatprep.mubr.f32.mxu0 0.0
    %5306 = vmatmul.mubr.f32.gmra.mrb[0].mxu0 %v5239
    %v5307 = vpop.f32.mrb[0].mxu0
    %v5308 = vadd.f32 0.0, %v5307
    %v5309 = vpop.f32.mrb[0].mxu0
    %5310 = vdwg.mxu0
    %v5312 = vsel %vm3571, %v3986, 0
    %5314 = vmatprep.subr.mxu0 0.0
    %5315 = vmatpush1.msra.mxu0 %v4080
    %5316 = vmatprep.subr.mxu0 0.0
    %5317 = vmatpush1.msra.mxu0 %v4081
    %5318 = vmatprep.subr.mxu0 0.0
    %5319 = vmatpush1.msra.mxu0 %v4082
    %5320 = vmatprep.subr.mxu0 0.0
    %5321 = vmatpush1.msra.mxu0 %v4083
    %5322 = vmatprep.subr.mxu0 0.0
    %5323 = vmatpush1.msra.mxu0 0.0
    %5324 = vmatprep.subr.mxu0 0.0
    %5325 = vmatpush1.msra.mxu0 0.0
    %5326 = vmatprep.subr.mxu0 0.0
    %5327 = vmatpush1.msra.mxu0 0.0
    %5328 = vmatprep.subr.mxu0 0.0
    %5329 = vmatpush1.msra.mxu0 0.0
    %5330 = vmatprep.subr.mxu0 0.0
    %5331 = vmatpush1.msra.mxu0 0.0
    %5332 = vmatprep.subr.mxu0 0.0
    %5333 = vmatpush1.msra.mxu0 0.0
    %5334 = vmatprep.subr.mxu0 0.0
    %5335 = vmatpush1.msra.mxu0 0.0
    %5336 = vmatprep.subr.mxu0 0.0
    %5337 = vmatpush1.msra.mxu0 0.0
    %5338 = vmatprep.subr.mxu0 0.0
    %5339 = vmatpush1.msra.mxu0 0.0
    %5340 = vmatprep.subr.mxu0 0.0
    %5341 = vmatpush1.msra.mxu0 0.0
    %5342 = vmatprep.subr.mxu0 0.0
    %5343 = vmatpush1.msra.mxu0 0.0
    %5344 = vmatprep.subr.mxu0 0.0
    %5345 = vmatpush1.msra.mxu0 0.0
    %5346 = vmatprep.subr.mxu0 0.0
    %5347 = vmatpush1.msra.mxu0 0.0
    %5348 = vmatprep.subr.mxu0 0.0
    %5349 = vmatpush1.msra.mxu0 0.0
    %5350 = vmatprep.subr.mxu0 0.0
    %5351 = vmatpush1.msra.mxu0 0.0
    %5352 = vmatprep.subr.mxu0 0.0
    %5353 = vmatpush1.msra.mxu0 0.0
    %5354 = vmatprep.subr.mxu0 0.0
    %5355 = vmatpush1.msra.mxu0 0.0
    %5356 = vmatprep.subr.mxu0 0.0
    %5357 = vmatpush1.msra.mxu0 0.0
    %5358 = vmatprep.subr.mxu0 0.0
    %5359 = vmatpush1.msra.mxu0 0.0
    %5360 = vmatprep.subr.mxu0 0.0
    %5361 = vmatpush1.msra.mxu0 0.0
    %5362 = vmatprep.subr.mxu0 0.0
    %5363 = vmatpush1.msra.mxu0 0.0
    %5364 = vmatprep.subr.mxu0 0.0
    %5365 = vmatpush1.msra.mxu0 0.0
    %5366 = vmatprep.subr.mxu0 0.0
    %5367 = vmatpush1.msra.mxu0 0.0
    %5368 = vmatprep.subr.mxu0 0.0
    %5369 = vmatpush1.msra.mxu0 0.0
    %5370 = vmatprep.subr.mxu0 0.0
    %5371 = vmatpush1.msra.mxu0 0.0
    %5372 = vmatprep.subr.mxu0 0.0
    %5373 = vmatpush1.msra.mxu0 0.0
    %5374 = vmatprep.subr.mxu0 0.0
    %5375 = vmatpush1.msra.mxu0 0.0
    %5376 = vmatprep.subr.mxu0 0.0
    %5377 = vmatpush1.msra.mxu0 0.0
    %5378 = vmatprep.mubr.f32.mxu0 0.0
    %5379 = vmatmul.mubr.f32.gmra.mrb[0].mxu0 %v5312
    %v5380 = vpop.f32.mrb[0].mxu0
    %v5381 = vadd.f32 0.0, %v5380
    %v5382 = vpop.f32.mrb[0].mxu0
    %5383 = vdwg.mxu0
    %v5385 = vsel %vm3571, %v3987, 0
    %5387 = vmatprep.subr.mxu0 0.0
    %5388 = vmatpush1.msra.mxu0 %v4084
    %5389 = vmatprep.subr.mxu0 0.0
    %5390 = vmatpush1.msra.mxu0 %v4085
    %5391 = vmatprep.subr.mxu0 0.0
    %5392 = vmatpush1.msra.mxu0 %v4086
    %5393 = vmatprep.subr.mxu0 0.0
    %5394 = vmatpush1.msra.mxu0 %v4087
    %5395 = vmatprep.subr.mxu0 0.0
    %5396 = vmatpush1.msra.mxu0 0.0
    %5397 = vmatprep.subr.mxu0 0.0
    %5398 = vmatpush1.msra.mxu0 0.0
    %5399 = vmatprep.subr.mxu0 0.0
    %5400 = vmatpush1.msra.mxu0 0.0
    %5401 = vmatprep.subr.mxu0 0.0
    %5402 = vmatpush1.msra.mxu0 0.0
    %5403 = vmatprep.subr.mxu0 0.0
    %5404 = vmatpush1.msra.mxu0 0.0
    %5405 = vmatprep.subr.mxu0 0.0
    %5406 = vmatpush1.msra.mxu0 0.0
    %5407 = vmatprep.subr.mxu0 0.0
    %5408 = vmatpush1.msra.mxu0 0.0
    %5409 = vmatprep.subr.mxu0 0.0
    %5410 = vmatpush1.msra.mxu0 0.0
    %5411 = vmatprep.subr.mxu0 0.0
    %5412 = vmatpush1.msra.mxu0 0.0
    %5413 = vmatprep.subr.mxu0 0.0
    %5414 = vmatpush1.msra.mxu0 0.0
    %5415 = vmatprep.subr.mxu0 0.0
    %5416 = vmatpush1.msra.mxu0 0.0
    %5417 = vmatprep.subr.mxu0 0.0
    %5418 = vmatpush1.msra.mxu0 0.0
    %5419 = vmatprep.subr.mxu0 0.0
    %5420 = vmatpush1.msra.mxu0 0.0
    %5421 = vmatprep.subr.mxu0 0.0
    %5422 = vmatpush1.msra.mxu0 0.0
    %5423 = vmatprep.subr.mxu0 0.0
    %5424 = vmatpush1.msra.mxu0 0.0
    %5425 = vmatprep.subr.mxu0 0.0
    %5426 = vmatpush1.msra.mxu0 0.0
    %5427 = vmatprep.subr.mxu0 0.0
    %5428 = vmatpush1.msra.mxu0 0.0
    %5429 = vmatprep.subr.mxu0 0.0
    %5430 = vmatpush1.msra.mxu0 0.0
    %5431 = vmatprep.subr.mxu0 0.0
    %5432 = vmatpush1.msra.mxu0 0.0
    %5433 = vmatprep.subr.mxu0 0.0
    %5434 = vmatpush1.msra.mxu0 0.0
    %5435 = vmatprep.subr.mxu0 0.0
    %5436 = vmatpush1.msra.mxu0 0.0
    %5437 = vmatprep.subr.mxu0 0.0
    %5438 = vmatpush1.msra.mxu0 0.0
    %5439 = vmatprep.subr.mxu0 0.0
    %5440 = vmatpush1.msra.mxu0 0.0
    %5441 = vmatprep.subr.mxu0 0.0
    %5442 = vmatpush1.msra.mxu0 0.0
    %5443 = vmatprep.subr.mxu0 0.0
    %5444 = vmatpush1.msra.mxu0 0.0
    %5445 = vmatprep.subr.mxu0 0.0
    %5446 = vmatpush1.msra.mxu0 0.0
    %5447 = vmatprep.subr.mxu0 0.0
    %5448 = vmatpush1.msra.mxu0 0.0
    %5449 = vmatprep.subr.mxu0 0.0
    %5450 = vmatpush1.msra.mxu0 0.0
    %5451 = vmatprep.mubr.f32.mxu0 0.0
    %5452 = vmatmul.mubr.f32.gmra.mrb[0].mxu0 %v5385
    %v5453 = vpop.f32.mrb[0].mxu0
    %v5454 = vadd.f32 0.0, %v5453
    %v5455 = vpop.f32.mrb[0].mxu0
    %5456 = vdwg.mxu0
    %v5458 = vsel %vm3571, %v3988, 0
    %5460 = vmatprep.subr.mxu0 0.0
    %5461 = vmatpush1.msra.mxu0 %v4088
    %5462 = vmatprep.subr.mxu0 0.0
    %5463 = vmatpush1.msra.mxu0 %v4089
    %5464 = vmatprep.subr.mxu0 0.0
    %5465 = vmatpush1.msra.mxu0 %v4090
    %5466 = vmatprep.subr.mxu0 0.0
    %5467 = vmatpush1.msra.mxu0 %v4091
    %5468 = vmatprep.subr.mxu0 0.0
    %5469 = vmatpush1.msra.mxu0 0.0
    %5470 = vmatprep.subr.mxu0 0.0
    %5471 = vmatpush1.msra.mxu0 0.0
    %5472 = vmatprep.subr.mxu0 0.0
    %5473 = vmatpush1.msra.mxu0 0.0
    %5474 = vmatprep.subr.mxu0 0.0
    %5475 = vmatpush1.msra.mxu0 0.0
    %5476 = vmatprep.subr.mxu0 0.0
    %5477 = vmatpush1.msra.mxu0 0.0
    %5478 = vmatprep.subr.mxu0 0.0
    %5479 = vmatpush1.msra.mxu0 0.0
    %5480 = vmatprep.subr.mxu0 0.0
    %5481 = vmatpush1.msra.mxu0 0.0
    %5482 = vmatprep.subr.mxu0 0.0
    %5483 = vmatpush1.msra.mxu0 0.0
    %5484 = vmatprep.subr.mxu0 0.0
    %5485 = vmatpush1.msra.mxu0 0.0
    %5486 = vmatprep.subr.mxu0 0.0
    %5487 = vmatpush1.msra.mxu0 0.0
    %5488 = vmatprep.subr.mxu0 0.0
    %5489 = vmatpush1.msra.mxu0 0.0
    %5490 = vmatprep.subr.mxu0 0.0
    %5491 = vmatpush1.msra.mxu0 0.0
    %5492 = vmatprep.subr.mxu0 0.0
    %5493 = vmatpush1.msra.mxu0 0.0
    %5494 = vmatprep.subr.mxu0 0.0
    %5495 = vmatpush1.msra.mxu0 0.0
    %5496 = vmatprep.subr.mxu0 0.0
    %5497 = vmatpush1.msra.mxu0 0.0
    %5498 = vmatprep.subr.mxu0 0.0
    %5499 = vmatpush1.msra.mxu0 0.0
    %5500 = vmatprep.subr.mxu0 0.0
    %5501 = vmatpush1.msra.mxu0 0.0
    %5502 = vmatprep.subr.mxu0 0.0
    %5503 = vmatpush1.msra.mxu0 0.0
    %5504 = vmatprep.subr.mxu0 0.0
    %5505 = vmatpush1.msra.mxu0 0.0
    %5506 = vmatprep.subr.mxu0 0.0
    %5507 = vmatpush1.msra.mxu0 0.0
    %5508 = vmatprep.subr.mxu0 0.0
    %5509 = vmatpush1.msra.mxu0 0.0
    %5510 = vmatprep.subr.mxu0 0.0
    %5511 = vmatpush1.msra.mxu0 0.0
    %5512 = vmatprep.subr.mxu0 0.0
    %5513 = vmatpush1.msra.mxu0 0.0
    %5514 = vmatprep.subr.mxu0 0.0
    %5515 = vmatpush1.msra.mxu0 0.0
    %5516 = vmatprep.subr.mxu0 0.0
    %5517 = vmatpush1.msra.mxu0 0.0
    %5518 = vmatprep.subr.mxu0 0.0
    %5519 = vmatpush1.msra.mxu0 0.0
    %5520 = vmatprep.subr.mxu0 0.0
    %5521 = vmatpush1.msra.mxu0 0.0
    %5522 = vmatprep.subr.mxu0 0.0
    %5523 = vmatpush1.msra.mxu0 0.0
    %5524 = vmatprep.mubr.f32.mxu0 0.0
    %5525 = vmatmul.mubr.f32.gmra.mrb[0].mxu0 %v5458
    %v5526 = vpop.f32.mrb[0].mxu0
    %v5527 = vadd.f32 0.0, %v5526
    %v5528 = vpop.f32.mrb[0].mxu0
    %5529 = vdwg.mxu0
    %v5531 = vsel %vm3571, %v3989, 0
    %5533 = vmatprep.subr.mxu0 0.0
    %5534 = vmatpush1.msra.mxu0 %v4092
    %5535 = vmatprep.subr.mxu0 0.0
    %5536 = vmatpush1.msra.mxu0 %v4093
    %5537 = vmatprep.subr.mxu0 0.0
    %5538 = vmatpush1.msra.mxu0 %v4094
    %5539 = vmatprep.subr.mxu0 0.0
    %5540 = vmatpush1.msra.mxu0 %v4095
    %5541 = vmatprep.subr.mxu0 0.0
    %5542 = vmatpush1.msra.mxu0 0.0
    %5543 = vmatprep.subr.mxu0 0.0
    %5544 = vmatpush1.msra.mxu0 0.0
    %5545 = vmatprep.subr.mxu0 0.0
    %5546 = vmatpush1.msra.mxu0 0.0
    %5547 = vmatprep.subr.mxu0 0.0
    %5548 = vmatpush1.msra.mxu0 0.0
    %5549 = vmatprep.subr.mxu0 0.0
    %5550 = vmatpush1.msra.mxu0 0.0
    %5551 = vmatprep.subr.mxu0 0.0
    %5552 = vmatpush1.msra.mxu0 0.0
    %5553 = vmatprep.subr.mxu0 0.0
    %5554 = vmatpush1.msra.mxu0 0.0
    %5555 = vmatprep.subr.mxu0 0.0
    %5556 = vmatpush1.msra.mxu0 0.0
    %5557 = vmatprep.subr.mxu0 0.0
    %5558 = vmatpush1.msra.mxu0 0.0
    %5559 = vmatprep.subr.mxu0 0.0
    %5560 = vmatpush1.msra.mxu0 0.0
    %5561 = vmatprep.subr.mxu0 0.0
    %5562 = vmatpush1.msra.mxu0 0.0
    %5563 = vmatprep.subr.mxu0 0.0
    %5564 = vmatpush1.msra.mxu0 0.0
    %5565 = vmatprep.subr.mxu0 0.0
    %5566 = vmatpush1.msra.mxu0 0.0
    %5567 = vmatprep.subr.mxu0 0.0
    %5568 = vmatpush1.msra.mxu0 0.0
    %5569 = vmatprep.subr.mxu0 0.0
    %5570 = vmatpush1.msra.mxu0 0.0
    %5571 = vmatprep.subr.mxu0 0.0
    %5572 = vmatpush1.msra.mxu0 0.0
    %5573 = vmatprep.subr.mxu0 0.0
    %5574 = vmatpush1.msra.mxu0 0.0
    %5575 = vmatprep.subr.mxu0 0.0
    %5576 = vmatpush1.msra.mxu0 0.0
    %5577 = vmatprep.subr.mxu0 0.0
    %5578 = vmatpush1.msra.mxu0 0.0
    %5579 = vmatprep.subr.mxu0 0.0
    %5580 = vmatpush1.msra.mxu0 0.0
    %5581 = vmatprep.subr.mxu0 0.0
    %5582 = vmatpush1.msra.mxu0 0.0
    %5583 = vmatprep.subr.mxu0 0.0
    %5584 = vmatpush1.msra.mxu0 0.0
    %5585 = vmatprep.subr.mxu0 0.0
    %5586 = vmatpush1.msra.mxu0 0.0
    %5587 = vmatprep.subr.mxu0 0.0
    %5588 = vmatpush1.msra.mxu0 0.0
    %5589 = vmatprep.subr.mxu0 0.0
    %5590 = vmatpush1.msra.mxu0 0.0
    %5591 = vmatprep.subr.mxu0 0.0
    %5592 = vmatpush1.msra.mxu0 0.0
    %5593 = vmatprep.subr.mxu0 0.0
    %5594 = vmatpush1.msra.mxu0 0.0
    %5595 = vmatprep.subr.mxu0 0.0
    %5596 = vmatpush1.msra.mxu0 0.0
    %5597 = vmatprep.mubr.f32.mxu0 0.0
    %5598 = vmatmul.mubr.f32.gmra.mrb[0].mxu0 %v5531
    %v5599 = vpop.f32.mrb[0].mxu0
    %v5600 = vadd.f32 0.0, %v5599
    %v5601 = vpop.f32.mrb[0].mxu0
    %5602 = vdwg.mxu0
    %v5604 = vsel %vm3571, %v3990, 0
    %5606 = vmatprep.subr.mxu0 0.0
    %5607 = vmatpush1.msra.mxu0 %v4096
    %5608 = vmatprep.subr.mxu0 0.0
    %5609 = vmatpush1.msra.mxu0 %v4097
    %5610 = vmatprep.subr.mxu0 0.0
    %5611 = vmatpush1.msra.mxu0 %v4098
    %5612 = vmatprep.subr.mxu0 0.0
    %5613 = vmatpush1.msra.mxu0 %v4099
    %5614 = vmatprep.subr.mxu0 0.0
    %5615 = vmatpush1.msra.mxu0 0.0
    %5616 = vmatprep.subr.mxu0 0.0
    %5617 = vmatpush1.msra.mxu0 0.0
    %5618 = vmatprep.subr.mxu0 0.0
    %5619 = vmatpush1.msra.mxu0 0.0
    %5620 = vmatprep.subr.mxu0 0.0
    %5621 = vmatpush1.msra.mxu0 0.0
    %5622 = vmatprep.subr.mxu0 0.0
    %5623 = vmatpush1.msra.mxu0 0.0
    %5624 = vmatprep.subr.mxu0 0.0
    %5625 = vmatpush1.msra.mxu0 0.0
    %5626 = vmatprep.subr.mxu0 0.0
    %5627 = vmatpush1.msra.mxu0 0.0
    %5628 = vmatprep.subr.mxu0 0.0
    %5629 = vmatpush1.msra.mxu0 0.0
    %5630 = vmatprep.subr.mxu0 0.0
    %5631 = vmatpush1.msra.mxu0 0.0
    %5632 = vmatprep.subr.mxu0 0.0
    %5633 = vmatpush1.msra.mxu0 0.0
    %5634 = vmatprep.subr.mxu0 0.0
    %5635 = vmatpush1.msra.mxu0 0.0
    %5636 = vmatprep.subr.mxu0 0.0
    %5637 = vmatpush1.msra.mxu0 0.0
    %5638 = vmatprep.subr.mxu0 0.0
    %5639 = vmatpush1.msra.mxu0 0.0
    %5640 = vmatprep.subr.mxu0 0.0
    %5641 = vmatpush1.msra.mxu0 0.0
    %5642 = vmatprep.subr.mxu0 0.0
    %5643 = vmatpush1.msra.mxu0 0.0
    %5644 = vmatprep.subr.mxu0 0.0
    %5645 = vmatpush1.msra.mxu0 0.0
    %5646 = vmatprep.subr.mxu0 0.0
    %5647 = vmatpush1.msra.mxu0 0.0
    %5648 = vmatprep.subr.mxu0 0.0
    %5649 = vmatpush1.msra.mxu0 0.0
    %5650 = vmatprep.subr.mxu0 0.0
    %5651 = vmatpush1.msra.mxu0 0.0
    %5652 = vmatprep.subr.mxu0 0.0
    %5653 = vmatpush1.msra.mxu0 0.0
    %5654 = vmatprep.subr.mxu0 0.0
    %5655 = vmatpush1.msra.mxu0 0.0
    %5656 = vmatprep.subr.mxu0 0.0
    %5657 = vmatpush1.msra.mxu0 0.0
    %5658 = vmatprep.subr.mxu0 0.0
    %5659 = vmatpush1.msra.mxu0 0.0
    %5660 = vmatprep.subr.mxu0 0.0
    %5661 = vmatpush1.msra.mxu0 0.0
    %5662 = vmatprep.subr.mxu0 0.0
    %5663 = vmatpush1.msra.mxu0 0.0
    %5664 = vmatprep.subr.mxu0 0.0
    %5665 = vmatpush1.msra.mxu0 0.0
    %5666 = vmatprep.subr.mxu0 0.0
    %5667 = vmatpush1.msra.mxu0 0.0
    %5668 = vmatprep.subr.mxu0 0.0
    %5669 = vmatpush1.msra.mxu0 0.0
    %5670 = vmatprep.mubr.f32.mxu0 0.0
    %5671 = vmatmul.mubr.f32.gmra.mrb[0].mxu0 %v5604
    %v5672 = vpop.f32.mrb[0].mxu0
    %v5673 = vadd.f32 0.0, %v5672
    %v5674 = vpop.f32.mrb[0].mxu0
    %5675 = vdwg.mxu0
    %v5677 = vsel %vm3571, %v3991, 0
    %5679 = vmatprep.subr.mxu0 0.0
    %5680 = vmatpush1.msra.mxu0 %v4100
    %5681 = vmatprep.subr.mxu0 0.0
    %5682 = vmatpush1.msra.mxu0 %v4101
    %5683 = vmatprep.subr.mxu0 0.0
    %5684 = vmatpush1.msra.mxu0 %v4102
    %5685 = vmatprep.subr.mxu0 0.0
    %5686 = vmatpush1.msra.mxu0 %v4103
    %5687 = vmatprep.subr.mxu0 0.0
    %5688 = vmatpush1.msra.mxu0 0.0
    %5689 = vmatprep.subr.mxu0 0.0
    %5690 = vmatpush1.msra.mxu0 0.0
    %5691 = vmatprep.subr.mxu0 0.0
    %5692 = vmatpush1.msra.mxu0 0.0
    %5693 = vmatprep.subr.mxu0 0.0
    %5694 = vmatpush1.msra.mxu0 0.0
    %5695 = vmatprep.subr.mxu0 0.0
    %5696 = vmatpush1.msra.mxu0 0.0
    %5697 = vmatprep.subr.mxu0 0.0
    %5698 = vmatpush1.msra.mxu0 0.0
    %5699 = vmatprep.subr.mxu0 0.0
    %5700 = vmatpush1.msra.mxu0 0.0
    %5701 = vmatprep.subr.mxu0 0.0
    %5702 = vmatpush1.msra.mxu0 0.0
    %5703 = vmatprep.subr.mxu0 0.0
    %5704 = vmatpush1.msra.mxu0 0.0
    %5705 = vmatprep.subr.mxu0 0.0
    %5706 = vmatpush1.msra.mxu0 0.0
    %5707 = vmatprep.subr.mxu0 0.0
    %5708 = vmatpush1.msra.mxu0 0.0
    %5709 = vmatprep.subr.mxu0 0.0
    %5710 = vmatpush1.msra.mxu0 0.0
    %5711 = vmatprep.subr.mxu0 0.0
    %5712 = vmatpush1.msra.mxu0 0.0
    %5713 = vmatprep.subr.mxu0 0.0
    %5714 = vmatpush1.msra.mxu0 0.0
    %5715 = vmatprep.subr.mxu0 0.0
    %5716 = vmatpush1.msra.mxu0 0.0
    %5717 = vmatprep.subr.mxu0 0.0
    %5718 = vmatpush1.msra.mxu0 0.0
    %5719 = vmatprep.subr.mxu0 0.0
    %5720 = vmatpush1.msra.mxu0 0.0
    %5721 = vmatprep.subr.mxu0 0.0
    %5722 = vmatpush1.msra.mxu0 0.0
    %5723 = vmatprep.subr.mxu0 0.0
    %5724 = vmatpush1.msra.mxu0 0.0
    %5725 = vmatprep.subr.mxu0 0.0
    %5726 = vmatpush1.msra.mxu0 0.0
    %5727 = vmatprep.subr.mxu0 0.0
    %5728 = vmatpush1.msra.mxu0 0.0
    %5729 = vmatprep.subr.mxu0 0.0
    %5730 = vmatpush1.msra.mxu0 0.0
    %5731 = vmatprep.subr.mxu0 0.0
    %5732 = vmatpush1.msra.mxu0 0.0
    %5733 = vmatprep.subr.mxu0 0.0
    %5734 = vmatpush1.msra.mxu0 0.0
    %5735 = vmatprep.subr.mxu0 0.0
    %5736 = vmatpush1.msra.mxu0 0.0
    %5737 = vmatprep.subr.mxu0 0.0
    %5738 = vmatpush1.msra.mxu0 0.0
    %5739 = vmatprep.subr.mxu0 0.0
    %5740 = vmatpush1.msra.mxu0 0.0
    %5741 = vmatprep.subr.mxu0 0.0
    %5742 = vmatpush1.msra.mxu0 0.0
    %5743 = vmatprep.mubr.f32.mxu0 0.0
    %5744 = vmatmul.mubr.f32.gmra.mrb[0].mxu0 %v5677
    %v5745 = vpop.f32.mrb[0].mxu0
    %v5746 = vadd.f32 0.0, %v5745
    %v5747 = vpop.f32.mrb[0].mxu0
    %5748 = vdwg.mxu0
    %v5750 = vsel %vm3571, %v3992, 0
    %5752 = vmatprep.subr.mxu0 0.0
    %5753 = vmatpush1.msra.mxu0 %v4104
    %5754 = vmatprep.subr.mxu0 0.0
    %5755 = vmatpush1.msra.mxu0 %v4105
    %5756 = vmatprep.subr.mxu0 0.0
    %5757 = vmatpush1.msra.mxu0 %v4106
    %5758 = vmatprep.subr.mxu0 0.0
    %5759 = vmatpush1.msra.mxu0 %v4107
    %5760 = vmatprep.subr.mxu0 0.0
    %5761 = vmatpush1.msra.mxu0 0.0
    %5762 = vmatprep.subr.mxu0 0.0
    %5763 = vmatpush1.msra.mxu0 0.0
    %5764 = vmatprep.subr.mxu0 0.0
    %5765 = vmatpush1.msra.mxu0 0.0
    %5766 = vmatprep.subr.mxu0 0.0
    %5767 = vmatpush1.msra.mxu0 0.0
    %5768 = vmatprep.subr.mxu0 0.0
    %5769 = vmatpush1.msra.mxu0 0.0
    %5770 = vmatprep.subr.mxu0 0.0
    %5771 = vmatpush1.msra.mxu0 0.0
    %5772 = vmatprep.subr.mxu0 0.0
    %5773 = vmatpush1.msra.mxu0 0.0
    %5774 = vmatprep.subr.mxu0 0.0
    %5775 = vmatpush1.msra.mxu0 0.0
    %5776 = vmatprep.subr.mxu0 0.0
    %5777 = vmatpush1.msra.mxu0 0.0
    %5778 = vmatprep.subr.mxu0 0.0
    %5779 = vmatpush1.msra.mxu0 0.0
    %5780 = vmatprep.subr.mxu0 0.0
    %5781 = vmatpush1.msra.mxu0 0.0
    %5782 = vmatprep.subr.mxu0 0.0
    %5783 = vmatpush1.msra.mxu0 0.0
    %5784 = vmatprep.subr.mxu0 0.0
    %5785 = vmatpush1.msra.mxu0 0.0
    %5786 = vmatprep.subr.mxu0 0.0
    %5787 = vmatpush1.msra.mxu0 0.0
    %5788 = vmatprep.subr.mxu0 0.0
    %5789 = vmatpush1.msra.mxu0 0.0
    %5790 = vmatprep.subr.mxu0 0.0
    %5791 = vmatpush1.msra.mxu0 0.0
    %5792 = vmatprep.subr.mxu0 0.0
    %5793 = vmatpush1.msra.mxu0 0.0
    %5794 = vmatprep.subr.mxu0 0.0
    %5795 = vmatpush1.msra.mxu0 0.0
    %5796 = vmatprep.subr.mxu0 0.0
    %5797 = vmatpush1.msra.mxu0 0.0
    %5798 = vmatprep.subr.mxu0 0.0
    %5799 = vmatpush1.msra.mxu0 0.0
    %5800 = vmatprep.subr.mxu0 0.0
    %5801 = vmatpush1.msra.mxu0 0.0
    %5802 = vmatprep.subr.mxu0 0.0
    %5803 = vmatpush1.msra.mxu0 0.0
    %5804 = vmatprep.subr.mxu0 0.0
    %5805 = vmatpush1.msra.mxu0 0.0
    %5806 = vmatprep.subr.mxu0 0.0
    %5807 = vmatpush1.msra.mxu0 0.0
    %5808 = vmatprep.subr.mxu0 0.0
    %5809 = vmatpush1.msra.mxu0 0.0
    %5810 = vmatprep.subr.mxu0 0.0
    %5811 = vmatpush1.msra.mxu0 0.0
    %5812 = vmatprep.subr.mxu0 0.0
    %5813 = vmatpush1.msra.mxu0 0.0
    %5814 = vmatprep.subr.mxu0 0.0
    %5815 = vmatpush1.msra.mxu0 0.0
    %5816 = vmatprep.mubr.f32.mxu0 0.0
    %5817 = vmatmul.mubr.f32.gmra.mrb[0].mxu0 %v5750
    %v5818 = vpop.f32.mrb[0].mxu0
    %v5819 = vadd.f32 0.0, %v5818
    %v5820 = vpop.f32.mrb[0].mxu0
    %5821 = vdwg.mxu0
    %v5823 = vsel %vm3571, %v3993, 0
    %5825 = vmatprep.subr.mxu0 0.0
    %5826 = vmatpush1.msra.mxu0 %v4108
    %5827 = vmatprep.subr.mxu0 0.0
    %5828 = vmatpush1.msra.mxu0 %v4109
    %5829 = vmatprep.subr.mxu0 0.0
    %5830 = vmatpush1.msra.mxu0 %v4110
    %5831 = vmatprep.subr.mxu0 0.0
    %5832 = vmatpush1.msra.mxu0 %v4111
    %5833 = vmatprep.subr.mxu0 0.0
    %5834 = vmatpush1.msra.mxu0 0.0
    %5835 = vmatprep.subr.mxu0 0.0
    %5836 = vmatpush1.msra.mxu0 0.0
    %5837 = vmatprep.subr.mxu0 0.0
    %5838 = vmatpush1.msra.mxu0 0.0
    %5839 = vmatprep.subr.mxu0 0.0
    %5840 = vmatpush1.msra.mxu0 0.0
    %5841 = vmatprep.subr.mxu0 0.0
    %5842 = vmatpush1.msra.mxu0 0.0
    %5843 = vmatprep.subr.mxu0 0.0
    %5844 = vmatpush1.msra.mxu0 0.0
    %5845 = vmatprep.subr.mxu0 0.0
    %5846 = vmatpush1.msra.mxu0 0.0
    %5847 = vmatprep.subr.mxu0 0.0
    %5848 = vmatpush1.msra.mxu0 0.0
    %5849 = vmatprep.subr.mxu0 0.0
    %5850 = vmatpush1.msra.mxu0 0.0
    %5851 = vmatprep.subr.mxu0 0.0
    %5852 = vmatpush1.msra.mxu0 0.0
    %5853 = vmatprep.subr.mxu0 0.0
    %5854 = vmatpush1.msra.mxu0 0.0
    %5855 = vmatprep.subr.mxu0 0.0
    %5856 = vmatpush1.msra.mxu0 0.0
    %5857 = vmatprep.subr.mxu0 0.0
    %5858 = vmatpush1.msra.mxu0 0.0
    %5859 = vmatprep.subr.mxu0 0.0
    %5860 = vmatpush1.msra.mxu0 0.0
    %5861 = vmatprep.subr.mxu0 0.0
    %5862 = vmatpush1.msra.mxu0 0.0
    %5863 = vmatprep.subr.mxu0 0.0
    %5864 = vmatpush1.msra.mxu0 0.0
    %5865 = vmatprep.subr.mxu0 0.0
    %5866 = vmatpush1.msra.mxu0 0.0
    %5867 = vmatprep.subr.mxu0 0.0
    %5868 = vmatpush1.msra.mxu0 0.0
    %5869 = vmatprep.subr.mxu0 0.0
    %5870 = vmatpush1.msra.mxu0 0.0
    %5871 = vmatprep.subr.mxu0 0.0
    %5872 = vmatpush1.msra.mxu0 0.0
    %5873 = vmatprep.subr.mxu0 0.0
    %5874 = vmatpush1.msra.mxu0 0.0
    %5875 = vmatprep.subr.mxu0 0.0
    %5876 = vmatpush1.msra.mxu0 0.0
    %5877 = vmatprep.subr.mxu0 0.0
    %5878 = vmatpush1.msra.mxu0 0.0
    %5879 = vmatprep.subr.mxu0 0.0
    %5880 = vmatpush1.msra.mxu0 0.0
    %5881 = vmatprep.subr.mxu0 0.0
    %5882 = vmatpush1.msra.mxu0 0.0
    %5883 = vmatprep.subr.mxu0 0.0
    %5884 = vmatpush1.msra.mxu0 0.0
    %5885 = vmatprep.subr.mxu0 0.0
    %5886 = vmatpush1.msra.mxu0 0.0
    %5887 = vmatprep.subr.mxu0 0.0
    %5888 = vmatpush1.msra.mxu0 0.0
    %5889 = vmatprep.mubr.f32.mxu0 0.0
    %5890 = vmatmul.mubr.f32.gmra.mrb[0].mxu0 %v5823
    %v5891 = vpop.f32.mrb[0].mxu0
    %v5892 = vadd.f32 0.0, %v5891
    %v5893 = vpop.f32.mrb[0].mxu0
    %5894 = vdwg.mxu0
    %v5896 = vsel %vm3571, %v3994, 0
    %5898 = vmatprep.subr.mxu0 0.0
    %5899 = vmatpush1.msra.mxu0 %v4112
    %5900 = vmatprep.subr.mxu0 0.0
    %5901 = vmatpush1.msra.mxu0 %v4113
    %5902 = vmatprep.subr.mxu0 0.0
    %5903 = vmatpush1.msra.mxu0 %v4114
    %5904 = vmatprep.subr.mxu0 0.0
    %5905 = vmatpush1.msra.mxu0 %v4115
    %5906 = vmatprep.subr.mxu0 0.0
    %5907 = vmatpush1.msra.mxu0 0.0
    %5908 = vmatprep.subr.mxu0 0.0
    %5909 = vmatpush1.msra.mxu0 0.0
    %5910 = vmatprep.subr.mxu0 0.0
    %5911 = vmatpush1.msra.mxu0 0.0
    %5912 = vmatprep.subr.mxu0 0.0
    %5913 = vmatpush1.msra.mxu0 0.0
    %5914 = vmatprep.subr.mxu0 0.0
    %5915 = vmatpush1.msra.mxu0 0.0
    %5916 = vmatprep.subr.mxu0 0.0
    %5917 = vmatpush1.msra.mxu0 0.0
    %5918 = vmatprep.subr.mxu0 0.0
    %5919 = vmatpush1.msra.mxu0 0.0
    %5920 = vmatprep.subr.mxu0 0.0
    %5921 = vmatpush1.msra.mxu0 0.0
    %5922 = vmatprep.subr.mxu0 0.0
    %5923 = vmatpush1.msra.mxu0 0.0
    %5924 = vmatprep.subr.mxu0 0.0
    %5925 = vmatpush1.msra.mxu0 0.0
    %5926 = vmatprep.subr.mxu0 0.0
    %5927 = vmatpush1.msra.mxu0 0.0
    %5928 = vmatprep.subr.mxu0 0.0
    %5929 = vmatpush1.msra.mxu0 0.0
    %5930 = vmatprep.subr.mxu0 0.0
    %5931 = vmatpush1.msra.mxu0 0.0
    %5932 = vmatprep.subr.mxu0 0.0
    %5933 = vmatpush1.msra.mxu0 0.0
    %5934 = vmatprep.subr.mxu0 0.0
    %5935 = vmatpush1.msra.mxu0 0.0
    %5936 = vmatprep.subr.mxu0 0.0
    %5937 = vmatpush1.msra.mxu0 0.0
    %5938 = vmatprep.subr.mxu0 0.0
    %5939 = vmatpush1.msra.mxu0 0.0
    %5940 = vmatprep.subr.mxu0 0.0
    %5941 = vmatpush1.msra.mxu0 0.0
    %5942 = vmatprep.subr.mxu0 0.0
    %5943 = vmatpush1.msra.mxu0 0.0
    %5944 = vmatprep.subr.mxu0 0.0
    %5945 = vmatpush1.msra.mxu0 0.0
    %5946 = vmatprep.subr.mxu0 0.0
    %5947 = vmatpush1.msra.mxu0 0.0
    %5948 = vmatprep.subr.mxu0 0.0
    %5949 = vmatpush1.msra.mxu0 0.0
    %5950 = vmatprep.subr.mxu0 0.0
    %5951 = vmatpush1.msra.mxu0 0.0
    %5952 = vmatprep.subr.mxu0 0.0
    %5953 = vmatpush1.msra.mxu0 0.0
    %5954 = vmatprep.subr.mxu0 0.0
    %5955 = vmatpush1.msra.mxu0 0.0
    %5956 = vmatprep.subr.mxu0 0.0
    %5957 = vmatpush1.msra.mxu0 0.0
    %5958 = vmatprep.subr.mxu0 0.0
    %5959 = vmatpush1.msra.mxu0 0.0
    %5960 = vmatprep.subr.mxu0 0.0
    %5961 = vmatpush1.msra.mxu0 0.0
    %5962 = vmatprep.mubr.f32.mxu0 0.0
    %5963 = vmatmul.mubr.f32.gmra.mrb[0].mxu0 %v5896
    %v5964 = vpop.f32.mrb[0].mxu0
    %v5965 = vadd.f32 0.0, %v5964
    %v5966 = vpop.f32.mrb[0].mxu0
    %5967 = vdwg.mxu0
    %v5969 = vsel %vm3571, %v3995, 0
    %5971 = vmatprep.subr.mxu0 0.0
    %5972 = vmatpush1.msra.mxu0 %v4116
    %5973 = vmatprep.subr.mxu0 0.0
    %5974 = vmatpush1.msra.mxu0 %v4117
    %5975 = vmatprep.subr.mxu0 0.0
    %5976 = vmatpush1.msra.mxu0 %v4118
    %5977 = vmatprep.subr.mxu0 0.0
    %5978 = vmatpush1.msra.mxu0 %v4119
    %5979 = vmatprep.subr.mxu0 0.0
    %5980 = vmatpush1.msra.mxu0 0.0
    %5981 = vmatprep.subr.mxu0 0.0
    %5982 = vmatpush1.msra.mxu0 0.0
    %5983 = vmatprep.subr.mxu0 0.0
    %5984 = vmatpush1.msra.mxu0 0.0
    %5985 = vmatprep.subr.mxu0 0.0
    %5986 = vmatpush1.msra.mxu0 0.0
    %5987 = vmatprep.subr.mxu0 0.0
    %5988 = vmatpush1.msra.mxu0 0.0
    %5989 = vmatprep.subr.mxu0 0.0
    %5990 = vmatpush1.msra.mxu0 0.0
    %5991 = vmatprep.subr.mxu0 0.0
    %5992 = vmatpush1.msra.mxu0 0.0
    %5993 = vmatprep.subr.mxu0 0.0
    %5994 = vmatpush1.msra.mxu0 0.0
    %5995 = vmatprep.subr.mxu0 0.0
    %5996 = vmatpush1.msra.mxu0 0.0
    %5997 = vmatprep.subr.mxu0 0.0
    %5998 = vmatpush1.msra.mxu0 0.0
    %5999 = vmatprep.subr.mxu0 0.0
    %6000 = vmatpush1.msra.mxu0 0.0
    %6001 = vmatprep.subr.mxu0 0.0
    %6002 = vmatpush1.msra.mxu0 0.0
    %6003 = vmatprep.subr.mxu0 0.0
    %6004 = vmatpush1.msra.mxu0 0.0
    %6005 = vmatprep.subr.mxu0 0.0
    %6006 = vmatpush1.msra.mxu0 0.0
    %6007 = vmatprep.subr.mxu0 0.0
    %6008 = vmatpush1.msra.mxu0 0.0
    %6009 = vmatprep.subr.mxu0 0.0
    %6010 = vmatpush1.msra.mxu0 0.0
    %6011 = vmatprep.subr.mxu0 0.0
    %6012 = vmatpush1.msra.mxu0 0.0
    %6013 = vmatprep.subr.mxu0 0.0
    %6014 = vmatpush1.msra.mxu0 0.0
    %6015 = vmatprep.subr.mxu0 0.0
    %6016 = vmatpush1.msra.mxu0 0.0
    %6017 = vmatprep.subr.mxu0 0.0
    %6018 = vmatpush1.msra.mxu0 0.0
    %6019 = vmatprep.subr.mxu0 0.0
    %6020 = vmatpush1.msra.mxu0 0.0
    %6021 = vmatprep.subr.mxu0 0.0
    %6022 = vmatpush1.msra.mxu0 0.0
    %6023 = vmatprep.subr.mxu0 0.0
    %6024 = vmatpush1.msra.mxu0 0.0
    %6025 = vmatprep.subr.mxu0 0.0
    %6026 = vmatpush1.msra.mxu0 0.0
    %6027 = vmatprep.subr.mxu0 0.0
    %6028 = vmatpush1.msra.mxu0 0.0
    %6029 = vmatprep.subr.mxu0 0.0
    %6030 = vmatpush1.msra.mxu0 0.0
    %6031 = vmatprep.subr.mxu0 0.0
    %6032 = vmatpush1.msra.mxu0 0.0
    %6033 = vmatprep.subr.mxu0 0.0
    %6034 = vmatpush1.msra.mxu0 0.0
    %6035 = vmatprep.mubr.f32.mxu0 0.0
    %6036 = vmatmul.mubr.f32.gmra.mrb[0].mxu0 %v5969
    %v6037 = vpop.f32.mrb[0].mxu0
    %v6038 = vadd.f32 0.0, %v6037
    %v6039 = vpop.f32.mrb[0].mxu0
    %6040 = vdwg.mxu0
    %v6042 = vsel %vm3571, %v3996, 0
    %6044 = vmatprep.subr.mxu0 0.0
    %6045 = vmatpush1.msra.mxu0 %v4120
    %6046 = vmatprep.subr.mxu0 0.0
    %6047 = vmatpush1.msra.mxu0 %v4121
    %6048 = vmatprep.subr.mxu0 0.0
    %6049 = vmatpush1.msra.mxu0 %v4122
    %6050 = vmatprep.subr.mxu0 0.0
    %6051 = vmatpush1.msra.mxu0 %v4123
    %6052 = vmatprep.subr.mxu0 0.0
    %6053 = vmatpush1.msra.mxu0 0.0
    %6054 = vmatprep.subr.mxu0 0.0
    %6055 = vmatpush1.msra.mxu0 0.0
    %6056 = vmatprep.subr.mxu0 0.0
    %6057 = vmatpush1.msra.mxu0 0.0
    %6058 = vmatprep.subr.mxu0 0.0
    %6059 = vmatpush1.msra.mxu0 0.0
    %6060 = vmatprep.subr.mxu0 0.0
    %6061 = vmatpush1.msra.mxu0 0.0
    %6062 = vmatprep.subr.mxu0 0.0
    %6063 = vmatpush1.msra.mxu0 0.0
    %6064 = vmatprep.subr.mxu0 0.0
    %6065 = vmatpush1.msra.mxu0 0.0
    %6066 = vmatprep.subr.mxu0 0.0
    %6067 = vmatpush1.msra.mxu0 0.0
    %6068 = vmatprep.subr.mxu0 0.0
    %6069 = vmatpush1.msra.mxu0 0.0
    %6070 = vmatprep.subr.mxu0 0.0
    %6071 = vmatpush1.msra.mxu0 0.0
    %6072 = vmatprep.subr.mxu0 0.0
    %6073 = vmatpush1.msra.mxu0 0.0
    %6074 = vmatprep.subr.mxu0 0.0
    %6075 = vmatpush1.msra.mxu0 0.0
    %6076 = vmatprep.subr.mxu0 0.0
    %6077 = vmatpush1.msra.mxu0 0.0
    %6078 = vmatprep.subr.mxu0 0.0
    %6079 = vmatpush1.msra.mxu0 0.0
    %6080 = vmatprep.subr.mxu0 0.0
    %6081 = vmatpush1.msra.mxu0 0.0
    %6082 = vmatprep.subr.mxu0 0.0
    %6083 = vmatpush1.msra.mxu0 0.0
    %6084 = vmatprep.subr.mxu0 0.0
    %6085 = vmatpush1.msra.mxu0 0.0
    %6086 = vmatprep.subr.mxu0 0.0
    %6087 = vmatpush1.msra.mxu0 0.0
    %6088 = vmatprep.subr.mxu0 0.0
    %6089 = vmatpush1.msra.mxu0 0.0
    %6090 = vmatprep.subr.mxu0 0.0
    %6091 = vmatpush1.msra.mxu0 0.0
    %6092 = vmatprep.subr.mxu0 0.0
    %6093 = vmatpush1.msra.mxu0 0.0
    %6094 = vmatprep.subr.mxu0 0.0
    %6095 = vmatpush1.msra.mxu0 0.0
    %6096 = vmatprep.subr.mxu0 0.0
    %6097 = vmatpush1.msra.mxu0 0.0
    %6098 = vmatprep.subr.mxu0 0.0
    %6099 = vmatpush1.msra.mxu0 0.0
    %6100 = vmatprep.subr.mxu0 0.0
    %6101 = vmatpush1.msra.mxu0 0.0
    %6102 = vmatprep.subr.mxu0 0.0
    %6103 = vmatpush1.msra.mxu0 0.0
    %6104 = vmatprep.subr.mxu0 0.0
    %6105 = vmatpush1.msra.mxu0 0.0
    %6106 = vmatprep.subr.mxu0 0.0
    %6107 = vmatpush1.msra.mxu0 0.0
    %6108 = vmatprep.mubr.f32.mxu0 0.0
    %6109 = vmatmul.mubr.f32.gmra.mrb[0].mxu0 %v6042
    %v6110 = vpop.f32.mrb[0].mxu0
    %v6111 = vadd.f32 0.0, %v6110
    %v6112 = vpop.f32.mrb[0].mxu0
    %6113 = vdwg.mxu0
    %v6115 = vsel %vm3571, %v3997, 0
    %6117 = vmatprep.subr.mxu0 0.0
    %6118 = vmatpush1.msra.mxu0 %v4124
    %6119 = vmatprep.subr.mxu0 0.0
    %6120 = vmatpush1.msra.mxu0 %v4125
    %6121 = vmatprep.subr.mxu0 0.0
    %6122 = vmatpush1.msra.mxu0 %v4126
    %6123 = vmatprep.subr.mxu0 0.0
    %6124 = vmatpush1.msra.mxu0 %v4127
    %6125 = vmatprep.subr.mxu0 0.0
    %6126 = vmatpush1.msra.mxu0 0.0
    %6127 = vmatprep.subr.mxu0 0.0
    %6128 = vmatpush1.msra.mxu0 0.0
    %6129 = vmatprep.subr.mxu0 0.0
    %6130 = vmatpush1.msra.mxu0 0.0
    %6131 = vmatprep.subr.mxu0 0.0
    %6132 = vmatpush1.msra.mxu0 0.0
    %6133 = vmatprep.subr.mxu0 0.0
    %6134 = vmatpush1.msra.mxu0 0.0
    %6135 = vmatprep.subr.mxu0 0.0
    %6136 = vmatpush1.msra.mxu0 0.0
    %6137 = vmatprep.subr.mxu0 0.0
    %6138 = vmatpush1.msra.mxu0 0.0
    %6139 = vmatprep.subr.mxu0 0.0
    %6140 = vmatpush1.msra.mxu0 0.0
    %6141 = vmatprep.subr.mxu0 0.0
    %6142 = vmatpush1.msra.mxu0 0.0
    %6143 = vmatprep.subr.mxu0 0.0
    %6144 = vmatpush1.msra.mxu0 0.0
    %6145 = vmatprep.subr.mxu0 0.0
    %6146 = vmatpush1.msra.mxu0 0.0
    %6147 = vmatprep.subr.mxu0 0.0
    %6148 = vmatpush1.msra.mxu0 0.0
    %6149 = vmatprep.subr.mxu0 0.0
    %6150 = vmatpush1.msra.mxu0 0.0
    %6151 = vmatprep.subr.mxu0 0.0
    %6152 = vmatpush1.msra.mxu0 0.0
    %6153 = vmatprep.subr.mxu0 0.0
    %6154 = vmatpush1.msra.mxu0 0.0
    %6155 = vmatprep.subr.mxu0 0.0
    %6156 = vmatpush1.msra.mxu0 0.0
    %6157 = vmatprep.subr.mxu0 0.0
    %6158 = vmatpush1.msra.mxu0 0.0
    %6159 = vmatprep.subr.mxu0 0.0
    %6160 = vmatpush1.msra.mxu0 0.0
    %6161 = vmatprep.subr.mxu0 0.0
    %6162 = vmatpush1.msra.mxu0 0.0
    %6163 = vmatprep.subr.mxu0 0.0
    %6164 = vmatpush1.msra.mxu0 0.0
    %6165 = vmatprep.subr.mxu0 0.0
    %6166 = vmatpush1.msra.mxu0 0.0
    %6167 = vmatprep.subr.mxu0 0.0
    %6168 = vmatpush1.msra.mxu0 0.0
    %6169 = vmatprep.subr.mxu0 0.0
    %6170 = vmatpush1.msra.mxu0 0.0
    %6171 = vmatprep.subr.mxu0 0.0
    %6172 = vmatpush1.msra.mxu0 0.0
    %6173 = vmatprep.subr.mxu0 0.0
    %6174 = vmatpush1.msra.mxu0 0.0
    %6175 = vmatprep.subr.mxu0 0.0
    %6176 = vmatpush1.msra.mxu0 0.0
    %6177 = vmatprep.subr.mxu0 0.0
    %6178 = vmatpush1.msra.mxu0 0.0
    %6179 = vmatprep.subr.mxu0 0.0
    %6180 = vmatpush1.msra.mxu0 0.0
    %6181 = vmatprep.mubr.f32.mxu0 0.0
    %6182 = vmatmul.mubr.f32.gmra.mrb[0].mxu0 %v6115
    %v6183 = vpop.f32.mrb[0].mxu0
    %v6184 = vadd.f32 0.0, %v6183
    %v6185 = vpop.f32.mrb[0].mxu0
    %6186 = vdwg.mxu0
    %v6188 = vsel %vm3571, %v3998, 0
    %6190 = vmatprep.subr.mxu0 0.0
    %6191 = vmatpush1.msra.mxu0 %v4128
    %6192 = vmatprep.subr.mxu0 0.0
    %6193 = vmatpush1.msra.mxu0 %v4129
    %6194 = vmatprep.subr.mxu0 0.0
    %6195 = vmatpush1.msra.mxu0 %v4130
    %6196 = vmatprep.subr.mxu0 0.0
    %6197 = vmatpush1.msra.mxu0 %v4131
    %6198 = vmatprep.subr.mxu0 0.0
    %6199 = vmatpush1.msra.mxu0 0.0
    %6200 = vmatprep.subr.mxu0 0.0
    %6201 = vmatpush1.msra.mxu0 0.0
    %6202 = vmatprep.subr.mxu0 0.0
    %6203 = vmatpush1.msra.mxu0 0.0
    %6204 = vmatprep.subr.mxu0 0.0
    %6205 = vmatpush1.msra.mxu0 0.0
    %6206 = vmatprep.subr.mxu0 0.0
    %6207 = vmatpush1.msra.mxu0 0.0
    %6208 = vmatprep.subr.mxu0 0.0
    %6209 = vmatpush1.msra.mxu0 0.0
    %6210 = vmatprep.subr.mxu0 0.0
    %6211 = vmatpush1.msra.mxu0 0.0
    %6212 = vmatprep.subr.mxu0 0.0
    %6213 = vmatpush1.msra.mxu0 0.0
    %6214 = vmatprep.subr.mxu0 0.0
    %6215 = vmatpush1.msra.mxu0 0.0
    %6216 = vmatprep.subr.mxu0 0.0
    %6217 = vmatpush1.msra.mxu0 0.0
    %6218 = vmatprep.subr.mxu0 0.0
    %6219 = vmatpush1.msra.mxu0 0.0
    %6220 = vmatprep.subr.mxu0 0.0
    %6221 = vmatpush1.msra.mxu0 0.0
    %6222 = vmatprep.subr.mxu0 0.0
    %6223 = vmatpush1.msra.mxu0 0.0
    %6224 = vmatprep.subr.mxu0 0.0
    %6225 = vmatpush1.msra.mxu0 0.0
    %6226 = vmatprep.subr.mxu0 0.0
    %6227 = vmatpush1.msra.mxu0 0.0
    %6228 = vmatprep.subr.mxu0 0.0
    %6229 = vmatpush1.msra.mxu0 0.0
    %6230 = vmatprep.subr.mxu0 0.0
    %6231 = vmatpush1.msra.mxu0 0.0
    %6232 = vmatprep.subr.mxu0 0.0
    %6233 = vmatpush1.msra.mxu0 0.0
    %6234 = vmatprep.subr.mxu0 0.0
    %6235 = vmatpush1.msra.mxu0 0.0
    %6236 = vmatprep.subr.mxu0 0.0
    %6237 = vmatpush1.msra.mxu0 0.0
    %6238 = vmatprep.subr.mxu0 0.0
    %6239 = vmatpush1.msra.mxu0 0.0
    %6240 = vmatprep.subr.mxu0 0.0
    %6241 = vmatpush1.msra.mxu0 0.0
    %6242 = vmatprep.subr.mxu0 0.0
    %6243 = vmatpush1.msra.mxu0 0.0
    %6244 = vmatprep.subr.mxu0 0.0
    %6245 = vmatpush1.msra.mxu0 0.0
    %6246 = vmatprep.subr.mxu0 0.0
    %6247 = vmatpush1.msra.mxu0 0.0
    %6248 = vmatprep.subr.mxu0 0.0
    %6249 = vmatpush1.msra.mxu0 0.0
    %6250 = vmatprep.subr.mxu0 0.0
    %6251 = vmatpush1.msra.mxu0 0.0
    %6252 = vmatprep.subr.mxu0 0.0
    %6253 = vmatpush1.msra.mxu0 0.0
    %6254 = vmatprep.mubr.f32.mxu0 0.0
    %6255 = vmatmul.mubr.f32.gmra.mrb[0].mxu0 %v6188
    %v6256 = vpop.f32.mrb[0].mxu0
    %v6257 = vadd.f32 0.0, %v6256
    %v6258 = vpop.f32.mrb[0].mxu0
    %6259 = vdwg.mxu0
    %v6261 = vsel %vm3571, %v3999, 0
    %6263 = vmatprep.subr.mxu0 0.0
    %6264 = vmatpush1.msra.mxu0 %v4132
    %6265 = vmatprep.subr.mxu0 0.0
    %6266 = vmatpush1.msra.mxu0 %v4133
    %6267 = vmatprep.subr.mxu0 0.0
    %6268 = vmatpush1.msra.mxu0 %v4134
    %6269 = vmatprep.subr.mxu0 0.0
    %6270 = vmatpush1.msra.mxu0 %v4135
    %6271 = vmatprep.subr.mxu0 0.0
    %6272 = vmatpush1.msra.mxu0 0.0
    %6273 = vmatprep.subr.mxu0 0.0
    %6274 = vmatpush1.msra.mxu0 0.0
    %6275 = vmatprep.subr.mxu0 0.0
    %6276 = vmatpush1.msra.mxu0 0.0
    %6277 = vmatprep.subr.mxu0 0.0
    %6278 = vmatpush1.msra.mxu0 0.0
    %6279 = vmatprep.subr.mxu0 0.0
    %6280 = vmatpush1.msra.mxu0 0.0
    %6281 = vmatprep.subr.mxu0 0.0
    %6282 = vmatpush1.msra.mxu0 0.0
    %6283 = vmatprep.subr.mxu0 0.0
    %6284 = vmatpush1.msra.mxu0 0.0
    %6285 = vmatprep.subr.mxu0 0.0
    %6286 = vmatpush1.msra.mxu0 0.0
    %6287 = vmatprep.subr.mxu0 0.0
    %6288 = vmatpush1.msra.mxu0 0.0
    %6289 = vmatprep.subr.mxu0 0.0
    %6290 = vmatpush1.msra.mxu0 0.0
    %6291 = vmatprep.subr.mxu0 0.0
    %6292 = vmatpush1.msra.mxu0 0.0
    %6293 = vmatprep.subr.mxu0 0.0
    %6294 = vmatpush1.msra.mxu0 0.0
    %6295 = vmatprep.subr.mxu0 0.0
    %6296 = vmatpush1.msra.mxu0 0.0
    %6297 = vmatprep.subr.mxu0 0.0
    %6298 = vmatpush1.msra.mxu0 0.0
    %6299 = vmatprep.subr.mxu0 0.0
    %6300 = vmatpush1.msra.mxu0 0.0
    %6301 = vmatprep.subr.mxu0 0.0
    %6302 = vmatpush1.msra.mxu0 0.0
    %6303 = vmatprep.subr.mxu0 0.0
    %6304 = vmatpush1.msra.mxu0 0.0
    %6305 = vmatprep.subr.mxu0 0.0
    %6306 = vmatpush1.msra.mxu0 0.0
    %6307 = vmatprep.subr.mxu0 0.0
    %6308 = vmatpush1.msra.mxu0 0.0
    %6309 = vmatprep.subr.mxu0 0.0
    %6310 = vmatpush1.msra.mxu0 0.0
    %6311 = vmatprep.subr.mxu0 0.0
    %6312 = vmatpush1.msra.mxu0 0.0
    %6313 = vmatprep.subr.mxu0 0.0
    %6314 = vmatpush1.msra.mxu0 0.0
    %6315 = vmatprep.subr.mxu0 0.0
    %6316 = vmatpush1.msra.mxu0 0.0
    %6317 = vmatprep.subr.mxu0 0.0
    %6318 = vmatpush1.msra.mxu0 0.0
    %6319 = vmatprep.subr.mxu0 0.0
    %6320 = vmatpush1.msra.mxu0 0.0
    %6321 = vmatprep.subr.mxu0 0.0
    %6322 = vmatpush1.msra.mxu0 0.0
    %6323 = vmatprep.subr.mxu0 0.0
    %6324 = vmatpush1.msra.mxu0 0.0
    %6325 = vmatprep.subr.mxu0 0.0
    %6326 = vmatpush1.msra.mxu0 0.0
    %6327 = vmatprep.mubr.f32.mxu0 0.0
    %6328 = vmatmul.mubr.f32.gmra.mrb[0].mxu0 %v6261
    %v6329 = vpop.f32.mrb[0].mxu0
    %v6330 = vadd.f32 0.0, %v6329
    %v6331 = vpop.f32.mrb[0].mxu0
    %6332 = vdwg.mxu0
    %v6334 = vsel %vm3571, %v4000, 0
    %6336 = vmatprep.subr.mxu0 0.0
    %6337 = vmatpush1.msra.mxu0 %v4136
    %6338 = vmatprep.subr.mxu0 0.0
    %6339 = vmatpush1.msra.mxu0 %v4137
    %6340 = vmatprep.subr.mxu0 0.0
    %6341 = vmatpush1.msra.mxu0 %v4138
    %6342 = vmatprep.subr.mxu0 0.0
    %6343 = vmatpush1.msra.mxu0 %v4139
    %6344 = vmatprep.subr.mxu0 0.0
    %6345 = vmatpush1.msra.mxu0 0.0
    %6346 = vmatprep.subr.mxu0 0.0
    %6347 = vmatpush1.msra.mxu0 0.0
    %6348 = vmatprep.subr.mxu0 0.0
    %6349 = vmatpush1.msra.mxu0 0.0
    %6350 = vmatprep.subr.mxu0 0.0
    %6351 = vmatpush1.msra.mxu0 0.0
    %6352 = vmatprep.subr.mxu0 0.0
    %6353 = vmatpush1.msra.mxu0 0.0
    %6354 = vmatprep.subr.mxu0 0.0
    %6355 = vmatpush1.msra.mxu0 0.0
    %6356 = vmatprep.subr.mxu0 0.0
    %6357 = vmatpush1.msra.mxu0 0.0
    %6358 = vmatprep.subr.mxu0 0.0
    %6359 = vmatpush1.msra.mxu0 0.0
    %6360 = vmatprep.subr.mxu0 0.0
    %6361 = vmatpush1.msra.mxu0 0.0
    %6362 = vmatprep.subr.mxu0 0.0
    %6363 = vmatpush1.msra.mxu0 0.0
    %6364 = vmatprep.subr.mxu0 0.0
    %6365 = vmatpush1.msra.mxu0 0.0
    %6366 = vmatprep.subr.mxu0 0.0
    %6367 = vmatpush1.msra.mxu0 0.0
    %6368 = vmatprep.subr.mxu0 0.0
    %6369 = vmatpush1.msra.mxu0 0.0
    %6370 = vmatprep.subr.mxu0 0.0
    %6371 = vmatpush1.msra.mxu0 0.0
    %6372 = vmatprep.subr.mxu0 0.0
    %6373 = vmatpush1.msra.mxu0 0.0
    %6374 = vmatprep.subr.mxu0 0.0
    %6375 = vmatpush1.msra.mxu0 0.0
    %6376 = vmatprep.subr.mxu0 0.0
    %6377 = vmatpush1.msra.mxu0 0.0
    %6378 = vmatprep.subr.mxu0 0.0
    %6379 = vmatpush1.msra.mxu0 0.0
    %6380 = vmatprep.subr.mxu0 0.0
    %6381 = vmatpush1.msra.mxu0 0.0
    %6382 = vmatprep.subr.mxu0 0.0
    %6383 = vmatpush1.msra.mxu0 0.0
    %6384 = vmatprep.subr.mxu0 0.0
    %6385 = vmatpush1.msra.mxu0 0.0
    %6386 = vmatprep.subr.mxu0 0.0
    %6387 = vmatpush1.msra.mxu0 0.0
    %6388 = vmatprep.subr.mxu0 0.0
    %6389 = vmatpush1.msra.mxu0 0.0
    %6390 = vmatprep.subr.mxu0 0.0
    %6391 = vmatpush1.msra.mxu0 0.0
    %6392 = vmatprep.subr.mxu0 0.0
    %6393 = vmatpush1.msra.mxu0 0.0
    %6394 = vmatprep.subr.mxu0 0.0
    %6395 = vmatpush1.msra.mxu0 0.0
    %6396 = vmatprep.subr.mxu0 0.0
    %6397 = vmatpush1.msra.mxu0 0.0
    %6398 = vmatprep.subr.mxu0 0.0
    %6399 = vmatpush1.msra.mxu0 0.0
    %6400 = vmatprep.mubr.f32.mxu0 0.0
    %6401 = vmatmul.mubr.f32.gmra.mrb[0].mxu0 %v6334
    %v6402 = vpop.f32.mrb[0].mxu0
    %v6403 = vadd.f32 0.0, %v6402
    %v6404 = vpop.f32.mrb[0].mxu0
    %6405 = vdwg.mxu0
    %v6407 = vsel %vm3571, %v4001, 0
    %6409 = vmatprep.subr.mxu0 0.0
    %6410 = vmatpush1.msra.mxu0 %v4140
    %6411 = vmatprep.subr.mxu0 0.0
    %6412 = vmatpush1.msra.mxu0 %v4141
    %6413 = vmatprep.subr.mxu0 0.0
    %6414 = vmatpush1.msra.mxu0 %v4142
    %6415 = vmatprep.subr.mxu0 0.0
    %6416 = vmatpush1.msra.mxu0 %v4143
    %6417 = vmatprep.subr.mxu0 0.0
    %6418 = vmatpush1.msra.mxu0 0.0
    %6419 = vmatprep.subr.mxu0 0.0
    %6420 = vmatpush1.msra.mxu0 0.0
    %6421 = vmatprep.subr.mxu0 0.0
    %6422 = vmatpush1.msra.mxu0 0.0
    %6423 = vmatprep.subr.mxu0 0.0
    %6424 = vmatpush1.msra.mxu0 0.0
    %6425 = vmatprep.subr.mxu0 0.0
    %6426 = vmatpush1.msra.mxu0 0.0
    %6427 = vmatprep.subr.mxu0 0.0
    %6428 = vmatpush1.msra.mxu0 0.0
    %6429 = vmatprep.subr.mxu0 0.0
    %6430 = vmatpush1.msra.mxu0 0.0
    %6431 = vmatprep.subr.mxu0 0.0
    %6432 = vmatpush1.msra.mxu0 0.0
    %6433 = vmatprep.subr.mxu0 0.0
    %6434 = vmatpush1.msra.mxu0 0.0
    %6435 = vmatprep.subr.mxu0 0.0
    %6436 = vmatpush1.msra.mxu0 0.0
    %6437 = vmatprep.subr.mxu0 0.0
    %6438 = vmatpush1.msra.mxu0 0.0
    %6439 = vmatprep.subr.mxu0 0.0
    %6440 = vmatpush1.msra.mxu0 0.0
    %6441 = vmatprep.subr.mxu0 0.0
    %6442 = vmatpush1.msra.mxu0 0.0
    %6443 = vmatprep.subr.mxu0 0.0
    %6444 = vmatpush1.msra.mxu0 0.0
    %6445 = vmatprep.subr.mxu0 0.0
    %6446 = vmatpush1.msra.mxu0 0.0
    %6447 = vmatprep.subr.mxu0 0.0
    %6448 = vmatpush1.msra.mxu0 0.0
    %6449 = vmatprep.subr.mxu0 0.0
    %6450 = vmatpush1.msra.mxu0 0.0
    %6451 = vmatprep.subr.mxu0 0.0
    %6452 = vmatpush1.msra.mxu0 0.0
    %6453 = vmatprep.subr.mxu0 0.0
    %6454 = vmatpush1.msra.mxu0 0.0
    %6455 = vmatprep.subr.mxu0 0.0
    %6456 = vmatpush1.msra.mxu0 0.0
    %6457 = vmatprep.subr.mxu0 0.0
    %6458 = vmatpush1.msra.mxu0 0.0
    %6459 = vmatprep.subr.mxu0 0.0
    %6460 = vmatpush1.msra.mxu0 0.0
    %6461 = vmatprep.subr.mxu0 0.0
    %6462 = vmatpush1.msra.mxu0 0.0
    %6463 = vmatprep.subr.mxu0 0.0
    %6464 = vmatpush1.msra.mxu0 0.0
    %6465 = vmatprep.subr.mxu0 0.0
    %6466 = vmatpush1.msra.mxu0 0.0
    %6467 = vmatprep.subr.mxu0 0.0
    %6468 = vmatpush1.msra.mxu0 0.0
    %6469 = vmatprep.subr.mxu0 0.0
    %6470 = vmatpush1.msra.mxu0 0.0
    %6471 = vmatprep.subr.mxu0 0.0
    %6472 = vmatpush1.msra.mxu0 0.0
    %6473 = vmatprep.mubr.f32.mxu0 0.0
    %6474 = vmatmul.mubr.f32.gmra.mrb[0].mxu0 %v6407
    %v6475 = vpop.f32.mrb[0].mxu0
    %v6476 = vadd.f32 0.0, %v6475
    %v6477 = vpop.f32.mrb[0].mxu0
    %6478 = vdwg.mxu0
    %v6480 = vsel %vm3571, %v4002, 0
    %6482 = vmatprep.subr.mxu0 0.0
    %6483 = vmatpush1.msra.mxu0 %v4144
    %6484 = vmatprep.subr.mxu0 0.0
    %6485 = vmatpush1.msra.mxu0 %v4145
    %6486 = vmatprep.subr.mxu0 0.0
    %6487 = vmatpush1.msra.mxu0 %v4146
    %6488 = vmatprep.subr.mxu0 0.0
    %6489 = vmatpush1.msra.mxu0 %v4147
    %6490 = vmatprep.subr.mxu0 0.0
    %6491 = vmatpush1.msra.mxu0 0.0
    %6492 = vmatprep.subr.mxu0 0.0
    %6493 = vmatpush1.msra.mxu0 0.0
    %6494 = vmatprep.subr.mxu0 0.0
    %6495 = vmatpush1.msra.mxu0 0.0
    %6496 = vmatprep.subr.mxu0 0.0
    %6497 = vmatpush1.msra.mxu0 0.0
    %6498 = vmatprep.subr.mxu0 0.0
    %6499 = vmatpush1.msra.mxu0 0.0
    %6500 = vmatprep.subr.mxu0 0.0
    %6501 = vmatpush1.msra.mxu0 0.0
    %6502 = vmatprep.subr.mxu0 0.0
    %6503 = vmatpush1.msra.mxu0 0.0
    %6504 = vmatprep.subr.mxu0 0.0
    %6505 = vmatpush1.msra.mxu0 0.0
    %6506 = vmatprep.subr.mxu0 0.0
    %6507 = vmatpush1.msra.mxu0 0.0
    %6508 = vmatprep.subr.mxu0 0.0
    %6509 = vmatpush1.msra.mxu0 0.0
    %6510 = vmatprep.subr.mxu0 0.0
    %6511 = vmatpush1.msra.mxu0 0.0
    %6512 = vmatprep.subr.mxu0 0.0
    %6513 = vmatpush1.msra.mxu0 0.0
    %6514 = vmatprep.subr.mxu0 0.0
    %6515 = vmatpush1.msra.mxu0 0.0
    %6516 = vmatprep.subr.mxu0 0.0
    %6517 = vmatpush1.msra.mxu0 0.0
    %6518 = vmatprep.subr.mxu0 0.0
    %6519 = vmatpush1.msra.mxu0 0.0
    %6520 = vmatprep.subr.mxu0 0.0
    %6521 = vmatpush1.msra.mxu0 0.0
    %6522 = vmatprep.subr.mxu0 0.0
    %6523 = vmatpush1.msra.mxu0 0.0
    %6524 = vmatprep.subr.mxu0 0.0
    %6525 = vmatpush1.msra.mxu0 0.0
    %6526 = vmatprep.subr.mxu0 0.0
    %6527 = vmatpush1.msra.mxu0 0.0
    %6528 = vmatprep.subr.mxu0 0.0
    %6529 = vmatpush1.msra.mxu0 0.0
    %6530 = vmatprep.subr.mxu0 0.0
    %6531 = vmatpush1.msra.mxu0 0.0
    %6532 = vmatprep.subr.mxu0 0.0
    %6533 = vmatpush1.msra.mxu0 0.0
    %6534 = vmatprep.subr.mxu0 0.0
    %6535 = vmatpush1.msra.mxu0 0.0
    %6536 = vmatprep.subr.mxu0 0.0
    %6537 = vmatpush1.msra.mxu0 0.0
    %6538 = vmatprep.subr.mxu0 0.0
    %6539 = vmatpush1.msra.mxu0 0.0
    %6540 = vmatprep.subr.mxu0 0.0
    %6541 = vmatpush1.msra.mxu0 0.0
    %6542 = vmatprep.subr.mxu0 0.0
    %6543 = vmatpush1.msra.mxu0 0.0
    %6544 = vmatprep.subr.mxu0 0.0
    %6545 = vmatpush1.msra.mxu0 0.0
    %6546 = vmatprep.mubr.f32.mxu0 0.0
    %6547 = vmatmul.mubr.f32.gmra.mrb[0].mxu0 %v6480
    %v6548 = vpop.f32.mrb[0].mxu0
    %v6549 = vadd.f32 0.0, %v6548
    %v6550 = vpop.f32.mrb[0].mxu0
    %6551 = vdwg.mxu0
    %v6553 = vsel %vm3571, %v4003, 0
    %6555 = vmatprep.subr.mxu0 0.0
    %6556 = vmatpush1.msra.mxu0 %v4148
    %6557 = vmatprep.subr.mxu0 0.0
    %6558 = vmatpush1.msra.mxu0 %v4149
    %6559 = vmatprep.subr.mxu0 0.0
    %6560 = vmatpush1.msra.mxu0 %v4150
    %6561 = vmatprep.subr.mxu0 0.0
    %6562 = vmatpush1.msra.mxu0 %v4151
    %6563 = vmatprep.subr.mxu0 0.0
    %6564 = vmatpush1.msra.mxu0 0.0
    %6565 = vmatprep.subr.mxu0 0.0
    %6566 = vmatpush1.msra.mxu0 0.0
    %6567 = vmatprep.subr.mxu0 0.0
    %6568 = vmatpush1.msra.mxu0 0.0
    %6569 = vmatprep.subr.mxu0 0.0
    %6570 = vmatpush1.msra.mxu0 0.0
    %6571 = vmatprep.subr.mxu0 0.0
    %6572 = vmatpush1.msra.mxu0 0.0
    %6573 = vmatprep.subr.mxu0 0.0
    %6574 = vmatpush1.msra.mxu0 0.0
    %6575 = vmatprep.subr.mxu0 0.0
    %6576 = vmatpush1.msra.mxu0 0.0
    %6577 = vmatprep.subr.mxu0 0.0
    %6578 = vmatpush1.msra.mxu0 0.0
    %6579 = vmatprep.subr.mxu0 0.0
    %6580 = vmatpush1.msra.mxu0 0.0
    %6581 = vmatprep.subr.mxu0 0.0
    %6582 = vmatpush1.msra.mxu0 0.0
    %6583 = vmatprep.subr.mxu0 0.0
    %6584 = vmatpush1.msra.mxu0 0.0
    %6585 = vmatprep.subr.mxu0 0.0
    %6586 = vmatpush1.msra.mxu0 0.0
    %6587 = vmatprep.subr.mxu0 0.0
    %6588 = vmatpush1.msra.mxu0 0.0
    %6589 = vmatprep.subr.mxu0 0.0
    %6590 = vmatpush1.msra.mxu0 0.0
    %6591 = vmatprep.subr.mxu0 0.0
    %6592 = vmatpush1.msra.mxu0 0.0
    %6593 = vmatprep.subr.mxu0 0.0
    %6594 = vmatpush1.msra.mxu0 0.0
    %6595 = vmatprep.subr.mxu0 0.0
    %6596 = vmatpush1.msra.mxu0 0.0
    %6597 = vmatprep.subr.mxu0 0.0
    %6598 = vmatpush1.msra.mxu0 0.0
    %6599 = vmatprep.subr.mxu0 0.0
    %6600 = vmatpush1.msra.mxu0 0.0
    %6601 = vmatprep.subr.mxu0 0.0
    %6602 = vmatpush1.msra.mxu0 0.0
    %6603 = vmatprep.subr.mxu0 0.0
    %6604 = vmatpush1.msra.mxu0 0.0
    %6605 = vmatprep.subr.mxu0 0.0
    %6606 = vmatpush1.msra.mxu0 0.0
    %6607 = vmatprep.subr.mxu0 0.0
    %6608 = vmatpush1.msra.mxu0 0.0
    %6609 = vmatprep.subr.mxu0 0.0
    %6610 = vmatpush1.msra.mxu0 0.0
    %6611 = vmatprep.subr.mxu0 0.0
    %6612 = vmatpush1.msra.mxu0 0.0
    %6613 = vmatprep.subr.mxu0 0.0
    %6614 = vmatpush1.msra.mxu0 0.0
    %6615 = vmatprep.subr.mxu0 0.0
    %6616 = vmatpush1.msra.mxu0 0.0
    %6617 = vmatprep.subr.mxu0 0.0
    %6618 = vmatpush1.msra.mxu0 0.0
    %6619 = vmatprep.mubr.f32.mxu0 0.0
    %6620 = vmatmul.mubr.f32.gmra.mrb[0].mxu0 %v6553
    %v6621 = vpop.f32.mrb[0].mxu0
    %v6622 = vadd.f32 0.0, %v6621
    %v6623 = vpop.f32.mrb[0].mxu0
    %6624 = vdwg.mxu0
    %v6626 = vsel %vm3571, %v4004, 0
    %6628 = vmatprep.subr.mxu0 0.0
    %6629 = vmatpush1.msra.mxu0 %v4152
    %6630 = vmatprep.subr.mxu0 0.0
    %6631 = vmatpush1.msra.mxu0 %v4153
    %6632 = vmatprep.subr.mxu0 0.0
    %6633 = vmatpush1.msra.mxu0 %v4154
    %6634 = vmatprep.subr.mxu0 0.0
    %6635 = vmatpush1.msra.mxu0 %v4155
    %6636 = vmatprep.subr.mxu0 0.0
    %6637 = vmatpush1.msra.mxu0 0.0
    %6638 = vmatprep.subr.mxu0 0.0
    %6639 = vmatpush1.msra.mxu0 0.0
    %6640 = vmatprep.subr.mxu0 0.0
    %6641 = vmatpush1.msra.mxu0 0.0
    %6642 = vmatprep.subr.mxu0 0.0
    %6643 = vmatpush1.msra.mxu0 0.0
    %6644 = vmatprep.subr.mxu0 0.0
    %6645 = vmatpush1.msra.mxu0 0.0
    %6646 = vmatprep.subr.mxu0 0.0
    %6647 = vmatpush1.msra.mxu0 0.0
    %6648 = vmatprep.subr.mxu0 0.0
    %6649 = vmatpush1.msra.mxu0 0.0
    %6650 = vmatprep.subr.mxu0 0.0
    %6651 = vmatpush1.msra.mxu0 0.0
    %6652 = vmatprep.subr.mxu0 0.0
    %6653 = vmatpush1.msra.mxu0 0.0
    %6654 = vmatprep.subr.mxu0 0.0
    %6655 = vmatpush1.msra.mxu0 0.0
    %6656 = vmatprep.subr.mxu0 0.0
    %6657 = vmatpush1.msra.mxu0 0.0
    %6658 = vmatprep.subr.mxu0 0.0
    %6659 = vmatpush1.msra.mxu0 0.0
    %6660 = vmatprep.subr.mxu0 0.0
    %6661 = vmatpush1.msra.mxu0 0.0
    %6662 = vmatprep.subr.mxu0 0.0
    %6663 = vmatpush1.msra.mxu0 0.0
    %6664 = vmatprep.subr.mxu0 0.0
    %6665 = vmatpush1.msra.mxu0 0.0
    %6666 = vmatprep.subr.mxu0 0.0
    %6667 = vmatpush1.msra.mxu0 0.0
    %6668 = vmatprep.subr.mxu0 0.0
    %6669 = vmatpush1.msra.mxu0 0.0
    %6670 = vmatprep.subr.mxu0 0.0
    %6671 = vmatpush1.msra.mxu0 0.0
    %6672 = vmatprep.subr.mxu0 0.0
    %6673 = vmatpush1.msra.mxu0 0.0
    %6674 = vmatprep.subr.mxu0 0.0
    %6675 = vmatpush1.msra.mxu0 0.0
    %6676 = vmatprep.subr.mxu0 0.0
    %6677 = vmatpush1.msra.mxu0 0.0
    %6678 = vmatprep.subr.mxu0 0.0
    %6679 = vmatpush1.msra.mxu0 0.0
    %6680 = vmatprep.subr.mxu0 0.0
    %6681 = vmatpush1.msra.mxu0 0.0
    %6682 = vmatprep.subr.mxu0 0.0
    %6683 = vmatpush1.msra.mxu0 0.0
    %6684 = vmatprep.subr.mxu0 0.0
    %6685 = vmatpush1.msra.mxu0 0.0
    %6686 = vmatprep.subr.mxu0 0.0
    %6687 = vmatpush1.msra.mxu0 0.0
    %6688 = vmatprep.subr.mxu0 0.0
    %6689 = vmatpush1.msra.mxu0 0.0
    %6690 = vmatprep.subr.mxu0 0.0
    %6691 = vmatpush1.msra.mxu0 0.0
    %6692 = vmatprep.mubr.f32.mxu0 0.0
    %6693 = vmatmul.mubr.f32.gmra.mrb[0].mxu0 %v6626
    %v6694 = vpop.f32.mrb[0].mxu0
    %v6695 = vadd.f32 0.0, %v6694
    %v6696 = vpop.f32.mrb[0].mxu0
    %6697 = vdwg.mxu0
    %v6699 = vsel %vm3571, %v4005, 0
    %6701 = vmatprep.subr.mxu0 0.0
    %6702 = vmatpush1.msra.mxu0 %v4156
    %6703 = vmatprep.subr.mxu0 0.0
    %6704 = vmatpush1.msra.mxu0 %v4157
    %6705 = vmatprep.subr.mxu0 0.0
    %6706 = vmatpush1.msra.mxu0 %v4158
    %6707 = vmatprep.subr.mxu0 0.0
    %6708 = vmatpush1.msra.mxu0 %v4159
    %6709 = vmatprep.subr.mxu0 0.0
    %6710 = vmatpush1.msra.mxu0 0.0
    %6711 = vmatprep.subr.mxu0 0.0
    %6712 = vmatpush1.msra.mxu0 0.0
    %6713 = vmatprep.subr.mxu0 0.0
    %6714 = vmatpush1.msra.mxu0 0.0
    %6715 = vmatprep.subr.mxu0 0.0
    %6716 = vmatpush1.msra.mxu0 0.0
    %6717 = vmatprep.subr.mxu0 0.0
    %6718 = vmatpush1.msra.mxu0 0.0
    %6719 = vmatprep.subr.mxu0 0.0
    %6720 = vmatpush1.msra.mxu0 0.0
    %6721 = vmatprep.subr.mxu0 0.0
    %6722 = vmatpush1.msra.mxu0 0.0
    %6723 = vmatprep.subr.mxu0 0.0
    %6724 = vmatpush1.msra.mxu0 0.0
    %6725 = vmatprep.subr.mxu0 0.0
    %6726 = vmatpush1.msra.mxu0 0.0
    %6727 = vmatprep.subr.mxu0 0.0
    %6728 = vmatpush1.msra.mxu0 0.0
    %6729 = vmatprep.subr.mxu0 0.0
    %6730 = vmatpush1.msra.mxu0 0.0
    %6731 = vmatprep.subr.mxu0 0.0
    %6732 = vmatpush1.msra.mxu0 0.0
    %6733 = vmatprep.subr.mxu0 0.0
    %6734 = vmatpush1.msra.mxu0 0.0
    %6735 = vmatprep.subr.mxu0 0.0
    %6736 = vmatpush1.msra.mxu0 0.0
    %6737 = vmatprep.subr.mxu0 0.0
    %6738 = vmatpush1.msra.mxu0 0.0
    %6739 = vmatprep.subr.mxu0 0.0
    %6740 = vmatpush1.msra.mxu0 0.0
    %6741 = vmatprep.subr.mxu0 0.0
    %6742 = vmatpush1.msra.mxu0 0.0
    %6743 = vmatprep.subr.mxu0 0.0
    %6744 = vmatpush1.msra.mxu0 0.0
    %6745 = vmatprep.subr.mxu0 0.0
    %6746 = vmatpush1.msra.mxu0 0.0
    %6747 = vmatprep.subr.mxu0 0.0
    %6748 = vmatpush1.msra.mxu0 0.0
    %6749 = vmatprep.subr.mxu0 0.0
    %6750 = vmatpush1.msra.mxu0 0.0
    %6751 = vmatprep.subr.mxu0 0.0
    %6752 = vmatpush1.msra.mxu0 0.0
    %6753 = vmatprep.subr.mxu0 0.0
    %6754 = vmatpush1.msra.mxu0 0.0
    %6755 = vmatprep.subr.mxu0 0.0
    %6756 = vmatpush1.msra.mxu0 0.0
    %6757 = vmatprep.subr.mxu0 0.0
    %6758 = vmatpush1.msra.mxu0 0.0
    %6759 = vmatprep.subr.mxu0 0.0
    %6760 = vmatpush1.msra.mxu0 0.0
    %6761 = vmatprep.subr.mxu0 0.0
    %6762 = vmatpush1.msra.mxu0 0.0
    %6763 = vmatprep.subr.mxu0 0.0
    %6764 = vmatpush1.msra.mxu0 0.0
    %6765 = vmatprep.mubr.f32.mxu0 0.0
    %6766 = vmatmul.mubr.f32.gmra.mrb[0].mxu0 %v6699
    %v6767 = vpop.f32.mrb[0].mxu0
    %v6768 = vadd.f32 0.0, %v6767
    %v6769 = vpop.f32.mrb[0].mxu0
    %6770 = vdwg.mxu0
    %v6772 = vsel %vm3571, %v4006, 0
    %6774 = vmatprep.subr.mxu0 0.0
    %6775 = vmatpush1.msra.mxu0 %v4160
    %6776 = vmatprep.subr.mxu0 0.0
    %6777 = vmatpush1.msra.mxu0 %v4161
    %6778 = vmatprep.subr.mxu0 0.0
    %6779 = vmatpush1.msra.mxu0 %v4162
    %6780 = vmatprep.subr.mxu0 0.0
    %6781 = vmatpush1.msra.mxu0 %v4163
    %6782 = vmatprep.subr.mxu0 0.0
    %6783 = vmatpush1.msra.mxu0 0.0
    %6784 = vmatprep.subr.mxu0 0.0
    %6785 = vmatpush1.msra.mxu0 0.0
    %6786 = vmatprep.subr.mxu0 0.0
    %6787 = vmatpush1.msra.mxu0 0.0
    %6788 = vmatprep.subr.mxu0 0.0
    %6789 = vmatpush1.msra.mxu0 0.0
    %6790 = vmatprep.subr.mxu0 0.0
    %6791 = vmatpush1.msra.mxu0 0.0
    %6792 = vmatprep.subr.mxu0 0.0
    %6793 = vmatpush1.msra.mxu0 0.0
    %6794 = vmatprep.subr.mxu0 0.0
    %6795 = vmatpush1.msra.mxu0 0.0
    %6796 = vmatprep.subr.mxu0 0.0
    %6797 = vmatpush1.msra.mxu0 0.0
    %6798 = vmatprep.subr.mxu0 0.0
    %6799 = vmatpush1.msra.mxu0 0.0
    %6800 = vmatprep.subr.mxu0 0.0
    %6801 = vmatpush1.msra.mxu0 0.0
    %6802 = vmatprep.subr.mxu0 0.0
    %6803 = vmatpush1.msra.mxu0 0.0
    %6804 = vmatprep.subr.mxu0 0.0
    %6805 = vmatpush1.msra.mxu0 0.0
    %6806 = vmatprep.subr.mxu0 0.0
    %6807 = vmatpush1.msra.mxu0 0.0
    %6808 = vmatprep.subr.mxu0 0.0
    %6809 = vmatpush1.msra.mxu0 0.0
    %6810 = vmatprep.subr.mxu0 0.0
    %6811 = vmatpush1.msra.mxu0 0.0
    %6812 = vmatprep.subr.mxu0 0.0
    %6813 = vmatpush1.msra.mxu0 0.0
    %6814 = vmatprep.subr.mxu0 0.0
    %6815 = vmatpush1.msra.mxu0 0.0
    %6816 = vmatprep.subr.mxu0 0.0
    %6817 = vmatpush1.msra.mxu0 0.0
    %6818 = vmatprep.subr.mxu0 0.0
    %6819 = vmatpush1.msra.mxu0 0.0
    %6820 = vmatprep.subr.mxu0 0.0
    %6821 = vmatpush1.msra.mxu0 0.0
    %6822 = vmatprep.subr.mxu0 0.0
    %6823 = vmatpush1.msra.mxu0 0.0
    %6824 = vmatprep.subr.mxu0 0.0
    %6825 = vmatpush1.msra.mxu0 0.0
    %6826 = vmatprep.subr.mxu0 0.0
    %6827 = vmatpush1.msra.mxu0 0.0
    %6828 = vmatprep.subr.mxu0 0.0
    %6829 = vmatpush1.msra.mxu0 0.0
    %6830 = vmatprep.subr.mxu0 0.0
    %6831 = vmatpush1.msra.mxu0 0.0
    %6832 = vmatprep.subr.mxu0 0.0
    %6833 = vmatpush1.msra.mxu0 0.0
    %6834 = vmatprep.subr.mxu0 0.0
    %6835 = vmatpush1.msra.mxu0 0.0
    %6836 = vmatprep.subr.mxu0 0.0
    %6837 = vmatpush1.msra.mxu0 0.0
    %6838 = vmatprep.mubr.f32.mxu0 0.0
    %6839 = vmatmul.mubr.f32.gmra.mrb[0].mxu0 %v6772
    %v6840 = vpop.f32.mrb[0].mxu0
    %v6841 = vadd.f32 0.0, %v6840
    %v6842 = vpop.f32.mrb[0].mxu0
    %6843 = vdwg.mxu0
    %v6845 = vsel %vm3571, %v4007, 0
    %6847 = vmatprep.subr.mxu0 0.0
    %6848 = vmatpush1.msra.mxu0 %v4164
    %6849 = vmatprep.subr.mxu0 0.0
    %6850 = vmatpush1.msra.mxu0 %v4165
    %6851 = vmatprep.subr.mxu0 0.0
    %6852 = vmatpush1.msra.mxu0 %v4166
    %6853 = vmatprep.subr.mxu0 0.0
    %6854 = vmatpush1.msra.mxu0 %v4167
    %6855 = vmatprep.subr.mxu0 0.0
    %6856 = vmatpush1.msra.mxu0 0.0
    %6857 = vmatprep.subr.mxu0 0.0
    %6858 = vmatpush1.msra.mxu0 0.0
    %6859 = vmatprep.subr.mxu0 0.0
    %6860 = vmatpush1.msra.mxu0 0.0
    %6861 = vmatprep.subr.mxu0 0.0
    %6862 = vmatpush1.msra.mxu0 0.0
    %6863 = vmatprep.subr.mxu0 0.0
    %6864 = vmatpush1.msra.mxu0 0.0
    %6865 = vmatprep.subr.mxu0 0.0
    %6866 = vmatpush1.msra.mxu0 0.0
    %6867 = vmatprep.subr.mxu0 0.0
    %6868 = vmatpush1.msra.mxu0 0.0
    %6869 = vmatprep.subr.mxu0 0.0
    %6870 = vmatpush1.msra.mxu0 0.0
    %6871 = vmatprep.subr.mxu0 0.0
    %6872 = vmatpush1.msra.mxu0 0.0
    %6873 = vmatprep.subr.mxu0 0.0
    %6874 = vmatpush1.msra.mxu0 0.0
    %6875 = vmatprep.subr.mxu0 0.0
    %6876 = vmatpush1.msra.mxu0 0.0
    %6877 = vmatprep.subr.mxu0 0.0
    %6878 = vmatpush1.msra.mxu0 0.0
    %6879 = vmatprep.subr.mxu0 0.0
    %6880 = vmatpush1.msra.mxu0 0.0
    %6881 = vmatprep.subr.mxu0 0.0
    %6882 = vmatpush1.msra.mxu0 0.0
    %6883 = vmatprep.subr.mxu0 0.0
    %6884 = vmatpush1.msra.mxu0 0.0
    %6885 = vmatprep.subr.mxu0 0.0
    %6886 = vmatpush1.msra.mxu0 0.0
    %6887 = vmatprep.subr.mxu0 0.0
    %6888 = vmatpush1.msra.mxu0 0.0
    %6889 = vmatprep.subr.mxu0 0.0
    %6890 = vmatpush1.msra.mxu0 0.0
    %6891 = vmatprep.subr.mxu0 0.0
    %6892 = vmatpush1.msra.mxu0 0.0
    %6893 = vmatprep.subr.mxu0 0.0
    %6894 = vmatpush1.msra.mxu0 0.0
    %6895 = vmatprep.subr.mxu0 0.0
    %6896 = vmatpush1.msra.mxu0 0.0
    %6897 = vmatprep.subr.mxu0 0.0
    %6898 = vmatpush1.msra.mxu0 0.0
    %6899 = vmatprep.subr.mxu0 0.0
    %6900 = vmatpush1.msra.mxu0 0.0
    %6901 = vmatprep.subr.mxu0 0.0
    %6902 = vmatpush1.msra.mxu0 0.0
    %6903 = vmatprep.subr.mxu0 0.0
    %6904 = vmatpush1.msra.mxu0 0.0
    %6905 = vmatprep.subr.mxu0 0.0
    %6906 = vmatpush1.msra.mxu0 0.0
    %6907 = vmatprep.subr.mxu0 0.0
    %6908 = vmatpush1.msra.mxu0 0.0
    %6909 = vmatprep.subr.mxu0 0.0
    %6910 = vmatpush1.msra.mxu0 0.0
    %6911 = vmatprep.mubr.f32.mxu0 0.0
    %6912 = vmatmul.mubr.f32.gmra.mrb[0].mxu0 %v6845
    %v6913 = vpop.f32.mrb[0].mxu0
    %v6914 = vadd.f32 0.0, %v6913
    %v6915 = vpop.f32.mrb[0].mxu0
    %6916 = vdwg.mxu0
    %v6918 = vsel %vm3571, %v4008, 0
    %6920 = vmatprep.subr.mxu0 0.0
    %6921 = vmatpush1.msra.mxu0 %v4168
    %6922 = vmatprep.subr.mxu0 0.0
    %6923 = vmatpush1.msra.mxu0 %v4169
    %6924 = vmatprep.subr.mxu0 0.0
    %6925 = vmatpush1.msra.mxu0 %v4170
    %6926 = vmatprep.subr.mxu0 0.0
    %6927 = vmatpush1.msra.mxu0 %v4171
    %6928 = vmatprep.subr.mxu0 0.0
    %6929 = vmatpush1.msra.mxu0 0.0
    %6930 = vmatprep.subr.mxu0 0.0
    %6931 = vmatpush1.msra.mxu0 0.0
    %6932 = vmatprep.subr.mxu0 0.0
    %6933 = vmatpush1.msra.mxu0 0.0
    %6934 = vmatprep.subr.mxu0 0.0
    %6935 = vmatpush1.msra.mxu0 0.0
    %6936 = vmatprep.subr.mxu0 0.0
    %6937 = vmatpush1.msra.mxu0 0.0
    %6938 = vmatprep.subr.mxu0 0.0
    %6939 = vmatpush1.msra.mxu0 0.0
    %6940 = vmatprep.subr.mxu0 0.0
    %6941 = vmatpush1.msra.mxu0 0.0
    %6942 = vmatprep.subr.mxu0 0.0
    %6943 = vmatpush1.msra.mxu0 0.0
    %6944 = vmatprep.subr.mxu0 0.0
    %6945 = vmatpush1.msra.mxu0 0.0
    %6946 = vmatprep.subr.mxu0 0.0
    %6947 = vmatpush1.msra.mxu0 0.0
    %6948 = vmatprep.subr.mxu0 0.0
    %6949 = vmatpush1.msra.mxu0 0.0
    %6950 = vmatprep.subr.mxu0 0.0
    %6951 = vmatpush1.msra.mxu0 0.0
    %6952 = vmatprep.subr.mxu0 0.0
    %6953 = vmatpush1.msra.mxu0 0.0
    %6954 = vmatprep.subr.mxu0 0.0
    %6955 = vmatpush1.msra.mxu0 0.0
    %6956 = vmatprep.subr.mxu0 0.0
    %6957 = vmatpush1.msra.mxu0 0.0
    %6958 = vmatprep.subr.mxu0 0.0
    %6959 = vmatpush1.msra.mxu0 0.0
    %6960 = vmatprep.subr.mxu0 0.0
    %6961 = vmatpush1.msra.mxu0 0.0
    %6962 = vmatprep.subr.mxu0 0.0
    %6963 = vmatpush1.msra.mxu0 0.0
    %6964 = vmatprep.subr.mxu0 0.0
    %6965 = vmatpush1.msra.mxu0 0.0
    %6966 = vmatprep.subr.mxu0 0.0
    %6967 = vmatpush1.msra.mxu0 0.0
    %6968 = vmatprep.subr.mxu0 0.0
    %6969 = vmatpush1.msra.mxu0 0.0
    %6970 = vmatprep.subr.mxu0 0.0
    %6971 = vmatpush1.msra.mxu0 0.0
    %6972 = vmatprep.subr.mxu0 0.0
    %6973 = vmatpush1.msra.mxu0 0.0
    %6974 = vmatprep.subr.mxu0 0.0
    %6975 = vmatpush1.msra.mxu0 0.0
    %6976 = vmatprep.subr.mxu0 0.0
    %6977 = vmatpush1.msra.mxu0 0.0
    %6978 = vmatprep.subr.mxu0 0.0
    %6979 = vmatpush1.msra.mxu0 0.0
    %6980 = vmatprep.subr.mxu0 0.0
    %6981 = vmatpush1.msra.mxu0 0.0
    %6982 = vmatprep.subr.mxu0 0.0
    %6983 = vmatpush1.msra.mxu0 0.0
    %6984 = vmatprep.mubr.f32.mxu0 0.0
    %6985 = vmatmul.mubr.f32.gmra.mrb[0].mxu0 %v6918
    %v6986 = vpop.f32.mrb[0].mxu0
    %v6987 = vadd.f32 0.0, %v6986
    %v6988 = vpop.f32.mrb[0].mxu0
    %6989 = vdwg.mxu0
    %v6991 = vsel %vm3571, %v4009, 0
    %6993 = vmatprep.subr.mxu0 0.0
    %6994 = vmatpush1.msra.mxu0 %v4172
    %6995 = vmatprep.subr.mxu0 0.0
    %6996 = vmatpush1.msra.mxu0 %v4173
    %6997 = vmatprep.subr.mxu0 0.0
    %6998 = vmatpush1.msra.mxu0 %v4174
    %6999 = vmatprep.subr.mxu0 0.0
    %7000 = vmatpush1.msra.mxu0 %v4175
    %7001 = vmatprep.subr.mxu0 0.0
    %7002 = vmatpush1.msra.mxu0 0.0
    %7003 = vmatprep.subr.mxu0 0.0
    %7004 = vmatpush1.msra.mxu0 0.0
    %7005 = vmatprep.subr.mxu0 0.0
    %7006 = vmatpush1.msra.mxu0 0.0
    %7007 = vmatprep.subr.mxu0 0.0
    %7008 = vmatpush1.msra.mxu0 0.0
    %7009 = vmatprep.subr.mxu0 0.0
    %7010 = vmatpush1.msra.mxu0 0.0
    %7011 = vmatprep.subr.mxu0 0.0
    %7012 = vmatpush1.msra.mxu0 0.0
    %7013 = vmatprep.subr.mxu0 0.0
    %7014 = vmatpush1.msra.mxu0 0.0
    %7015 = vmatprep.subr.mxu0 0.0
    %7016 = vmatpush1.msra.mxu0 0.0
    %7017 = vmatprep.subr.mxu0 0.0
    %7018 = vmatpush1.msra.mxu0 0.0
    %7019 = vmatprep.subr.mxu0 0.0
    %7020 = vmatpush1.msra.mxu0 0.0
    %7021 = vmatprep.subr.mxu0 0.0
    %7022 = vmatpush1.msra.mxu0 0.0
    %7023 = vmatprep.subr.mxu0 0.0
    %7024 = vmatpush1.msra.mxu0 0.0
    %7025 = vmatprep.subr.mxu0 0.0
    %7026 = vmatpush1.msra.mxu0 0.0
    %7027 = vmatprep.subr.mxu0 0.0
    %7028 = vmatpush1.msra.mxu0 0.0
    %7029 = vmatprep.subr.mxu0 0.0
    %7030 = vmatpush1.msra.mxu0 0.0
    %7031 = vmatprep.subr.mxu0 0.0
    %7032 = vmatpush1.msra.mxu0 0.0
    %7033 = vmatprep.subr.mxu0 0.0
    %7034 = vmatpush1.msra.mxu0 0.0
    %7035 = vmatprep.subr.mxu0 0.0
    %7036 = vmatpush1.msra.mxu0 0.0
    %7037 = vmatprep.subr.mxu0 0.0
    %7038 = vmatpush1.msra.mxu0 0.0
    %7039 = vmatprep.subr.mxu0 0.0
    %7040 = vmatpush1.msra.mxu0 0.0
    %7041 = vmatprep.subr.mxu0 0.0
    %7042 = vmatpush1.msra.mxu0 0.0
    %7043 = vmatprep.subr.mxu0 0.0
    %7044 = vmatpush1.msra.mxu0 0.0
    %7045 = vmatprep.subr.mxu0 0.0
    %7046 = vmatpush1.msra.mxu0 0.0
    %7047 = vmatprep.subr.mxu0 0.0
    %7048 = vmatpush1.msra.mxu0 0.0
    %7049 = vmatprep.subr.mxu0 0.0
    %7050 = vmatpush1.msra.mxu0 0.0
    %7051 = vmatprep.subr.mxu0 0.0
    %7052 = vmatpush1.msra.mxu0 0.0
    %7053 = vmatprep.subr.mxu0 0.0
    %7054 = vmatpush1.msra.mxu0 0.0
    %7055 = vmatprep.subr.mxu0 0.0
    %7056 = vmatpush1.msra.mxu0 0.0
    %7057 = vmatprep.mubr.f32.mxu0 0.0
    %7058 = vmatmul.mubr.f32.gmra.mrb[0].mxu0 %v6991
    %v7059 = vpop.f32.mrb[0].mxu0
    %v7060 = vadd.f32 0.0, %v7059
    %v7061 = vpop.f32.mrb[0].mxu0
    %7062 = vdwg.mxu0
    %v7064 = vsel %vm3571, %v4010, 0
    %7066 = vmatprep.subr.mxu0 0.0
    %7067 = vmatpush1.msra.mxu0 %v4176
    %7068 = vmatprep.subr.mxu0 0.0
    %7069 = vmatpush1.msra.mxu0 %v4177
    %7070 = vmatprep.subr.mxu0 0.0
    %7071 = vmatpush1.msra.mxu0 %v4178
    %7072 = vmatprep.subr.mxu0 0.0
    %7073 = vmatpush1.msra.mxu0 %v4179
    %7074 = vmatprep.subr.mxu0 0.0
    %7075 = vmatpush1.msra.mxu0 0.0
    %7076 = vmatprep.subr.mxu0 0.0
    %7077 = vmatpush1.msra.mxu0 0.0
    %7078 = vmatprep.subr.mxu0 0.0
    %7079 = vmatpush1.msra.mxu0 0.0
    %7080 = vmatprep.subr.mxu0 0.0
    %7081 = vmatpush1.msra.mxu0 0.0
    %7082 = vmatprep.subr.mxu0 0.0
    %7083 = vmatpush1.msra.mxu0 0.0
    %7084 = vmatprep.subr.mxu0 0.0
    %7085 = vmatpush1.msra.mxu0 0.0
    %7086 = vmatprep.subr.mxu0 0.0
    %7087 = vmatpush1.msra.mxu0 0.0
    %7088 = vmatprep.subr.mxu0 0.0
    %7089 = vmatpush1.msra.mxu0 0.0
    %7090 = vmatprep.subr.mxu0 0.0
    %7091 = vmatpush1.msra.mxu0 0.0
    %7092 = vmatprep.subr.mxu0 0.0
    %7093 = vmatpush1.msra.mxu0 0.0
    %7094 = vmatprep.subr.mxu0 0.0
    %7095 = vmatpush1.msra.mxu0 0.0
    %7096 = vmatprep.subr.mxu0 0.0
    %7097 = vmatpush1.msra.mxu0 0.0
    %7098 = vmatprep.subr.mxu0 0.0
    %7099 = vmatpush1.msra.mxu0 0.0
    %7100 = vmatprep.subr.mxu0 0.0
    %7101 = vmatpush1.msra.mxu0 0.0
    %7102 = vmatprep.subr.mxu0 0.0
    %7103 = vmatpush1.msra.mxu0 0.0
    %7104 = vmatprep.subr.mxu0 0.0
    %7105 = vmatpush1.msra.mxu0 0.0
    %7106 = vmatprep.subr.mxu0 0.0
    %7107 = vmatpush1.msra.mxu0 0.0
    %7108 = vmatprep.subr.mxu0 0.0
    %7109 = vmatpush1.msra.mxu0 0.0
    %7110 = vmatprep.subr.mxu0 0.0
    %7111 = vmatpush1.msra.mxu0 0.0
    %7112 = vmatprep.subr.mxu0 0.0
    %7113 = vmatpush1.msra.mxu0 0.0
    %7114 = vmatprep.subr.mxu0 0.0
    %7115 = vmatpush1.msra.mxu0 0.0
    %7116 = vmatprep.subr.mxu0 0.0
    %7117 = vmatpush1.msra.mxu0 0.0
    %7118 = vmatprep.subr.mxu0 0.0
    %7119 = vmatpush1.msra.mxu0 0.0
    %7120 = vmatprep.subr.mxu0 0.0
    %7121 = vmatpush1.msra.mxu0 0.0
    %7122 = vmatprep.subr.mxu0 0.0
    %7123 = vmatpush1.msra.mxu0 0.0
    %7124 = vmatprep.subr.mxu0 0.0
    %7125 = vmatpush1.msra.mxu0 0.0
    %7126 = vmatprep.subr.mxu0 0.0
    %7127 = vmatpush1.msra.mxu0 0.0
    %7128 = vmatprep.subr.mxu0 0.0
    %7129 = vmatpush1.msra.mxu0 0.0
    %7130 = vmatprep.mubr.f32.mxu0 0.0
    %7131 = vmatmul.mubr.f32.gmra.mrb[0].mxu0 %v7064
    %v7132 = vpop.f32.mrb[0].mxu0
    %v7133 = vadd.f32 0.0, %v7132
    %v7134 = vpop.f32.mrb[0].mxu0
    %7135 = vdwg.mxu0
    %v7137 = vsel %vm3571, %v4011, 0
    %7139 = vmatprep.subr.mxu0 0.0
    %7140 = vmatpush1.msra.mxu0 %v4180
    %7141 = vmatprep.subr.mxu0 0.0
    %7142 = vmatpush1.msra.mxu0 %v4181
    %7143 = vmatprep.subr.mxu0 0.0
    %7144 = vmatpush1.msra.mxu0 %v4182
    %7145 = vmatprep.subr.mxu0 0.0
    %7146 = vmatpush1.msra.mxu0 %v4183
    %7147 = vmatprep.subr.mxu0 0.0
    %7148 = vmatpush1.msra.mxu0 0.0
    %7149 = vmatprep.subr.mxu0 0.0
    %7150 = vmatpush1.msra.mxu0 0.0
    %7151 = vmatprep.subr.mxu0 0.0
    %7152 = vmatpush1.msra.mxu0 0.0
    %7153 = vmatprep.subr.mxu0 0.0
    %7154 = vmatpush1.msra.mxu0 0.0
    %7155 = vmatprep.subr.mxu0 0.0
    %7156 = vmatpush1.msra.mxu0 0.0
    %7157 = vmatprep.subr.mxu0 0.0
    %7158 = vmatpush1.msra.mxu0 0.0
    %7159 = vmatprep.subr.mxu0 0.0
    %7160 = vmatpush1.msra.mxu0 0.0
    %7161 = vmatprep.subr.mxu0 0.0
    %7162 = vmatpush1.msra.mxu0 0.0
    %7163 = vmatprep.subr.mxu0 0.0
    %7164 = vmatpush1.msra.mxu0 0.0
    %7165 = vmatprep.subr.mxu0 0.0
    %7166 = vmatpush1.msra.mxu0 0.0
    %7167 = vmatprep.subr.mxu0 0.0
    %7168 = vmatpush1.msra.mxu0 0.0
    %7169 = vmatprep.subr.mxu0 0.0
    %7170 = vmatpush1.msra.mxu0 0.0
    %7171 = vmatprep.subr.mxu0 0.0
    %7172 = vmatpush1.msra.mxu0 0.0
    %7173 = vmatprep.subr.mxu0 0.0
    %7174 = vmatpush1.msra.mxu0 0.0
    %7175 = vmatprep.subr.mxu0 0.0
    %7176 = vmatpush1.msra.mxu0 0.0
    %7177 = vmatprep.subr.mxu0 0.0
    %7178 = vmatpush1.msra.mxu0 0.0
    %7179 = vmatprep.subr.mxu0 0.0
    %7180 = vmatpush1.msra.mxu0 0.0
    %7181 = vmatprep.subr.mxu0 0.0
    %7182 = vmatpush1.msra.mxu0 0.0
    %7183 = vmatprep.subr.mxu0 0.0
    %7184 = vmatpush1.msra.mxu0 0.0
    %7185 = vmatprep.subr.mxu0 0.0
    %7186 = vmatpush1.msra.mxu0 0.0
    %7187 = vmatprep.subr.mxu0 0.0
    %7188 = vmatpush1.msra.mxu0 0.0
    %7189 = vmatprep.subr.mxu0 0.0
    %7190 = vmatpush1.msra.mxu0 0.0
    %7191 = vmatprep.subr.mxu0 0.0
    %7192 = vmatpush1.msra.mxu0 0.0
    %7193 = vmatprep.subr.mxu0 0.0
    %7194 = vmatpush1.msra.mxu0 0.0
    %7195 = vmatprep.subr.mxu0 0.0
    %7196 = vmatpush1.msra.mxu0 0.0
    %7197 = vmatprep.subr.mxu0 0.0
    %7198 = vmatpush1.msra.mxu0 0.0
    %7199 = vmatprep.subr.mxu0 0.0
    %7200 = vmatpush1.msra.mxu0 0.0
    %7201 = vmatprep.subr.mxu0 0.0
    %7202 = vmatpush1.msra.mxu0 0.0
    %7203 = vmatprep.mubr.f32.mxu0 0.0
    %7204 = vmatmul.mubr.f32.gmra.mrb[0].mxu0 %v7137
    %v7205 = vpop.f32.mrb[0].mxu0
    %v7206 = vadd.f32 0.0, %v7205
    %v7207 = vpop.f32.mrb[0].mxu0
    %7208 = vdwg.mxu0
    %v7210 = vsel %vm3571, %v4012, 0
    %7212 = vmatprep.subr.mxu0 0.0
    %7213 = vmatpush1.msra.mxu0 %v4184
    %7214 = vmatprep.subr.mxu0 0.0
    %7215 = vmatpush1.msra.mxu0 %v4185
    %7216 = vmatprep.subr.mxu0 0.0
    %7217 = vmatpush1.msra.mxu0 %v4186
    %7218 = vmatprep.subr.mxu0 0.0
    %7219 = vmatpush1.msra.mxu0 %v4187
    %7220 = vmatprep.subr.mxu0 0.0
    %7221 = vmatpush1.msra.mxu0 0.0
    %7222 = vmatprep.subr.mxu0 0.0
    %7223 = vmatpush1.msra.mxu0 0.0
    %7224 = vmatprep.subr.mxu0 0.0
    %7225 = vmatpush1.msra.mxu0 0.0
    %7226 = vmatprep.subr.mxu0 0.0
    %7227 = vmatpush1.msra.mxu0 0.0
    %7228 = vmatprep.subr.mxu0 0.0
    %7229 = vmatpush1.msra.mxu0 0.0
    %7230 = vmatprep.subr.mxu0 0.0
    %7231 = vmatpush1.msra.mxu0 0.0
    %7232 = vmatprep.subr.mxu0 0.0
    %7233 = vmatpush1.msra.mxu0 0.0
    %7234 = vmatprep.subr.mxu0 0.0
    %7235 = vmatpush1.msra.mxu0 0.0
    %7236 = vmatprep.subr.mxu0 0.0
    %7237 = vmatpush1.msra.mxu0 0.0
    %7238 = vmatprep.subr.mxu0 0.0
    %7239 = vmatpush1.msra.mxu0 0.0
    %7240 = vmatprep.subr.mxu0 0.0
    %7241 = vmatpush1.msra.mxu0 0.0
    %7242 = vmatprep.subr.mxu0 0.0
    %7243 = vmatpush1.msra.mxu0 0.0
    %7244 = vmatprep.subr.mxu0 0.0
    %7245 = vmatpush1.msra.mxu0 0.0
    %7246 = vmatprep.subr.mxu0 0.0
    %7247 = vmatpush1.msra.mxu0 0.0
    %7248 = vmatprep.subr.mxu0 0.0
    %7249 = vmatpush1.msra.mxu0 0.0
    %7250 = vmatprep.subr.mxu0 0.0
    %7251 = vmatpush1.msra.mxu0 0.0
    %7252 = vmatprep.subr.mxu0 0.0
    %7253 = vmatpush1.msra.mxu0 0.0
    %7254 = vmatprep.subr.mxu0 0.0
    %7255 = vmatpush1.msra.mxu0 0.0
    %7256 = vmatprep.subr.mxu0 0.0
    %7257 = vmatpush1.msra.mxu0 0.0
    %7258 = vmatprep.subr.mxu0 0.0
    %7259 = vmatpush1.msra.mxu0 0.0
    %7260 = vmatprep.subr.mxu0 0.0
    %7261 = vmatpush1.msra.mxu0 0.0
    %7262 = vmatprep.subr.mxu0 0.0
    %7263 = vmatpush1.msra.mxu0 0.0
    %7264 = vmatprep.subr.mxu0 0.0
    %7265 = vmatpush1.msra.mxu0 0.0
    %7266 = vmatprep.subr.mxu0 0.0
    %7267 = vmatpush1.msra.mxu0 0.0
    %7268 = vmatprep.subr.mxu0 0.0
    %7269 = vmatpush1.msra.mxu0 0.0
    %7270 = vmatprep.subr.mxu0 0.0
    %7271 = vmatpush1.msra.mxu0 0.0
    %7272 = vmatprep.subr.mxu0 0.0
    %7273 = vmatpush1.msra.mxu0 0.0
    %7274 = vmatprep.subr.mxu0 0.0
    %7275 = vmatpush1.msra.mxu0 0.0
    %7276 = vmatprep.mubr.f32.mxu0 0.0
    %7277 = vmatmul.mubr.f32.gmra.mrb[0].mxu0 %v7210
    %v7278 = vpop.f32.mrb[0].mxu0
    %v7279 = vadd.f32 0.0, %v7278
    %v7280 = vpop.f32.mrb[0].mxu0
    %7281 = vdwg.mxu0
    %v7283 = vsel %vm3571, %v4013, 0
    %7285 = vmatprep.subr.mxu0 0.0
    %7286 = vmatpush1.msra.mxu0 %v4188
    %7287 = vmatprep.subr.mxu0 0.0
    %7288 = vmatpush1.msra.mxu0 %v4189
    %7289 = vmatprep.subr.mxu0 0.0
    %7290 = vmatpush1.msra.mxu0 %v4190
    %7291 = vmatprep.subr.mxu0 0.0
    %7292 = vmatpush1.msra.mxu0 %v4191
    %7293 = vmatprep.subr.mxu0 0.0
    %7294 = vmatpush1.msra.mxu0 0.0
    %7295 = vmatprep.subr.mxu0 0.0
    %7296 = vmatpush1.msra.mxu0 0.0
    %7297 = vmatprep.subr.mxu0 0.0
    %7298 = vmatpush1.msra.mxu0 0.0
    %7299 = vmatprep.subr.mxu0 0.0
    %7300 = vmatpush1.msra.mxu0 0.0
    %7301 = vmatprep.subr.mxu0 0.0
    %7302 = vmatpush1.msra.mxu0 0.0
    %7303 = vmatprep.subr.mxu0 0.0
    %7304 = vmatpush1.msra.mxu0 0.0
    %7305 = vmatprep.subr.mxu0 0.0
    %7306 = vmatpush1.msra.mxu0 0.0
    %7307 = vmatprep.subr.mxu0 0.0
    %7308 = vmatpush1.msra.mxu0 0.0
    %7309 = vmatprep.subr.mxu0 0.0
    %7310 = vmatpush1.msra.mxu0 0.0
    %7311 = vmatprep.subr.mxu0 0.0
    %7312 = vmatpush1.msra.mxu0 0.0
    %7313 = vmatprep.subr.mxu0 0.0
    %7314 = vmatpush1.msra.mxu0 0.0
    %7315 = vmatprep.subr.mxu0 0.0
    %7316 = vmatpush1.msra.mxu0 0.0
    %7317 = vmatprep.subr.mxu0 0.0
    %7318 = vmatpush1.msra.mxu0 0.0
    %7319 = vmatprep.subr.mxu0 0.0
    %7320 = vmatpush1.msra.mxu0 0.0
    %7321 = vmatprep.subr.mxu0 0.0
    %7322 = vmatpush1.msra.mxu0 0.0
    %7323 = vmatprep.subr.mxu0 0.0
    %7324 = vmatpush1.msra.mxu0 0.0
    %7325 = vmatprep.subr.mxu0 0.0
    %7326 = vmatpush1.msra.mxu0 0.0
    %7327 = vmatprep.subr.mxu0 0.0
    %7328 = vmatpush1.msra.mxu0 0.0
    %7329 = vmatprep.subr.mxu0 0.0
    %7330 = vmatpush1.msra.mxu0 0.0
    %7331 = vmatprep.subr.mxu0 0.0
    %7332 = vmatpush1.msra.mxu0 0.0
    %7333 = vmatprep.subr.mxu0 0.0
    %7334 = vmatpush1.msra.mxu0 0.0
    %7335 = vmatprep.subr.mxu0 0.0
    %7336 = vmatpush1.msra.mxu0 0.0
    %7337 = vmatprep.subr.mxu0 0.0
    %7338 = vmatpush1.msra.mxu0 0.0
    %7339 = vmatprep.subr.mxu0 0.0
    %7340 = vmatpush1.msra.mxu0 0.0
    %7341 = vmatprep.subr.mxu0 0.0
    %7342 = vmatpush1.msra.mxu0 0.0
    %7343 = vmatprep.subr.mxu0 0.0
    %7344 = vmatpush1.msra.mxu0 0.0
    %7345 = vmatprep.subr.mxu0 0.0
    %7346 = vmatpush1.msra.mxu0 0.0
    %7347 = vmatprep.subr.mxu0 0.0
    %7348 = vmatpush1.msra.mxu0 0.0
    %7349 = vmatprep.mubr.f32.mxu0 0.0
    %7350 = vmatmul.mubr.f32.gmra.mrb[0].mxu0 %v7283
    %v7351 = vpop.f32.mrb[0].mxu0
    %v7352 = vadd.f32 0.0, %v7351
    %v7353 = vpop.f32.mrb[0].mxu0
    %7354 = vdwg.mxu0
    %v7356 = vsel %vm3571, %v4014, 0
    %7358 = vmatprep.subr.mxu0 0.0
    %7359 = vmatpush1.msra.mxu0 %v4192
    %7360 = vmatprep.subr.mxu0 0.0
    %7361 = vmatpush1.msra.mxu0 %v4193
    %7362 = vmatprep.subr.mxu0 0.0
    %7363 = vmatpush1.msra.mxu0 %v4194
    %7364 = vmatprep.subr.mxu0 0.0
    %7365 = vmatpush1.msra.mxu0 %v4195
    %7366 = vmatprep.subr.mxu0 0.0
    %7367 = vmatpush1.msra.mxu0 0.0
    %7368 = vmatprep.subr.mxu0 0.0
    %7369 = vmatpush1.msra.mxu0 0.0
    %7370 = vmatprep.subr.mxu0 0.0
    %7371 = vmatpush1.msra.mxu0 0.0
    %7372 = vmatprep.subr.mxu0 0.0
    %7373 = vmatpush1.msra.mxu0 0.0
    %7374 = vmatprep.subr.mxu0 0.0
    %7375 = vmatpush1.msra.mxu0 0.0
    %7376 = vmatprep.subr.mxu0 0.0
    %7377 = vmatpush1.msra.mxu0 0.0
    %7378 = vmatprep.subr.mxu0 0.0
    %7379 = vmatpush1.msra.mxu0 0.0
    %7380 = vmatprep.subr.mxu0 0.0
    %7381 = vmatpush1.msra.mxu0 0.0
    %7382 = vmatprep.subr.mxu0 0.0
    %7383 = vmatpush1.msra.mxu0 0.0
    %7384 = vmatprep.subr.mxu0 0.0
    %7385 = vmatpush1.msra.mxu0 0.0
    %7386 = vmatprep.subr.mxu0 0.0
    %7387 = vmatpush1.msra.mxu0 0.0
    %7388 = vmatprep.subr.mxu0 0.0
    %7389 = vmatpush1.msra.mxu0 0.0
    %7390 = vmatprep.subr.mxu0 0.0
    %7391 = vmatpush1.msra.mxu0 0.0
    %7392 = vmatprep.subr.mxu0 0.0
    %7393 = vmatpush1.msra.mxu0 0.0
    %7394 = vmatprep.subr.mxu0 0.0
    %7395 = vmatpush1.msra.mxu0 0.0
    %7396 = vmatprep.subr.mxu0 0.0
    %7397 = vmatpush1.msra.mxu0 0.0
    %7398 = vmatprep.subr.mxu0 0.0
    %7399 = vmatpush1.msra.mxu0 0.0
    %7400 = vmatprep.subr.mxu0 0.0
    %7401 = vmatpush1.msra.mxu0 0.0
    %7402 = vmatprep.subr.mxu0 0.0
    %7403 = vmatpush1.msra.mxu0 0.0
    %7404 = vmatprep.subr.mxu0 0.0
    %7405 = vmatpush1.msra.mxu0 0.0
    %7406 = vmatprep.subr.mxu0 0.0
    %7407 = vmatpush1.msra.mxu0 0.0
    %7408 = vmatprep.subr.mxu0 0.0
    %7409 = vmatpush1.msra.mxu0 0.0
    %7410 = vmatprep.subr.mxu0 0.0
    %7411 = vmatpush1.msra.mxu0 0.0
    %7412 = vmatprep.subr.mxu0 0.0
    %7413 = vmatpush1.msra.mxu0 0.0
    %7414 = vmatprep.subr.mxu0 0.0
    %7415 = vmatpush1.msra.mxu0 0.0
    %7416 = vmatprep.subr.mxu0 0.0
    %7417 = vmatpush1.msra.mxu0 0.0
    %7418 = vmatprep.subr.mxu0 0.0
    %7419 = vmatpush1.msra.mxu0 0.0
    %7420 = vmatprep.subr.mxu0 0.0
    %7421 = vmatpush1.msra.mxu0 0.0
    %7422 = vmatprep.mubr.f32.mxu0 0.0
    %7423 = vmatmul.mubr.f32.gmra.mrb[0].mxu0 %v7356
    %v7424 = vpop.f32.mrb[0].mxu0
    %v7425 = vadd.f32 0.0, %v7424
    %v7426 = vpop.f32.mrb[0].mxu0
    %7427 = vdwg.mxu0
    %v7429 = vsel %vm3571, %v4015, 0
    %7431 = vmatprep.subr.mxu0 0.0
    %7432 = vmatpush1.msra.mxu0 %v4196
    %7433 = vmatprep.subr.mxu0 0.0
    %7434 = vmatpush1.msra.mxu0 %v4197
    %7435 = vmatprep.subr.mxu0 0.0
    %7436 = vmatpush1.msra.mxu0 %v4198
    %7437 = vmatprep.subr.mxu0 0.0
    %7438 = vmatpush1.msra.mxu0 %v4199
    %7439 = vmatprep.subr.mxu0 0.0
    %7440 = vmatpush1.msra.mxu0 0.0
    %7441 = vmatprep.subr.mxu0 0.0
    %7442 = vmatpush1.msra.mxu0 0.0
    %7443 = vmatprep.subr.mxu0 0.0
    %7444 = vmatpush1.msra.mxu0 0.0
    %7445 = vmatprep.subr.mxu0 0.0
    %7446 = vmatpush1.msra.mxu0 0.0
    %7447 = vmatprep.subr.mxu0 0.0
    %7448 = vmatpush1.msra.mxu0 0.0
    %7449 = vmatprep.subr.mxu0 0.0
    %7450 = vmatpush1.msra.mxu0 0.0
    %7451 = vmatprep.subr.mxu0 0.0
    %7452 = vmatpush1.msra.mxu0 0.0
    %7453 = vmatprep.subr.mxu0 0.0
    %7454 = vmatpush1.msra.mxu0 0.0
    %7455 = vmatprep.subr.mxu0 0.0
    %7456 = vmatpush1.msra.mxu0 0.0
    %7457 = vmatprep.subr.mxu0 0.0
    %7458 = vmatpush1.msra.mxu0 0.0
    %7459 = vmatprep.subr.mxu0 0.0
    %7460 = vmatpush1.msra.mxu0 0.0
    %7461 = vmatprep.subr.mxu0 0.0
    %7462 = vmatpush1.msra.mxu0 0.0
    %7463 = vmatprep.subr.mxu0 0.0
    %7464 = vmatpush1.msra.mxu0 0.0
    %7465 = vmatprep.subr.mxu0 0.0
    %7466 = vmatpush1.msra.mxu0 0.0
    %7467 = vmatprep.subr.mxu0 0.0
    %7468 = vmatpush1.msra.mxu0 0.0
    %7469 = vmatprep.subr.mxu0 0.0
    %7470 = vmatpush1.msra.mxu0 0.0
    %7471 = vmatprep.subr.mxu0 0.0
    %7472 = vmatpush1.msra.mxu0 0.0
    %7473 = vmatprep.subr.mxu0 0.0
    %7474 = vmatpush1.msra.mxu0 0.0
    %7475 = vmatprep.subr.mxu0 0.0
    %7476 = vmatpush1.msra.mxu0 0.0
    %7477 = vmatprep.subr.mxu0 0.0
    %7478 = vmatpush1.msra.mxu0 0.0
    %7479 = vmatprep.subr.mxu0 0.0
    %7480 = vmatpush1.msra.mxu0 0.0
    %7481 = vmatprep.subr.mxu0 0.0
    %7482 = vmatpush1.msra.mxu0 0.0
    %7483 = vmatprep.subr.mxu0 0.0
    %7484 = vmatpush1.msra.mxu0 0.0
    %7485 = vmatprep.subr.mxu0 0.0
    %7486 = vmatpush1.msra.mxu0 0.0
    %7487 = vmatprep.subr.mxu0 0.0
    %7488 = vmatpush1.msra.mxu0 0.0
    %7489 = vmatprep.subr.mxu0 0.0
    %7490 = vmatpush1.msra.mxu0 0.0
    %7491 = vmatprep.subr.mxu0 0.0
    %7492 = vmatpush1.msra.mxu0 0.0
    %7493 = vmatprep.subr.mxu0 0.0
    %7494 = vmatpush1.msra.mxu0 0.0
    %7495 = vmatprep.mubr.f32.mxu0 0.0
    %7496 = vmatmul.mubr.f32.gmra.mrb[0].mxu0 %v7429
    %v7497 = vpop.f32.mrb[0].mxu0
    %v7498 = vadd.f32 0.0, %v7497
    %v7499 = vpop.f32.mrb[0].mxu0
    %7500 = vdwg.mxu0
    %v7502 = vsel %vm3571, %v4016, 0
    %7504 = vmatprep.subr.mxu0 0.0
    %7505 = vmatpush1.msra.mxu0 %v4200
    %7506 = vmatprep.subr.mxu0 0.0
    %7507 = vmatpush1.msra.mxu0 %v4201
    %7508 = vmatprep.subr.mxu0 0.0
    %7509 = vmatpush1.msra.mxu0 %v4202
    %7510 = vmatprep.subr.mxu0 0.0
    %7511 = vmatpush1.msra.mxu0 %v4203
    %7512 = vmatprep.subr.mxu0 0.0
    %7513 = vmatpush1.msra.mxu0 0.0
    %7514 = vmatprep.subr.mxu0 0.0
    %7515 = vmatpush1.msra.mxu0 0.0
    %7516 = vmatprep.subr.mxu0 0.0
    %7517 = vmatpush1.msra.mxu0 0.0
    %7518 = vmatprep.subr.mxu0 0.0
    %7519 = vmatpush1.msra.mxu0 0.0
    %7520 = vmatprep.subr.mxu0 0.0
    %7521 = vmatpush1.msra.mxu0 0.0
    %7522 = vmatprep.subr.mxu0 0.0
    %7523 = vmatpush1.msra.mxu0 0.0
    %7524 = vmatprep.subr.mxu0 0.0
    %7525 = vmatpush1.msra.mxu0 0.0
    %7526 = vmatprep.subr.mxu0 0.0
    %7527 = vmatpush1.msra.mxu0 0.0
    %7528 = vmatprep.subr.mxu0 0.0
    %7529 = vmatpush1.msra.mxu0 0.0
    %7530 = vmatprep.subr.mxu0 0.0
    %7531 = vmatpush1.msra.mxu0 0.0
    %7532 = vmatprep.subr.mxu0 0.0
    %7533 = vmatpush1.msra.mxu0 0.0
    %7534 = vmatprep.subr.mxu0 0.0
    %7535 = vmatpush1.msra.mxu0 0.0
    %7536 = vmatprep.subr.mxu0 0.0
    %7537 = vmatpush1.msra.mxu0 0.0
    %7538 = vmatprep.subr.mxu0 0.0
    %7539 = vmatpush1.msra.mxu0 0.0
    %7540 = vmatprep.subr.mxu0 0.0
    %7541 = vmatpush1.msra.mxu0 0.0
    %7542 = vmatprep.subr.mxu0 0.0
    %7543 = vmatpush1.msra.mxu0 0.0
    %7544 = vmatprep.subr.mxu0 0.0
    %7545 = vmatpush1.msra.mxu0 0.0
    %7546 = vmatprep.subr.mxu0 0.0
    %7547 = vmatpush1.msra.mxu0 0.0
    %7548 = vmatprep.subr.mxu0 0.0
    %7549 = vmatpush1.msra.mxu0 0.0
    %7550 = vmatprep.subr.mxu0 0.0
    %7551 = vmatpush1.msra.mxu0 0.0
    %7552 = vmatprep.subr.mxu0 0.0
    %7553 = vmatpush1.msra.mxu0 0.0
    %7554 = vmatprep.subr.mxu0 0.0
    %7555 = vmatpush1.msra.mxu0 0.0
    %7556 = vmatprep.subr.mxu0 0.0
    %7557 = vmatpush1.msra.mxu0 0.0
    %7558 = vmatprep.subr.mxu0 0.0
    %7559 = vmatpush1.msra.mxu0 0.0
    %7560 = vmatprep.subr.mxu0 0.0
    %7561 = vmatpush1.msra.mxu0 0.0
    %7562 = vmatprep.subr.mxu0 0.0
    %7563 = vmatpush1.msra.mxu0 0.0
    %7564 = vmatprep.subr.mxu0 0.0
    %7565 = vmatpush1.msra.mxu0 0.0
    %7566 = vmatprep.subr.mxu0 0.0
    %7567 = vmatpush1.msra.mxu0 0.0
    %7568 = vmatprep.mubr.f32.mxu0 0.0
    %7569 = vmatmul.mubr.f32.gmra.mrb[0].mxu0 %v7502
    %v7570 = vpop.f32.mrb[0].mxu0
    %v7571 = vadd.f32 0.0, %v7570
    %v7572 = vpop.f32.mrb[0].mxu0
    %7573 = vdwg.mxu0
    %v7575 = vsel %vm3571, %v4017, 0
    %7577 = vmatprep.subr.mxu0 0.0
    %7578 = vmatpush1.msra.mxu0 %v4204
    %7579 = vmatprep.subr.mxu0 0.0
    %7580 = vmatpush1.msra.mxu0 %v4205
    %7581 = vmatprep.subr.mxu0 0.0
    %7582 = vmatpush1.msra.mxu0 %v4206
    %7583 = vmatprep.subr.mxu0 0.0
    %7584 = vmatpush1.msra.mxu0 %v4207
    %7585 = vmatprep.subr.mxu0 0.0
    %7586 = vmatpush1.msra.mxu0 0.0
    %7587 = vmatprep.subr.mxu0 0.0
    %7588 = vmatpush1.msra.mxu0 0.0
    %7589 = vmatprep.subr.mxu0 0.0
    %7590 = vmatpush1.msra.mxu0 0.0
    %7591 = vmatprep.subr.mxu0 0.0
    %7592 = vmatpush1.msra.mxu0 0.0
    %7593 = vmatprep.subr.mxu0 0.0
    %7594 = vmatpush1.msra.mxu0 0.0
    %7595 = vmatprep.subr.mxu0 0.0
    %7596 = vmatpush1.msra.mxu0 0.0
    %7597 = vmatprep.subr.mxu0 0.0
    %7598 = vmatpush1.msra.mxu0 0.0
    %7599 = vmatprep.subr.mxu0 0.0
    %7600 = vmatpush1.msra.mxu0 0.0
    %7601 = vmatprep.subr.mxu0 0.0
    %7602 = vmatpush1.msra.mxu0 0.0
    %7603 = vmatprep.subr.mxu0 0.0
    %7604 = vmatpush1.msra.mxu0 0.0
    %7605 = vmatprep.subr.mxu0 0.0
    %7606 = vmatpush1.msra.mxu0 0.0
    %7607 = vmatprep.subr.mxu0 0.0
    %7608 = vmatpush1.msra.mxu0 0.0
    %7609 = vmatprep.subr.mxu0 0.0
    %7610 = vmatpush1.msra.mxu0 0.0
    %7611 = vmatprep.subr.mxu0 0.0
    %7612 = vmatpush1.msra.mxu0 0.0
    %7613 = vmatprep.subr.mxu0 0.0
    %7614 = vmatpush1.msra.mxu0 0.0
    %7615 = vmatprep.subr.mxu0 0.0
    %7616 = vmatpush1.msra.mxu0 0.0
    %7617 = vmatprep.subr.mxu0 0.0
    %7618 = vmatpush1.msra.mxu0 0.0
    %7619 = vmatprep.subr.mxu0 0.0
    %7620 = vmatpush1.msra.mxu0 0.0
    %7621 = vmatprep.subr.mxu0 0.0
    %7622 = vmatpush1.msra.mxu0 0.0
    %7623 = vmatprep.subr.mxu0 0.0
    %7624 = vmatpush1.msra.mxu0 0.0
    %7625 = vmatprep.subr.mxu0 0.0
    %7626 = vmatpush1.msra.mxu0 0.0
    %7627 = vmatprep.subr.mxu0 0.0
    %7628 = vmatpush1.msra.mxu0 0.0
    %7629 = vmatprep.subr.mxu0 0.0
    %7630 = vmatpush1.msra.mxu0 0.0
    %7631 = vmatprep.subr.mxu0 0.0
    %7632 = vmatpush1.msra.mxu0 0.0
    %7633 = vmatprep.subr.mxu0 0.0
    %7634 = vmatpush1.msra.mxu0 0.0
    %7635 = vmatprep.subr.mxu0 0.0
    %7636 = vmatpush1.msra.mxu0 0.0
    %7637 = vmatprep.subr.mxu0 0.0
    %7638 = vmatpush1.msra.mxu0 0.0
    %7639 = vmatprep.subr.mxu0 0.0
    %7640 = vmatpush1.msra.mxu0 0.0
    %7641 = vmatprep.mubr.f32.mxu0 0.0
    %7642 = vmatmul.mubr.f32.gmra.mrb[0].mxu0 %v7575
    %v7643 = vpop.f32.mrb[0].mxu0
    %v7644 = vadd.f32 0.0, %v7643
    %v7645 = vpop.f32.mrb[0].mxu0
    %7646 = vdwg.mxu0
    %v7648 = vsel %vm3571, %v4018, 0
    %7650 = vmatprep.subr.mxu0 0.0
    %7651 = vmatpush1.msra.mxu0 %v4208
    %7652 = vmatprep.subr.mxu0 0.0
    %7653 = vmatpush1.msra.mxu0 %v4209
    %7654 = vmatprep.subr.mxu0 0.0
    %7655 = vmatpush1.msra.mxu0 %v4210
    %7656 = vmatprep.subr.mxu0 0.0
    %7657 = vmatpush1.msra.mxu0 %v4211
    %7658 = vmatprep.subr.mxu0 0.0
    %7659 = vmatpush1.msra.mxu0 0.0
    %7660 = vmatprep.subr.mxu0 0.0
    %7661 = vmatpush1.msra.mxu0 0.0
    %7662 = vmatprep.subr.mxu0 0.0
    %7663 = vmatpush1.msra.mxu0 0.0
    %7664 = vmatprep.subr.mxu0 0.0
    %7665 = vmatpush1.msra.mxu0 0.0
    %7666 = vmatprep.subr.mxu0 0.0
    %7667 = vmatpush1.msra.mxu0 0.0
    %7668 = vmatprep.subr.mxu0 0.0
    %7669 = vmatpush1.msra.mxu0 0.0
    %7670 = vmatprep.subr.mxu0 0.0
    %7671 = vmatpush1.msra.mxu0 0.0
    %7672 = vmatprep.subr.mxu0 0.0
    %7673 = vmatpush1.msra.mxu0 0.0
    %7674 = vmatprep.subr.mxu0 0.0
    %7675 = vmatpush1.msra.mxu0 0.0
    %7676 = vmatprep.subr.mxu0 0.0
    %7677 = vmatpush1.msra.mxu0 0.0
    %7678 = vmatprep.subr.mxu0 0.0
    %7679 = vmatpush1.msra.mxu0 0.0
    %7680 = vmatprep.subr.mxu0 0.0
    %7681 = vmatpush1.msra.mxu0 0.0
    %7682 = vmatprep.subr.mxu0 0.0
    %7683 = vmatpush1.msra.mxu0 0.0
    %7684 = vmatprep.subr.mxu0 0.0
    %7685 = vmatpush1.msra.mxu0 0.0
    %7686 = vmatprep.subr.mxu0 0.0
    %7687 = vmatpush1.msra.mxu0 0.0
    %7688 = vmatprep.subr.mxu0 0.0
    %7689 = vmatpush1.msra.mxu0 0.0
    %7690 = vmatprep.subr.mxu0 0.0
    %7691 = vmatpush1.msra.mxu0 0.0
    %7692 = vmatprep.subr.mxu0 0.0
    %7693 = vmatpush1.msra.mxu0 0.0
    %7694 = vmatprep.subr.mxu0 0.0
    %7695 = vmatpush1.msra.mxu0 0.0
    %7696 = vmatprep.subr.mxu0 0.0
    %7697 = vmatpush1.msra.mxu0 0.0
    %7698 = vmatprep.subr.mxu0 0.0
    %7699 = vmatpush1.msra.mxu0 0.0
    %7700 = vmatprep.subr.mxu0 0.0
    %7701 = vmatpush1.msra.mxu0 0.0
    %7702 = vmatprep.subr.mxu0 0.0
    %7703 = vmatpush1.msra.mxu0 0.0
    %7704 = vmatprep.subr.mxu0 0.0
    %7705 = vmatpush1.msra.mxu0 0.0
    %7706 = vmatprep.subr.mxu0 0.0
    %7707 = vmatpush1.msra.mxu0 0.0
    %7708 = vmatprep.subr.mxu0 0.0
    %7709 = vmatpush1.msra.mxu0 0.0
    %7710 = vmatprep.subr.mxu0 0.0
    %7711 = vmatpush1.msra.mxu0 0.0
    %7712 = vmatprep.subr.mxu0 0.0
    %7713 = vmatpush1.msra.mxu0 0.0
    %7714 = vmatprep.mubr.f32.mxu0 0.0
    %7715 = vmatmul.mubr.f32.gmra.mrb[0].mxu0 %v7648
    %v7716 = vpop.f32.mrb[0].mxu0
    %v7717 = vadd.f32 0.0, %v7716
    %v7718 = vpop.f32.mrb[0].mxu0
    %7719 = vdwg.mxu0
    %v7721 = vsel %vm3571, %v4019, 0
    %7723 = vmatprep.subr.mxu0 0.0
    %7724 = vmatpush1.msra.mxu0 %v4212
    %7725 = vmatprep.subr.mxu0 0.0
    %7726 = vmatpush1.msra.mxu0 %v4213
    %7727 = vmatprep.subr.mxu0 0.0
    %7728 = vmatpush1.msra.mxu0 %v4214
    %7729 = vmatprep.subr.mxu0 0.0
    %7730 = vmatpush1.msra.mxu0 %v4215
    %7731 = vmatprep.subr.mxu0 0.0
    %7732 = vmatpush1.msra.mxu0 0.0
    %7733 = vmatprep.subr.mxu0 0.0
    %7734 = vmatpush1.msra.mxu0 0.0
    %7735 = vmatprep.subr.mxu0 0.0
    %7736 = vmatpush1.msra.mxu0 0.0
    %7737 = vmatprep.subr.mxu0 0.0
    %7738 = vmatpush1.msra.mxu0 0.0
    %7739 = vmatprep.subr.mxu0 0.0
    %7740 = vmatpush1.msra.mxu0 0.0
    %7741 = vmatprep.subr.mxu0 0.0
    %7742 = vmatpush1.msra.mxu0 0.0
    %7743 = vmatprep.subr.mxu0 0.0
    %7744 = vmatpush1.msra.mxu0 0.0
    %7745 = vmatprep.subr.mxu0 0.0
    %7746 = vmatpush1.msra.mxu0 0.0
    %7747 = vmatprep.subr.mxu0 0.0
    %7748 = vmatpush1.msra.mxu0 0.0
    %7749 = vmatprep.subr.mxu0 0.0
    %7750 = vmatpush1.msra.mxu0 0.0
    %7751 = vmatprep.subr.mxu0 0.0
    %7752 = vmatpush1.msra.mxu0 0.0
    %7753 = vmatprep.subr.mxu0 0.0
    %7754 = vmatpush1.msra.mxu0 0.0
    %7755 = vmatprep.subr.mxu0 0.0
    %7756 = vmatpush1.msra.mxu0 0.0
    %7757 = vmatprep.subr.mxu0 0.0
    %7758 = vmatpush1.msra.mxu0 0.0
    %7759 = vmatprep.subr.mxu0 0.0
    %7760 = vmatpush1.msra.mxu0 0.0
    %7761 = vmatprep.subr.mxu0 0.0
    %7762 = vmatpush1.msra.mxu0 0.0
    %7763 = vmatprep.subr.mxu0 0.0
    %7764 = vmatpush1.msra.mxu0 0.0
    %7765 = vmatprep.subr.mxu0 0.0
    %7766 = vmatpush1.msra.mxu0 0.0
    %7767 = vmatprep.subr.mxu0 0.0
    %7768 = vmatpush1.msra.mxu0 0.0
    %7769 = vmatprep.subr.mxu0 0.0
    %7770 = vmatpush1.msra.mxu0 0.0
    %7771 = vmatprep.subr.mxu0 0.0
    %7772 = vmatpush1.msra.mxu0 0.0
    %7773 = vmatprep.subr.mxu0 0.0
    %7774 = vmatpush1.msra.mxu0 0.0
    %7775 = vmatprep.subr.mxu0 0.0
    %7776 = vmatpush1.msra.mxu0 0.0
    %7777 = vmatprep.subr.mxu0 0.0
    %7778 = vmatpush1.msra.mxu0 0.0
    %7779 = vmatprep.subr.mxu0 0.0
    %7780 = vmatpush1.msra.mxu0 0.0
    %7781 = vmatprep.subr.mxu0 0.0
    %7782 = vmatpush1.msra.mxu0 0.0
    %7783 = vmatprep.subr.mxu0 0.0
    %7784 = vmatpush1.msra.mxu0 0.0
    %7785 = vmatprep.subr.mxu0 0.0
    %7786 = vmatpush1.msra.mxu0 0.0
    %7787 = vmatprep.mubr.f32.mxu0 0.0
    %7788 = vmatmul.mubr.f32.gmra.mrb[0].mxu0 %v7721
    %v7789 = vpop.f32.mrb[0].mxu0
    %v7790 = vadd.f32 0.0, %v7789
    %v7791 = vpop.f32.mrb[0].mxu0
    %7792 = vdwg.mxu0
    %vm7793 = vcmask 80896
    %v7794 = vsel %vm7793, %v4286, 0.0
    %v7795 = vsel %vm7793, %v4359, 0.0
    %v7796 = vadd.f32 %v7794, %v7795
    %v7797 = vsel %vm7793, %v4432, 0.0
    %v7798 = vadd.f32 %v7796, %v7797
    %v7799 = vsel %vm7793, %v4505, 0.0
    %v7800 = vadd.f32 %v7798, %v7799
    %v7801 = vsel %vm7793, %v4578, 0.0
    %v7802 = vadd.f32 %v7800, %v7801
    %v7803 = vsel %vm7793, %v4651, 0.0
    %v7804 = vadd.f32 %v7802, %v7803
    %v7805 = vsel %vm7793, %v4724, 0.0
    %v7806 = vadd.f32 %v7804, %v7805
    %v7807 = vsel %vm7793, %v4797, 0.0
    %v7808 = vadd.f32 %v7806, %v7807
    %v7809 = vsel %vm7793, %v4870, 0.0
    %v7810 = vadd.f32 %v7808, %v7809
    %v7811 = vsel %vm7793, %v4943, 0.0
    %v7812 = vadd.f32 %v7810, %v7811
    %v7813 = vsel %vm7793, %v5016, 0.0
    %v7814 = vadd.f32 %v7812, %v7813
    %v7815 = vsel %vm7793, %v5089, 0.0
    %v7816 = vadd.f32 %v7814, %v7815
    %v7817 = vsel %vm7793, %v5162, 0.0
    %v7818 = vadd.f32 %v7816, %v7817
    %v7819 = vsel %vm7793, %v5235, 0.0
    %v7820 = vadd.f32 %v7818, %v7819
    %v7821 = vsel %vm7793, %v5308, 0.0
    %v7822 = vadd.f32 %v7820, %v7821
    %v7823 = vsel %vm7793, %v5381, 0.0
    %v7824 = vadd.f32 %v7822, %v7823
    %v7825 = vsel %vm7793, %v5454, 0.0
    %v7826 = vadd.f32 %v7824, %v7825
    %v7827 = vsel %vm7793, %v5527, 0.0
    %v7828 = vadd.f32 %v7826, %v7827
    %v7829 = vsel %vm7793, %v5600, 0.0
    %v7830 = vadd.f32 %v7828, %v7829
    %v7831 = vsel %vm7793, %v5673, 0.0
    %v7832 = vadd.f32 %v7830, %v7831
    %v7833 = vsel %vm7793, %v5746, 0.0
    %v7834 = vadd.f32 %v7832, %v7833
    %v7835 = vsel %vm7793, %v5819, 0.0
    %v7836 = vadd.f32 %v7834, %v7835
    %v7837 = vsel %vm7793, %v5892, 0.0
    %v7838 = vadd.f32 %v7836, %v7837
    %v7839 = vsel %vm7793, %v5965, 0.0
    %v7840 = vadd.f32 %v7838, %v7839
    %v7841 = vsel %vm7793, %v6038, 0.0
    %v7842 = vadd.f32 %v7840, %v7841
    %v7843 = vsel %vm7793, %v6111, 0.0
    %v7844 = vadd.f32 %v7842, %v7843
    %v7845 = vsel %vm7793, %v6184, 0.0
    %v7846 = vadd.f32 %v7844, %v7845
    %v7847 = vsel %vm7793, %v6257, 0.0
    %v7848 = vadd.f32 %v7846, %v7847
    %v7849 = vsel %vm7793, %v6330, 0.0
    %v7850 = vadd.f32 %v7848, %v7849
    %v7851 = vsel %vm7793, %v6403, 0.0
    %v7852 = vadd.f32 %v7850, %v7851
    %v7853 = vsel %vm7793, %v6476, 0.0
    %v7854 = vadd.f32 %v7852, %v7853
    %v7855 = vsel %vm7793, %v6549, 0.0
    %v7856 = vadd.f32 %v7854, %v7855
    %v7857 = vsel %vm7793, %v6622, 0.0
    %v7858 = vadd.f32 %v7856, %v7857
    %v7859 = vsel %vm7793, %v6695, 0.0
    %v7860 = vadd.f32 %v7858, %v7859
    %v7861 = vsel %vm7793, %v6768, 0.0
    %v7862 = vadd.f32 %v7860, %v7861
    %v7863 = vsel %vm7793, %v6841, 0.0
    %v7864 = vadd.f32 %v7862, %v7863
    %v7865 = vsel %vm7793, %v6914, 0.0
    %v7866 = vadd.f32 %v7864, %v7865
    %v7867 = vsel %vm7793, %v6987, 0.0
    %v7868 = vadd.f32 %v7866, %v7867
    %v7869 = vsel %vm7793, %v7060, 0.0
    %v7870 = vadd.f32 %v7868, %v7869
    %v7871 = vsel %vm7793, %v7133, 0.0
    %v7872 = vadd.f32 %v7870, %v7871
    %v7873 = vsel %vm7793, %v7206, 0.0
    %v7874 = vadd.f32 %v7872, %v7873
    %v7875 = vsel %vm7793, %v7279, 0.0
    %v7876 = vadd.f32 %v7874, %v7875
    %v7877 = vsel %vm7793, %v7352, 0.0
    %v7878 = vadd.f32 %v7876, %v7877
    %v7879 = vsel %vm7793, %v7425, 0.0
    %v7880 = vadd.f32 %v7878, %v7879
    %v7881 = vsel %vm7793, %v7498, 0.0
    %v7882 = vadd.f32 %v7880, %v7881
    %v7883 = vsel %vm7793, %v7571, 0.0
    %v7884 = vadd.f32 %v7882, %v7883
    %v7885 = vsel %vm7793, %v7644, 0.0
    %v7886 = vadd.f32 %v7884, %v7885
    %v7887 = vsel %vm7793, %v7717, 0.0
    %v7888 = vadd.f32 %v7886, %v7887
    %v7889 = vsel %vm7793, %v7790, 0.0
    %v7890 = vadd.f32 %v7888, %v7889
    %v7891 = vld [vmem:[#allocation7] sm:$0x1]
    %v7893 = vlaneseq
    %v7894 = vshrl.u32 %v7893, 7
    %v7895 = vsub.s32 0, %v7894
    %v7896 = vrot.slane %v7891, %v7895
    %v7898 = vadd.f32 %v7890, %v7896
    %7899 = vst.msk [vmem:[#allocation8] sm:$0xff] %vm7793, %v7898
    // Predicated region
    $region34: #{tpu_custom_call.1} parent=1 // pred_check
      _
    $region35: #{tpu_custom_call.1} parent=1 // pred_check_branch
      %7901 = sbr.rel (0) target = $region37
    $region36: #{tpu_custom_call.1} parent=1 // pred_region
      %s7903 = ssub.s32 128, 128
      %7904 = vsyncadd [#allocation4], %s7903
      %s7906 = sshll.u32 [#allocation8], 4
      %s7907 = int_to_ptr.vmem [resolvable:$true] %s7906
      %7909 = dma.vmem_to_hbm [thread:$0]  %s7907, 128, %s5, [#allocation4]
    $region37: #{tpu_custom_call.1} parent=1 // pred_fallthru
      _
    // Predicated region
    $region38: #{tpu_custom_call.1} parent=1 // pred_check
      _
    $region39: #{tpu_custom_call.1} parent=1 // pred_check_branch
      %7911 = sbr.rel (0) target = $region41
    $region40: #{tpu_custom_call.1} parent=1 // pred_region
      %7912 = dma.done [#allocation4], 128
    $region41: #{tpu_custom_call.1} parent=1 // pred_fallthru
      _
    %7913 = vsyncpa [#allocation3], 1
    %7914 = vsyncpa [#allocation6], 1
    %7915 = vsyncpa [#allocation4], 1

</llo_original>
